<compile_context>
chip_gen: v5e
topology: v5e:2x2
jax: 0.10.0
libtpu: 0.0.40
codegen_flags: <defaults>
</compile_context>

<pallas_src>
import functools

import jax
import jax.numpy as jnp
from jax.experimental import pallas as pl
from jax.experimental.pallas import tpu as pltpu

LEAK = 0.1          # LeakyReLU slope of the synthesized critic blocks.
HIDDEN = 32         # critic channel width.
W_LAMBDA = 10.0     # gradient-penalty weight (unused: see TODO in forward).


# ---------------------------------------------------------------------------
# Pallas kernels
# ---------------------------------------------------------------------------
def _conv3x3_s1_kernel(x_ref, w_ref, b_ref, o_ref, *, H, Wc, cin, groups):
    """Fused [optional avg-pool] + 3x3 stride-1 conv + bias + LeakyReLU.

    x_ref : (1, H+2, Wc+2, groups*cin) bf16, zero-padded input (groups > 1:
            space-to-depth lane groups averaged first == 2x2 / 4x4 avg pool
            fused into this kernel, pure VPU work).
    w_ref : (3, 3, cin, C1) bf16   (VMEM-resident across grid steps)
    b_ref : (1, C1) f32
    o_ref : (1, H, Wc, C1) bf16
    """
    xg = x_ref[0]                                     # (H+2, Wc+2, groups*cin)
    if groups > 1:
        pooled = xg[..., 0:cin].astype(jnp.float32)
        for g in range(1, groups):
            pooled = pooled + xg[..., g * cin:(g + 1) * cin].astype(jnp.float32)
        xp = (pooled * (1.0 / groups)).astype(jnp.bfloat16)
    else:
        xp = xg                                       # (H+2, Wc+2, cin)

    C1 = w_ref.shape[-1]
    acc = jnp.zeros((H * Wc, C1), jnp.float32)
    # In-kernel patch extraction: 9 shifted slices of the VMEM-resident tile,
    # each a (H*Wc, cin) x (cin, C1) bf16 MXU matmul accumulated in f32.  This
    # replaces the previous HBM-materialised 9x im2col.
    for dy in range(3):
        for dx in range(3):
            xs = xp[dy:dy + H, dx:dx + Wc, :]         # (H, Wc, cin)
            acc = acc + jnp.dot(xs.reshape(H * Wc, cin), w_ref[dy, dx],
                                preferred_element_type=jnp.float32)
    y = acc + b_ref[...]                              # (H*Wc, C1) + (1, C1)
    y = jnp.where(y >= 0.0, y, LEAK * y)
    o_ref[0] = y.reshape(H, Wc, C1).astype(o_ref.dtype)


def _conv_s2_gap_head_kernel(x_ref, w_ref, b_ref, wl_ref, bl_ref, o_ref):
    """3x3 stride-2 conv (single matmul over pre-gathered patches) + bias +
    LeakyReLU, with the global-average-pool + linear head fused into the
    epilogue so h2 never leaves VMEM.

    x_ref  : (1, Ho*Wo, 9*C1) bf16 patch matrix for one batch element
    w_ref  : (9*C1, C1) bf16    (VMEM-resident)
    b_ref  : (1, C1) f32
    wl_ref : (1, C1) f32  head weight
    bl_ref : (1, 1)  f32  head bias
    o_ref  : (1, 1, 128) f32 lane-dense score row
    """
    x = x_ref[0]                                               # (Mo, 9*C1)
    y = jnp.dot(x, w_ref[...], preferred_element_type=jnp.float32) + b_ref[...]
    y = jnp.where(y >= 0.0, y, LEAK * y)                       # (Mo, C1)
    pooled = jnp.mean(y, axis=0, keepdims=True)                # (1, C1)  GAP
    score = jnp.sum(pooled * wl_ref[...], axis=-1, keepdims=True) + bl_ref[...]
    o_ref[0] = jnp.broadcast_to(score, (1, o_ref.shape[-1]))   # already f32


# ---------------------------------------------------------------------------
# pallas_call wrappers
# ---------------------------------------------------------------------------
def _mosaic_params():
    # Batch grid axis is "parallel" -> sharded over v7x's 2 TensorCores (no-op
    # on single-TC v5e/v6e).  Explicit VMEM limit; per-step footprint < 1 MiB.
    return pltpu.CompilerParams(
        dimension_semantics=("parallel",),
        vmem_limit_bytes=32 * 1024 * 1024,
    )


def conv3x3_s1(xp, w, b, *, H, Wc, cin, groups):
    B = xp.shape[0]
    C1 = w.shape[-1]
    kern = functools.partial(_conv3x3_s1_kernel, H=H, Wc=Wc, cin=cin, groups=groups)
    return pl.pallas_call(
        kern,
        out_shape=jax.ShapeDtypeStruct((B, H, Wc, C1), jnp.bfloat16),
        grid=(B,),
        in_specs=[
            pl.BlockSpec((1, H + 2, Wc + 2, groups * cin), lambda i: (i, 0, 0, 0)),
            pl.BlockSpec((3, 3, cin, C1), lambda i: (0, 0, 0, 0)),   # resident
            pl.BlockSpec((1, C1), lambda i: (0, 0)),                 # resident
        ],
        out_specs=pl.BlockSpec((1, H, Wc, C1), lambda i: (i, 0, 0, 0)),
        compiler_params=_mosaic_params(),
    )(xp, w.astype(jnp.bfloat16), b.reshape(1, C1).astype(jnp.float32))


def conv_s2_gap_head(cols, w, b, wl, bl):
    B, Mo, K = cols.shape
    C1 = w.shape[-1]
    w2d = w.reshape(9 * w.shape[2], C1).astype(jnp.bfloat16)
    out = pl.pallas_call(
        _conv_s2_gap_head_kernel,
        out_shape=jax.ShapeDtypeStruct((B, 1, 128), jnp.float32),
        grid=(B,),
        in_specs=[
            pl.BlockSpec((1, Mo, K), lambda i: (i, 0, 0)),
            pl.BlockSpec((K, C1), lambda i: (0, 0)),                 # resident
            pl.BlockSpec((1, C1), lambda i: (0, 0)),
            pl.BlockSpec((1, C1), lambda i: (0, 0)),
            pl.BlockSpec((1, 1), lambda i: (0, 0)),
        ],
        out_specs=pl.BlockSpec((1, 1, 128), lambda i: (i, 0, 0)),
        compiler_params=_mosaic_params(),
    )(cols, w2d,
      b.reshape(1, C1).astype(jnp.float32),
      wl.reshape(1, C1).astype(jnp.float32),
      bl.reshape(1, 1).astype(jnp.float32))
    return out[:, 0, 0:1]                                            # (B, 1)


# ---------------------------------------------------------------------------
# JAX glue (layout prep only -- all cheap, fused under jit)
# ---------------------------------------------------------------------------
def _space_to_depth2(x):
    """(B, H, W, C) -> (B, H/2, W/2, 4*C); lane groups = the 2x2 sub-pixels."""
    B, H, W, C = x.shape
    x = x.reshape(B, H // 2, 2, W // 2, 2, C)
    x = jnp.transpose(x, (0, 1, 3, 2, 4, 5))
    return x.reshape(B, H // 2, W // 2, 4 * C)


def _pad_for_conv(x, Wc):
    """Zero-pad the 1-pixel conv halo plus extra zero columns on the right so
    the kernel computes Wc (multiple of 8) columns; the in-kernel
    (H, Wc, cin) -> (H*Wc, cin) flatten is then sublane-aligned."""
    B, H, W, C = x.shape
    x = jnp.pad(x, ((0, 0), (1, 1), (1, Wc + 1 - W), (0, 0)))
    return x.astype(jnp.bfloat16)


def _im2col_s2_pad1(x):
    """3x3 / stride-2 / pad-1 patch matrix: (B, H, W, C) -> (B, Ho*Wo, 9*C).
    Built under jit so it fuses with the producing conv output; ~2.25x
    expansion of the small h1 tensor only."""
    B, H, W, C = x.shape
    xp = jnp.pad(x, ((0, 0), (1, 1), (1, 1), (0, 0)))
    Ho = (H + 2 - 3) // 2 + 1
    Wo = (W + 2 - 3) // 2 + 1
    cols = []
    for dy in range(3):
        for dx in range(3):
            cols.append(xp[:, dy:dy + 2 * Ho - 1:2, dx:dx + 2 * Wo - 1:2, :])
    patches = jnp.concatenate(cols, axis=-1)                  # (B, Ho, Wo, 9C)
    return patches.reshape(B, Ho * Wo, 9 * C)


# ---------------------------------------------------------------------------
# Synthesized WGAN-GP critic + adversary forward
# ---------------------------------------------------------------------------
def make_critic_params(key, cin, hidden=HIDDEN):
    k1, k2, k3, k4, k5, k6 = jax.random.split(key, 6)
    return dict(
        w1=jax.random.normal(k1, (3, 3, cin, hidden), jnp.float32) * 0.1,
        b1=jax.random.normal(k2, (hidden,), jnp.float32) * 0.1,
        w2=jax.random.normal(k3, (3, 3, hidden, hidden), jnp.float32) * 0.1,
        b2=jax.random.normal(k4, (hidden,), jnp.float32) * 0.1,
        wl=jax.random.normal(k5, (hidden,), jnp.float32) * 0.1,
        bl=jax.random.normal(k6, (1,), jnp.float32) * 0.1,
    )


def _branch_score(x_scale, groups, p):
    """One critic branch on one scale.  x_scale: (B, Hs, Ws, groups*cin) f32;
    for groups > 1 the lane-group mean (done inside the conv1 kernel) equals
    the avg-pooled image, i.e. the pool is fused into the conv."""
    B, Hs, Ws, GC = x_scale.shape
    cin = GC // groups
    Wc = ((Ws + 7) // 8) * 8                 # sublane-aligned column count
    xp = _pad_for_conv(x_scale, Wc)          # (B, Hs+2, Wc+2, groups*cin) bf16
    h1 = conv3x3_s1(xp, p['w1'], p['b1'], H=Hs, Wc=Wc, cin=cin, groups=groups)
    h1 = h1[:, :, :Ws, :]                    # drop alignment-only extra columns
    cols = _im2col_s2_pad1(h1)               # (B, Ho*Wo, 9*hidden) bf16
    return conv_s2_gap_head(cols, p['w2'], p['b2'], p['wl'], p['bl'])   # (B,1)


def wgan_critic_score(x3_nchw, params):
    """Synthesized WganGpDiscriminator: multi-scale (1x, 1/2x, 1/4x) CNN critic,
    per-sample scores averaged over scales.  x3_nchw: (B, 3, H, W)."""
    img = jnp.transpose(x3_nchw, (0, 2, 3, 1)).astype(jnp.float32)   # NHWC
    s2d1 = _space_to_depth2(img)       # 1/2x scale (2x2 pool fused into conv1)
    s2d2 = _space_to_depth2(s2d1)      # 1/4x scale (fused single 4x4 pool)
    s_full = _branch_score(img, 1, params['c1'])
    s_half = _branch_score(s2d1, 4, params['c2'])
    s_quar = _branch_score(s2d2, 16, params['c3'])
    return (s_full + s_half + s_quar) / 3.0                           # (B, 1)


def wgan_gp_old_forward(for_gen, I_fake, params, I_real=None, w_lambda=W_LAMBDA):
    """Forward of ImageAdversarySimpleWganGpOLD (w_lambda = lambda_weight)."""
    if for_gen:
        return -1.0 * wgan_critic_score(I_fake[:, 0:3, :, :], params)
    loss_real = wgan_critic_score(I_real[:, 0:3, :, :], params)
    loss_fake = wgan_critic_score(I_fake[:, 0:3, :, :], params)
    # TODO(synk): calculate_gradient_penalty needs autograd of the critic w.r.t.
    # interpolated inputs; the Pallas kernels are not differentiated here, so
    # the gradient-penalty term is omitted (gradpen = 0).
    gradpen = 0.0
    return loss_fake - loss_real + w_lambda * gradpen


# ---------------------------------------------------------------------------
# Pure-JAX f32 reference (correctness check only)
# ---------------------------------------------------------------------------
def _ref_conv3x3(x, w, b, stride, act=True):
    y = jax.lax.conv_general_dilated(
        x, w, window_strides=(stride, stride), padding=((1, 1), (1, 1)),
        dimension_numbers=('NHWC', 'HWIO', 'NHWC'))
    y = y + b
    if act:
        y = jnp.where(y >= 0.0, y, LEAK * y)
    return y


def _ref_halver(x):
    B, H, W, C = x.shape
    return x.reshape(B, H // 2, 2, W // 2, 2, C).mean(axis=(2, 4))


def _ref_branch(x, p):
    h1 = _ref_conv3x3(x, p['w1'], p['b1'], 1)
    h2 = _ref_conv3x3(h1, p['w2'], p['b2'], 2)
    pooled = h2.mean(axis=(1, 2))
    return jnp.sum(pooled * p['wl'], axis=-1, keepdims=True) + p['bl']


def _ref_critic(x3_nchw, params):
    img = jnp.transpose(x3_nchw, (0, 2, 3, 1)).astype(jnp.float32)
    mini = _ref_halver(img)
    micro = _ref_halver(mini)
    return (_ref_branch(img, params['c1'])
            + _ref_branch(mini, params['c2'])
            + _ref_branch(micro, params['c3'])) / 3.0


def _ref_forward(for_gen, I_fake, params, I_real=None):
    if for_gen:
        return -1.0 * _ref_critic(I_fake[:, 0:3, :, :], params)
    return (_ref_critic(I_fake[:, 0:3, :, :], params)
            - _ref_critic(I_real[:, 0:3, :, :], params))


if __name__ == "__main__":
    key = jax.random.PRNGKey(0)
    kf, kr, k1, k2, k3 = jax.random.split(key, 5)
    # PyTorch-convention NCHW inputs; the module slices channels 0:3 itself.
    I_fake = jax.random.normal(kf, (2, 4, 16, 16), jnp.float32)
    I_real = jax.random.normal(kr, (2, 4, 16, 16), jnp.float32)
    params = dict(c1=make_critic_params(k1, 3),
                  c2=make_critic_params(k2, 3),
                  c3=make_critic_params(k3, 3))

    gen_loss_fn = jax.jit(lambda If: wgan_gp_old_forward(True, If, params))
    critic_loss_fn = jax.jit(
        lambda If, Ir: wgan_gp_old_forward(False, If, params, I_real=Ir))

    gen_loss = jax.block_until_ready(gen_loss_fn(I_fake))
    critic_loss = jax.block_until_ready(critic_loss_fn(I_fake, I_real))
    assert gen_loss.shape == (2, 1), gen_loss.shape
    assert critic_loss.shape == (2, 1), critic_loss.shape

    # Correctness vs. a pure-JAX f32 reference.  Matmul operands are bf16 with
    # f32 accumulation, so expect ~1e-2-level agreement (not 1e-4).
    ref_gen = _ref_forward(True, I_fake, params)
    ref_cri = _ref_forward(False, I_fake, params, I_real=I_real)
    assert jnp.allclose(gen_loss, ref_gen, atol=5e-2, rtol=5e-2), (gen_loss, ref_gen)
    assert jnp.allclose(critic_loss, ref_cri, atol=5e-2, rtol=5e-2), (critic_loss,
                                                                      ref_cri)

    print("KERNEL_OK")
</pallas_src>

<mosaic_0001>
module attributes {stable_mosaic.version = 11 : i64} {
  func.func @_conv3x3_s1_kernel(%arg0: i32, %arg1: memref<1x10x10x12xbf16, #tpu.memory_space<vmem>>, %arg2: memref<3x3x3x32xbf16, #tpu.memory_space<vmem>>, %arg3: memref<1x32xf32, #tpu.memory_space<vmem>>, %arg4: memref<1x8x8x32xbf16, #tpu.memory_space<vmem>>) attributes {dimension_semantics = [#tpu.dimension_semantics<parallel>], iteration_bounds = array<i64: 2>, scalar_prefetch = 0 : i64, scratch_operands = 0 : i64, tpu.core_type = #tpu.core_type<tc>, window_params = [{transform_indices = @transform_0, window_bounds = array<i64: 1, 10, 10, 12>}, {pipeline_mode = #tpu.pipeline_mode<synchronous>, transform_indices = @transform_1, window_bounds = array<i64: 3, 3, 3, 32>}, {pipeline_mode = #tpu.pipeline_mode<synchronous>, transform_indices = @transform_2, window_bounds = array<i64: 1, 32>}, {transform_indices = @transform_3, window_bounds = array<i64: 1, 8, 8, 32>}]} {
    %c0 = arith.constant 0 : index
    %c0_0 = arith.constant 0 : index
    %c0_1 = arith.constant 0 : index
    %c0_2 = arith.constant 0 : index
    %0 = vector.load %arg1[%c0, %c0_0, %c0_1, %c0_2] : memref<1x10x10x12xbf16, #tpu.memory_space<vmem>>, vector<1x10x10x12xbf16>
    %1 = vector.shape_cast %0 : vector<1x10x10x12xbf16> to vector<10x10x12xbf16>
    %2 = vector.extract_strided_slice %1 {offsets = [0, 0, 0], sizes = [10, 10, 3], strides = [1, 1, 1]} : vector<10x10x12xbf16> to vector<10x10x3xbf16>
    %3 = arith.extf %2 : vector<10x10x3xbf16> to vector<10x10x3xf32>
    %4 = vector.extract_strided_slice %1 {offsets = [0, 0, 3], sizes = [10, 10, 3], strides = [1, 1, 1]} : vector<10x10x12xbf16> to vector<10x10x3xbf16>
    %5 = arith.extf %4 : vector<10x10x3xbf16> to vector<10x10x3xf32>
    %6 = arith.addf %3, %5 : vector<10x10x3xf32>
    %7 = vector.extract_strided_slice %1 {offsets = [0, 0, 6], sizes = [10, 10, 3], strides = [1, 1, 1]} : vector<10x10x12xbf16> to vector<10x10x3xbf16>
    %8 = arith.extf %7 : vector<10x10x3xbf16> to vector<10x10x3xf32>
    %9 = arith.addf %6, %8 : vector<10x10x3xf32>
    %10 = vector.extract_strided_slice %1 {offsets = [0, 0, 9], sizes = [10, 10, 3], strides = [1, 1, 1]} : vector<10x10x12xbf16> to vector<10x10x3xbf16>
    %11 = arith.extf %10 : vector<10x10x3xbf16> to vector<10x10x3xf32>
    %12 = arith.addf %9, %11 : vector<10x10x3xf32>
    %cst = arith.constant 2.500000e-01 : f32
    %13 = vector.broadcast %cst : f32 to vector<10x10x3xf32>
    %14 = arith.mulf %12, %13 : vector<10x10x3xf32>
    %15 = arith.truncf %14 : vector<10x10x3xf32> to vector<10x10x3xbf16>
    %cst_3 = arith.constant 0.000000e+00 : f32
    %16 = vector.broadcast %cst_3 : f32 to vector<64x32xf32>
    %17 = vector.extract_strided_slice %15 {offsets = [0, 0, 0], sizes = [8, 8, 3], strides = [1, 1, 1]} : vector<10x10x3xbf16> to vector<8x8x3xbf16>
    %18 = vector.shape_cast %17 : vector<8x8x3xbf16> to vector<64x3xbf16>
    %c0_4 = arith.constant 0 : index
    %c0_5 = arith.constant 0 : index
    %c0_6 = arith.constant 0 : index
    %c0_7 = arith.constant 0 : index
    %19 = vector.load %arg2[%c0_4, %c0_5, %c0_6, %c0_7] : memref<3x3x3x32xbf16, #tpu.memory_space<vmem>>, vector<1x1x3x32xbf16>
    %20 = vector.shape_cast %19 : vector<1x1x3x32xbf16> to vector<3x32xbf16>
    %cst_8 = arith.constant dense<0.000000e+00> : vector<64x32xf32>
    %21 = tpu.matmul %18, %20, %cst_8 {dimension_numbers = #tpu.dot_dimension_numbers<[1], [0], [0], [1], [0, 0, 1, 1], [], []>} : vector<64x3xbf16>, vector<3x32xbf16>, vector<64x32xf32> -> vector<64x32xf32>
    %22 = arith.addf %16, %21 : vector<64x32xf32>
    %23 = vector.extract_strided_slice %15 {offsets = [0, 1, 0], sizes = [8, 8, 3], strides = [1, 1, 1]} : vector<10x10x3xbf16> to vector<8x8x3xbf16>
    %24 = vector.shape_cast %23 : vector<8x8x3xbf16> to vector<64x3xbf16>
    %c0_9 = arith.constant 0 : index
    %c1 = arith.constant 1 : index
    %c0_10 = arith.constant 0 : index
    %c0_11 = arith.constant 0 : index
    %25 = vector.load %arg2[%c0_9, %c1, %c0_10, %c0_11] : memref<3x3x3x32xbf16, #tpu.memory_space<vmem>>, vector<1x1x3x32xbf16>
    %26 = vector.shape_cast %25 : vector<1x1x3x32xbf16> to vector<3x32xbf16>
    %cst_12 = arith.constant dense<0.000000e+00> : vector<64x32xf32>
    %27 = tpu.matmul %24, %26, %cst_12 {dimension_numbers = #tpu.dot_dimension_numbers<[1], [0], [0], [1], [0, 0, 1, 1], [], []>} : vector<64x3xbf16>, vector<3x32xbf16>, vector<64x32xf32> -> vector<64x32xf32>
    %28 = arith.addf %22, %27 : vector<64x32xf32>
    %29 = vector.extract_strided_slice %15 {offsets = [0, 2, 0], sizes = [8, 8, 3], strides = [1, 1, 1]} : vector<10x10x3xbf16> to vector<8x8x3xbf16>
    %30 = vector.shape_cast %29 : vector<8x8x3xbf16> to vector<64x3xbf16>
    %c0_13 = arith.constant 0 : index
    %c2 = arith.constant 2 : index
    %c0_14 = arith.constant 0 : index
    %c0_15 = arith.constant 0 : index
    %31 = vector.load %arg2[%c0_13, %c2, %c0_14, %c0_15] : memref<3x3x3x32xbf16, #tpu.memory_space<vmem>>, vector<1x1x3x32xbf16>
    %32 = vector.shape_cast %31 : vector<1x1x3x32xbf16> to vector<3x32xbf16>
    %cst_16 = arith.constant dense<0.000000e+00> : vector<64x32xf32>
    %33 = tpu.matmul %30, %32, %cst_16 {dimension_numbers = #tpu.dot_dimension_numbers<[1], [0], [0], [1], [0, 0, 1, 1], [], []>} : vector<64x3xbf16>, vector<3x32xbf16>, vector<64x32xf32> -> vector<64x32xf32>
    %34 = arith.addf %28, %33 : vector<64x32xf32>
    %35 = vector.extract_strided_slice %15 {offsets = [1, 0, 0], sizes = [8, 8, 3], strides = [1, 1, 1]} : vector<10x10x3xbf16> to vector<8x8x3xbf16>
    %36 = vector.shape_cast %35 : vector<8x8x3xbf16> to vector<64x3xbf16>
    %c1_17 = arith.constant 1 : index
    %c0_18 = arith.constant 0 : index
    %c0_19 = arith.constant 0 : index
    %c0_20 = arith.constant 0 : index
    %37 = vector.load %arg2[%c1_17, %c0_18, %c0_19, %c0_20] : memref<3x3x3x32xbf16, #tpu.memory_space<vmem>>, vector<1x1x3x32xbf16>
    %38 = vector.shape_cast %37 : vector<1x1x3x32xbf16> to vector<3x32xbf16>
    %cst_21 = arith.constant dense<0.000000e+00> : vector<64x32xf32>
    %39 = tpu.matmul %36, %38, %cst_21 {dimension_numbers = #tpu.dot_dimension_numbers<[1], [0], [0], [1], [0, 0, 1, 1], [], []>} : vector<64x3xbf16>, vector<3x32xbf16>, vector<64x32xf32> -> vector<64x32xf32>
    %40 = arith.addf %34, %39 : vector<64x32xf32>
    %41 = vector.extract_strided_slice %15 {offsets = [1, 1, 0], sizes = [8, 8, 3], strides = [1, 1, 1]} : vector<10x10x3xbf16> to vector<8x8x3xbf16>
    %42 = vector.shape_cast %41 : vector<8x8x3xbf16> to vector<64x3xbf16>
    %c1_22 = arith.constant 1 : index
    %c1_23 = arith.constant 1 : index
    %c0_24 = arith.constant 0 : index
    %c0_25 = arith.constant 0 : index
    %43 = vector.load %arg2[%c1_22, %c1_23, %c0_24, %c0_25] : memref<3x3x3x32xbf16, #tpu.memory_space<vmem>>, vector<1x1x3x32xbf16>
    %44 = vector.shape_cast %43 : vector<1x1x3x32xbf16> to vector<3x32xbf16>
    %cst_26 = arith.constant dense<0.000000e+00> : vector<64x32xf32>
    %45 = tpu.matmul %42, %44, %cst_26 {dimension_numbers = #tpu.dot_dimension_numbers<[1], [0], [0], [1], [0, 0, 1, 1], [], []>} : vector<64x3xbf16>, vector<3x32xbf16>, vector<64x32xf32> -> vector<64x32xf32>
    %46 = arith.addf %40, %45 : vector<64x32xf32>
    %47 = vector.extract_strided_slice %15 {offsets = [1, 2, 0], sizes = [8, 8, 3], strides = [1, 1, 1]} : vector<10x10x3xbf16> to vector<8x8x3xbf16>
    %48 = vector.shape_cast %47 : vector<8x8x3xbf16> to vector<64x3xbf16>
    %c1_27 = arith.constant 1 : index
    %c2_28 = arith.constant 2 : index
    %c0_29 = arith.constant 0 : index
    %c0_30 = arith.constant 0 : index
    %49 = vector.load %arg2[%c1_27, %c2_28, %c0_29, %c0_30] : memref<3x3x3x32xbf16, #tpu.memory_space<vmem>>, vector<1x1x3x32xbf16>
    %50 = vector.shape_cast %49 : vector<1x1x3x32xbf16> to vector<3x32xbf16>
    %cst_31 = arith.constant dense<0.000000e+00> : vector<64x32xf32>
    %51 = tpu.matmul %48, %50, %cst_31 {dimension_numbers = #tpu.dot_dimension_numbers<[1], [0], [0], [1], [0, 0, 1, 1], [], []>} : vector<64x3xbf16>, vector<3x32xbf16>, vector<64x32xf32> -> vector<64x32xf32>
    %52 = arith.addf %46, %51 : vector<64x32xf32>
    %53 = vector.extract_strided_slice %15 {offsets = [2, 0, 0], sizes = [8, 8, 3], strides = [1, 1, 1]} : vector<10x10x3xbf16> to vector<8x8x3xbf16>
    %54 = vector.shape_cast %53 : vector<8x8x3xbf16> to vector<64x3xbf16>
    %c2_32 = arith.constant 2 : index
    %c0_33 = arith.constant 0 : index
    %c0_34 = arith.constant 0 : index
    %c0_35 = arith.constant 0 : index
    %55 = vector.load %arg2[%c2_32, %c0_33, %c0_34, %c0_35] : memref<3x3x3x32xbf16, #tpu.memory_space<vmem>>, vector<1x1x3x32xbf16>
    %56 = vector.shape_cast %55 : vector<1x1x3x32xbf16> to vector<3x32xbf16>
    %cst_36 = arith.constant dense<0.000000e+00> : vector<64x32xf32>
    %57 = tpu.matmul %54, %56, %cst_36 {dimension_numbers = #tpu.dot_dimension_numbers<[1], [0], [0], [1], [0, 0, 1, 1], [], []>} : vector<64x3xbf16>, vector<3x32xbf16>, vector<64x32xf32> -> vector<64x32xf32>
    %58 = arith.addf %52, %57 : vector<64x32xf32>
    %59 = vector.extract_strided_slice %15 {offsets = [2, 1, 0], sizes = [8, 8, 3], strides = [1, 1, 1]} : vector<10x10x3xbf16> to vector<8x8x3xbf16>
    %60 = vector.shape_cast %59 : vector<8x8x3xbf16> to vector<64x3xbf16>
    %c2_37 = arith.constant 2 : index
    %c1_38 = arith.constant 1 : index
    %c0_39 = arith.constant 0 : index
    %c0_40 = arith.constant 0 : index
    %61 = vector.load %arg2[%c2_37, %c1_38, %c0_39, %c0_40] : memref<3x3x3x32xbf16, #tpu.memory_space<vmem>>, vector<1x1x3x32xbf16>
    %62 = vector.shape_cast %61 : vector<1x1x3x32xbf16> to vector<3x32xbf16>
    %cst_41 = arith.constant dense<0.000000e+00> : vector<64x32xf32>
    %63 = tpu.matmul %60, %62, %cst_41 {dimension_numbers = #tpu.dot_dimension_numbers<[1], [0], [0], [1], [0, 0, 1, 1], [], []>} : vector<64x3xbf16>, vector<3x32xbf16>, vector<64x32xf32> -> vector<64x32xf32>
    %64 = arith.addf %58, %63 : vector<64x32xf32>
    %65 = vector.extract_strided_slice %15 {offsets = [2, 2, 0], sizes = [8, 8, 3], strides = [1, 1, 1]} : vector<10x10x3xbf16> to vector<8x8x3xbf16>
    %66 = vector.shape_cast %65 : vector<8x8x3xbf16> to vector<64x3xbf16>
    %c2_42 = arith.constant 2 : index
    %c2_43 = arith.constant 2 : index
    %c0_44 = arith.constant 0 : index
    %c0_45 = arith.constant 0 : index
    %67 = vector.load %arg2[%c2_42, %c2_43, %c0_44, %c0_45] : memref<3x3x3x32xbf16, #tpu.memory_space<vmem>>, vector<1x1x3x32xbf16>
    %68 = vector.shape_cast %67 : vector<1x1x3x32xbf16> to vector<3x32xbf16>
    %cst_46 = arith.constant dense<0.000000e+00> : vector<64x32xf32>
    %69 = tpu.matmul %66, %68, %cst_46 {dimension_numbers = #tpu.dot_dimension_numbers<[1], [0], [0], [1], [0, 0, 1, 1], [], []>} : vector<64x3xbf16>, vector<3x32xbf16>, vector<64x32xf32> -> vector<64x32xf32>
    %70 = arith.addf %64, %69 : vector<64x32xf32>
    %c0_47 = arith.constant 0 : index
    %c0_48 = arith.constant 0 : index
    %71 = vector.load %arg3[%c0_47, %c0_48] : memref<1x32xf32, #tpu.memory_space<vmem>>, vector<1x32xf32>
    %72 = vector.broadcast %71 : vector<1x32xf32> to vector<64x32xf32>
    %73 = arith.addf %70, %72 : vector<64x32xf32>
    %cst_49 = arith.constant 0.000000e+00 : f32
    %74 = vector.broadcast %cst_49 : f32 to vector<64x32xf32>
    %75 = arith.cmpf oge, %73, %74 : vector<64x32xf32>
    %cst_50 = arith.constant 1.000000e-01 : f32
    %76 = vector.broadcast %cst_50 : f32 to vector<64x32xf32>
    %77 = arith.mulf %76, %73 : vector<64x32xf32>
    %78 = arith.select %75, %73, %77 : vector<64x32xi1>, vector<64x32xf32>
    %79 = vector.shape_cast %78 : vector<64x32xf32> to vector<8x8x32xf32>
    %80 = arith.truncf %79 : vector<8x8x32xf32> to vector<8x8x32xbf16>
    %c0_51 = arith.constant 0 : index
    %c0_52 = arith.constant 0 : index
    %c0_53 = arith.constant 0 : index
    %c0_54 = arith.constant 0 : index
    %81 = vector.load %arg4[%c0_51, %c0_52, %c0_53, %c0_54] : memref<1x8x8x32xbf16, #tpu.memory_space<vmem>>, vector<1x8x8x32xbf16>
    %82 = vector.shape_cast %81 : vector<1x8x8x32xbf16> to vector<8x8x32xbf16>
    %83 = vector.shape_cast %80 : vector<8x8x32xbf16> to vector<1x8x8x32xbf16>
    tpu.vector_store %arg4[%c0_51, %c0_52, %c0_53, %c0_54], %83 {strides = array<i32>} : memref<1x8x8x32xbf16, #tpu.memory_space<vmem>>, vector<1x8x8x32xbf16>,
    return
  }
  func.func @transform_0(%arg0: i32) -> (i32, i32, i32, i32) {
    %c0_i32 = arith.constant 0 : i32
    %c0_i32_0 = arith.constant 0 : i32
    %c0_i32_1 = arith.constant 0 : i32
    %c0_i32_2 = arith.constant 0 : i32
    return %arg0, %c0_i32, %c0_i32_0, %c0_i32_1 : i32, i32, i32, i32
  }
  func.func @transform_1(%arg0: i32) -> (i32, i32, i32, i32) {
    %c0_i32 = arith.constant 0 : i32
    %c0_i32_0 = arith.constant 0 : i32
    %c0_i32_1 = arith.constant 0 : i32
    %c0_i32_2 = arith.constant 0 : i32
    %c0_i32_3 = arith.constant 0 : i32
    return %c0_i32, %c0_i32_0, %c0_i32_1, %c0_i32_2 : i32, i32, i32, i32
  }
  func.func @transform_2(%arg0: i32) -> (i32, i32) {
    %c0_i32 = arith.constant 0 : i32
    %c0_i32_0 = arith.constant 0 : i32
    %c0_i32_1 = arith.constant 0 : i32
    return %c0_i32, %c0_i32_0 : i32, i32
  }
  func.func @transform_3(%arg0: i32) -> (i32, i32, i32, i32) {
    %c0_i32 = arith.constant 0 : i32
    %c0_i32_0 = arith.constant 0 : i32
    %c0_i32_1 = arith.constant 0 : i32
    %c0_i32_2 = arith.constant 0 : i32
    return %arg0, %c0_i32, %c0_i32_0, %c0_i32_1 : i32, i32, i32, i32
  }
}

module attributes {stable_mosaic.version = 11 : i64} {
  func.func @_conv_s2_gap_head_kernel(%arg0: i32, %arg1: memref<1x16x288xbf16, #tpu.memory_space<vmem>>, %arg2: memref<288x32xbf16, #tpu.memory_space<vmem>>, %arg3: memref<1x32xf32, #tpu.memory_space<vmem>>, %arg4: memref<1x32xf32, #tpu.memory_space<vmem>>, %arg5: memref<1x1xf32, #tpu.memory_space<vmem>>, %arg6: memref<1x1x128xf32, #tpu.memory_space<vmem>>) attributes {dimension_semantics = [#tpu.dimension_semantics<parallel>], iteration_bounds = array<i64: 2>, scalar_prefetch = 0 : i64, scratch_operands = 0 : i64, tpu.core_type = #tpu.core_type<tc>, window_params = [{transform_indices = @transform_0, window_bounds = array<i64: 1, 16, 288>}, {pipeline_mode = #tpu.pipeline_mode<synchronous>, transform_indices = @transform_1, window_bounds = array<i64: 288, 32>}, {pipeline_mode = #tpu.pipeline_mode<synchronous>, transform_indices = @transform_2, window_bounds = array<i64: 1, 32>}, {pipeline_mode = #tpu.pipeline_mode<synchronous>, transform_indices = @transform_3, window_bounds = array<i64: 1, 32>}, {pipeline_mode = #tpu.pipeline_mode<synchronous>, transform_indices = @transform_4, window_bounds = array<i64: 1, 1>}, {transform_indices = @transform_5, window_bounds = array<i64: 1, 1, 128>}]} {
    %c0 = arith.constant 0 : index
    %c0_0 = arith.constant 0 : index
    %c0_1 = arith.constant 0 : index
    %0 = vector.load %arg1[%c0, %c0_0, %c0_1] : memref<1x16x288xbf16, #tpu.memory_space<vmem>>, vector<1x16x288xbf16>
    %1 = vector.shape_cast %0 : vector<1x16x288xbf16> to vector<16x288xbf16>
    %c0_2 = arith.constant 0 : index
    %c0_3 = arith.constant 0 : index
    %2 = vector.load %arg2[%c0_2, %c0_3] : memref<288x32xbf16, #tpu.memory_space<vmem>>, vector<288x32xbf16>
    %cst = arith.constant dense<0.000000e+00> : vector<16x32xf32>
    %3 = tpu.matmul %1, %2, %cst {dimension_numbers = #tpu.dot_dimension_numbers<[1], [0], [0], [1], [0, 0, 1, 1], [], []>} : vector<16x288xbf16>, vector<288x32xbf16>, vector<16x32xf32> -> vector<16x32xf32>
    %c0_4 = arith.constant 0 : index
    %c0_5 = arith.constant 0 : index
    %4 = vector.load %arg3[%c0_4, %c0_5] : memref<1x32xf32, #tpu.memory_space<vmem>>, vector<1x32xf32>
    %5 = vector.broadcast %4 : vector<1x32xf32> to vector<16x32xf32>
    %6 = arith.addf %3, %5 : vector<16x32xf32>
    %cst_6 = arith.constant 0.000000e+00 : f32
    %7 = vector.broadcast %cst_6 : f32 to vector<16x32xf32>
    %8 = arith.cmpf oge, %6, %7 : vector<16x32xf32>
    %cst_7 = arith.constant 1.000000e-01 : f32
    %9 = vector.broadcast %cst_7 : f32 to vector<16x32xf32>
    %10 = arith.mulf %9, %6 : vector<16x32xf32>
    %11 = arith.select %8, %6, %10 : vector<16x32xi1>, vector<16x32xf32>
    %cst_8 = arith.constant dense<0.000000e+00> : vector<32xf32>
    %12 = vector.multi_reduction <add>, %11, %cst_8 [0] : vector<16x32xf32> to vector<32xf32>
    %13 = vector.shape_cast %12 : vector<32xf32> to vector<1x32xf32>
    %cst_9 = arith.constant 1.600000e+01 : f32
    %14 = vector.broadcast %cst_9 : f32 to vector<1x32xf32>
    %15 = arith.divf %13, %14 : vector<1x32xf32>
    %c0_10 = arith.constant 0 : index
    %c0_11 = arith.constant 0 : index
    %16 = vector.load %arg4[%c0_10, %c0_11] : memref<1x32xf32, #tpu.memory_space<vmem>>, vector<1x32xf32>
    %17 = arith.mulf %15, %16 : vector<1x32xf32>
    %cst_12 = arith.constant dense<0.000000e+00> : vector<1xf32>
    %18 = vector.multi_reduction <add>, %17, %cst_12 [1] : vector<1x32xf32> to vector<1xf32>
    %19 = vector.shape_cast %18 : vector<1xf32> to vector<1x1xf32>
    %c0_13 = arith.constant 0 : index
    %c0_14 = arith.constant 0 : index
    %20 = vector.load %arg5[%c0_13, %c0_14] : memref<1x1xf32, #tpu.memory_space<vmem>>, vector<1x1xf32>
    %21 = arith.addf %19, %20 : vector<1x1xf32>
    %22 = vector.shape_cast %21 : vector<1x1xf32> to vector<1x1xf32>
    %23 = vector.broadcast %22 : vector<1x1xf32> to vector<1x128xf32>
    %c0_15 = arith.constant 0 : index
    %c0_16 = arith.constant 0 : index
    %c0_17 = arith.constant 0 : index
    %24 = vector.load %arg6[%c0_15, %c0_16, %c0_17] : memref<1x1x128xf32, #tpu.memory_space<vmem>>, vector<1x1x128xf32>
    %25 = vector.shape_cast %24 : vector<1x1x128xf32> to vector<1x128xf32>
    %26 = vector.shape_cast %23 : vector<1x128xf32> to vector<1x1x128xf32>
    tpu.vector_store %arg6[%c0_15, %c0_16, %c0_17], %26 {strides = array<i32>} : memref<1x1x128xf32, #tpu.memory_space<vmem>>, vector<1x1x128xf32>,
    return
  }
  func.func @transform_0(%arg0: i32) -> (i32, i32, i32) {
    %c0_i32 = arith.constant 0 : i32
    %c0_i32_0 = arith.constant 0 : i32
    %c0_i32_1 = arith.constant 0 : i32
    return %arg0, %c0_i32, %c0_i32_0 : i32, i32, i32
  }
  func.func @transform_1(%arg0: i32) -> (i32, i32) {
    %c0_i32 = arith.constant 0 : i32
    %c0_i32_0 = arith.constant 0 : i32
    %c0_i32_1 = arith.constant 0 : i32
    return %c0_i32, %c0_i32_0 : i32, i32
  }
  func.func @transform_2(%arg0: i32) -> (i32, i32) {
    %c0_i32 = arith.constant 0 : i32
    %c0_i32_0 = arith.constant 0 : i32
    %c0_i32_1 = arith.constant 0 : i32
    return %c0_i32, %c0_i32_0 : i32, i32
  }
  func.func @transform_3(%arg0: i32) -> (i32, i32) {
    %c0_i32 = arith.constant 0 : i32
    %c0_i32_0 = arith.constant 0 : i32
    %c0_i32_1 = arith.constant 0 : i32
    return %c0_i32, %c0_i32_0 : i32, i32
  }
  func.func @transform_4(%arg0: i32) -> (i32, i32) {
    %c0_i32 = arith.constant 0 : i32
    %c0_i32_0 = arith.constant 0 : i32
    %c0_i32_1 = arith.constant 0 : i32
    return %c0_i32, %c0_i32_0 : i32, i32
  }
  func.func @transform_5(%arg0: i32) -> (i32, i32, i32) {
    %c0_i32 = arith.constant 0 : i32
    %c0_i32_0 = arith.constant 0 : i32
    %c0_i32_1 = arith.constant 0 : i32
    return %arg0, %c0_i32, %c0_i32_0 : i32, i32, i32
  }
}

module attributes {stable_mosaic.version = 11 : i64} {
  func.func @_conv3x3_s1_kernel(%arg0: i32, %arg1: memref<1x6x10x48xbf16, #tpu.memory_space<vmem>>, %arg2: memref<3x3x3x32xbf16, #tpu.memory_space<vmem>>, %arg3: memref<1x32xf32, #tpu.memory_space<vmem>>, %arg4: memref<1x4x8x32xbf16, #tpu.memory_space<vmem>>) attributes {dimension_semantics = [#tpu.dimension_semantics<parallel>], iteration_bounds = array<i64: 2>, scalar_prefetch = 0 : i64, scratch_operands = 0 : i64, tpu.core_type = #tpu.core_type<tc>, window_params = [{transform_indices = @transform_0, window_bounds = array<i64: 1, 6, 10, 48>}, {pipeline_mode = #tpu.pipeline_mode<synchronous>, transform_indices = @transform_1, window_bounds = array<i64: 3, 3, 3, 32>}, {pipeline_mode = #tpu.pipeline_mode<synchronous>, transform_indices = @transform_2, window_bounds = array<i64: 1, 32>}, {transform_indices = @transform_3, window_bounds = array<i64: 1, 4, 8, 32>}]} {
    %c0 = arith.constant 0 : index
    %c0_0 = arith.constant 0 : index
    %c0_1 = arith.constant 0 : index
    %c0_2 = arith.constant 0 : index
    %0 = vector.load %arg1[%c0, %c0_0, %c0_1, %c0_2] : memref<1x6x10x48xbf16, #tpu.memory_space<vmem>>, vector<1x6x10x48xbf16>
    %1 = vector.shape_cast %0 : vector<1x6x10x48xbf16> to vector<6x10x48xbf16>
    %2 = vector.extract_strided_slice %1 {offsets = [0, 0, 0], sizes = [6, 10, 3], strides = [1, 1, 1]} : vector<6x10x48xbf16> to vector<6x10x3xbf16>
    %3 = arith.extf %2 : vector<6x10x3xbf16> to vector<6x10x3xf32>
    %4 = vector.extract_strided_slice %1 {offsets = [0, 0, 3], sizes = [6, 10, 3], strides = [1, 1, 1]} : vector<6x10x48xbf16> to vector<6x10x3xbf16>
    %5 = arith.extf %4 : vector<6x10x3xbf16> to vector<6x10x3xf32>
    %6 = arith.addf %3, %5 : vector<6x10x3xf32>
    %7 = vector.extract_strided_slice %1 {offsets = [0, 0, 6], sizes = [6, 10, 3], strides = [1, 1, 1]} : vector<6x10x48xbf16> to vector<6x10x3xbf16>
    %8 = arith.extf %7 : vector<6x10x3xbf16> to vector<6x10x3xf32>
    %9 = arith.addf %6, %8 : vector<6x10x3xf32>
    %10 = vector.extract_strided_slice %1 {offsets = [0, 0, 9], sizes = [6, 10, 3], strides = [1, 1, 1]} : vector<6x10x48xbf16> to vector<6x10x3xbf16>
    %11 = arith.extf %10 : vector<6x10x3xbf16> to vector<6x10x3xf32>
    %12 = arith.addf %9, %11 : vector<6x10x3xf32>
    %13 = vector.extract_strided_slice %1 {offsets = [0, 0, 12], sizes = [6, 10, 3], strides = [1, 1, 1]} : vector<6x10x48xbf16> to vector<6x10x3xbf16>
    %14 = arith.extf %13 : vector<6x10x3xbf16> to vector<6x10x3xf32>
    %15 = arith.addf %12, %14 : vector<6x10x3xf32>
    %16 = vector.extract_strided_slice %1 {offsets = [0, 0, 15], sizes = [6, 10, 3], strides = [1, 1, 1]} : vector<6x10x48xbf16> to vector<6x10x3xbf16>
    %17 = arith.extf %16 : vector<6x10x3xbf16> to vector<6x10x3xf32>
    %18 = arith.addf %15, %17 : vector<6x10x3xf32>
    %19 = vector.extract_strided_slice %1 {offsets = [0, 0, 18], sizes = [6, 10, 3], strides = [1, 1, 1]} : vector<6x10x48xbf16> to vector<6x10x3xbf16>
    %20 = arith.extf %19 : vector<6x10x3xbf16> to vector<6x10x3xf32>
    %21 = arith.addf %18, %20 : vector<6x10x3xf32>
    %22 = vector.extract_strided_slice %1 {offsets = [0, 0, 21], sizes = [6, 10, 3], strides = [1, 1, 1]} : vector<6x10x48xbf16> to vector<6x10x3xbf16>
    %23 = arith.extf %22 : vector<6x10x3xbf16> to vector<6x10x3xf32>
    %24 = arith.addf %21, %23 : vector<6x10x3xf32>
    %25 = vector.extract_strided_slice %1 {offsets = [0, 0, 24], sizes = [6, 10, 3], strides = [1, 1, 1]} : vector<6x10x48xbf16> to vector<6x10x3xbf16>
    %26 = arith.extf %25 : vector<6x10x3xbf16> to vector<6x10x3xf32>
    %27 = arith.addf %24, %26 : vector<6x10x3xf32>
    %28 = vector.extract_strided_slice %1 {offsets = [0, 0, 27], sizes = [6, 10, 3], strides = [1, 1, 1]} : vector<6x10x48xbf16> to vector<6x10x3xbf16>
    %29 = arith.extf %28 : vector<6x10x3xbf16> to vector<6x10x3xf32>
    %30 = arith.addf %27, %29 : vector<6x10x3xf32>
    %31 = vector.extract_strided_slice %1 {offsets = [0, 0, 30], sizes = [6, 10, 3], strides = [1, 1, 1]} : vector<6x10x48xbf16> to vector<6x10x3xbf16>
    %32 = arith.extf %31 : vector<6x10x3xbf16> to vector<6x10x3xf32>
    %33 = arith.addf %30, %32 : vector<6x10x3xf32>
    %34 = vector.extract_strided_slice %1 {offsets = [0, 0, 33], sizes = [6, 10, 3], strides = [1, 1, 1]} : vector<6x10x48xbf16> to vector<6x10x3xbf16>
    %35 = arith.extf %34 : vector<6x10x3xbf16> to vector<6x10x3xf32>
    %36 = arith.addf %33, %35 : vector<6x10x3xf32>
    %37 = vector.extract_strided_slice %1 {offsets = [0, 0, 36], sizes = [6, 10, 3], strides = [1, 1, 1]} : vector<6x10x48xbf16> to vector<6x10x3xbf16>
    %38 = arith.extf %37 : vector<6x10x3xbf16> to vector<6x10x3xf32>
    %39 = arith.addf %36, %38 : vector<6x10x3xf32>
    %40 = vector.extract_strided_slice %1 {offsets = [0, 0, 39], sizes = [6, 10, 3], strides = [1, 1, 1]} : vector<6x10x48xbf16> to vector<6x10x3xbf16>
    %41 = arith.extf %40 : vector<6x10x3xbf16> to vector<6x10x3xf32>
    %42 = arith.addf %39, %41 : vector<6x10x3xf32>
    %43 = vector.extract_strided_slice %1 {offsets = [0, 0, 42], sizes = [6, 10, 3], strides = [1, 1, 1]} : vector<6x10x48xbf16> to vector<6x10x3xbf16>
    %44 = arith.extf %43 : vector<6x10x3xbf16> to vector<6x10x3xf32>
    %45 = arith.addf %42, %44 : vector<6x10x3xf32>
    %46 = vector.extract_strided_slice %1 {offsets = [0, 0, 45], sizes = [6, 10, 3], strides = [1, 1, 1]} : vector<6x10x48xbf16> to vector<6x10x3xbf16>
    %47 = arith.extf %46 : vector<6x10x3xbf16> to vector<6x10x3xf32>
    %48 = arith.addf %45, %47 : vector<6x10x3xf32>
    %cst = arith.constant 6.250000e-02 : f32
    %49 = vector.broadcast %cst : f32 to vector<6x10x3xf32>
    %50 = arith.mulf %48, %49 : vector<6x10x3xf32>
    %51 = arith.truncf %50 : vector<6x10x3xf32> to vector<6x10x3xbf16>
    %cst_3 = arith.constant 0.000000e+00 : f32
    %52 = vector.broadcast %cst_3 : f32 to vector<32x32xf32>
    %53 = vector.extract_strided_slice %51 {offsets = [0, 0, 0], sizes = [4, 8, 3], strides = [1, 1, 1]} : vector<6x10x3xbf16> to vector<4x8x3xbf16>
    %54 = vector.shape_cast %53 : vector<4x8x3xbf16> to vector<32x3xbf16>
    %c0_4 = arith.constant 0 : index
    %c0_5 = arith.constant 0 : index
    %c0_6 = arith.constant 0 : index
    %c0_7 = arith.constant 0 : index
    %55 = vector.load %arg2[%c0_4, %c0_5, %c0_6, %c0_7] : memref<3x3x3x32xbf16, #tpu.memory_space<vmem>>, vector<1x1x3x32xbf16>
    %56 = vector.shape_cast %55 : vector<1x1x3x32xbf16> to vector<3x32xbf16>
    %cst_8 = arith.constant dense<0.000000e+00> : vector<32x32xf32>
    %57 = tpu.matmul %54, %56, %cst_8 {dimension_numbers = #tpu.dot_dimension_numbers<[1], [0], [0], [1], [0, 0, 1, 1], [], []>} : vector<32x3xbf16>, vector<3x32xbf16>, vector<32x32xf32> -> vector<32x32xf32>
    %58 = arith.addf %52, %57 : vector<32x32xf32>
    %59 = vector.extract_strided_slice %51 {offsets = [0, 1, 0], sizes = [4, 8, 3], strides = [1, 1, 1]} : vector<6x10x3xbf16> to vector<4x8x3xbf16>
    %60 = vector.shape_cast %59 : vector<4x8x3xbf16> to vector<32x3xbf16>
    %c0_9 = arith.constant 0 : index
    %c1 = arith.constant 1 : index
    %c0_10 = arith.constant 0 : index
    %c0_11 = arith.constant 0 : index
    %61 = vector.load %arg2[%c0_9, %c1, %c0_10, %c0_11] : memref<3x3x3x32xbf16, #tpu.memory_space<vmem>>, vector<1x1x3x32xbf16>
    %62 = vector.shape_cast %61 : vector<1x1x3x32xbf16> to vector<3x32xbf16>
    %cst_12 = arith.constant dense<0.000000e+00> : vector<32x32xf32>
    %63 = tpu.matmul %60, %62, %cst_12 {dimension_numbers = #tpu.dot_dimension_numbers<[1], [0], [0], [1], [0, 0, 1, 1], [], []>} : vector<32x3xbf16>, vector<3x32xbf16>, vector<32x32xf32> -> vector<32x32xf32>
    %64 = arith.addf %58, %63 : vector<32x32xf32>
    %65 = vector.extract_strided_slice %51 {offsets = [0, 2, 0], sizes = [4, 8, 3], strides = [1, 1, 1]} : vector<6x10x3xbf16> to vector<4x8x3xbf16>
    %66 = vector.shape_cast %65 : vector<4x8x3xbf16> to vector<32x3xbf16>
    %c0_13 = arith.constant 0 : index
    %c2 = arith.constant 2 : index
    %c0_14 = arith.constant 0 : index
    %c0_15 = arith.constant 0 : index
    %67 = vector.load %arg2[%c0_13, %c2, %c0_14, %c0_15] : memref<3x3x3x32xbf16, #tpu.memory_space<vmem>>, vector<1x1x3x32xbf16>
    %68 = vector.shape_cast %67 : vector<1x1x3x32xbf16> to vector<3x32xbf16>
    %cst_16 = arith.constant dense<0.000000e+00> : vector<32x32xf32>
    %69 = tpu.matmul %66, %68, %cst_16 {dimension_numbers = #tpu.dot_dimension_numbers<[1], [0], [0], [1], [0, 0, 1, 1], [], []>} : vector<32x3xbf16>, vector<3x32xbf16>, vector<32x32xf32> -> vector<32x32xf32>
    %70 = arith.addf %64, %69 : vector<32x32xf32>
    %71 = vector.extract_strided_slice %51 {offsets = [1, 0, 0], sizes = [4, 8, 3], strides = [1, 1, 1]} : vector<6x10x3xbf16> to vector<4x8x3xbf16>
    %72 = vector.shape_cast %71 : vector<4x8x3xbf16> to vector<32x3xbf16>
    %c1_17 = arith.constant 1 : index
    %c0_18 = arith.constant 0 : index
    %c0_19 = arith.constant 0 : index
    %c0_20 = arith.constant 0 : index
    %73 = vector.load %arg2[%c1_17, %c0_18, %c0_19, %c0_20] : memref<3x3x3x32xbf16, #tpu.memory_space<vmem>>, vector<1x1x3x32xbf16>
    %74 = vector.shape_cast %73 : vector<1x1x3x32xbf16> to vector<3x32xbf16>
    %cst_21 = arith.constant dense<0.000000e+00> : vector<32x32xf32>
    %75 = tpu.matmul %72, %74, %cst_21 {dimension_numbers = #tpu.dot_dimension_numbers<[1], [0], [0], [1], [0, 0, 1, 1], [], []>} : vector<32x3xbf16>, vector<3x32xbf16>, vector<32x32xf32> -> vector<32x32xf32>
    %76 = arith.addf %70, %75 : vector<32x32xf32>
    %77 = vector.extract_strided_slice %51 {offsets = [1, 1, 0], sizes = [4, 8, 3], strides = [1, 1, 1]} : vector<6x10x3xbf16> to vector<4x8x3xbf16>
    %78 = vector.shape_cast %77 : vector<4x8x3xbf16> to vector<32x3xbf16>
    %c1_22 = arith.constant 1 : index
    %c1_23 = arith.constant 1 : index
    %c0_24 = arith.constant 0 : index
    %c0_25 = arith.constant 0 : index
    %79 = vector.load %arg2[%c1_22, %c1_23, %c0_24, %c0_25] : memref<3x3x3x32xbf16, #tpu.memory_space<vmem>>, vector<1x1x3x32xbf16>
    %80 = vector.shape_cast %79 : vector<1x1x3x32xbf16> to vector<3x32xbf16>
    %cst_26 = arith.constant dense<0.000000e+00> : vector<32x32xf32>
    %81 = tpu.matmul %78, %80, %cst_26 {dimension_numbers = #tpu.dot_dimension_numbers<[1], [0], [0], [1], [0, 0, 1, 1], [], []>} : vector<32x3xbf16>, vector<3x32xbf16>, vector<32x32xf32> -> vector<32x32xf32>
    %82 = arith.addf %76, %81 : vector<32x32xf32>
    %83 = vector.extract_strided_slice %51 {offsets = [1, 2, 0], sizes = [4, 8, 3], strides = [1, 1, 1]} : vector<6x10x3xbf16> to vector<4x8x3xbf16>
    %84 = vector.shape_cast %83 : vector<4x8x3xbf16> to vector<32x3xbf16>
    %c1_27 = arith.constant 1 : index
    %c2_28 = arith.constant 2 : index
    %c0_29 = arith.constant 0 : index
    %c0_30 = arith.constant 0 : index
    %85 = vector.load %arg2[%c1_27, %c2_28, %c0_29, %c0_30] : memref<3x3x3x32xbf16, #tpu.memory_space<vmem>>, vector<1x1x3x32xbf16>
    %86 = vector.shape_cast %85 : vector<1x1x3x32xbf16> to vector<3x32xbf16>
    %cst_31 = arith.constant dense<0.000000e+00> : vector<32x32xf32>
    %87 = tpu.matmul %84, %86, %cst_31 {dimension_numbers = #tpu.dot_dimension_numbers<[1], [0], [0], [1], [0, 0, 1, 1], [], []>} : vector<32x3xbf16>, vector<3x32xbf16>, vector<32x32xf32> -> vector<32x32xf32>
    %88 = arith.addf %82, %87 : vector<32x32xf32>
    %89 = vector.extract_strided_slice %51 {offsets = [2, 0, 0], sizes = [4, 8, 3], strides = [1, 1, 1]} : vector<6x10x3xbf16> to vector<4x8x3xbf16>
    %90 = vector.shape_cast %89 : vector<4x8x3xbf16> to vector<32x3xbf16>
    %c2_32 = arith.constant 2 : index
    %c0_33 = arith.constant 0 : index
    %c0_34 = arith.constant 0 : index
    %c0_35 = arith.constant 0 : index
    %91 = vector.load %arg2[%c2_32, %c0_33, %c0_34, %c0_35] : memref<3x3x3x32xbf16, #tpu.memory_space<vmem>>, vector<1x1x3x32xbf16>
    %92 = vector.shape_cast %91 : vector<1x1x3x32xbf16> to vector<3x32xbf16>
    %cst_36 = arith.constant dense<0.000000e+00> : vector<32x32xf32>
    %93 = tpu.matmul %90, %92, %cst_36 {dimension_numbers = #tpu.dot_dimension_numbers<[1], [0], [0], [1], [0, 0, 1, 1], [], []>} : vector<32x3xbf16>, vector<3x32xbf16>, vector<32x32xf32> -> vector<32x32xf32>
    %94 = arith.addf %88, %93 : vector<32x32xf32>
    %95 = vector.extract_strided_slice %51 {offsets = [2, 1, 0], sizes = [4, 8, 3], strides = [1, 1, 1]} : vector<6x10x3xbf16> to vector<4x8x3xbf16>
    %96 = vector.shape_cast %95 : vector<4x8x3xbf16> to vector<32x3xbf16>
    %c2_37 = arith.constant 2 : index
    %c1_38 = arith.constant 1 : index
    %c0_39 = arith.constant 0 : index
    %c0_40 = arith.constant 0 : index
    %97 = vector.load %arg2[%c2_37, %c1_38, %c0_39, %c0_40] : memref<3x3x3x32xbf16, #tpu.memory_space<vmem>>, vector<1x1x3x32xbf16>
    %98 = vector.shape_cast %97 : vector<1x1x3x32xbf16> to vector<3x32xbf16>
    %cst_41 = arith.constant dense<0.000000e+00> : vector<32x32xf32>
    %99 = tpu.matmul %96, %98, %cst_41 {dimension_numbers = #tpu.dot_dimension_numbers<[1], [0], [0], [1], [0, 0, 1, 1], [], []>} : vector<32x3xbf16>, vector<3x32xbf16>, vector<32x32xf32> -> vector<32x32xf32>
    %100 = arith.addf %94, %99 : vector<32x32xf32>
    %101 = vector.extract_strided_slice %51 {offsets = [2, 2, 0], sizes = [4, 8, 3], strides = [1, 1, 1]} : vector<6x10x3xbf16> to vector<4x8x3xbf16>
    %102 = vector.shape_cast %101 : vector<4x8x3xbf16> to vector<32x3xbf16>
    %c2_42 = arith.constant 2 : index
    %c2_43 = arith.constant 2 : index
    %c0_44 = arith.constant 0 : index
    %c0_45 = arith.constant 0 : index
    %103 = vector.load %arg2[%c2_42, %c2_43, %c0_44, %c0_45] : memref<3x3x3x32xbf16, #tpu.memory_space<vmem>>, vector<1x1x3x32xbf16>
    %104 = vector.shape_cast %103 : vector<1x1x3x32xbf16> to vector<3x32xbf16>
    %cst_46 = arith.constant dense<0.000000e+00> : vector<32x32xf32>
    %105 = tpu.matmul %102, %104, %cst_46 {dimension_numbers = #tpu.dot_dimension_numbers<[1], [0], [0], [1], [0, 0, 1, 1], [], []>} : vector<32x3xbf16>, vector<3x32xbf16>, vector<32x32xf32> -> vector<32x32xf32>
    %106 = arith.addf %100, %105 : vector<32x32xf32>
    %c0_47 = arith.constant 0 : index
    %c0_48 = arith.constant 0 : index
    %107 = vector.load %arg3[%c0_47, %c0_48] : memref<1x32xf32, #tpu.memory_space<vmem>>, vector<1x32xf32>
    %108 = vector.broadcast %107 : vector<1x32xf32> to vector<32x32xf32>
    %109 = arith.addf %106, %108 : vector<32x32xf32>
    %cst_49 = arith.constant 0.000000e+00 : f32
    %110 = vector.broadcast %cst_49 : f32 to vector<32x32xf32>
    %111 = arith.cmpf oge, %109, %110 : vector<32x32xf32>
    %cst_50 = arith.constant 1.000000e-01 : f32
    %112 = vector.broadcast %cst_50 : f32 to vector<32x32xf32>
    %113 = arith.mulf %112, %109 : vector<32x32xf32>
    %114 = arith.select %111, %109, %113 : vector<32x32xi1>, vector<32x32xf32>
    %115 = vector.shape_cast %114 : vector<32x32xf32> to vector<4x8x32xf32>
    %116 = arith.truncf %115 : vector<4x8x32xf32> to vector<4x8x32xbf16>
    %c0_51 = arith.constant 0 : index
    %c0_52 = arith.constant 0 : index
    %c0_53 = arith.constant 0 : index
    %c0_54 = arith.constant 0 : index
    %117 = vector.load %arg4[%c0_51, %c0_52, %c0_53, %c0_54] : memref<1x4x8x32xbf16, #tpu.memory_space<vmem>>, vector<1x4x8x32xbf16>
    %118 = vector.shape_cast %117 : vector<1x4x8x32xbf16> to vector<4x8x32xbf16>
    %119 = vector.shape_cast %116 : vector<4x8x32xbf16> to vector<1x4x8x32xbf16>
    tpu.vector_store %arg4[%c0_51, %c0_52, %c0_53, %c0_54], %119 {strides = array<i32>} : memref<1x4x8x32xbf16, #tpu.memory_space<vmem>>, vector<1x4x8x32xbf16>,
    return
  }
  func.func @transform_0(%arg0: i32) -> (i32, i32, i32, i32) {
    %c0_i32 = arith.constant 0 : i32
    %c0_i32_0 = arith.constant 0 : i32
    %c0_i32_1 = arith.constant 0 : i32
    %c0_i32_2 = arith.constant 0 : i32
    return %arg0, %c0_i32, %c0_i32_0, %c0_i32_1 : i32, i32, i32, i32
  }
  func.func @transform_1(%arg0: i32) -> (i32, i32, i32, i32) {
    %c0_i32 = arith.constant 0 : i32
    %c0_i32_0 = arith.constant 0 : i32
    %c0_i32_1 = arith.constant 0 : i32
    %c0_i32_2 = arith.constant 0 : i32
    %c0_i32_3 = arith.constant 0 : i32
    return %c0_i32, %c0_i32_0, %c0_i32_1, %c0_i32_2 : i32, i32, i32, i32
  }
  func.func @transform_2(%arg0: i32) -> (i32, i32) {
    %c0_i32 = arith.constant 0 : i32
    %c0_i32_0 = arith.constant 0 : i32
    %c0_i32_1 = arith.constant 0 : i32
    return %c0_i32, %c0_i32_0 : i32, i32
  }
  func.func @transform_3(%arg0: i32) -> (i32, i32, i32, i32) {
    %c0_i32 = arith.constant 0 : i32
    %c0_i32_0 = arith.constant 0 : i32
    %c0_i32_1 = arith.constant 0 : i32
    %c0_i32_2 = arith.constant 0 : i32
    return %arg0, %c0_i32, %c0_i32_0, %c0_i32_1 : i32, i32, i32, i32
  }
}

module attributes {stable_mosaic.version = 11 : i64} {
  func.func @_conv_s2_gap_head_kernel(%arg0: i32, %arg1: memref<1x4x288xbf16, #tpu.memory_space<vmem>>, %arg2: memref<288x32xbf16, #tpu.memory_space<vmem>>, %arg3: memref<1x32xf32, #tpu.memory_space<vmem>>, %arg4: memref<1x32xf32, #tpu.memory_space<vmem>>, %arg5: memref<1x1xf32, #tpu.memory_space<vmem>>, %arg6: memref<1x1x128xf32, #tpu.memory_space<vmem>>) attributes {dimension_semantics = [#tpu.dimension_semantics<parallel>], iteration_bounds = array<i64: 2>, scalar_prefetch = 0 : i64, scratch_operands = 0 : i64, tpu.core_type = #tpu.core_type<tc>, window_params = [{transform_indices = @transform_0, window_bounds = array<i64: 1, 4, 288>}, {pipeline_mode = #tpu.pipeline_mode<synchronous>, transform_indices = @transform_1, window_bounds = array<i64: 288, 32>}, {pipeline_mode = #tpu.pipeline_mode<synchronous>, transform_indices = @transform_2, window_bounds = array<i64: 1, 32>}, {pipeline_mode = #tpu.pipeline_mode<synchronous>, transform_indices = @transform_3, window_bounds = array<i64: 1, 32>}, {pipeline_mode = #tpu.pipeline_mode<synchronous>, transform_indices = @transform_4, window_bounds = array<i64: 1, 1>}, {transform_indices = @transform_5, window_bounds = array<i64: 1, 1, 128>}]} {
    %c0 = arith.constant 0 : index
    %c0_0 = arith.constant 0 : index
    %c0_1 = arith.constant 0 : index
    %0 = vector.load %arg1[%c0, %c0_0, %c0_1] : memref<1x4x288xbf16, #tpu.memory_space<vmem>>, vector<1x4x288xbf16>
    %1 = vector.shape_cast %0 : vector<1x4x288xbf16> to vector<4x288xbf16>
    %c0_2 = arith.constant 0 : index
    %c0_3 = arith.constant 0 : index
    %2 = vector.load %arg2[%c0_2, %c0_3] : memref<288x32xbf16, #tpu.memory_space<vmem>>, vector<288x32xbf16>
    %cst = arith.constant dense<0.000000e+00> : vector<4x32xf32>
    %3 = tpu.matmul %1, %2, %cst {dimension_numbers = #tpu.dot_dimension_numbers<[1], [0], [0], [1], [0, 0, 1, 1], [], []>} : vector<4x288xbf16>, vector<288x32xbf16>, vector<4x32xf32> -> vector<4x32xf32>
    %c0_4 = arith.constant 0 : index
    %c0_5 = arith.constant 0 : index
    %4 = vector.load %arg3[%c0_4, %c0_5] : memref<1x32xf32, #tpu.memory_space<vmem>>, vector<1x32xf32>
    %5 = vector.broadcast %4 : vector<1x32xf32> to vector<4x32xf32>
    %6 = arith.addf %3, %5 : vector<4x32xf32>
    %cst_6 = arith.constant 0.000000e+00 : f32
    %7 = vector.broadcast %cst_6 : f32 to vector<4x32xf32>
    %8 = arith.cmpf oge, %6, %7 : vector<4x32xf32>
    %cst_7 = arith.constant 1.000000e-01 : f32
    %9 = vector.broadcast %cst_7 : f32 to vector<4x32xf32>
    %10 = arith.mulf %9, %6 : vector<4x32xf32>
    %11 = arith.select %8, %6, %10 : vector<4x32xi1>, vector<4x32xf32>
    %cst_8 = arith.constant dense<0.000000e+00> : vector<32xf32>
    %12 = vector.multi_reduction <add>, %11, %cst_8 [0] : vector<4x32xf32> to vector<32xf32>
    %13 = vector.shape_cast %12 : vector<32xf32> to vector<1x32xf32>
    %cst_9 = arith.constant 4.000000e+00 : f32
    %14 = vector.broadcast %cst_9 : f32 to vector<1x32xf32>
    %15 = arith.divf %13, %14 : vector<1x32xf32>
    %c0_10 = arith.constant 0 : index
    %c0_11 = arith.constant 0 : index
    %16 = vector.load %arg4[%c0_10, %c0_11] : memref<1x32xf32, #tpu.memory_space<vmem>>, vector<1x32xf32>
    %17 = arith.mulf %15, %16 : vector<1x32xf32>
    %cst_12 = arith.constant dense<0.000000e+00> : vector<1xf32>
    %18 = vector.multi_reduction <add>, %17, %cst_12 [1] : vector<1x32xf32> to vector<1xf32>
    %19 = vector.shape_cast %18 : vector<1xf32> to vector<1x1xf32>
    %c0_13 = arith.constant 0 : index
    %c0_14 = arith.constant 0 : index
    %20 = vector.load %arg5[%c0_13, %c0_14] : memref<1x1xf32, #tpu.memory_space<vmem>>, vector<1x1xf32>
    %21 = arith.addf %19, %20 : vector<1x1xf32>
    %22 = vector.shape_cast %21 : vector<1x1xf32> to vector<1x1xf32>
    %23 = vector.broadcast %22 : vector<1x1xf32> to vector<1x128xf32>
    %c0_15 = arith.constant 0 : index
    %c0_16 = arith.constant 0 : index
    %c0_17 = arith.constant 0 : index
    %24 = vector.load %arg6[%c0_15, %c0_16, %c0_17] : memref<1x1x128xf32, #tpu.memory_space<vmem>>, vector<1x1x128xf32>
    %25 = vector.shape_cast %24 : vector<1x1x128xf32> to vector<1x128xf32>
    %26 = vector.shape_cast %23 : vector<1x128xf32> to vector<1x1x128xf32>
    tpu.vector_store %arg6[%c0_15, %c0_16, %c0_17], %26 {strides = array<i32>} : memref<1x1x128xf32, #tpu.memory_space<vmem>>, vector<1x1x128xf32>,
    return
  }
  func.func @transform_0(%arg0: i32) -> (i32, i32, i32) {
    %c0_i32 = arith.constant 0 : i32
    %c0_i32_0 = arith.constant 0 : i32
    %c0_i32_1 = arith.constant 0 : i32
    return %arg0, %c0_i32, %c0_i32_0 : i32, i32, i32
  }
  func.func @transform_1(%arg0: i32) -> (i32, i32) {
    %c0_i32 = arith.constant 0 : i32
    %c0_i32_0 = arith.constant 0 : i32
    %c0_i32_1 = arith.constant 0 : i32
    return %c0_i32, %c0_i32_0 : i32, i32
  }
  func.func @transform_2(%arg0: i32) -> (i32, i32) {
    %c0_i32 = arith.constant 0 : i32
    %c0_i32_0 = arith.constant 0 : i32
    %c0_i32_1 = arith.constant 0 : i32
    return %c0_i32, %c0_i32_0 : i32, i32
  }
  func.func @transform_3(%arg0: i32) -> (i32, i32) {
    %c0_i32 = arith.constant 0 : i32
    %c0_i32_0 = arith.constant 0 : i32
    %c0_i32_1 = arith.constant 0 : i32
    return %c0_i32, %c0_i32_0 : i32, i32
  }
  func.func @transform_4(%arg0: i32) -> (i32, i32) {
    %c0_i32 = arith.constant 0 : i32
    %c0_i32_0 = arith.constant 0 : i32
    %c0_i32_1 = arith.constant 0 : i32
    return %c0_i32, %c0_i32_0 : i32, i32
  }
  func.func @transform_5(%arg0: i32) -> (i32, i32, i32) {
    %c0_i32 = arith.constant 0 : i32
    %c0_i32_0 = arith.constant 0 : i32
    %c0_i32_1 = arith.constant 0 : i32
    return %arg0, %c0_i32, %c0_i32_0 : i32, i32, i32
  }
}

module attributes {stable_mosaic.version = 11 : i64} {
  func.func @_conv3x3_s1_kernel(%arg0: i32, %arg1: memref<1x18x18x3xbf16, #tpu.memory_space<vmem>>, %arg2: memref<3x3x3x32xbf16, #tpu.memory_space<vmem>>, %arg3: memref<1x32xf32, #tpu.memory_space<vmem>>, %arg4: memref<1x16x16x32xbf16, #tpu.memory_space<vmem>>) attributes {dimension_semantics = [#tpu.dimension_semantics<parallel>], iteration_bounds = array<i64: 2>, scalar_prefetch = 0 : i64, scratch_operands = 0 : i64, tpu.core_type = #tpu.core_type<tc>, window_params = [{transform_indices = @transform_0, window_bounds = array<i64: 1, 18, 18, 3>}, {pipeline_mode = #tpu.pipeline_mode<synchronous>, transform_indices = @transform_1, window_bounds = array<i64: 3, 3, 3, 32>}, {pipeline_mode = #tpu.pipeline_mode<synchronous>, transform_indices = @transform_2, window_bounds = array<i64: 1, 32>}, {transform_indices = @transform_3, window_bounds = array<i64: 1, 16, 16, 32>}]} {
    %c0 = arith.constant 0 : index
    %c0_0 = arith.constant 0 : index
    %c0_1 = arith.constant 0 : index
    %c0_2 = arith.constant 0 : index
    %0 = vector.load %arg1[%c0, %c0_0, %c0_1, %c0_2] : memref<1x18x18x3xbf16, #tpu.memory_space<vmem>>, vector<1x18x18x3xbf16>
    %1 = vector.shape_cast %0 : vector<1x18x18x3xbf16> to vector<18x18x3xbf16>
    %cst = arith.constant 0.000000e+00 : f32
    %2 = vector.broadcast %cst : f32 to vector<256x32xf32>
    %3 = vector.extract_strided_slice %1 {offsets = [0, 0, 0], sizes = [16, 16, 3], strides = [1, 1, 1]} : vector<18x18x3xbf16> to vector<16x16x3xbf16>
    %4 = vector.shape_cast %3 : vector<16x16x3xbf16> to vector<256x3xbf16>
    %c0_3 = arith.constant 0 : index
    %c0_4 = arith.constant 0 : index
    %c0_5 = arith.constant 0 : index
    %c0_6 = arith.constant 0 : index
    %5 = vector.load %arg2[%c0_3, %c0_4, %c0_5, %c0_6] : memref<3x3x3x32xbf16, #tpu.memory_space<vmem>>, vector<1x1x3x32xbf16>
    %6 = vector.shape_cast %5 : vector<1x1x3x32xbf16> to vector<3x32xbf16>
    %cst_7 = arith.constant dense<0.000000e+00> : vector<256x32xf32>
    %7 = tpu.matmul %4, %6, %cst_7 {dimension_numbers = #tpu.dot_dimension_numbers<[1], [0], [0], [1], [0, 0, 1, 1], [], []>} : vector<256x3xbf16>, vector<3x32xbf16>, vector<256x32xf32> -> vector<256x32xf32>
    %8 = arith.addf %2, %7 : vector<256x32xf32>
    %9 = vector.extract_strided_slice %1 {offsets = [0, 1, 0], sizes = [16, 16, 3], strides = [1, 1, 1]} : vector<18x18x3xbf16> to vector<16x16x3xbf16>
    %10 = vector.shape_cast %9 : vector<16x16x3xbf16> to vector<256x3xbf16>
    %c0_8 = arith.constant 0 : index
    %c1 = arith.constant 1 : index
    %c0_9 = arith.constant 0 : index
    %c0_10 = arith.constant 0 : index
    %11 = vector.load %arg2[%c0_8, %c1, %c0_9, %c0_10] : memref<3x3x3x32xbf16, #tpu.memory_space<vmem>>, vector<1x1x3x32xbf16>
    %12 = vector.shape_cast %11 : vector<1x1x3x32xbf16> to vector<3x32xbf16>
    %cst_11 = arith.constant dense<0.000000e+00> : vector<256x32xf32>
    %13 = tpu.matmul %10, %12, %cst_11 {dimension_numbers = #tpu.dot_dimension_numbers<[1], [0], [0], [1], [0, 0, 1, 1], [], []>} : vector<256x3xbf16>, vector<3x32xbf16>, vector<256x32xf32> -> vector<256x32xf32>
    %14 = arith.addf %8, %13 : vector<256x32xf32>
    %15 = vector.extract_strided_slice %1 {offsets = [0, 2, 0], sizes = [16, 16, 3], strides = [1, 1, 1]} : vector<18x18x3xbf16> to vector<16x16x3xbf16>
    %16 = vector.shape_cast %15 : vector<16x16x3xbf16> to vector<256x3xbf16>
    %c0_12 = arith.constant 0 : index
    %c2 = arith.constant 2 : index
    %c0_13 = arith.constant 0 : index
    %c0_14 = arith.constant 0 : index
    %17 = vector.load %arg2[%c0_12, %c2, %c0_13, %c0_14] : memref<3x3x3x32xbf16, #tpu.memory_space<vmem>>, vector<1x1x3x32xbf16>
    %18 = vector.shape_cast %17 : vector<1x1x3x32xbf16> to vector<3x32xbf16>
    %cst_15 = arith.constant dense<0.000000e+00> : vector<256x32xf32>
    %19 = tpu.matmul %16, %18, %cst_15 {dimension_numbers = #tpu.dot_dimension_numbers<[1], [0], [0], [1], [0, 0, 1, 1], [], []>} : vector<256x3xbf16>, vector<3x32xbf16>, vector<256x32xf32> -> vector<256x32xf32>
    %20 = arith.addf %14, %19 : vector<256x32xf32>
    %21 = vector.extract_strided_slice %1 {offsets = [1, 0, 0], sizes = [16, 16, 3], strides = [1, 1, 1]} : vector<18x18x3xbf16> to vector<16x16x3xbf16>
    %22 = vector.shape_cast %21 : vector<16x16x3xbf16> to vector<256x3xbf16>
    %c1_16 = arith.constant 1 : index
    %c0_17 = arith.constant 0 : index
    %c0_18 = arith.constant 0 : index
    %c0_19 = arith.constant 0 : index
    %23 = vector.load %arg2[%c1_16, %c0_17, %c0_18, %c0_19] : memref<3x3x3x32xbf16, #tpu.memory_space<vmem>>, vector<1x1x3x32xbf16>
    %24 = vector.shape_cast %23 : vector<1x1x3x32xbf16> to vector<3x32xbf16>
    %cst_20 = arith.constant dense<0.000000e+00> : vector<256x32xf32>
    %25 = tpu.matmul %22, %24, %cst_20 {dimension_numbers = #tpu.dot_dimension_numbers<[1], [0], [0], [1], [0, 0, 1, 1], [], []>} : vector<256x3xbf16>, vector<3x32xbf16>, vector<256x32xf32> -> vector<256x32xf32>
    %26 = arith.addf %20, %25 : vector<256x32xf32>
    %27 = vector.extract_strided_slice %1 {offsets = [1, 1, 0], sizes = [16, 16, 3], strides = [1, 1, 1]} : vector<18x18x3xbf16> to vector<16x16x3xbf16>
    %28 = vector.shape_cast %27 : vector<16x16x3xbf16> to vector<256x3xbf16>
    %c1_21 = arith.constant 1 : index
    %c1_22 = arith.constant 1 : index
    %c0_23 = arith.constant 0 : index
    %c0_24 = arith.constant 0 : index
    %29 = vector.load %arg2[%c1_21, %c1_22, %c0_23, %c0_24] : memref<3x3x3x32xbf16, #tpu.memory_space<vmem>>, vector<1x1x3x32xbf16>
    %30 = vector.shape_cast %29 : vector<1x1x3x32xbf16> to vector<3x32xbf16>
    %cst_25 = arith.constant dense<0.000000e+00> : vector<256x32xf32>
    %31 = tpu.matmul %28, %30, %cst_25 {dimension_numbers = #tpu.dot_dimension_numbers<[1], [0], [0], [1], [0, 0, 1, 1], [], []>} : vector<256x3xbf16>, vector<3x32xbf16>, vector<256x32xf32> -> vector<256x32xf32>
    %32 = arith.addf %26, %31 : vector<256x32xf32>
    %33 = vector.extract_strided_slice %1 {offsets = [1, 2, 0], sizes = [16, 16, 3], strides = [1, 1, 1]} : vector<18x18x3xbf16> to vector<16x16x3xbf16>
    %34 = vector.shape_cast %33 : vector<16x16x3xbf16> to vector<256x3xbf16>
    %c1_26 = arith.constant 1 : index
    %c2_27 = arith.constant 2 : index
    %c0_28 = arith.constant 0 : index
    %c0_29 = arith.constant 0 : index
    %35 = vector.load %arg2[%c1_26, %c2_27, %c0_28, %c0_29] : memref<3x3x3x32xbf16, #tpu.memory_space<vmem>>, vector<1x1x3x32xbf16>
    %36 = vector.shape_cast %35 : vector<1x1x3x32xbf16> to vector<3x32xbf16>
    %cst_30 = arith.constant dense<0.000000e+00> : vector<256x32xf32>
    %37 = tpu.matmul %34, %36, %cst_30 {dimension_numbers = #tpu.dot_dimension_numbers<[1], [0], [0], [1], [0, 0, 1, 1], [], []>} : vector<256x3xbf16>, vector<3x32xbf16>, vector<256x32xf32> -> vector<256x32xf32>
    %38 = arith.addf %32, %37 : vector<256x32xf32>
    %39 = vector.extract_strided_slice %1 {offsets = [2, 0, 0], sizes = [16, 16, 3], strides = [1, 1, 1]} : vector<18x18x3xbf16> to vector<16x16x3xbf16>
    %40 = vector.shape_cast %39 : vector<16x16x3xbf16> to vector<256x3xbf16>
    %c2_31 = arith.constant 2 : index
    %c0_32 = arith.constant 0 : index
    %c0_33 = arith.constant 0 : index
    %c0_34 = arith.constant 0 : index
    %41 = vector.load %arg2[%c2_31, %c0_32, %c0_33, %c0_34] : memref<3x3x3x32xbf16, #tpu.memory_space<vmem>>, vector<1x1x3x32xbf16>
    %42 = vector.shape_cast %41 : vector<1x1x3x32xbf16> to vector<3x32xbf16>
    %cst_35 = arith.constant dense<0.000000e+00> : vector<256x32xf32>
    %43 = tpu.matmul %40, %42, %cst_35 {dimension_numbers = #tpu.dot_dimension_numbers<[1], [0], [0], [1], [0, 0, 1, 1], [], []>} : vector<256x3xbf16>, vector<3x32xbf16>, vector<256x32xf32> -> vector<256x32xf32>
    %44 = arith.addf %38, %43 : vector<256x32xf32>
    %45 = vector.extract_strided_slice %1 {offsets = [2, 1, 0], sizes = [16, 16, 3], strides = [1, 1, 1]} : vector<18x18x3xbf16> to vector<16x16x3xbf16>
    %46 = vector.shape_cast %45 : vector<16x16x3xbf16> to vector<256x3xbf16>
    %c2_36 = arith.constant 2 : index
    %c1_37 = arith.constant 1 : index
    %c0_38 = arith.constant 0 : index
    %c0_39 = arith.constant 0 : index
    %47 = vector.load %arg2[%c2_36, %c1_37, %c0_38, %c0_39] : memref<3x3x3x32xbf16, #tpu.memory_space<vmem>>, vector<1x1x3x32xbf16>
    %48 = vector.shape_cast %47 : vector<1x1x3x32xbf16> to vector<3x32xbf16>
    %cst_40 = arith.constant dense<0.000000e+00> : vector<256x32xf32>
    %49 = tpu.matmul %46, %48, %cst_40 {dimension_numbers = #tpu.dot_dimension_numbers<[1], [0], [0], [1], [0, 0, 1, 1], [], []>} : vector<256x3xbf16>, vector<3x32xbf16>, vector<256x32xf32> -> vector<256x32xf32>
    %50 = arith.addf %44, %49 : vector<256x32xf32>
    %51 = vector.extract_strided_slice %1 {offsets = [2, 2, 0], sizes = [16, 16, 3], strides = [1, 1, 1]} : vector<18x18x3xbf16> to vector<16x16x3xbf16>
    %52 = vector.shape_cast %51 : vector<16x16x3xbf16> to vector<256x3xbf16>
    %c2_41 = arith.constant 2 : index
    %c2_42 = arith.constant 2 : index
    %c0_43 = arith.constant 0 : index
    %c0_44 = arith.constant 0 : index
    %53 = vector.load %arg2[%c2_41, %c2_42, %c0_43, %c0_44] : memref<3x3x3x32xbf16, #tpu.memory_space<vmem>>, vector<1x1x3x32xbf16>
    %54 = vector.shape_cast %53 : vector<1x1x3x32xbf16> to vector<3x32xbf16>
    %cst_45 = arith.constant dense<0.000000e+00> : vector<256x32xf32>
    %55 = tpu.matmul %52, %54, %cst_45 {dimension_numbers = #tpu.dot_dimension_numbers<[1], [0], [0], [1], [0, 0, 1, 1], [], []>} : vector<256x3xbf16>, vector<3x32xbf16>, vector<256x32xf32> -> vector<256x32xf32>
    %56 = arith.addf %50, %55 : vector<256x32xf32>
    %c0_46 = arith.constant 0 : index
    %c0_47 = arith.constant 0 : index
    %57 = vector.load %arg3[%c0_46, %c0_47] : memref<1x32xf32, #tpu.memory_space<vmem>>, vector<1x32xf32>
    %58 = vector.broadcast %57 : vector<1x32xf32> to vector<256x32xf32>
    %59 = arith.addf %56, %58 : vector<256x32xf32>
    %cst_48 = arith.constant 0.000000e+00 : f32
    %60 = vector.broadcast %cst_48 : f32 to vector<256x32xf32>
    %61 = arith.cmpf oge, %59, %60 : vector<256x32xf32>
    %cst_49 = arith.constant 1.000000e-01 : f32
    %62 = vector.broadcast %cst_49 : f32 to vector<256x32xf32>
    %63 = arith.mulf %62, %59 : vector<256x32xf32>
    %64 = arith.select %61, %59, %63 : vector<256x32xi1>, vector<256x32xf32>
    %65 = vector.shape_cast %64 : vector<256x32xf32> to vector<16x16x32xf32>
    %66 = arith.truncf %65 : vector<16x16x32xf32> to vector<16x16x32xbf16>
    %c0_50 = arith.constant 0 : index
    %c0_51 = arith.constant 0 : index
    %c0_52 = arith.constant 0 : index
    %c0_53 = arith.constant 0 : index
    %67 = vector.load %arg4[%c0_50, %c0_51, %c0_52, %c0_53] : memref<1x16x16x32xbf16, #tpu.memory_space<vmem>>, vector<1x16x16x32xbf16>
    %68 = vector.shape_cast %67 : vector<1x16x16x32xbf16> to vector<16x16x32xbf16>
    %69 = vector.shape_cast %66 : vector<16x16x32xbf16> to vector<1x16x16x32xbf16>
    tpu.vector_store %arg4[%c0_50, %c0_51, %c0_52, %c0_53], %69 {strides = array<i32>} : memref<1x16x16x32xbf16, #tpu.memory_space<vmem>>, vector<1x16x16x32xbf16>,
    return
  }
  func.func @transform_0(%arg0: i32) -> (i32, i32, i32, i32) {
    %c0_i32 = arith.constant 0 : i32
    %c0_i32_0 = arith.constant 0 : i32
    %c0_i32_1 = arith.constant 0 : i32
    %c0_i32_2 = arith.constant 0 : i32
    return %arg0, %c0_i32, %c0_i32_0, %c0_i32_1 : i32, i32, i32, i32
  }
  func.func @transform_1(%arg0: i32) -> (i32, i32, i32, i32) {
    %c0_i32 = arith.constant 0 : i32
    %c0_i32_0 = arith.constant 0 : i32
    %c0_i32_1 = arith.constant 0 : i32
    %c0_i32_2 = arith.constant 0 : i32
    %c0_i32_3 = arith.constant 0 : i32
    return %c0_i32, %c0_i32_0, %c0_i32_1, %c0_i32_2 : i32, i32, i32, i32
  }
  func.func @transform_2(%arg0: i32) -> (i32, i32) {
    %c0_i32 = arith.constant 0 : i32
    %c0_i32_0 = arith.constant 0 : i32
    %c0_i32_1 = arith.constant 0 : i32
    return %c0_i32, %c0_i32_0 : i32, i32
  }
  func.func @transform_3(%arg0: i32) -> (i32, i32, i32, i32) {
    %c0_i32 = arith.constant 0 : i32
    %c0_i32_0 = arith.constant 0 : i32
    %c0_i32_1 = arith.constant 0 : i32
    %c0_i32_2 = arith.constant 0 : i32
    return %arg0, %c0_i32, %c0_i32_0, %c0_i32_1 : i32, i32, i32, i32
  }
}

module attributes {stable_mosaic.version = 11 : i64} {
  func.func @_conv_s2_gap_head_kernel(%arg0: i32, %arg1: memref<1x64x288xbf16, #tpu.memory_space<vmem>>, %arg2: memref<288x32xbf16, #tpu.memory_space<vmem>>, %arg3: memref<1x32xf32, #tpu.memory_space<vmem>>, %arg4: memref<1x32xf32, #tpu.memory_space<vmem>>, %arg5: memref<1x1xf32, #tpu.memory_space<vmem>>, %arg6: memref<1x1x128xf32, #tpu.memory_space<vmem>>) attributes {dimension_semantics = [#tpu.dimension_semantics<parallel>], iteration_bounds = array<i64: 2>, scalar_prefetch = 0 : i64, scratch_operands = 0 : i64, tpu.core_type = #tpu.core_type<tc>, window_params = [{transform_indices = @transform_0, window_bounds = array<i64: 1, 64, 288>}, {pipeline_mode = #tpu.pipeline_mode<synchronous>, transform_indices = @transform_1, window_bounds = array<i64: 288, 32>}, {pipeline_mode = #tpu.pipeline_mode<synchronous>, transform_indices = @transform_2, window_bounds = array<i64: 1, 32>}, {pipeline_mode = #tpu.pipeline_mode<synchronous>, transform_indices = @transform_3, window_bounds = array<i64: 1, 32>}, {pipeline_mode = #tpu.pipeline_mode<synchronous>, transform_indices = @transform_4, window_bounds = array<i64: 1, 1>}, {transform_indices = @transform_5, window_bounds = array<i64: 1, 1, 128>}]} {
    %c0 = arith.constant 0 : index
    %c0_0 = arith.constant 0 : index
    %c0_1 = arith.constant 0 : index
    %0 = vector.load %arg1[%c0, %c0_0, %c0_1] : memref<1x64x288xbf16, #tpu.memory_space<vmem>>, vector<1x64x288xbf16>
    %1 = vector.shape_cast %0 : vector<1x64x288xbf16> to vector<64x288xbf16>
    %c0_2 = arith.constant 0 : index
    %c0_3 = arith.constant 0 : index
    %2 = vector.load %arg2[%c0_2, %c0_3] : memref<288x32xbf16, #tpu.memory_space<vmem>>, vector<288x32xbf16>
    %cst = arith.constant dense<0.000000e+00> : vector<64x32xf32>
    %3 = tpu.matmul %1, %2, %cst {dimension_numbers = #tpu.dot_dimension_numbers<[1], [0], [0], [1], [0, 0, 1, 1], [], []>} : vector<64x288xbf16>, vector<288x32xbf16>, vector<64x32xf32> -> vector<64x32xf32>
    %c0_4 = arith.constant 0 : index
    %c0_5 = arith.constant 0 : index
    %4 = vector.load %arg3[%c0_4, %c0_5] : memref<1x32xf32, #tpu.memory_space<vmem>>, vector<1x32xf32>
    %5 = vector.broadcast %4 : vector<1x32xf32> to vector<64x32xf32>
    %6 = arith.addf %3, %5 : vector<64x32xf32>
    %cst_6 = arith.constant 0.000000e+00 : f32
    %7 = vector.broadcast %cst_6 : f32 to vector<64x32xf32>
    %8 = arith.cmpf oge, %6, %7 : vector<64x32xf32>
    %cst_7 = arith.constant 1.000000e-01 : f32
    %9 = vector.broadcast %cst_7 : f32 to vector<64x32xf32>
    %10 = arith.mulf %9, %6 : vector<64x32xf32>
    %11 = arith.select %8, %6, %10 : vector<64x32xi1>, vector<64x32xf32>
    %cst_8 = arith.constant dense<0.000000e+00> : vector<32xf32>
    %12 = vector.multi_reduction <add>, %11, %cst_8 [0] : vector<64x32xf32> to vector<32xf32>
    %13 = vector.shape_cast %12 : vector<32xf32> to vector<1x32xf32>
    %cst_9 = arith.constant 6.400000e+01 : f32
    %14 = vector.broadcast %cst_9 : f32 to vector<1x32xf32>
    %15 = arith.divf %13, %14 : vector<1x32xf32>
    %c0_10 = arith.constant 0 : index
    %c0_11 = arith.constant 0 : index
    %16 = vector.load %arg4[%c0_10, %c0_11] : memref<1x32xf32, #tpu.memory_space<vmem>>, vector<1x32xf32>
    %17 = arith.mulf %15, %16 : vector<1x32xf32>
    %cst_12 = arith.constant dense<0.000000e+00> : vector<1xf32>
    %18 = vector.multi_reduction <add>, %17, %cst_12 [1] : vector<1x32xf32> to vector<1xf32>
    %19 = vector.shape_cast %18 : vector<1xf32> to vector<1x1xf32>
    %c0_13 = arith.constant 0 : index
    %c0_14 = arith.constant 0 : index
    %20 = vector.load %arg5[%c0_13, %c0_14] : memref<1x1xf32, #tpu.memory_space<vmem>>, vector<1x1xf32>
    %21 = arith.addf %19, %20 : vector<1x1xf32>
    %22 = vector.shape_cast %21 : vector<1x1xf32> to vector<1x1xf32>
    %23 = vector.broadcast %22 : vector<1x1xf32> to vector<1x128xf32>
    %c0_15 = arith.constant 0 : index
    %c0_16 = arith.constant 0 : index
    %c0_17 = arith.constant 0 : index
    %24 = vector.load %arg6[%c0_15, %c0_16, %c0_17] : memref<1x1x128xf32, #tpu.memory_space<vmem>>, vector<1x1x128xf32>
    %25 = vector.shape_cast %24 : vector<1x1x128xf32> to vector<1x128xf32>
    %26 = vector.shape_cast %23 : vector<1x128xf32> to vector<1x1x128xf32>
    tpu.vector_store %arg6[%c0_15, %c0_16, %c0_17], %26 {strides = array<i32>} : memref<1x1x128xf32, #tpu.memory_space<vmem>>, vector<1x1x128xf32>,
    return
  }
  func.func @transform_0(%arg0: i32) -> (i32, i32, i32) {
    %c0_i32 = arith.constant 0 : i32
    %c0_i32_0 = arith.constant 0 : i32
    %c0_i32_1 = arith.constant 0 : i32
    return %arg0, %c0_i32, %c0_i32_0 : i32, i32, i32
  }
  func.func @transform_1(%arg0: i32) -> (i32, i32) {
    %c0_i32 = arith.constant 0 : i32
    %c0_i32_0 = arith.constant 0 : i32
    %c0_i32_1 = arith.constant 0 : i32
    return %c0_i32, %c0_i32_0 : i32, i32
  }
  func.func @transform_2(%arg0: i32) -> (i32, i32) {
    %c0_i32 = arith.constant 0 : i32
    %c0_i32_0 = arith.constant 0 : i32
    %c0_i32_1 = arith.constant 0 : i32
    return %c0_i32, %c0_i32_0 : i32, i32
  }
  func.func @transform_3(%arg0: i32) -> (i32, i32) {
    %c0_i32 = arith.constant 0 : i32
    %c0_i32_0 = arith.constant 0 : i32
    %c0_i32_1 = arith.constant 0 : i32
    return %c0_i32, %c0_i32_0 : i32, i32
  }
  func.func @transform_4(%arg0: i32) -> (i32, i32) {
    %c0_i32 = arith.constant 0 : i32
    %c0_i32_0 = arith.constant 0 : i32
    %c0_i32_1 = arith.constant 0 : i32
    return %c0_i32, %c0_i32_0 : i32, i32
  }
  func.func @transform_5(%arg0: i32) -> (i32, i32, i32) {
    %c0_i32 = arith.constant 0 : i32
    %c0_i32_0 = arith.constant 0 : i32
    %c0_i32_1 = arith.constant 0 : i32
    return %arg0, %c0_i32, %c0_i32_0 : i32, i32, i32
  }
}

</mosaic_0001>

<llo_original>
// kernel: _lambda_.9
$region0: #{_lambda_.9}
  #allocation0 [shape = 'u32[]', space=smem, size = 0x4, offset = 0x4, fixed_abs, tag = 'smem constant byte address 0x4 - core index']
  #allocation1 [shape = 'u32[72,128]{1,0:T(1,128)}', space=vmem, size = 0x9000, scoped, tag = 'internal scratch']
  #allocation2 [shape = 'f32[1,1]{1,0:T(1,128)S(1)}', space=vmem, size = 0x200, scoped, tag = 'scoped memory for _lambda_.9']
  %s0 = inlined_call_operand.vmem [shape: bf16[2,16,288], index: 0, kind: input, shape index: {}]
  %s1 = inlined_call_operand.vmem [shape: bf16[288,32], index: 1, kind: input, shape index: {}]
  %s2 = inlined_call_operand.vmem [shape: f32[1,32], index: 2, kind: input, shape index: {}]
  %s3 = inlined_call_operand.vmem [shape: f32[1,32], index: 3, kind: input, shape index: {}]
  %s4 = inlined_call_operand.<no memory space> [shape: f32[1,1], index: 4, kind: input, shape index: {}]
  %s5 = inlined_call_operand.vmem [shape: f32[2,1,128], index: 5, kind: output, shape index: {}]
  %s6 = sld [smem:[#allocation0]]
  $region53: #{_lambda_.9} parent=0
    _
  %s8 = ssub.s32 1, %s6
  %s9 = scalar_select 0, %s8, %s6
  %v10 = vstv %s4
  %11 = vst [vmem:[#allocation2] sm:$0x1] %v10
  loop: start=0, step=1, limit=4
  $region2: #{_lambda_.9} parent=0 // loop_pre_header
    _
  $region3: #{_lambda_.9} parent=0 // loop_header
    %s13 = sphi 0, %s17
    %p14 = scmp.ge.s32.totalorder %s13, 4
    %s23 = sphi 0, %s25
    %s26 = sphi 0, %s23
    %s27 = sphi 0, %s26
    %s43 = sphi 0, %s27
    %s47 = sphi 0, %s47
    %s49 = sphi 0, %s47
    %s50 = sphi 0, %s49
    %s64 = sphi 0, %s50
    %s68 = sphi 0, %s68
    %s70 = sphi 0, %s68
    %s71 = sphi 0, %s70
    %s85 = sphi 0, %s71
    %s89 = sphi 0, %s89
    %s91 = sphi 0, %s89
    %s92 = sphi 0, %s91
    %s106 = sphi 0, %s92
    %s110 = sphi 0, %s110
    %s112 = sphi 0, %s110
    %s113 = sphi 0, %s112
    %s127 = sphi 0, %s113
    %s133 = sphi 0, %s135
    %s136 = sphi 0, %s133
    %s137 = sphi 0, %s136
    %s153 = sphi 0, %s137
  $region4: #{_lambda_.9} parent=0 // loop_header_branch
    %16 = sbr.rel (%p14) target = $region8
  $region5: #{_lambda_.9} parent=0 // loop_body
    %s18 = ssub.s32 %s13, 1
    %s19 = ssub.s32 %s13, 2
    %s20 = sadd.s32 %s13, 1
    %s21 = ssub.s32 %s13, %s20
    %p22 = scmp.eq.s32.totalorder %s21, 0
    %s24 = sadd.s32 %s23, 1
    %s25 = scalar_select %p22, %s23, %s24
    %p28 = pneg %p22
    %p29 = scmp.eq.s32.totalorder %s13, 1
    %p30 = por %p28, %p29
    %p31 = scmp.ne.s32.totalorder %s23, %s26
    %p32 = scmp.eq.s32.totalorder %s13, 0
    %p33 = por %p31, %p32
    %p34 = scmp.ne.s32.totalorder %s23, %s26
    %p35 = scmp.eq.s32.totalorder %s18, 1
    %p36 = por %p34, %p35
    %p37 = scmp.ne.s32.totalorder %s26, %s27
    %p38 = scmp.eq.s32.totalorder %s18, 0
    %p39 = por %p37, %p38
    %p40 = scmp.ne.s32.totalorder %s26, %s27
    %p41 = scmp.eq.s32.totalorder %s19, 1
    %p42 = por %p40, %p41
    %p44 = scmp.ne.s32.totalorder %s27, %s43
    %p45 = scmp.eq.s32.totalorder %s19, 0
    %p46 = por %p44, %p45
    %s48 = sadd.s32 %s47, 1
    %p51 = scmp.eq.s32.totalorder %s13, 1
    %p52 = scmp.ne.s32.totalorder %s47, %s49
    %p53 = scmp.eq.s32.totalorder %s13, 0
    %p54 = por %p52, %p53
    %p55 = scmp.ne.s32.totalorder %s47, %s49
    %p56 = scmp.eq.s32.totalorder %s18, 1
    %p57 = por %p55, %p56
    %p58 = scmp.ne.s32.totalorder %s49, %s50
    %p59 = scmp.eq.s32.totalorder %s18, 0
    %p60 = por %p58, %p59
    %p61 = scmp.ne.s32.totalorder %s49, %s50
    %p62 = scmp.eq.s32.totalorder %s19, 1
    %p63 = por %p61, %p62
    %p65 = scmp.ne.s32.totalorder %s50, %s64
    %p66 = scmp.eq.s32.totalorder %s19, 0
    %p67 = por %p65, %p66
    %s69 = sadd.s32 %s68, 1
    %p72 = scmp.eq.s32.totalorder %s13, 1
    %p73 = scmp.ne.s32.totalorder %s68, %s70
    %p74 = scmp.eq.s32.totalorder %s13, 0
    %p75 = por %p73, %p74
    %p76 = scmp.ne.s32.totalorder %s68, %s70
    %p77 = scmp.eq.s32.totalorder %s18, 1
    %p78 = por %p76, %p77
    %p79 = scmp.ne.s32.totalorder %s70, %s71
    %p80 = scmp.eq.s32.totalorder %s18, 0
    %p81 = por %p79, %p80
    %p82 = scmp.ne.s32.totalorder %s70, %s71
    %p83 = scmp.eq.s32.totalorder %s19, 1
    %p84 = por %p82, %p83
    %p86 = scmp.ne.s32.totalorder %s71, %s85
    %p87 = scmp.eq.s32.totalorder %s19, 0
    %p88 = por %p86, %p87
    %s90 = sadd.s32 %s89, 1
    %p93 = scmp.eq.s32.totalorder %s13, 1
    %p94 = scmp.ne.s32.totalorder %s89, %s91
    %p95 = scmp.eq.s32.totalorder %s13, 0
    %p96 = por %p94, %p95
    %p97 = scmp.ne.s32.totalorder %s89, %s91
    %p98 = scmp.eq.s32.totalorder %s18, 1
    %p99 = por %p97, %p98
    %p100 = scmp.ne.s32.totalorder %s91, %s92
    %p101 = scmp.eq.s32.totalorder %s18, 0
    %p102 = por %p100, %p101
    %p103 = scmp.ne.s32.totalorder %s91, %s92
    %p104 = scmp.eq.s32.totalorder %s19, 1
    %p105 = por %p103, %p104
    %p107 = scmp.ne.s32.totalorder %s92, %s106
    %p108 = scmp.eq.s32.totalorder %s19, 0
    %p109 = por %p107, %p108
    %s111 = sadd.s32 %s110, 1
    %p114 = scmp.eq.s32.totalorder %s13, 1
    %p115 = scmp.ne.s32.totalorder %s110, %s112
    %p116 = scmp.eq.s32.totalorder %s13, 0
    %p117 = por %p115, %p116
    %p118 = scmp.ne.s32.totalorder %s110, %s112
    %p119 = scmp.eq.s32.totalorder %s18, 1
    %p120 = por %p118, %p119
    %p121 = scmp.ne.s32.totalorder %s112, %s113
    %p122 = scmp.eq.s32.totalorder %s18, 0
    %p123 = por %p121, %p122
    %p124 = scmp.ne.s32.totalorder %s112, %s113
    %p125 = scmp.eq.s32.totalorder %s19, 1
    %p126 = por %p124, %p125
    %p128 = scmp.ne.s32.totalorder %s113, %s127
    %p129 = scmp.eq.s32.totalorder %s19, 0
    %p130 = por %p128, %p129
    %s131 = ssub.s32 %s13, %s20
    %p132 = scmp.eq.s32.totalorder %s131, 0
    %s134 = sadd.s32 %s133, 1
    %s135 = scalar_select %p132, %s133, %s134
    %p138 = pneg %p132
    %p139 = scmp.eq.s32.totalorder %s13, 1
    %p140 = por %p138, %p139
    %p141 = scmp.ne.s32.totalorder %s133, %s136
    %p142 = scmp.eq.s32.totalorder %s13, 0
    %p143 = por %p141, %p142
    %p144 = scmp.ne.s32.totalorder %s133, %s136
    %p145 = scmp.eq.s32.totalorder %s18, 1
    %p146 = por %p144, %p145
    %p147 = scmp.ne.s32.totalorder %s136, %s137
    %p148 = scmp.eq.s32.totalorder %s18, 0
    %p149 = por %p147, %p148
    %p150 = scmp.ne.s32.totalorder %s136, %s137
    %p151 = scmp.eq.s32.totalorder %s19, 1
    %p152 = por %p150, %p151
    %p154 = scmp.ne.s32.totalorder %s137, %s153
    %p155 = scmp.eq.s32.totalorder %s19, 0
    %p156 = por %p154, %p155
    %p157 = scmp.le.s32.totalorder 1, %s13
    %p158 = scmp.lt.s32.totalorder %s13, 3
    %p159 = pnand %p157, %p158
    %p160 = pneg %p159
    // Predicated region
    $region9: #{_lambda_.9} parent=5 // pred_check
      _
    $region10: #{_lambda_.9} parent=5 // pred_check_branch
      %162 = sbr.rel (%p159) target = $region12
    $region11: #{_lambda_.9} parent=5 // pred_region
      %s163 = ssub.s32 %s13, 1
      // Predicated region
      $region13: #{_lambda_.9} parent=11 // pred_check
        %p164 = pneg %p60
      $region14: #{_lambda_.9} parent=11 // pred_check_branch
        %166 = sbr.rel (%p164) target = $region16
      $region15: #{_lambda_.9} parent=11 // pred_region
        _
      $region16: #{_lambda_.9} parent=11 // pred_fallthru
        _
      // Predicated region
      $region17: #{_lambda_.9} parent=11 // pred_check
        %p167 = pneg %p81
      $region18: #{_lambda_.9} parent=11 // pred_check_branch
        %169 = sbr.rel (%p167) target = $region20
      $region19: #{_lambda_.9} parent=11 // pred_region
        _
      $region20: #{_lambda_.9} parent=11 // pred_fallthru
        _
      // Predicated region
      $region21: #{_lambda_.9} parent=11 // pred_check
        %p170 = pneg %p102
      $region22: #{_lambda_.9} parent=11 // pred_check_branch
        %172 = sbr.rel (%p170) target = $region24
      $region23: #{_lambda_.9} parent=11 // pred_region
        _
      $region24: #{_lambda_.9} parent=11 // pred_fallthru
        _
      // Predicated region
      $region25: #{_lambda_.9} parent=11 // pred_check
        %p173 = pneg %p123
      $region26: #{_lambda_.9} parent=11 // pred_check_branch
        %175 = sbr.rel (%p173) target = $region28
      $region27: #{_lambda_.9} parent=11 // pred_region
        _
      $region28: #{_lambda_.9} parent=11 // pred_fallthru
        _
    $region12: #{_lambda_.9} parent=5 // pred_fallthru
      _
    %p176 = scmp.lt.s32.totalorder %s13, 2
    // Predicated region
    $region29: #{_lambda_.9} parent=5 // pred_check
      %p177 = pneg %p176
    $region30: #{_lambda_.9} parent=5 // pred_check_branch
      %179 = sbr.rel (%p177) target = $region32
    $region31: #{_lambda_.9} parent=5 // pred_region
      // Predicated region
      $region33: #{_lambda_.9} parent=31 // pred_check
        %p180 = pneg %p33
      $region34: #{_lambda_.9} parent=31 // pred_check_branch
        %182 = sbr.rel (%p180) target = $region36
      $region35: #{_lambda_.9} parent=31 // pred_region
        %p183 = scmp.lt.s32.totalorder %s13, 1
        %s184 = scalar_select %p183, %s13, 1
        %s185 = smul.addr %s184, 6
        %s186 = smul.addr %s185, 4
        %s187 = scalar_lea.vmem %s0, %s186
      $region36: #{_lambda_.9} parent=31 // pred_fallthru
        _
    $region32: #{_lambda_.9} parent=5 // pred_fallthru
      _
    %p188 = scmp.le.s32.totalorder 1, %s13
    %p189 = scmp.lt.s32.totalorder %s13, 3
    %p190 = pnand %p188, %p189
    %p191 = pneg %p190
    // Predicated region
    $region37: #{_lambda_.9} parent=5 // pred_check
      _
    $region38: #{_lambda_.9} parent=5 // pred_check_branch
      %193 = sbr.rel (%p190) target = $region40
    $region39: #{_lambda_.9} parent=5 // pred_region
      %s194 = ssub.s32 %s13, 1
      %p195 = scmp.lt.s32.totalorder %s18, 1
      %s196 = scalar_select %p195, %s18, 1
      %s197 = smul.addr %s196, 6
      %s198 = smul.addr %s197, 4
      %s199 = scalar_lea.vmem %s0, %s198
      %p200 = pneg %p39
      %p201 = pneg %p36
      %p202 = pneg %p60
      %p203 = pneg %p57
      %p204 = pneg %p81
      %p205 = pneg %p78
      %p206 = pneg %p102
      %p207 = pneg %p99
      %p208 = pneg %p123
      %p209 = pneg %p120
      %p210 = pneg %p149
      %p211 = pneg %p146
      %p212 = scmp.lt.s32.totalorder %s18, 1
      %s213 = scalar_select %p212, %s18, 1
      %s214 = scalar_lea.vmem %s5, %s213
      %p215 = scmp.lt.s32.totalorder %s18, 1
      %s216 = scalar_select %p215, %s18, 1
      %s217 = smul.addr %s216, 6
      %s218 = smul.addr %s217, 4
      %s219 = scalar_lea.vmem %s0, %s218
      %p220 = scmp.lt.s32.totalorder %s18, 1
      %s221 = scalar_select %p220, %s18, 1
      %s222 = scalar_lea.vmem %s5, %s221
      %v224 = vld [vmem:[%s219] sm:$0xff]
      %v225 = vld [vmem:[%s219 + $0x8] sm:$0xf]
      %v226 = vld [vmem:[%s219 + $0xc] sm:$0xff]
      %v227 = vld [vmem:[%s219 + $0x14] sm:$0xf]
      %v228 = vld [vmem:[%s1] sm:$0xf]
      %v229 = vld [vmem:[%s1 + $0x4] sm:$0xf]
      %v230 = vld [vmem:[%s1 + $0x8] sm:$0xf]
      %v231 = vld [vmem:[%s1 + $0xc] sm:$0xf]
      %v232 = vld [vmem:[%s1 + $0x10] sm:$0xf]
      %v233 = vld [vmem:[%s1 + $0x14] sm:$0xf]
      %v234 = vld [vmem:[%s1 + $0x18] sm:$0xf]
      %v235 = vld [vmem:[%s1 + $0x1c] sm:$0xf]
      %v236 = vld [vmem:[%s1 + $0x20] sm:$0xf]
      %v237 = vld [vmem:[%s1 + $0x24] sm:$0xf]
      %v238 = vld [vmem:[%s1 + $0x28] sm:$0xf]
      %v239 = vld [vmem:[%s1 + $0x2c] sm:$0xf]
      %v240 = vld [vmem:[%s1 + $0x30] sm:$0xf]
      %v241 = vld [vmem:[%s1 + $0x34] sm:$0xf]
      %v242 = vld [vmem:[%s1 + $0x38] sm:$0xf]
      %v243 = vld [vmem:[%s1 + $0x3c] sm:$0xf]
      %v244 = vld [vmem:[%s1 + $0x40] sm:$0xf]
      %v245 = vld [vmem:[%s1 + $0x44] sm:$0xf]
      %v246 = vld [vmem:[%s1 + $0x48] sm:$0xf]
      %v247 = vld [vmem:[%s1 + $0x4c] sm:$0xf]
      %v248 = vld [vmem:[%s1 + $0x50] sm:$0xf]
      %v249 = vld [vmem:[%s1 + $0x54] sm:$0xf]
      %v250 = vld [vmem:[%s1 + $0x58] sm:$0xf]
      %v251 = vld [vmem:[%s1 + $0x5c] sm:$0xf]
      %v252 = vld [vmem:[%s1 + $0x60] sm:$0xf]
      %v253 = vld [vmem:[%s1 + $0x64] sm:$0xf]
      %v254 = vld [vmem:[%s1 + $0x68] sm:$0xf]
      %v255 = vld [vmem:[%s1 + $0x6c] sm:$0xf]
      %v256 = vld [vmem:[%s1 + $0x70] sm:$0xf]
      %v257 = vld [vmem:[%s1 + $0x74] sm:$0xf]
      %v258 = vld [vmem:[%s1 + $0x78] sm:$0xf]
      %v259 = vld [vmem:[%s1 + $0x7c] sm:$0xf]
      %v260 = vld [vmem:[%s1 + $0x80] sm:$0xf]
      %v261 = vld [vmem:[%s1 + $0x84] sm:$0xf]
      %v262 = vld [vmem:[%s1 + $0x88] sm:$0xf]
      %v263 = vld [vmem:[%s1 + $0x8c] sm:$0xf]
      %v264 = vld [vmem:[%s2] sm:$0x1]
      %v266 = vperm.slane %v264, 0
      %v272 = vunpack.c.l.b16 %v224
      %v273 = vunpack.c.h.b16 %v224
      %v274 = vunpack.c.l.b16 %v225
      %v275 = vunpack.c.l.b16 %v226
      %v276 = vunpack.c.h.b16 %v226
      %v277 = vunpack.c.l.b16 %v227
      %v278 = vpack.c.b16 %v275, %v272
      %v279 = vpack.c.b16 %v276, %v273
      %v280 = vpack.c.b16 %v277, %v274
      %v319 = vunpack.c.l.b16 %v228
      %v320 = vunpack.c.l.b16 %v229
      %v321 = vunpack.c.l.b16 %v230
      %v322 = vunpack.c.l.b16 %v231
      %v323 = vunpack.c.l.b16 %v232
      %v324 = vunpack.c.l.b16 %v233
      %v325 = vunpack.c.l.b16 %v234
      %v326 = vunpack.c.l.b16 %v235
      %v327 = vunpack.c.l.b16 %v236
      %v328 = vunpack.c.l.b16 %v237
      %v329 = vunpack.c.l.b16 %v238
      %v330 = vunpack.c.l.b16 %v239
      %v331 = vunpack.c.l.b16 %v240
      %v332 = vunpack.c.l.b16 %v241
      %v333 = vunpack.c.l.b16 %v242
      %v334 = vunpack.c.l.b16 %v243
      %v335 = vunpack.c.l.b16 %v244
      %v336 = vunpack.c.l.b16 %v245
      %v337 = vunpack.c.l.b16 %v246
      %v338 = vunpack.c.l.b16 %v247
      %v339 = vunpack.c.l.b16 %v248
      %v340 = vunpack.c.l.b16 %v249
      %v341 = vunpack.c.l.b16 %v250
      %v342 = vunpack.c.l.b16 %v251
      %v343 = vunpack.c.l.b16 %v252
      %v344 = vunpack.c.l.b16 %v253
      %v345 = vunpack.c.l.b16 %v254
      %v346 = vunpack.c.l.b16 %v255
      %v347 = vunpack.c.l.b16 %v256
      %v348 = vunpack.c.l.b16 %v257
      %v349 = vunpack.c.l.b16 %v258
      %v350 = vunpack.c.l.b16 %v259
      %v351 = vunpack.c.l.b16 %v260
      %v352 = vunpack.c.l.b16 %v261
      %v353 = vunpack.c.l.b16 %v262
      %v354 = vunpack.c.l.b16 %v263
      %v355 = vpack.c.b16 %v320, %v319
      %v356 = vpack.c.b16 %v322, %v321
      %v357 = vpack.c.b16 %v324, %v323
      %v358 = vpack.c.b16 %v326, %v325
      %v359 = vpack.c.b16 %v328, %v327
      %v360 = vpack.c.b16 %v330, %v329
      %v361 = vpack.c.b16 %v332, %v331
      %v362 = vpack.c.b16 %v334, %v333
      %v363 = vpack.c.b16 %v336, %v335
      %v364 = vpack.c.b16 %v338, %v337
      %v365 = vpack.c.b16 %v340, %v339
      %v366 = vpack.c.b16 %v342, %v341
      %v367 = vpack.c.b16 %v344, %v343
      %v368 = vpack.c.b16 %v346, %v345
      %v369 = vpack.c.b16 %v348, %v347
      %v370 = vpack.c.b16 %v350, %v349
      %v371 = vpack.c.b16 %v352, %v351
      %v372 = vpack.c.b16 %v354, %v353
      %vm391 = vcmask 261120
      %v393 = vsel %vm391, %v280, 0
      %395 = vmatpush.bf16.msra.mxu0 %v362
      %396 = vmatpush.bf16.msra.mxu0 %v361
      %397 = vmatpush.bf16.msra.mxu0 %v360
      %398 = vmatpush.bf16.msra.mxu0 %v359
      %399 = vmatpush.bf16.msra.mxu0 %v358
      %400 = vmatpush.bf16.msra.mxu0 %v357
      %401 = vmatpush.bf16.msra.mxu0 %v356
      %402 = vmatpush.bf16.msra.mxu0 %v355
      %403 = vmatmul.bf16.gmra.mxu0 %v278
      %v404 = vpop.f32.mrf.mxu0
      %v405 = vadd.f32 %v266, %v404
      %v406 = vpop.f32.mrf.mxu0
      %v407 = vadd.f32 %v266, %v406
      %408 = vdwg.mxu0
      %409 = vmatpush.bf16.msra.mxu0 %v370
      %410 = vmatpush.bf16.msra.mxu0 %v369
      %411 = vmatpush.bf16.msra.mxu0 %v368
      %412 = vmatpush.bf16.msra.mxu0 %v367
      %413 = vmatpush.bf16.msra.mxu0 %v366
      %414 = vmatpush.bf16.msra.mxu0 %v365
      %415 = vmatpush.bf16.msra.mxu0 %v364
      %416 = vmatpush.bf16.msra.mxu0 %v363
      %417 = vmatmul.bf16.gmra.mxu0 %v279
      %v418 = vpop.f32.mrf.mxu0
      %v419 = vadd.f32 %v405, %v418
      %v420 = vpop.f32.mrf.mxu0
      %v421 = vadd.f32 %v407, %v420
      %422 = vdwg.mxu0
      %423 = vmatpush.bf16.msra.mxu0 0
      %424 = vmatpush.bf16.msra.mxu0 0
      %425 = vmatpush.bf16.msra.mxu0 0
      %426 = vmatpush.bf16.msra.mxu0 0
      %427 = vmatpush.bf16.msra.mxu0 0
      %428 = vmatpush.bf16.msra.mxu0 0
      %429 = vmatpush.bf16.msra.mxu0 %v372
      %430 = vmatpush.bf16.msra.mxu0 %v371
      %431 = vmatmul.bf16.gmra.mxu0 %v393
      %v432 = vpop.f32.mrf.mxu0
      %v433 = vadd.f32 %v419, %v432
      %v434 = vpop.f32.mrf.mxu0
      %v435 = vadd.f32 %v421, %v434
      %436 = vdwg.mxu0
      %vm437 = vcmp.ge.f32.partialorder %v433, 0.0
      %vm438 = vcmp.ge.f32.partialorder %v435, 0.0
      %v439 = vmul.f32 %v433, 0.1
      %v440 = vmul.f32 %v435, 0.1
      %v441 = vsel %vm437, %v433, %v439
      %v442 = vsel %vm438, %v435, %v440
      %v443 = vsel %vm391, %v441, 0.0
      %v444 = vsel %vm391, %v442, 0.0
      %v445 = vadd.f32 %v443, %v444
      %v446 = vrot.slane %v445, 4
      %v447 = vadd.f32 %v445, %v446
      %v448 = vrot.slane %v447, 2
      %v449 = vadd.f32 %v447, %v448
      %v450 = vrot.slane %v449, 1
      %v451 = vadd.f32 %v449, %v450
      %v452 = vrcp.pop 16.0
      %v453 = vmul.f32 16.0, %v452
      %v454 = vsub.f32 1.0, %v453
      %v455 = vmul.f32 %v452, %v454
      %v456 = vadd.f32 %v452, %v455
      %vm457 = vweird.f32 %v452
      %v458 = vsel %vm457, %v452, %v456
      %v459 = vmul.f32 %v451, %v458
      %v460 = vld [vmem:[%s3] sm:$0x1]
      %v461 = vmul.f32 %v459, %v460
      %vm462 = vcmask 253952
      %v463 = vsel %vm462, %v461, 0.0
      %464 = vadd.xlane.f32.xlu0 %v463
      %v465 = vpop.xlane.xlu0 %464
      %v466 = vld [vmem:[#allocation2] sm:$0x1]
      %v467 = vadd.f32 %v465, %v466
      %469 = vset.pattern.permute.xlu0 0
      %470 = vperm.xlu0 %469, %v467
      %v471 = vpop.permute.xlu0 %470
      %473 = vst [vmem:[%s222] sm:$0x1] %v471
      %p474 = scmp.lt.s32.totalorder %s18, 1
      %s475 = scalar_select %p474, %s18, 1
      %s476 = scalar_lea.vmem %s5, %s475
      // Predicated region
      $region41: #{_lambda_.9} parent=39 // pred_check
        %p477 = pneg %p146
      $region42: #{_lambda_.9} parent=39 // pred_check_branch
        %479 = sbr.rel (%p477) target = $region44
      $region43: #{_lambda_.9} parent=39 // pred_region
        _
      $region44: #{_lambda_.9} parent=39 // pred_fallthru
        _
    $region40: #{_lambda_.9} parent=5 // pred_fallthru
      _
    %p480 = scmp.le.s32.totalorder 2, %s13
    // Predicated region
    $region45: #{_lambda_.9} parent=5 // pred_check
      %p481 = pneg %p480
    $region46: #{_lambda_.9} parent=5 // pred_check_branch
      %483 = sbr.rel (%p481) target = $region48
    $region47: #{_lambda_.9} parent=5 // pred_region
      %s484 = ssub.s32 %s13, 2
      // Predicated region
      $region49: #{_lambda_.9} parent=47 // pred_check
        %p485 = pneg %p152
      $region50: #{_lambda_.9} parent=47 // pred_check_branch
        %487 = sbr.rel (%p485) target = $region52
      $region51: #{_lambda_.9} parent=47 // pred_region
        %p488 = scmp.lt.s32.totalorder %s19, 1
        %s489 = scalar_select %p488, %s19, 1
        %s490 = scalar_lea.vmem %s5, %s489
      $region52: #{_lambda_.9} parent=47 // pred_fallthru
        _
    $region48: #{_lambda_.9} parent=5 // pred_fallthru
      _
  $region6: #{_lambda_.9} parent=0 // loop_footer
    %s17 = sadd.s32 1, %s13
  $region7: #{_lambda_.9} parent=0 // loop_footer_branch
    %12 = sbr.rel target = $region3
  $region8: #{_lambda_.9} parent=0 // loop_exit
    _

// kernel: _lambda_.8
$region0: #{_lambda_.8}
  #allocation0 [shape = 'u32[]', space=smem, size = 0x4, offset = 0x4, fixed_abs, tag = 'smem constant byte address 0x4 - core index']
  #allocation1 [shape = 'u32[72,128]{1,0:T(1,128)}', space=vmem, size = 0x9000, scoped, tag = 'internal scratch']
  %s0 = inlined_call_operand.vmem [shape: bf16[2,10,10,12], index: 0, kind: input, shape index: {}]
  %s1 = inlined_call_operand.vmem [shape: bf16[3,3,3,32], index: 1, kind: input, shape index: {}]
  %s2 = inlined_call_operand.vmem [shape: f32[1,32], index: 2, kind: input, shape index: {}]
  %s3 = inlined_call_operand.vmem [shape: bf16[2,8,8,32], index: 3, kind: output, shape index: {}]
  %s4 = sld [smem:[#allocation0]]
  $region45: #{_lambda_.8} parent=0
    _
  %s6 = ssub.s32 1, %s4
  %s7 = scalar_select 0, %s6, %s4
  loop: start=0, step=1, limit=4
  $region2: #{_lambda_.8} parent=0 // loop_pre_header
    _
  $region3: #{_lambda_.8} parent=0 // loop_header
    %s9 = sphi 0, %s13
    %p10 = scmp.ge.s32.totalorder %s9, 4
    %s19 = sphi 0, %s21
    %s22 = sphi 0, %s19
    %s23 = sphi 0, %s22
    %s39 = sphi 0, %s23
    %s43 = sphi 0, %s43
    %s45 = sphi 0, %s43
    %s46 = sphi 0, %s45
    %s60 = sphi 0, %s46
    %s64 = sphi 0, %s64
    %s66 = sphi 0, %s64
    %s67 = sphi 0, %s66
    %s81 = sphi 0, %s67
    %s87 = sphi 0, %s89
    %s90 = sphi 0, %s87
    %s91 = sphi 0, %s90
    %s107 = sphi 0, %s91
  $region4: #{_lambda_.8} parent=0 // loop_header_branch
    %12 = sbr.rel (%p10) target = $region8
  $region5: #{_lambda_.8} parent=0 // loop_body
    %s14 = ssub.s32 %s9, 1
    %s15 = ssub.s32 %s9, 2
    %s16 = sadd.s32 %s9, 1
    %s17 = ssub.s32 %s9, %s16
    %p18 = scmp.eq.s32.totalorder %s17, 0
    %s20 = sadd.s32 %s19, 1
    %s21 = scalar_select %p18, %s19, %s20
    %p24 = pneg %p18
    %p25 = scmp.eq.s32.totalorder %s9, 1
    %p26 = por %p24, %p25
    %p27 = scmp.ne.s32.totalorder %s19, %s22
    %p28 = scmp.eq.s32.totalorder %s9, 0
    %p29 = por %p27, %p28
    %p30 = scmp.ne.s32.totalorder %s19, %s22
    %p31 = scmp.eq.s32.totalorder %s14, 1
    %p32 = por %p30, %p31
    %p33 = scmp.ne.s32.totalorder %s22, %s23
    %p34 = scmp.eq.s32.totalorder %s14, 0
    %p35 = por %p33, %p34
    %p36 = scmp.ne.s32.totalorder %s22, %s23
    %p37 = scmp.eq.s32.totalorder %s15, 1
    %p38 = por %p36, %p37
    %p40 = scmp.ne.s32.totalorder %s23, %s39
    %p41 = scmp.eq.s32.totalorder %s15, 0
    %p42 = por %p40, %p41
    %s44 = sadd.s32 %s43, 1
    %p47 = scmp.eq.s32.totalorder %s9, 1
    %p48 = scmp.ne.s32.totalorder %s43, %s45
    %p49 = scmp.eq.s32.totalorder %s9, 0
    %p50 = por %p48, %p49
    %p51 = scmp.ne.s32.totalorder %s43, %s45
    %p52 = scmp.eq.s32.totalorder %s14, 1
    %p53 = por %p51, %p52
    %p54 = scmp.ne.s32.totalorder %s45, %s46
    %p55 = scmp.eq.s32.totalorder %s14, 0
    %p56 = por %p54, %p55
    %p57 = scmp.ne.s32.totalorder %s45, %s46
    %p58 = scmp.eq.s32.totalorder %s15, 1
    %p59 = por %p57, %p58
    %p61 = scmp.ne.s32.totalorder %s46, %s60
    %p62 = scmp.eq.s32.totalorder %s15, 0
    %p63 = por %p61, %p62
    %s65 = sadd.s32 %s64, 1
    %p68 = scmp.eq.s32.totalorder %s9, 1
    %p69 = scmp.ne.s32.totalorder %s64, %s66
    %p70 = scmp.eq.s32.totalorder %s9, 0
    %p71 = por %p69, %p70
    %p72 = scmp.ne.s32.totalorder %s64, %s66
    %p73 = scmp.eq.s32.totalorder %s14, 1
    %p74 = por %p72, %p73
    %p75 = scmp.ne.s32.totalorder %s66, %s67
    %p76 = scmp.eq.s32.totalorder %s14, 0
    %p77 = por %p75, %p76
    %p78 = scmp.ne.s32.totalorder %s66, %s67
    %p79 = scmp.eq.s32.totalorder %s15, 1
    %p80 = por %p78, %p79
    %p82 = scmp.ne.s32.totalorder %s67, %s81
    %p83 = scmp.eq.s32.totalorder %s15, 0
    %p84 = por %p82, %p83
    %s85 = ssub.s32 %s9, %s16
    %p86 = scmp.eq.s32.totalorder %s85, 0
    %s88 = sadd.s32 %s87, 1
    %s89 = scalar_select %p86, %s87, %s88
    %p92 = pneg %p86
    %p93 = scmp.eq.s32.totalorder %s9, 1
    %p94 = por %p92, %p93
    %p95 = scmp.ne.s32.totalorder %s87, %s90
    %p96 = scmp.eq.s32.totalorder %s9, 0
    %p97 = por %p95, %p96
    %p98 = scmp.ne.s32.totalorder %s87, %s90
    %p99 = scmp.eq.s32.totalorder %s14, 1
    %p100 = por %p98, %p99
    %p101 = scmp.ne.s32.totalorder %s90, %s91
    %p102 = scmp.eq.s32.totalorder %s14, 0
    %p103 = por %p101, %p102
    %p104 = scmp.ne.s32.totalorder %s90, %s91
    %p105 = scmp.eq.s32.totalorder %s15, 1
    %p106 = por %p104, %p105
    %p108 = scmp.ne.s32.totalorder %s91, %s107
    %p109 = scmp.eq.s32.totalorder %s15, 0
    %p110 = por %p108, %p109
    %p111 = scmp.le.s32.totalorder 1, %s9
    %p112 = scmp.lt.s32.totalorder %s9, 3
    %p113 = pnand %p111, %p112
    %p114 = pneg %p113
    // Predicated region
    $region9: #{_lambda_.8} parent=5 // pred_check
      _
    $region10: #{_lambda_.8} parent=5 // pred_check_branch
      %116 = sbr.rel (%p113) target = $region12
    $region11: #{_lambda_.8} parent=5 // pred_region
      %s117 = ssub.s32 %s9, 1
      // Predicated region
      $region13: #{_lambda_.8} parent=11 // pred_check
        %p118 = pneg %p56
      $region14: #{_lambda_.8} parent=11 // pred_check_branch
        %120 = sbr.rel (%p118) target = $region16
      $region15: #{_lambda_.8} parent=11 // pred_region
        _
      $region16: #{_lambda_.8} parent=11 // pred_fallthru
        _
      // Predicated region
      $region17: #{_lambda_.8} parent=11 // pred_check
        %p121 = pneg %p77
      $region18: #{_lambda_.8} parent=11 // pred_check_branch
        %123 = sbr.rel (%p121) target = $region20
      $region19: #{_lambda_.8} parent=11 // pred_region
        _
      $region20: #{_lambda_.8} parent=11 // pred_fallthru
        _
    $region12: #{_lambda_.8} parent=5 // pred_fallthru
      _
    %p124 = scmp.lt.s32.totalorder %s9, 2
    // Predicated region
    $region21: #{_lambda_.8} parent=5 // pred_check
      %p125 = pneg %p124
    $region22: #{_lambda_.8} parent=5 // pred_check_branch
      %127 = sbr.rel (%p125) target = $region24
    $region23: #{_lambda_.8} parent=5 // pred_region
      // Predicated region
      $region25: #{_lambda_.8} parent=23 // pred_check
        %p128 = pneg %p29
      $region26: #{_lambda_.8} parent=23 // pred_check_branch
        %130 = sbr.rel (%p128) target = $region28
      $region27: #{_lambda_.8} parent=23 // pred_region
        %p131 = scmp.lt.s32.totalorder %s9, 1
        %s132 = scalar_select %p131, %s9, 1
        %s133 = smul.addr %s132, 20
        %s134 = smul.addr %s133, 4
        %s135 = scalar_lea.vmem %s0, %s134
      $region28: #{_lambda_.8} parent=23 // pred_fallthru
        _
    $region24: #{_lambda_.8} parent=5 // pred_fallthru
      _
    %p136 = scmp.le.s32.totalorder 1, %s9
    %p137 = scmp.lt.s32.totalorder %s9, 3
    %p138 = pnand %p136, %p137
    %p139 = pneg %p138
    // Predicated region
    $region29: #{_lambda_.8} parent=5 // pred_check
      _
    $region30: #{_lambda_.8} parent=5 // pred_check_branch
      %141 = sbr.rel (%p138) target = $region32
    $region31: #{_lambda_.8} parent=5 // pred_region
      %s142 = ssub.s32 %s9, 1
      %p143 = scmp.lt.s32.totalorder %s14, 1
      %s144 = scalar_select %p143, %s14, 1
      %s145 = smul.addr %s144, 20
      %s146 = smul.addr %s145, 4
      %s147 = scalar_lea.vmem %s0, %s146
      %p148 = pneg %p35
      %p149 = pneg %p32
      %p150 = pneg %p56
      %p151 = pneg %p53
      %p152 = pneg %p77
      %p153 = pneg %p74
      %p154 = pneg %p103
      %p155 = pneg %p100
      %p156 = scmp.lt.s32.totalorder %s14, 1
      %s157 = scalar_select %p156, %s14, 1
      %s158 = smul.addr %s157, 8
      %s159 = smul.addr %s158, 4
      %s160 = scalar_lea.vmem %s3, %s159
      %p161 = scmp.lt.s32.totalorder %s14, 1
      %s162 = scalar_select %p161, %s14, 1
      %s163 = smul.addr %s162, 20
      %s164 = smul.addr %s163, 4
      %s165 = scalar_lea.vmem %s0, %s164
      %p166 = scmp.lt.s32.totalorder %s14, 1
      %s167 = scalar_select %p166, %s14, 1
      %s168 = smul.addr %s167, 8
      %s169 = smul.addr %s168, 4
      %s170 = scalar_lea.vmem %s3, %s169
      %v172 = vld [vmem:[%s165] sm:$0xf]
      %v173 = vld [vmem:[%s165 + $0x4] sm:$0x1]
      %v174 = vld [vmem:[%s165 + $0x8] sm:$0xf]
      %v175 = vld [vmem:[%s165 + $0xc] sm:$0x1]
      %v176 = vld [vmem:[%s165 + $0x10] sm:$0xf]
      %v177 = vld [vmem:[%s165 + $0x14] sm:$0x1]
      %v178 = vld [vmem:[%s165 + $0x18] sm:$0xf]
      %v179 = vld [vmem:[%s165 + $0x1c] sm:$0x1]
      %v180 = vld [vmem:[%s165 + $0x20] sm:$0xf]
      %v181 = vld [vmem:[%s165 + $0x24] sm:$0x1]
      %v182 = vld [vmem:[%s165 + $0x28] sm:$0xf]
      %v183 = vld [vmem:[%s165 + $0x2c] sm:$0x1]
      %v184 = vld [vmem:[%s165 + $0x30] sm:$0xf]
      %v185 = vld [vmem:[%s165 + $0x34] sm:$0x1]
      %v186 = vld [vmem:[%s165 + $0x38] sm:$0xf]
      %v187 = vld [vmem:[%s165 + $0x3c] sm:$0x1]
      %v188 = vld [vmem:[%s165 + $0x40] sm:$0xf]
      %v189 = vld [vmem:[%s165 + $0x44] sm:$0x1]
      %v190 = vld [vmem:[%s165 + $0x48] sm:$0xf]
      %v191 = vld [vmem:[%s165 + $0x4c] sm:$0x1]
      %v192 = vunpack.c.l.bf16 %v172
      %v193 = vunpack.c.l.bf16 %v173
      %v194 = vunpack.c.l.bf16 %v174
      %v195 = vunpack.c.l.bf16 %v175
      %v196 = vunpack.c.l.bf16 %v176
      %v197 = vunpack.c.l.bf16 %v177
      %v198 = vunpack.c.l.bf16 %v178
      %v199 = vunpack.c.l.bf16 %v179
      %v200 = vunpack.c.l.bf16 %v180
      %v201 = vunpack.c.l.bf16 %v181
      %v202 = vunpack.c.l.bf16 %v182
      %v203 = vunpack.c.l.bf16 %v183
      %v204 = vunpack.c.l.bf16 %v184
      %v205 = vunpack.c.l.bf16 %v185
      %v206 = vunpack.c.l.bf16 %v186
      %v207 = vunpack.c.l.bf16 %v187
      %v208 = vunpack.c.l.bf16 %v188
      %v209 = vunpack.c.l.bf16 %v189
      %v210 = vunpack.c.l.bf16 %v190
      %v211 = vunpack.c.l.bf16 %v191
      %232 = vrot.lane.b32.xlu0 %v192, 125
      %v233 = vpop.permute.xlu0 %232
      %234 = vrot.lane.b32.xlu0 %v193, 125
      %v235 = vpop.permute.xlu0 %234
      %236 = vrot.lane.b32.xlu0 %v194, 125
      %v237 = vpop.permute.xlu0 %236
      %238 = vrot.lane.b32.xlu0 %v195, 125
      %v239 = vpop.permute.xlu0 %238
      %240 = vrot.lane.b32.xlu0 %v196, 125
      %v241 = vpop.permute.xlu0 %240
      %242 = vrot.lane.b32.xlu0 %v197, 125
      %v243 = vpop.permute.xlu0 %242
      %244 = vrot.lane.b32.xlu0 %v198, 125
      %v245 = vpop.permute.xlu0 %244
      %246 = vrot.lane.b32.xlu0 %v199, 125
      %v247 = vpop.permute.xlu0 %246
      %248 = vrot.lane.b32.xlu0 %v200, 125
      %v249 = vpop.permute.xlu0 %248
      %250 = vrot.lane.b32.xlu0 %v201, 125
      %v251 = vpop.permute.xlu0 %250
      %252 = vrot.lane.b32.xlu0 %v202, 125
      %v253 = vpop.permute.xlu0 %252
      %254 = vrot.lane.b32.xlu0 %v203, 125
      %v255 = vpop.permute.xlu0 %254
      %256 = vrot.lane.b32.xlu0 %v204, 125
      %v257 = vpop.permute.xlu0 %256
      %258 = vrot.lane.b32.xlu0 %v205, 125
      %v259 = vpop.permute.xlu0 %258
      %260 = vrot.lane.b32.xlu0 %v206, 125
      %v261 = vpop.permute.xlu0 %260
      %262 = vrot.lane.b32.xlu0 %v207, 125
      %v263 = vpop.permute.xlu0 %262
      %264 = vrot.lane.b32.xlu0 %v208, 125
      %v265 = vpop.permute.xlu0 %264
      %266 = vrot.lane.b32.xlu0 %v209, 125
      %v267 = vpop.permute.xlu0 %266
      %268 = vrot.lane.b32.xlu0 %v210, 125
      %v269 = vpop.permute.xlu0 %268
      %270 = vrot.lane.b32.xlu0 %v211, 125
      %v271 = vpop.permute.xlu0 %270
      %v292 = vadd.f32 %v192, %v233
      %v293 = vadd.f32 %v193, %v235
      %v294 = vadd.f32 %v194, %v237
      %v295 = vadd.f32 %v195, %v239
      %v296 = vadd.f32 %v196, %v241
      %v297 = vadd.f32 %v197, %v243
      %v298 = vadd.f32 %v198, %v245
      %v299 = vadd.f32 %v199, %v247
      %v300 = vadd.f32 %v200, %v249
      %v301 = vadd.f32 %v201, %v251
      %v302 = vadd.f32 %v202, %v253
      %v303 = vadd.f32 %v203, %v255
      %v304 = vadd.f32 %v204, %v257
      %v305 = vadd.f32 %v205, %v259
      %v306 = vadd.f32 %v206, %v261
      %v307 = vadd.f32 %v207, %v263
      %v308 = vadd.f32 %v208, %v265
      %v309 = vadd.f32 %v209, %v267
      %v310 = vadd.f32 %v210, %v269
      %v311 = vadd.f32 %v211, %v271
      %312 = vrot.lane.b32.xlu0 %v192, 122
      %v313 = vpop.permute.xlu0 %312
      %314 = vrot.lane.b32.xlu0 %v193, 122
      %v315 = vpop.permute.xlu0 %314
      %316 = vrot.lane.b32.xlu0 %v194, 122
      %v317 = vpop.permute.xlu0 %316
      %318 = vrot.lane.b32.xlu0 %v195, 122
      %v319 = vpop.permute.xlu0 %318
      %320 = vrot.lane.b32.xlu0 %v196, 122
      %v321 = vpop.permute.xlu0 %320
      %322 = vrot.lane.b32.xlu0 %v197, 122
      %v323 = vpop.permute.xlu0 %322
      %324 = vrot.lane.b32.xlu0 %v198, 122
      %v325 = vpop.permute.xlu0 %324
      %326 = vrot.lane.b32.xlu0 %v199, 122
      %v327 = vpop.permute.xlu0 %326
      %328 = vrot.lane.b32.xlu0 %v200, 122
      %v329 = vpop.permute.xlu0 %328
      %330 = vrot.lane.b32.xlu0 %v201, 122
      %v331 = vpop.permute.xlu0 %330
      %332 = vrot.lane.b32.xlu0 %v202, 122
      %v333 = vpop.permute.xlu0 %332
      %334 = vrot.lane.b32.xlu0 %v203, 122
      %v335 = vpop.permute.xlu0 %334
      %336 = vrot.lane.b32.xlu0 %v204, 122
      %v337 = vpop.permute.xlu0 %336
      %338 = vrot.lane.b32.xlu0 %v205, 122
      %v339 = vpop.permute.xlu0 %338
      %340 = vrot.lane.b32.xlu0 %v206, 122
      %v341 = vpop.permute.xlu0 %340
      %342 = vrot.lane.b32.xlu0 %v207, 122
      %v343 = vpop.permute.xlu0 %342
      %344 = vrot.lane.b32.xlu0 %v208, 122
      %v345 = vpop.permute.xlu0 %344
      %346 = vrot.lane.b32.xlu0 %v209, 122
      %v347 = vpop.permute.xlu0 %346
      %348 = vrot.lane.b32.xlu0 %v210, 122
      %v349 = vpop.permute.xlu0 %348
      %350 = vrot.lane.b32.xlu0 %v211, 122
      %v351 = vpop.permute.xlu0 %350
      %v372 = vadd.f32 %v292, %v313
      %v373 = vadd.f32 %v293, %v315
      %v374 = vadd.f32 %v294, %v317
      %v375 = vadd.f32 %v295, %v319
      %v376 = vadd.f32 %v296, %v321
      %v377 = vadd.f32 %v297, %v323
      %v378 = vadd.f32 %v298, %v325
      %v379 = vadd.f32 %v299, %v327
      %v380 = vadd.f32 %v300, %v329
      %v381 = vadd.f32 %v301, %v331
      %v382 = vadd.f32 %v302, %v333
      %v383 = vadd.f32 %v303, %v335
      %v384 = vadd.f32 %v304, %v337
      %v385 = vadd.f32 %v305, %v339
      %v386 = vadd.f32 %v306, %v341
      %v387 = vadd.f32 %v307, %v343
      %v388 = vadd.f32 %v308, %v345
      %v389 = vadd.f32 %v309, %v347
      %v390 = vadd.f32 %v310, %v349
      %v391 = vadd.f32 %v311, %v351
      %392 = vrot.lane.b32.xlu0 %v192, 119
      %v393 = vpop.permute.xlu0 %392
      %394 = vrot.lane.b32.xlu0 %v193, 119
      %v395 = vpop.permute.xlu0 %394
      %396 = vrot.lane.b32.xlu0 %v194, 119
      %v397 = vpop.permute.xlu0 %396
      %398 = vrot.lane.b32.xlu0 %v195, 119
      %v399 = vpop.permute.xlu0 %398
      %400 = vrot.lane.b32.xlu0 %v196, 119
      %v401 = vpop.permute.xlu0 %400
      %402 = vrot.lane.b32.xlu0 %v197, 119
      %v403 = vpop.permute.xlu0 %402
      %404 = vrot.lane.b32.xlu0 %v198, 119
      %v405 = vpop.permute.xlu0 %404
      %406 = vrot.lane.b32.xlu0 %v199, 119
      %v407 = vpop.permute.xlu0 %406
      %408 = vrot.lane.b32.xlu0 %v200, 119
      %v409 = vpop.permute.xlu0 %408
      %410 = vrot.lane.b32.xlu0 %v201, 119
      %v411 = vpop.permute.xlu0 %410
      %412 = vrot.lane.b32.xlu0 %v202, 119
      %v413 = vpop.permute.xlu0 %412
      %414 = vrot.lane.b32.xlu0 %v203, 119
      %v415 = vpop.permute.xlu0 %414
      %416 = vrot.lane.b32.xlu0 %v204, 119
      %v417 = vpop.permute.xlu0 %416
      %418 = vrot.lane.b32.xlu0 %v205, 119
      %v419 = vpop.permute.xlu0 %418
      %420 = vrot.lane.b32.xlu0 %v206, 119
      %v421 = vpop.permute.xlu0 %420
      %422 = vrot.lane.b32.xlu0 %v207, 119
      %v423 = vpop.permute.xlu0 %422
      %424 = vrot.lane.b32.xlu0 %v208, 119
      %v425 = vpop.permute.xlu0 %424
      %426 = vrot.lane.b32.xlu0 %v209, 119
      %v427 = vpop.permute.xlu0 %426
      %428 = vrot.lane.b32.xlu0 %v210, 119
      %v429 = vpop.permute.xlu0 %428
      %430 = vrot.lane.b32.xlu0 %v211, 119
      %v431 = vpop.permute.xlu0 %430
      %v452 = vadd.f32 %v372, %v393
      %v453 = vadd.f32 %v373, %v395
      %v454 = vadd.f32 %v374, %v397
      %v455 = vadd.f32 %v375, %v399
      %v456 = vadd.f32 %v376, %v401
      %v457 = vadd.f32 %v377, %v403
      %v458 = vadd.f32 %v378, %v405
      %v459 = vadd.f32 %v379, %v407
      %v460 = vadd.f32 %v380, %v409
      %v461 = vadd.f32 %v381, %v411
      %v462 = vadd.f32 %v382, %v413
      %v463 = vadd.f32 %v383, %v415
      %v464 = vadd.f32 %v384, %v417
      %v465 = vadd.f32 %v385, %v419
      %v466 = vadd.f32 %v386, %v421
      %v467 = vadd.f32 %v387, %v423
      %v468 = vadd.f32 %v388, %v425
      %v469 = vadd.f32 %v389, %v427
      %v470 = vadd.f32 %v390, %v429
      %v471 = vadd.f32 %v391, %v431
      %v472 = vmul.f32 %v452, 0.25
      %v473 = vmul.f32 %v453, 0.25
      %v474 = vmul.f32 %v454, 0.25
      %v475 = vmul.f32 %v455, 0.25
      %v476 = vmul.f32 %v456, 0.25
      %v477 = vmul.f32 %v457, 0.25
      %v478 = vmul.f32 %v458, 0.25
      %v479 = vmul.f32 %v459, 0.25
      %v480 = vmul.f32 %v460, 0.25
      %v481 = vmul.f32 %v461, 0.25
      %v482 = vmul.f32 %v462, 0.25
      %v483 = vmul.f32 %v463, 0.25
      %v484 = vmul.f32 %v464, 0.25
      %v485 = vmul.f32 %v465, 0.25
      %v486 = vmul.f32 %v466, 0.25
      %v487 = vmul.f32 %v467, 0.25
      %v488 = vmul.f32 %v468, 0.25
      %v489 = vmul.f32 %v469, 0.25
      %v490 = vmul.f32 %v470, 0.25
      %v491 = vmul.f32 %v471, 0.25
      %v492 = vpack.c.bf16 %v472, %v472
      %v493 = vpack.c.bf16 %v473, %v473
      %v494 = vpack.c.bf16 %v474, %v474
      %v495 = vpack.c.bf16 %v475, %v475
      %v496 = vpack.c.bf16 %v476, %v476
      %v497 = vpack.c.bf16 %v477, %v477
      %v498 = vpack.c.bf16 %v478, %v478
      %v499 = vpack.c.bf16 %v479, %v479
      %v500 = vpack.c.bf16 %v480, %v480
      %v501 = vpack.c.bf16 %v481, %v481
      %v502 = vpack.c.bf16 %v482, %v482
      %v503 = vpack.c.bf16 %v483, %v483
      %v504 = vpack.c.bf16 %v484, %v484
      %v505 = vpack.c.bf16 %v485, %v485
      %v506 = vpack.c.bf16 %v486, %v486
      %v507 = vpack.c.bf16 %v487, %v487
      %v508 = vpack.c.bf16 %v488, %v488
      %v509 = vpack.c.bf16 %v489, %v489
      %v510 = vpack.c.bf16 %v490, %v490
      %v511 = vpack.c.bf16 %v491, %v491
      %v512 = vld [vmem:[%s1] sm:$0x3]
      %vm513 = vsmask.f32 3328
      %vm514 = vsmask.f32 7440
      %vm515 = vmor %vm513, %vm514
      %v517 = vshrl.u32 %v492, 16
      %v519 = vrot.slane %v517, 4
      %v520 = vshll.u32 %v492, 16
      %v522 = vrot.slane %v520, 5
      %v523 = vor.u32 %v519, %v522
      %v524 = vrot.slane %v523, 4
      %v526 = vshll.u32 %v493, 16
      %v528 = vrot.slane %v526, 5
      %v529 = vsel %vm515, %v524, %v528
      %v531 = vshrl.u32 %v494, 16
      %v533 = vrot.slane %v531, 4
      %v534 = vshll.u32 %v494, 16
      %v536 = vrot.slane %v534, 5
      %v537 = vor.u32 %v533, %v536
      %v538 = vrot.slane %v537, 4
      %v540 = vshll.u32 %v495, 16
      %v542 = vrot.slane %v540, 5
      %v543 = vsel %vm515, %v538, %v542
      %v545 = vshrl.u32 %v496, 16
      %v547 = vrot.slane %v545, 4
      %v548 = vshll.u32 %v496, 16
      %v550 = vrot.slane %v548, 5
      %v551 = vor.u32 %v547, %v550
      %v552 = vrot.slane %v551, 4
      %v554 = vshll.u32 %v497, 16
      %v556 = vrot.slane %v554, 5
      %v557 = vsel %vm515, %v552, %v556
      %v559 = vshrl.u32 %v498, 16
      %v561 = vrot.slane %v559, 4
      %v562 = vshll.u32 %v498, 16
      %v564 = vrot.slane %v562, 5
      %v565 = vor.u32 %v561, %v564
      %v566 = vrot.slane %v565, 4
      %v568 = vshll.u32 %v499, 16
      %v570 = vrot.slane %v568, 5
      %v571 = vsel %vm515, %v566, %v570
      %v573 = vshrl.u32 %v500, 16
      %v575 = vrot.slane %v573, 4
      %v576 = vshll.u32 %v500, 16
      %v578 = vrot.slane %v576, 5
      %v579 = vor.u32 %v575, %v578
      %v580 = vrot.slane %v579, 4
      %v582 = vshll.u32 %v501, 16
      %v584 = vrot.slane %v582, 5
      %v585 = vsel %vm515, %v580, %v584
      %v587 = vshrl.u32 %v502, 16
      %v589 = vrot.slane %v587, 4
      %v590 = vshll.u32 %v502, 16
      %v592 = vrot.slane %v590, 5
      %v593 = vor.u32 %v589, %v592
      %v594 = vrot.slane %v593, 4
      %v596 = vshll.u32 %v503, 16
      %v598 = vrot.slane %v596, 5
      %v599 = vsel %vm515, %v594, %v598
      %v601 = vshrl.u32 %v504, 16
      %v603 = vrot.slane %v601, 4
      %v604 = vshll.u32 %v504, 16
      %v606 = vrot.slane %v604, 5
      %v607 = vor.u32 %v603, %v606
      %v608 = vrot.slane %v607, 4
      %v610 = vshll.u32 %v505, 16
      %v612 = vrot.slane %v610, 5
      %v613 = vsel %vm515, %v608, %v612
      %v615 = vshrl.u32 %v506, 16
      %v617 = vrot.slane %v615, 4
      %v618 = vshll.u32 %v506, 16
      %v620 = vrot.slane %v618, 5
      %v621 = vor.u32 %v617, %v620
      %v622 = vrot.slane %v621, 4
      %v624 = vshll.u32 %v507, 16
      %v626 = vrot.slane %v624, 5
      %v627 = vsel %vm515, %v622, %v626
      %s628 = scalar_lea.vmem %s1, 2
      %v629 = vld [vmem:[%s628] sm:$0x3]
      %v630 = vunpack.c.l.b16 %v529
      %v631 = vunpack.c.l.b16 %v543
      %v632 = vunpack.c.l.b16 %v557
      %v633 = vunpack.c.l.b16 %v571
      %v634 = vunpack.c.l.b16 %v585
      %v635 = vunpack.c.l.b16 %v599
      %v636 = vunpack.c.l.b16 %v613
      %v637 = vunpack.c.l.b16 %v627
      %v638 = vpack.c.b16 %v631, %v630
      %v639 = vpack.c.b16 %v633, %v632
      %v640 = vpack.c.b16 %v635, %v634
      %v641 = vpack.c.b16 %v637, %v636
      %vm642 = vcmask 23552
      %v644 = vsel %vm642, %v638, 0
      %v647 = vsel %vm642, %v639, 0
      %v650 = vsel %vm642, %v640, 0
      %v653 = vsel %vm642, %v641, 0
      %vm655 = vcmask 1040384
      %vm656 = vcmask 1041408
      %v657 = vsel %vm655, 4294967295, 65535
      %v658 = vsel %vm656, %v657, 0
      %v660 = vand.u32 %v629, %v658
      %662 = vmatpush.bf16.msra.mxu0 0
      %663 = vmatpush.bf16.msra.mxu0 0
      %664 = vmatpush.bf16.msra.mxu0 0
      %665 = vmatpush.bf16.msra.mxu0 0
      %666 = vmatpush.bf16.msra.mxu0 0
      %667 = vmatpush.bf16.msra.mxu0 0
      %668 = vmatpush.bf16.msra.mxu0 0
      %669 = vmatpush.bf16.msra.mxu0 %v660
      %670 = vmatmul.bf16.gmra.mxu0 %v644
      %v671 = vpop.f32.mrf.mxu0
      %v672 = vadd.f32 0.0, %v671
      %v673 = vpop.f32.mrf.mxu0
      %v674 = vadd.f32 0.0, %v673
      %675 = vmatmul.bf16.gmra.mxu0 %v647
      %v676 = vpop.f32.mrf.mxu0
      %v677 = vadd.f32 0.0, %v676
      %v678 = vpop.f32.mrf.mxu0
      %v679 = vadd.f32 0.0, %v678
      %680 = vmatmul.bf16.gmra.mxu0 %v650
      %v681 = vpop.f32.mrf.mxu0
      %v682 = vadd.f32 0.0, %v681
      %v683 = vpop.f32.mrf.mxu0
      %v684 = vadd.f32 0.0, %v683
      %685 = vmatmul.bf16.gmra.mxu0 %v653
      %v686 = vpop.f32.mrf.mxu0
      %v687 = vadd.f32 0.0, %v686
      %v688 = vpop.f32.mrf.mxu0
      %v689 = vadd.f32 0.0, %v688
      %690 = vdwg.mxu0
      %v699 = vunpack.c.l.b16 %v492
      %v700 = vunpack.c.l.b16 %v494
      %v701 = vunpack.c.l.b16 %v496
      %v702 = vunpack.c.l.b16 %v498
      %v703 = vunpack.c.l.b16 %v500
      %v704 = vunpack.c.l.b16 %v502
      %v705 = vunpack.c.l.b16 %v504
      %v706 = vunpack.c.l.b16 %v506
      %v707 = vpack.c.b16 %v700, %v699
      %v708 = vpack.c.b16 %v702, %v701
      %v709 = vpack.c.b16 %v704, %v703
      %v710 = vpack.c.b16 %v706, %v705
      %v712 = vsel %vm642, %v707, 0
      %v715 = vsel %vm642, %v708, 0
      %v718 = vsel %vm642, %v709, 0
      %v721 = vsel %vm642, %v710, 0
      %v724 = vand.u32 %v512, %v658
      %726 = vmatpush.bf16.msra.mxu0 0
      %727 = vmatpush.bf16.msra.mxu0 0
      %728 = vmatpush.bf16.msra.mxu0 0
      %729 = vmatpush.bf16.msra.mxu0 0
      %730 = vmatpush.bf16.msra.mxu0 0
      %731 = vmatpush.bf16.msra.mxu0 0
      %732 = vmatpush.bf16.msra.mxu0 0
      %733 = vmatpush.bf16.msra.mxu0 %v724
      %734 = vmatmul.bf16.gmra.mxu0 %v712
      %v735 = vpop.f32.mrf.mxu0
      %v736 = vadd.f32 %v672, %v735
      %v737 = vpop.f32.mrf.mxu0
      %v738 = vadd.f32 %v674, %v737
      %739 = vmatmul.bf16.gmra.mxu0 %v715
      %v740 = vpop.f32.mrf.mxu0
      %v741 = vadd.f32 %v677, %v740
      %v742 = vpop.f32.mrf.mxu0
      %v743 = vadd.f32 %v679, %v742
      %744 = vmatmul.bf16.gmra.mxu0 %v718
      %v745 = vpop.f32.mrf.mxu0
      %v746 = vadd.f32 %v682, %v745
      %v747 = vpop.f32.mrf.mxu0
      %v748 = vadd.f32 %v684, %v747
      %749 = vmatmul.bf16.gmra.mxu0 %v721
      %v750 = vpop.f32.mrf.mxu0
      %v751 = vadd.f32 %v687, %v750
      %v752 = vpop.f32.mrf.mxu0
      %v753 = vadd.f32 %v689, %v752
      %754 = vdwg.mxu0
      %vm763 = vcmask 1042432
      %vm764 = vcmask 1046532
      %vm765 = vmor %vm763, %vm764
      %v766 = vrot.slane %v492, 5
      %v767 = vrot.slane %v766, 4
      %v768 = vrot.slane %v493, 5
      %v769 = vsel %vm765, %v767, %v768
      %v770 = vrot.slane %v494, 5
      %v771 = vrot.slane %v770, 4
      %v772 = vrot.slane %v495, 5
      %v773 = vsel %vm765, %v771, %v772
      %v774 = vrot.slane %v496, 5
      %v775 = vrot.slane %v774, 4
      %v776 = vrot.slane %v497, 5
      %v777 = vsel %vm765, %v775, %v776
      %v778 = vrot.slane %v498, 5
      %v779 = vrot.slane %v778, 4
      %v780 = vrot.slane %v499, 5
      %v781 = vsel %vm765, %v779, %v780
      %v782 = vrot.slane %v500, 5
      %v783 = vrot.slane %v782, 4
      %v784 = vrot.slane %v501, 5
      %v785 = vsel %vm765, %v783, %v784
      %v786 = vrot.slane %v502, 5
      %v787 = vrot.slane %v786, 4
      %v788 = vrot.slane %v503, 5
      %v789 = vsel %vm765, %v787, %v788
      %v790 = vrot.slane %v504, 5
      %v791 = vrot.slane %v790, 4
      %v792 = vrot.slane %v505, 5
      %v793 = vsel %vm765, %v791, %v792
      %v794 = vrot.slane %v506, 5
      %v795 = vrot.slane %v794, 4
      %v796 = vrot.slane %v507, 5
      %v797 = vsel %vm765, %v795, %v796
      %s798 = scalar_lea.vmem %s1, 4
      %v799 = vld [vmem:[%s798] sm:$0x3]
      %v800 = vunpack.c.l.b16 %v769
      %v801 = vunpack.c.l.b16 %v773
      %v802 = vunpack.c.l.b16 %v777
      %v803 = vunpack.c.l.b16 %v781
      %v804 = vunpack.c.l.b16 %v785
      %v805 = vunpack.c.l.b16 %v789
      %v806 = vunpack.c.l.b16 %v793
      %v807 = vunpack.c.l.b16 %v797
      %v808 = vpack.c.b16 %v801, %v800
      %v809 = vpack.c.b16 %v803, %v802
      %v810 = vpack.c.b16 %v805, %v804
      %v811 = vpack.c.b16 %v807, %v806
      %v813 = vsel %vm642, %v808, 0
      %v816 = vsel %vm642, %v809, 0
      %v819 = vsel %vm642, %v810, 0
      %v822 = vsel %vm642, %v811, 0
      %v825 = vand.u32 %v799, %v658
      %827 = vmatpush.bf16.msra.mxu0 0
      %828 = vmatpush.bf16.msra.mxu0 0
      %829 = vmatpush.bf16.msra.mxu0 0
      %830 = vmatpush.bf16.msra.mxu0 0
      %831 = vmatpush.bf16.msra.mxu0 0
      %832 = vmatpush.bf16.msra.mxu0 0
      %833 = vmatpush.bf16.msra.mxu0 0
      %834 = vmatpush.bf16.msra.mxu0 %v825
      %835 = vmatmul.bf16.gmra.mxu0 %v813
      %v836 = vpop.f32.mrf.mxu0
      %v837 = vadd.f32 0.0, %v836
      %v838 = vpop.f32.mrf.mxu0
      %v839 = vadd.f32 0.0, %v838
      %840 = vmatmul.bf16.gmra.mxu0 %v816
      %v841 = vpop.f32.mrf.mxu0
      %v842 = vadd.f32 0.0, %v841
      %v843 = vpop.f32.mrf.mxu0
      %v844 = vadd.f32 0.0, %v843
      %845 = vmatmul.bf16.gmra.mxu0 %v819
      %v846 = vpop.f32.mrf.mxu0
      %v847 = vadd.f32 0.0, %v846
      %v848 = vpop.f32.mrf.mxu0
      %v849 = vadd.f32 0.0, %v848
      %850 = vmatmul.bf16.gmra.mxu0 %v822
      %v851 = vpop.f32.mrf.mxu0
      %v852 = vadd.f32 0.0, %v851
      %v853 = vpop.f32.mrf.mxu0
      %v854 = vadd.f32 0.0, %v853
      %855 = vdwg.mxu0
      %v856 = vadd.f32 %v736, %v837
      %v857 = vadd.f32 %v738, %v839
      %v858 = vadd.f32 %v741, %v842
      %v859 = vadd.f32 %v743, %v844
      %v860 = vadd.f32 %v746, %v847
      %v861 = vadd.f32 %v748, %v849
      %v862 = vadd.f32 %v751, %v852
      %v863 = vadd.f32 %v753, %v854
      %s864 = scalar_lea.vmem %s1, 6
      %v865 = vld [vmem:[%s864] sm:$0x3]
      %v867 = vunpack.c.l.b16 %v508
      %v868 = vpack.c.b16 %v701, %v700
      %v869 = vpack.c.b16 %v703, %v702
      %v870 = vpack.c.b16 %v705, %v704
      %v871 = vpack.c.b16 %v867, %v706
      %v873 = vsel %vm642, %v868, 0
      %v876 = vsel %vm642, %v869, 0
      %v879 = vsel %vm642, %v870, 0
      %v882 = vsel %vm642, %v871, 0
      %v885 = vand.u32 %v865, %v658
      %887 = vmatpush.bf16.msra.mxu0 0
      %888 = vmatpush.bf16.msra.mxu0 0
      %889 = vmatpush.bf16.msra.mxu0 0
      %890 = vmatpush.bf16.msra.mxu0 0
      %891 = vmatpush.bf16.msra.mxu0 0
      %892 = vmatpush.bf16.msra.mxu0 0
      %893 = vmatpush.bf16.msra.mxu0 0
      %894 = vmatpush.bf16.msra.mxu0 %v885
      %895 = vmatmul.bf16.gmra.mxu0 %v873
      %v896 = vpop.f32.mrf.mxu0
      %v897 = vadd.f32 0.0, %v896
      %v898 = vpop.f32.mrf.mxu0
      %v899 = vadd.f32 0.0, %v898
      %900 = vmatmul.bf16.gmra.mxu0 %v876
      %v901 = vpop.f32.mrf.mxu0
      %v902 = vadd.f32 0.0, %v901
      %v903 = vpop.f32.mrf.mxu0
      %v904 = vadd.f32 0.0, %v903
      %905 = vmatmul.bf16.gmra.mxu0 %v879
      %v906 = vpop.f32.mrf.mxu0
      %v907 = vadd.f32 0.0, %v906
      %v908 = vpop.f32.mrf.mxu0
      %v909 = vadd.f32 0.0, %v908
      %910 = vmatmul.bf16.gmra.mxu0 %v882
      %v911 = vpop.f32.mrf.mxu0
      %v912 = vadd.f32 0.0, %v911
      %v913 = vpop.f32.mrf.mxu0
      %v914 = vadd.f32 0.0, %v913
      %915 = vdwg.mxu0
      %v916 = vadd.f32 %v856, %v897
      %v917 = vadd.f32 %v857, %v899
      %v918 = vadd.f32 %v858, %v902
      %v919 = vadd.f32 %v859, %v904
      %v920 = vadd.f32 %v860, %v907
      %v921 = vadd.f32 %v861, %v909
      %v922 = vadd.f32 %v862, %v912
      %v923 = vadd.f32 %v863, %v914
      %v925 = vshrl.u32 %v508, 16
      %v927 = vrot.slane %v925, 4
      %v928 = vshll.u32 %v508, 16
      %v930 = vrot.slane %v928, 5
      %v931 = vor.u32 %v927, %v930
      %v932 = vrot.slane %v931, 4
      %v934 = vshll.u32 %v509, 16
      %v936 = vrot.slane %v934, 5
      %v937 = vsel %vm515, %v932, %v936
      %s938 = scalar_lea.vmem %s1, 8
      %v939 = vld [vmem:[%s938] sm:$0x3]
      %v940 = vunpack.c.l.b16 %v937
      %v941 = vpack.c.b16 %v632, %v631
      %v942 = vpack.c.b16 %v634, %v633
      %v943 = vpack.c.b16 %v636, %v635
      %v944 = vpack.c.b16 %v940, %v637
      %v946 = vsel %vm642, %v941, 0
      %v949 = vsel %vm642, %v942, 0
      %v952 = vsel %vm642, %v943, 0
      %v955 = vsel %vm642, %v944, 0
      %v958 = vand.u32 %v939, %v658
      %960 = vmatpush.bf16.msra.mxu0 0
      %961 = vmatpush.bf16.msra.mxu0 0
      %962 = vmatpush.bf16.msra.mxu0 0
      %963 = vmatpush.bf16.msra.mxu0 0
      %964 = vmatpush.bf16.msra.mxu0 0
      %965 = vmatpush.bf16.msra.mxu0 0
      %966 = vmatpush.bf16.msra.mxu0 0
      %967 = vmatpush.bf16.msra.mxu0 %v958
      %968 = vmatmul.bf16.gmra.mxu0 %v946
      %v969 = vpop.f32.mrf.mxu0
      %v970 = vadd.f32 0.0, %v969
      %v971 = vpop.f32.mrf.mxu0
      %v972 = vadd.f32 0.0, %v971
      %973 = vmatmul.bf16.gmra.mxu0 %v949
      %v974 = vpop.f32.mrf.mxu0
      %v975 = vadd.f32 0.0, %v974
      %v976 = vpop.f32.mrf.mxu0
      %v977 = vadd.f32 0.0, %v976
      %978 = vmatmul.bf16.gmra.mxu0 %v952
      %v979 = vpop.f32.mrf.mxu0
      %v980 = vadd.f32 0.0, %v979
      %v981 = vpop.f32.mrf.mxu0
      %v982 = vadd.f32 0.0, %v981
      %983 = vmatmul.bf16.gmra.mxu0 %v955
      %v984 = vpop.f32.mrf.mxu0
      %v985 = vadd.f32 0.0, %v984
      %v986 = vpop.f32.mrf.mxu0
      %v987 = vadd.f32 0.0, %v986
      %988 = vdwg.mxu0
      %v989 = vadd.f32 %v916, %v970
      %v990 = vadd.f32 %v917, %v972
      %v991 = vadd.f32 %v918, %v975
      %v992 = vadd.f32 %v919, %v977
      %v993 = vadd.f32 %v920, %v980
      %v994 = vadd.f32 %v921, %v982
      %v995 = vadd.f32 %v922, %v985
      %v996 = vadd.f32 %v923, %v987
      %v998 = vrot.slane %v508, 5
      %v999 = vrot.slane %v998, 4
      %v1000 = vrot.slane %v509, 5
      %v1001 = vsel %vm765, %v999, %v1000
      %s1002 = scalar_lea.vmem %s1, 10
      %v1003 = vld [vmem:[%s1002] sm:$0x3]
      %v1004 = vunpack.c.l.b16 %v1001
      %v1005 = vpack.c.b16 %v802, %v801
      %v1006 = vpack.c.b16 %v804, %v803
      %v1007 = vpack.c.b16 %v806, %v805
      %v1008 = vpack.c.b16 %v1004, %v807
      %v1010 = vsel %vm642, %v1005, 0
      %v1013 = vsel %vm642, %v1006, 0
      %v1016 = vsel %vm642, %v1007, 0
      %v1019 = vsel %vm642, %v1008, 0
      %v1022 = vand.u32 %v1003, %v658
      %1024 = vmatpush.bf16.msra.mxu0 0
      %1025 = vmatpush.bf16.msra.mxu0 0
      %1026 = vmatpush.bf16.msra.mxu0 0
      %1027 = vmatpush.bf16.msra.mxu0 0
      %1028 = vmatpush.bf16.msra.mxu0 0
      %1029 = vmatpush.bf16.msra.mxu0 0
      %1030 = vmatpush.bf16.msra.mxu0 0
      %1031 = vmatpush.bf16.msra.mxu0 %v1022
      %1032 = vmatmul.bf16.gmra.mxu0 %v1010
      %v1033 = vpop.f32.mrf.mxu0
      %v1034 = vadd.f32 0.0, %v1033
      %v1035 = vpop.f32.mrf.mxu0
      %v1036 = vadd.f32 0.0, %v1035
      %1037 = vmatmul.bf16.gmra.mxu0 %v1013
      %v1038 = vpop.f32.mrf.mxu0
      %v1039 = vadd.f32 0.0, %v1038
      %v1040 = vpop.f32.mrf.mxu0
      %v1041 = vadd.f32 0.0, %v1040
      %1042 = vmatmul.bf16.gmra.mxu0 %v1016
      %v1043 = vpop.f32.mrf.mxu0
      %v1044 = vadd.f32 0.0, %v1043
      %v1045 = vpop.f32.mrf.mxu0
      %v1046 = vadd.f32 0.0, %v1045
      %1047 = vmatmul.bf16.gmra.mxu0 %v1019
      %v1048 = vpop.f32.mrf.mxu0
      %v1049 = vadd.f32 0.0, %v1048
      %v1050 = vpop.f32.mrf.mxu0
      %v1051 = vadd.f32 0.0, %v1050
      %1052 = vdwg.mxu0
      %v1053 = vadd.f32 %v989, %v1034
      %v1054 = vadd.f32 %v990, %v1036
      %v1055 = vadd.f32 %v991, %v1039
      %v1056 = vadd.f32 %v992, %v1041
      %v1057 = vadd.f32 %v993, %v1044
      %v1058 = vadd.f32 %v994, %v1046
      %v1059 = vadd.f32 %v995, %v1049
      %v1060 = vadd.f32 %v996, %v1051
      %s1061 = scalar_lea.vmem %s1, 12
      %v1062 = vld [vmem:[%s1061] sm:$0x3]
      %v1064 = vunpack.c.l.b16 %v510
      %v1065 = vpack.c.b16 %v1064, %v867
      %v1067 = vsel %vm642, %v1065, 0
      %v1070 = vand.u32 %v1062, %v658
      %1072 = vmatpush.bf16.msra.mxu0 0
      %1073 = vmatpush.bf16.msra.mxu0 0
      %1074 = vmatpush.bf16.msra.mxu0 0
      %1075 = vmatpush.bf16.msra.mxu0 0
      %1076 = vmatpush.bf16.msra.mxu0 0
      %1077 = vmatpush.bf16.msra.mxu0 0
      %1078 = vmatpush.bf16.msra.mxu0 0
      %1079 = vmatpush.bf16.msra.mxu0 %v1070
      %1080 = vmatmul.bf16.gmra.mxu0 %v715
      %v1081 = vpop.f32.mrf.mxu0
      %v1082 = vadd.f32 0.0, %v1081
      %v1083 = vpop.f32.mrf.mxu0
      %v1084 = vadd.f32 0.0, %v1083
      %1085 = vmatmul.bf16.gmra.mxu0 %v718
      %v1086 = vpop.f32.mrf.mxu0
      %v1087 = vadd.f32 0.0, %v1086
      %v1088 = vpop.f32.mrf.mxu0
      %v1089 = vadd.f32 0.0, %v1088
      %1090 = vmatmul.bf16.gmra.mxu0 %v721
      %v1091 = vpop.f32.mrf.mxu0
      %v1092 = vadd.f32 0.0, %v1091
      %v1093 = vpop.f32.mrf.mxu0
      %v1094 = vadd.f32 0.0, %v1093
      %1095 = vmatmul.bf16.gmra.mxu0 %v1067
      %v1096 = vpop.f32.mrf.mxu0
      %v1097 = vadd.f32 0.0, %v1096
      %v1098 = vpop.f32.mrf.mxu0
      %v1099 = vadd.f32 0.0, %v1098
      %1100 = vdwg.mxu0
      %v1101 = vadd.f32 %v1053, %v1082
      %v1102 = vadd.f32 %v1054, %v1084
      %v1103 = vadd.f32 %v1055, %v1087
      %v1104 = vadd.f32 %v1056, %v1089
      %v1105 = vadd.f32 %v1057, %v1092
      %v1106 = vadd.f32 %v1058, %v1094
      %v1107 = vadd.f32 %v1059, %v1097
      %v1108 = vadd.f32 %v1060, %v1099
      %v1110 = vshrl.u32 %v510, 16
      %v1112 = vrot.slane %v1110, 4
      %v1113 = vshll.u32 %v510, 16
      %v1115 = vrot.slane %v1113, 5
      %v1116 = vor.u32 %v1112, %v1115
      %v1117 = vrot.slane %v1116, 4
      %v1119 = vshll.u32 %v511, 16
      %v1121 = vrot.slane %v1119, 5
      %v1122 = vsel %vm515, %v1117, %v1121
      %s1123 = scalar_lea.vmem %s1, 14
      %v1124 = vld [vmem:[%s1123] sm:$0x3]
      %v1125 = vunpack.c.l.b16 %v1122
      %v1126 = vpack.c.b16 %v1125, %v940
      %v1128 = vsel %vm642, %v1126, 0
      %v1131 = vand.u32 %v1124, %v658
      %1133 = vmatpush.bf16.msra.mxu0 0
      %1134 = vmatpush.bf16.msra.mxu0 0
      %1135 = vmatpush.bf16.msra.mxu0 0
      %1136 = vmatpush.bf16.msra.mxu0 0
      %1137 = vmatpush.bf16.msra.mxu0 0
      %1138 = vmatpush.bf16.msra.mxu0 0
      %1139 = vmatpush.bf16.msra.mxu0 0
      %1140 = vmatpush.bf16.msra.mxu0 %v1131
      %1141 = vmatmul.bf16.gmra.mxu0 %v647
      %v1142 = vpop.f32.mrf.mxu0
      %v1143 = vadd.f32 0.0, %v1142
      %v1144 = vpop.f32.mrf.mxu0
      %v1145 = vadd.f32 0.0, %v1144
      %1146 = vmatmul.bf16.gmra.mxu0 %v650
      %v1147 = vpop.f32.mrf.mxu0
      %v1148 = vadd.f32 0.0, %v1147
      %v1149 = vpop.f32.mrf.mxu0
      %v1150 = vadd.f32 0.0, %v1149
      %1151 = vmatmul.bf16.gmra.mxu0 %v653
      %v1152 = vpop.f32.mrf.mxu0
      %v1153 = vadd.f32 0.0, %v1152
      %v1154 = vpop.f32.mrf.mxu0
      %v1155 = vadd.f32 0.0, %v1154
      %1156 = vmatmul.bf16.gmra.mxu0 %v1128
      %v1157 = vpop.f32.mrf.mxu0
      %v1158 = vadd.f32 0.0, %v1157
      %v1159 = vpop.f32.mrf.mxu0
      %v1160 = vadd.f32 0.0, %v1159
      %1161 = vdwg.mxu0
      %v1162 = vadd.f32 %v1101, %v1143
      %v1163 = vadd.f32 %v1102, %v1145
      %v1164 = vadd.f32 %v1103, %v1148
      %v1165 = vadd.f32 %v1104, %v1150
      %v1166 = vadd.f32 %v1105, %v1153
      %v1167 = vadd.f32 %v1106, %v1155
      %v1168 = vadd.f32 %v1107, %v1158
      %v1169 = vadd.f32 %v1108, %v1160
      %v1171 = vrot.slane %v510, 5
      %v1172 = vrot.slane %v1171, 4
      %v1173 = vrot.slane %v511, 5
      %v1174 = vsel %vm765, %v1172, %v1173
      %s1175 = scalar_lea.vmem %s1, 16
      %v1176 = vld [vmem:[%s1175] sm:$0x3]
      %v1177 = vunpack.c.l.b16 %v1174
      %v1178 = vpack.c.b16 %v1177, %v1004
      %v1180 = vsel %vm642, %v1178, 0
      %v1183 = vand.u32 %v1176, %v658
      %1185 = vmatpush.bf16.msra.mxu0 0
      %1186 = vmatpush.bf16.msra.mxu0 0
      %1187 = vmatpush.bf16.msra.mxu0 0
      %1188 = vmatpush.bf16.msra.mxu0 0
      %1189 = vmatpush.bf16.msra.mxu0 0
      %1190 = vmatpush.bf16.msra.mxu0 0
      %1191 = vmatpush.bf16.msra.mxu0 0
      %1192 = vmatpush.bf16.msra.mxu0 %v1183
      %1193 = vmatmul.bf16.gmra.mxu0 %v816
      %v1194 = vpop.f32.mrf.mxu0
      %v1195 = vadd.f32 0.0, %v1194
      %v1196 = vpop.f32.mrf.mxu0
      %v1197 = vadd.f32 0.0, %v1196
      %1198 = vmatmul.bf16.gmra.mxu0 %v819
      %v1199 = vpop.f32.mrf.mxu0
      %v1200 = vadd.f32 0.0, %v1199
      %v1201 = vpop.f32.mrf.mxu0
      %v1202 = vadd.f32 0.0, %v1201
      %1203 = vmatmul.bf16.gmra.mxu0 %v822
      %v1204 = vpop.f32.mrf.mxu0
      %v1205 = vadd.f32 0.0, %v1204
      %v1206 = vpop.f32.mrf.mxu0
      %v1207 = vadd.f32 0.0, %v1206
      %1208 = vmatmul.bf16.gmra.mxu0 %v1180
      %v1209 = vpop.f32.mrf.mxu0
      %v1210 = vadd.f32 0.0, %v1209
      %v1211 = vpop.f32.mrf.mxu0
      %v1212 = vadd.f32 0.0, %v1211
      %1213 = vdwg.mxu0
      %v1214 = vadd.f32 %v1162, %v1195
      %v1215 = vadd.f32 %v1163, %v1197
      %v1216 = vadd.f32 %v1164, %v1200
      %v1217 = vadd.f32 %v1165, %v1202
      %v1218 = vadd.f32 %v1166, %v1205
      %v1219 = vadd.f32 %v1167, %v1207
      %v1220 = vadd.f32 %v1168, %v1210
      %v1221 = vadd.f32 %v1169, %v1212
      %v1222 = vld [vmem:[%s2] sm:$0x1]
      %v1224 = vperm.slane %v1222, 0
      %v1226 = vadd.f32 %v1214, %v1224
      %v1227 = vadd.f32 %v1215, %v1224
      %v1228 = vadd.f32 %v1216, %v1224
      %v1229 = vadd.f32 %v1217, %v1224
      %v1230 = vadd.f32 %v1218, %v1224
      %v1231 = vadd.f32 %v1219, %v1224
      %v1232 = vadd.f32 %v1220, %v1224
      %v1233 = vadd.f32 %v1221, %v1224
      %vm1234 = vcmp.ge.f32.partialorder %v1226, 0.0
      %vm1235 = vcmp.ge.f32.partialorder %v1227, 0.0
      %vm1236 = vcmp.ge.f32.partialorder %v1228, 0.0
      %vm1237 = vcmp.ge.f32.partialorder %v1229, 0.0
      %vm1238 = vcmp.ge.f32.partialorder %v1230, 0.0
      %vm1239 = vcmp.ge.f32.partialorder %v1231, 0.0
      %vm1240 = vcmp.ge.f32.partialorder %v1232, 0.0
      %vm1241 = vcmp.ge.f32.partialorder %v1233, 0.0
      %v1242 = vmul.f32 %v1226, 0.1
      %v1243 = vmul.f32 %v1227, 0.1
      %v1244 = vmul.f32 %v1228, 0.1
      %v1245 = vmul.f32 %v1229, 0.1
      %v1246 = vmul.f32 %v1230, 0.1
      %v1247 = vmul.f32 %v1231, 0.1
      %v1248 = vmul.f32 %v1232, 0.1
      %v1249 = vmul.f32 %v1233, 0.1
      %v1250 = vsel %vm1234, %v1226, %v1242
      %v1251 = vsel %vm1235, %v1227, %v1243
      %v1252 = vsel %vm1236, %v1228, %v1244
      %v1253 = vsel %vm1237, %v1229, %v1245
      %v1254 = vsel %vm1238, %v1230, %v1246
      %v1255 = vsel %vm1239, %v1231, %v1247
      %v1256 = vsel %vm1240, %v1232, %v1248
      %v1257 = vsel %vm1241, %v1233, %v1249
      %v1258 = vpack.c.bf16 %v1250, %v1250
      %v1259 = vpack.c.bf16 %v1251, %v1251
      %v1260 = vpack.c.bf16 %v1252, %v1252
      %v1261 = vpack.c.bf16 %v1253, %v1253
      %v1262 = vpack.c.bf16 %v1254, %v1254
      %v1263 = vpack.c.bf16 %v1255, %v1255
      %v1264 = vpack.c.bf16 %v1256, %v1256
      %v1265 = vpack.c.bf16 %v1257, %v1257
      %vm1266 = vcmask 257024
      %1267 = vst.msk [vmem:[%s170] sm:$0xf] %vm1266, %v1258
      %1268 = vst.msk [vmem:[%s170 + $0x4] sm:$0xf] %vm1266, %v1259
      %1269 = vst.msk [vmem:[%s170 + $0x8] sm:$0xf] %vm1266, %v1260
      %1270 = vst.msk [vmem:[%s170 + $0xc] sm:$0xf] %vm1266, %v1261
      %1271 = vst.msk [vmem:[%s170 + $0x10] sm:$0xf] %vm1266, %v1262
      %1272 = vst.msk [vmem:[%s170 + $0x14] sm:$0xf] %vm1266, %v1263
      %1273 = vst.msk [vmem:[%s170 + $0x18] sm:$0xf] %vm1266, %v1264
      %1274 = vst.msk [vmem:[%s170 + $0x1c] sm:$0xf] %vm1266, %v1265
      %p1275 = scmp.lt.s32.totalorder %s14, 1
      %s1276 = scalar_select %p1275, %s14, 1
      %s1277 = smul.addr %s1276, 8
      %s1278 = smul.addr %s1277, 4
      %s1279 = scalar_lea.vmem %s3, %s1278
      // Predicated region
      $region33: #{_lambda_.8} parent=31 // pred_check
        %p1280 = pneg %p100
      $region34: #{_lambda_.8} parent=31 // pred_check_branch
        %1282 = sbr.rel (%p1280) target = $region36
      $region35: #{_lambda_.8} parent=31 // pred_region
        _
      $region36: #{_lambda_.8} parent=31 // pred_fallthru
        _
    $region32: #{_lambda_.8} parent=5 // pred_fallthru
      _
    %p1283 = scmp.le.s32.totalorder 2, %s9
    // Predicated region
    $region37: #{_lambda_.8} parent=5 // pred_check
      %p1284 = pneg %p1283
    $region38: #{_lambda_.8} parent=5 // pred_check_branch
      %1286 = sbr.rel (%p1284) target = $region40
    $region39: #{_lambda_.8} parent=5 // pred_region
      %s1287 = ssub.s32 %s9, 2
      // Predicated region
      $region41: #{_lambda_.8} parent=39 // pred_check
        %p1288 = pneg %p106
      $region42: #{_lambda_.8} parent=39 // pred_check_branch
        %1290 = sbr.rel (%p1288) target = $region44
      $region43: #{_lambda_.8} parent=39 // pred_region
        %p1291 = scmp.lt.s32.totalorder %s15, 1
        %s1292 = scalar_select %p1291, %s15, 1
        %s1293 = smul.addr %s1292, 8
        %s1294 = smul.addr %s1293, 4
        %s1295 = scalar_lea.vmem %s3, %s1294
      $region44: #{_lambda_.8} parent=39 // pred_fallthru
        _
    $region40: #{_lambda_.8} parent=5 // pred_fallthru
      _
  $region6: #{_lambda_.8} parent=0 // loop_footer
    %s13 = sadd.s32 1, %s9
  $region7: #{_lambda_.8} parent=0 // loop_footer_branch
    %8 = sbr.rel target = $region3
  $region8: #{_lambda_.8} parent=0 // loop_exit
    _

// kernel: _lambda_.10
$region0: #{_lambda_.10}
  #allocation0 [shape = 'u32[]', space=smem, size = 0x4, offset = 0x4, fixed_abs, tag = 'smem constant byte address 0x4 - core index']
  #allocation1 [shape = 'u32[72,128]{1,0:T(1,128)}', space=vmem, size = 0x9000, scoped, tag = 'internal scratch']
  %s0 = inlined_call_operand.vmem [shape: bf16[2,6,10,48], index: 0, kind: input, shape index: {}]
  %s1 = inlined_call_operand.vmem [shape: bf16[3,3,3,32], index: 1, kind: input, shape index: {}]
  %s2 = inlined_call_operand.vmem [shape: f32[1,32], index: 2, kind: input, shape index: {}]
  %s3 = inlined_call_operand.vmem [shape: bf16[2,4,8,32], index: 3, kind: output, shape index: {}]
  %s4 = sld [smem:[#allocation0]]
  $region45: #{_lambda_.10} parent=0
    _
  %s6 = ssub.s32 1, %s4
  %s7 = scalar_select 0, %s6, %s4
  loop: start=0, step=1, limit=4
  $region2: #{_lambda_.10} parent=0 // loop_pre_header
    _
  $region3: #{_lambda_.10} parent=0 // loop_header
    %s9 = sphi 0, %s13
    %p10 = scmp.ge.s32.totalorder %s9, 4
    %s19 = sphi 0, %s21
    %s22 = sphi 0, %s19
    %s23 = sphi 0, %s22
    %s39 = sphi 0, %s23
    %s43 = sphi 0, %s43
    %s45 = sphi 0, %s43
    %s46 = sphi 0, %s45
    %s60 = sphi 0, %s46
    %s64 = sphi 0, %s64
    %s66 = sphi 0, %s64
    %s67 = sphi 0, %s66
    %s81 = sphi 0, %s67
    %s87 = sphi 0, %s89
    %s90 = sphi 0, %s87
    %s91 = sphi 0, %s90
    %s107 = sphi 0, %s91
  $region4: #{_lambda_.10} parent=0 // loop_header_branch
    %12 = sbr.rel (%p10) target = $region8
  $region5: #{_lambda_.10} parent=0 // loop_body
    %s14 = ssub.s32 %s9, 1
    %s15 = ssub.s32 %s9, 2
    %s16 = sadd.s32 %s9, 1
    %s17 = ssub.s32 %s9, %s16
    %p18 = scmp.eq.s32.totalorder %s17, 0
    %s20 = sadd.s32 %s19, 1
    %s21 = scalar_select %p18, %s19, %s20
    %p24 = pneg %p18
    %p25 = scmp.eq.s32.totalorder %s9, 1
    %p26 = por %p24, %p25
    %p27 = scmp.ne.s32.totalorder %s19, %s22
    %p28 = scmp.eq.s32.totalorder %s9, 0
    %p29 = por %p27, %p28
    %p30 = scmp.ne.s32.totalorder %s19, %s22
    %p31 = scmp.eq.s32.totalorder %s14, 1
    %p32 = por %p30, %p31
    %p33 = scmp.ne.s32.totalorder %s22, %s23
    %p34 = scmp.eq.s32.totalorder %s14, 0
    %p35 = por %p33, %p34
    %p36 = scmp.ne.s32.totalorder %s22, %s23
    %p37 = scmp.eq.s32.totalorder %s15, 1
    %p38 = por %p36, %p37
    %p40 = scmp.ne.s32.totalorder %s23, %s39
    %p41 = scmp.eq.s32.totalorder %s15, 0
    %p42 = por %p40, %p41
    %s44 = sadd.s32 %s43, 1
    %p47 = scmp.eq.s32.totalorder %s9, 1
    %p48 = scmp.ne.s32.totalorder %s43, %s45
    %p49 = scmp.eq.s32.totalorder %s9, 0
    %p50 = por %p48, %p49
    %p51 = scmp.ne.s32.totalorder %s43, %s45
    %p52 = scmp.eq.s32.totalorder %s14, 1
    %p53 = por %p51, %p52
    %p54 = scmp.ne.s32.totalorder %s45, %s46
    %p55 = scmp.eq.s32.totalorder %s14, 0
    %p56 = por %p54, %p55
    %p57 = scmp.ne.s32.totalorder %s45, %s46
    %p58 = scmp.eq.s32.totalorder %s15, 1
    %p59 = por %p57, %p58
    %p61 = scmp.ne.s32.totalorder %s46, %s60
    %p62 = scmp.eq.s32.totalorder %s15, 0
    %p63 = por %p61, %p62
    %s65 = sadd.s32 %s64, 1
    %p68 = scmp.eq.s32.totalorder %s9, 1
    %p69 = scmp.ne.s32.totalorder %s64, %s66
    %p70 = scmp.eq.s32.totalorder %s9, 0
    %p71 = por %p69, %p70
    %p72 = scmp.ne.s32.totalorder %s64, %s66
    %p73 = scmp.eq.s32.totalorder %s14, 1
    %p74 = por %p72, %p73
    %p75 = scmp.ne.s32.totalorder %s66, %s67
    %p76 = scmp.eq.s32.totalorder %s14, 0
    %p77 = por %p75, %p76
    %p78 = scmp.ne.s32.totalorder %s66, %s67
    %p79 = scmp.eq.s32.totalorder %s15, 1
    %p80 = por %p78, %p79
    %p82 = scmp.ne.s32.totalorder %s67, %s81
    %p83 = scmp.eq.s32.totalorder %s15, 0
    %p84 = por %p82, %p83
    %s85 = ssub.s32 %s9, %s16
    %p86 = scmp.eq.s32.totalorder %s85, 0
    %s88 = sadd.s32 %s87, 1
    %s89 = scalar_select %p86, %s87, %s88
    %p92 = pneg %p86
    %p93 = scmp.eq.s32.totalorder %s9, 1
    %p94 = por %p92, %p93
    %p95 = scmp.ne.s32.totalorder %s87, %s90
    %p96 = scmp.eq.s32.totalorder %s9, 0
    %p97 = por %p95, %p96
    %p98 = scmp.ne.s32.totalorder %s87, %s90
    %p99 = scmp.eq.s32.totalorder %s14, 1
    %p100 = por %p98, %p99
    %p101 = scmp.ne.s32.totalorder %s90, %s91
    %p102 = scmp.eq.s32.totalorder %s14, 0
    %p103 = por %p101, %p102
    %p104 = scmp.ne.s32.totalorder %s90, %s91
    %p105 = scmp.eq.s32.totalorder %s15, 1
    %p106 = por %p104, %p105
    %p108 = scmp.ne.s32.totalorder %s91, %s107
    %p109 = scmp.eq.s32.totalorder %s15, 0
    %p110 = por %p108, %p109
    %p111 = scmp.le.s32.totalorder 1, %s9
    %p112 = scmp.lt.s32.totalorder %s9, 3
    %p113 = pnand %p111, %p112
    %p114 = pneg %p113
    // Predicated region
    $region9: #{_lambda_.10} parent=5 // pred_check
      _
    $region10: #{_lambda_.10} parent=5 // pred_check_branch
      %116 = sbr.rel (%p113) target = $region12
    $region11: #{_lambda_.10} parent=5 // pred_region
      %s117 = ssub.s32 %s9, 1
      // Predicated region
      $region13: #{_lambda_.10} parent=11 // pred_check
        %p118 = pneg %p56
      $region14: #{_lambda_.10} parent=11 // pred_check_branch
        %120 = sbr.rel (%p118) target = $region16
      $region15: #{_lambda_.10} parent=11 // pred_region
        _
      $region16: #{_lambda_.10} parent=11 // pred_fallthru
        _
      // Predicated region
      $region17: #{_lambda_.10} parent=11 // pred_check
        %p121 = pneg %p77
      $region18: #{_lambda_.10} parent=11 // pred_check_branch
        %123 = sbr.rel (%p121) target = $region20
      $region19: #{_lambda_.10} parent=11 // pred_region
        _
      $region20: #{_lambda_.10} parent=11 // pred_fallthru
        _
    $region12: #{_lambda_.10} parent=5 // pred_fallthru
      _
    %p124 = scmp.lt.s32.totalorder %s9, 2
    // Predicated region
    $region21: #{_lambda_.10} parent=5 // pred_check
      %p125 = pneg %p124
    $region22: #{_lambda_.10} parent=5 // pred_check_branch
      %127 = sbr.rel (%p125) target = $region24
    $region23: #{_lambda_.10} parent=5 // pred_region
      // Predicated region
      $region25: #{_lambda_.10} parent=23 // pred_check
        %p128 = pneg %p29
      $region26: #{_lambda_.10} parent=23 // pred_check_branch
        %130 = sbr.rel (%p128) target = $region28
      $region27: #{_lambda_.10} parent=23 // pred_region
        %p131 = scmp.lt.s32.totalorder %s9, 1
        %s132 = scalar_select %p131, %s9, 1
        %s133 = smul.addr %s132, 12
        %s134 = smul.addr %s133, 4
        %s135 = scalar_lea.vmem %s0, %s134
      $region28: #{_lambda_.10} parent=23 // pred_fallthru
        _
    $region24: #{_lambda_.10} parent=5 // pred_fallthru
      _
    %p136 = scmp.le.s32.totalorder 1, %s9
    %p137 = scmp.lt.s32.totalorder %s9, 3
    %p138 = pnand %p136, %p137
    %p139 = pneg %p138
    // Predicated region
    $region29: #{_lambda_.10} parent=5 // pred_check
      _
    $region30: #{_lambda_.10} parent=5 // pred_check_branch
      %141 = sbr.rel (%p138) target = $region32
    $region31: #{_lambda_.10} parent=5 // pred_region
      %s142 = ssub.s32 %s9, 1
      %p143 = scmp.lt.s32.totalorder %s14, 1
      %s144 = scalar_select %p143, %s14, 1
      %s145 = smul.addr %s144, 12
      %s146 = smul.addr %s145, 4
      %s147 = scalar_lea.vmem %s0, %s146
      %p148 = pneg %p35
      %p149 = pneg %p32
      %p150 = pneg %p56
      %p151 = pneg %p53
      %p152 = pneg %p77
      %p153 = pneg %p74
      %p154 = pneg %p103
      %p155 = pneg %p100
      %p156 = scmp.lt.s32.totalorder %s14, 1
      %s157 = scalar_select %p156, %s14, 1
      %s158 = smul.addr %s157, 4
      %s159 = smul.addr %s158, 4
      %s160 = scalar_lea.vmem %s3, %s159
      %p161 = scmp.lt.s32.totalorder %s14, 1
      %s162 = scalar_select %p161, %s14, 1
      %s163 = smul.addr %s162, 12
      %s164 = smul.addr %s163, 4
      %s165 = scalar_lea.vmem %s0, %s164
      %p166 = scmp.lt.s32.totalorder %s14, 1
      %s167 = scalar_select %p166, %s14, 1
      %s168 = smul.addr %s167, 4
      %s169 = smul.addr %s168, 4
      %s170 = scalar_lea.vmem %s3, %s169
      %v172 = vld [vmem:[%s165] sm:$0xf]
      %v173 = vld [vmem:[%s165 + $0x4] sm:$0x1]
      %v174 = vld [vmem:[%s165 + $0x8] sm:$0xf]
      %v175 = vld [vmem:[%s165 + $0xc] sm:$0x1]
      %v176 = vld [vmem:[%s165 + $0x10] sm:$0xf]
      %v177 = vld [vmem:[%s165 + $0x14] sm:$0x1]
      %v178 = vld [vmem:[%s165 + $0x18] sm:$0xf]
      %v179 = vld [vmem:[%s165 + $0x1c] sm:$0x1]
      %v180 = vld [vmem:[%s165 + $0x20] sm:$0xf]
      %v181 = vld [vmem:[%s165 + $0x24] sm:$0x1]
      %v182 = vld [vmem:[%s165 + $0x28] sm:$0xf]
      %v183 = vld [vmem:[%s165 + $0x2c] sm:$0x1]
      %v184 = vunpack.c.l.bf16 %v172
      %v185 = vunpack.c.l.bf16 %v173
      %v186 = vunpack.c.l.bf16 %v174
      %v187 = vunpack.c.l.bf16 %v175
      %v188 = vunpack.c.l.bf16 %v176
      %v189 = vunpack.c.l.bf16 %v177
      %v190 = vunpack.c.l.bf16 %v178
      %v191 = vunpack.c.l.bf16 %v179
      %v192 = vunpack.c.l.bf16 %v180
      %v193 = vunpack.c.l.bf16 %v181
      %v194 = vunpack.c.l.bf16 %v182
      %v195 = vunpack.c.l.bf16 %v183
      %208 = vrot.lane.b32.xlu0 %v184, 125
      %v209 = vpop.permute.xlu0 %208
      %210 = vrot.lane.b32.xlu0 %v185, 125
      %v211 = vpop.permute.xlu0 %210
      %212 = vrot.lane.b32.xlu0 %v186, 125
      %v213 = vpop.permute.xlu0 %212
      %214 = vrot.lane.b32.xlu0 %v187, 125
      %v215 = vpop.permute.xlu0 %214
      %216 = vrot.lane.b32.xlu0 %v188, 125
      %v217 = vpop.permute.xlu0 %216
      %218 = vrot.lane.b32.xlu0 %v189, 125
      %v219 = vpop.permute.xlu0 %218
      %220 = vrot.lane.b32.xlu0 %v190, 125
      %v221 = vpop.permute.xlu0 %220
      %222 = vrot.lane.b32.xlu0 %v191, 125
      %v223 = vpop.permute.xlu0 %222
      %224 = vrot.lane.b32.xlu0 %v192, 125
      %v225 = vpop.permute.xlu0 %224
      %226 = vrot.lane.b32.xlu0 %v193, 125
      %v227 = vpop.permute.xlu0 %226
      %228 = vrot.lane.b32.xlu0 %v194, 125
      %v229 = vpop.permute.xlu0 %228
      %230 = vrot.lane.b32.xlu0 %v195, 125
      %v231 = vpop.permute.xlu0 %230
      %v244 = vadd.f32 %v184, %v209
      %v245 = vadd.f32 %v185, %v211
      %v246 = vadd.f32 %v186, %v213
      %v247 = vadd.f32 %v187, %v215
      %v248 = vadd.f32 %v188, %v217
      %v249 = vadd.f32 %v189, %v219
      %v250 = vadd.f32 %v190, %v221
      %v251 = vadd.f32 %v191, %v223
      %v252 = vadd.f32 %v192, %v225
      %v253 = vadd.f32 %v193, %v227
      %v254 = vadd.f32 %v194, %v229
      %v255 = vadd.f32 %v195, %v231
      %256 = vrot.lane.b32.xlu0 %v184, 122
      %v257 = vpop.permute.xlu0 %256
      %258 = vrot.lane.b32.xlu0 %v185, 122
      %v259 = vpop.permute.xlu0 %258
      %260 = vrot.lane.b32.xlu0 %v186, 122
      %v261 = vpop.permute.xlu0 %260
      %262 = vrot.lane.b32.xlu0 %v187, 122
      %v263 = vpop.permute.xlu0 %262
      %264 = vrot.lane.b32.xlu0 %v188, 122
      %v265 = vpop.permute.xlu0 %264
      %266 = vrot.lane.b32.xlu0 %v189, 122
      %v267 = vpop.permute.xlu0 %266
      %268 = vrot.lane.b32.xlu0 %v190, 122
      %v269 = vpop.permute.xlu0 %268
      %270 = vrot.lane.b32.xlu0 %v191, 122
      %v271 = vpop.permute.xlu0 %270
      %272 = vrot.lane.b32.xlu0 %v192, 122
      %v273 = vpop.permute.xlu0 %272
      %274 = vrot.lane.b32.xlu0 %v193, 122
      %v275 = vpop.permute.xlu0 %274
      %276 = vrot.lane.b32.xlu0 %v194, 122
      %v277 = vpop.permute.xlu0 %276
      %278 = vrot.lane.b32.xlu0 %v195, 122
      %v279 = vpop.permute.xlu0 %278
      %v292 = vadd.f32 %v244, %v257
      %v293 = vadd.f32 %v245, %v259
      %v294 = vadd.f32 %v246, %v261
      %v295 = vadd.f32 %v247, %v263
      %v296 = vadd.f32 %v248, %v265
      %v297 = vadd.f32 %v249, %v267
      %v298 = vadd.f32 %v250, %v269
      %v299 = vadd.f32 %v251, %v271
      %v300 = vadd.f32 %v252, %v273
      %v301 = vadd.f32 %v253, %v275
      %v302 = vadd.f32 %v254, %v277
      %v303 = vadd.f32 %v255, %v279
      %304 = vrot.lane.b32.xlu0 %v184, 119
      %v305 = vpop.permute.xlu0 %304
      %306 = vrot.lane.b32.xlu0 %v185, 119
      %v307 = vpop.permute.xlu0 %306
      %308 = vrot.lane.b32.xlu0 %v186, 119
      %v309 = vpop.permute.xlu0 %308
      %310 = vrot.lane.b32.xlu0 %v187, 119
      %v311 = vpop.permute.xlu0 %310
      %312 = vrot.lane.b32.xlu0 %v188, 119
      %v313 = vpop.permute.xlu0 %312
      %314 = vrot.lane.b32.xlu0 %v189, 119
      %v315 = vpop.permute.xlu0 %314
      %316 = vrot.lane.b32.xlu0 %v190, 119
      %v317 = vpop.permute.xlu0 %316
      %318 = vrot.lane.b32.xlu0 %v191, 119
      %v319 = vpop.permute.xlu0 %318
      %320 = vrot.lane.b32.xlu0 %v192, 119
      %v321 = vpop.permute.xlu0 %320
      %322 = vrot.lane.b32.xlu0 %v193, 119
      %v323 = vpop.permute.xlu0 %322
      %324 = vrot.lane.b32.xlu0 %v194, 119
      %v325 = vpop.permute.xlu0 %324
      %326 = vrot.lane.b32.xlu0 %v195, 119
      %v327 = vpop.permute.xlu0 %326
      %v340 = vadd.f32 %v292, %v305
      %v341 = vadd.f32 %v293, %v307
      %v342 = vadd.f32 %v294, %v309
      %v343 = vadd.f32 %v295, %v311
      %v344 = vadd.f32 %v296, %v313
      %v345 = vadd.f32 %v297, %v315
      %v346 = vadd.f32 %v298, %v317
      %v347 = vadd.f32 %v299, %v319
      %v348 = vadd.f32 %v300, %v321
      %v349 = vadd.f32 %v301, %v323
      %v350 = vadd.f32 %v302, %v325
      %v351 = vadd.f32 %v303, %v327
      %352 = vrot.lane.b32.xlu0 %v184, 116
      %v353 = vpop.permute.xlu0 %352
      %354 = vrot.lane.b32.xlu0 %v185, 116
      %v355 = vpop.permute.xlu0 %354
      %356 = vrot.lane.b32.xlu0 %v186, 116
      %v357 = vpop.permute.xlu0 %356
      %358 = vrot.lane.b32.xlu0 %v187, 116
      %v359 = vpop.permute.xlu0 %358
      %360 = vrot.lane.b32.xlu0 %v188, 116
      %v361 = vpop.permute.xlu0 %360
      %362 = vrot.lane.b32.xlu0 %v189, 116
      %v363 = vpop.permute.xlu0 %362
      %364 = vrot.lane.b32.xlu0 %v190, 116
      %v365 = vpop.permute.xlu0 %364
      %366 = vrot.lane.b32.xlu0 %v191, 116
      %v367 = vpop.permute.xlu0 %366
      %368 = vrot.lane.b32.xlu0 %v192, 116
      %v369 = vpop.permute.xlu0 %368
      %370 = vrot.lane.b32.xlu0 %v193, 116
      %v371 = vpop.permute.xlu0 %370
      %372 = vrot.lane.b32.xlu0 %v194, 116
      %v373 = vpop.permute.xlu0 %372
      %374 = vrot.lane.b32.xlu0 %v195, 116
      %v375 = vpop.permute.xlu0 %374
      %v388 = vadd.f32 %v340, %v353
      %v389 = vadd.f32 %v341, %v355
      %v390 = vadd.f32 %v342, %v357
      %v391 = vadd.f32 %v343, %v359
      %v392 = vadd.f32 %v344, %v361
      %v393 = vadd.f32 %v345, %v363
      %v394 = vadd.f32 %v346, %v365
      %v395 = vadd.f32 %v347, %v367
      %v396 = vadd.f32 %v348, %v369
      %v397 = vadd.f32 %v349, %v371
      %v398 = vadd.f32 %v350, %v373
      %v399 = vadd.f32 %v351, %v375
      %400 = vrot.lane.b32.xlu0 %v184, 113
      %v401 = vpop.permute.xlu0 %400
      %402 = vrot.lane.b32.xlu0 %v185, 113
      %v403 = vpop.permute.xlu0 %402
      %404 = vrot.lane.b32.xlu0 %v186, 113
      %v405 = vpop.permute.xlu0 %404
      %406 = vrot.lane.b32.xlu0 %v187, 113
      %v407 = vpop.permute.xlu0 %406
      %408 = vrot.lane.b32.xlu0 %v188, 113
      %v409 = vpop.permute.xlu0 %408
      %410 = vrot.lane.b32.xlu0 %v189, 113
      %v411 = vpop.permute.xlu0 %410
      %412 = vrot.lane.b32.xlu0 %v190, 113
      %v413 = vpop.permute.xlu0 %412
      %414 = vrot.lane.b32.xlu0 %v191, 113
      %v415 = vpop.permute.xlu0 %414
      %416 = vrot.lane.b32.xlu0 %v192, 113
      %v417 = vpop.permute.xlu0 %416
      %418 = vrot.lane.b32.xlu0 %v193, 113
      %v419 = vpop.permute.xlu0 %418
      %420 = vrot.lane.b32.xlu0 %v194, 113
      %v421 = vpop.permute.xlu0 %420
      %422 = vrot.lane.b32.xlu0 %v195, 113
      %v423 = vpop.permute.xlu0 %422
      %v436 = vadd.f32 %v388, %v401
      %v437 = vadd.f32 %v389, %v403
      %v438 = vadd.f32 %v390, %v405
      %v439 = vadd.f32 %v391, %v407
      %v440 = vadd.f32 %v392, %v409
      %v441 = vadd.f32 %v393, %v411
      %v442 = vadd.f32 %v394, %v413
      %v443 = vadd.f32 %v395, %v415
      %v444 = vadd.f32 %v396, %v417
      %v445 = vadd.f32 %v397, %v419
      %v446 = vadd.f32 %v398, %v421
      %v447 = vadd.f32 %v399, %v423
      %448 = vrot.lane.b32.xlu0 %v184, 110
      %v449 = vpop.permute.xlu0 %448
      %450 = vrot.lane.b32.xlu0 %v185, 110
      %v451 = vpop.permute.xlu0 %450
      %452 = vrot.lane.b32.xlu0 %v186, 110
      %v453 = vpop.permute.xlu0 %452
      %454 = vrot.lane.b32.xlu0 %v187, 110
      %v455 = vpop.permute.xlu0 %454
      %456 = vrot.lane.b32.xlu0 %v188, 110
      %v457 = vpop.permute.xlu0 %456
      %458 = vrot.lane.b32.xlu0 %v189, 110
      %v459 = vpop.permute.xlu0 %458
      %460 = vrot.lane.b32.xlu0 %v190, 110
      %v461 = vpop.permute.xlu0 %460
      %462 = vrot.lane.b32.xlu0 %v191, 110
      %v463 = vpop.permute.xlu0 %462
      %464 = vrot.lane.b32.xlu0 %v192, 110
      %v465 = vpop.permute.xlu0 %464
      %466 = vrot.lane.b32.xlu0 %v193, 110
      %v467 = vpop.permute.xlu0 %466
      %468 = vrot.lane.b32.xlu0 %v194, 110
      %v469 = vpop.permute.xlu0 %468
      %470 = vrot.lane.b32.xlu0 %v195, 110
      %v471 = vpop.permute.xlu0 %470
      %v484 = vadd.f32 %v436, %v449
      %v485 = vadd.f32 %v437, %v451
      %v486 = vadd.f32 %v438, %v453
      %v487 = vadd.f32 %v439, %v455
      %v488 = vadd.f32 %v440, %v457
      %v489 = vadd.f32 %v441, %v459
      %v490 = vadd.f32 %v442, %v461
      %v491 = vadd.f32 %v443, %v463
      %v492 = vadd.f32 %v444, %v465
      %v493 = vadd.f32 %v445, %v467
      %v494 = vadd.f32 %v446, %v469
      %v495 = vadd.f32 %v447, %v471
      %496 = vrot.lane.b32.xlu0 %v184, 107
      %v497 = vpop.permute.xlu0 %496
      %498 = vrot.lane.b32.xlu0 %v185, 107
      %v499 = vpop.permute.xlu0 %498
      %500 = vrot.lane.b32.xlu0 %v186, 107
      %v501 = vpop.permute.xlu0 %500
      %502 = vrot.lane.b32.xlu0 %v187, 107
      %v503 = vpop.permute.xlu0 %502
      %504 = vrot.lane.b32.xlu0 %v188, 107
      %v505 = vpop.permute.xlu0 %504
      %506 = vrot.lane.b32.xlu0 %v189, 107
      %v507 = vpop.permute.xlu0 %506
      %508 = vrot.lane.b32.xlu0 %v190, 107
      %v509 = vpop.permute.xlu0 %508
      %510 = vrot.lane.b32.xlu0 %v191, 107
      %v511 = vpop.permute.xlu0 %510
      %512 = vrot.lane.b32.xlu0 %v192, 107
      %v513 = vpop.permute.xlu0 %512
      %514 = vrot.lane.b32.xlu0 %v193, 107
      %v515 = vpop.permute.xlu0 %514
      %516 = vrot.lane.b32.xlu0 %v194, 107
      %v517 = vpop.permute.xlu0 %516
      %518 = vrot.lane.b32.xlu0 %v195, 107
      %v519 = vpop.permute.xlu0 %518
      %v532 = vadd.f32 %v484, %v497
      %v533 = vadd.f32 %v485, %v499
      %v534 = vadd.f32 %v486, %v501
      %v535 = vadd.f32 %v487, %v503
      %v536 = vadd.f32 %v488, %v505
      %v537 = vadd.f32 %v489, %v507
      %v538 = vadd.f32 %v490, %v509
      %v539 = vadd.f32 %v491, %v511
      %v540 = vadd.f32 %v492, %v513
      %v541 = vadd.f32 %v493, %v515
      %v542 = vadd.f32 %v494, %v517
      %v543 = vadd.f32 %v495, %v519
      %544 = vrot.lane.b32.xlu0 %v184, 104
      %v545 = vpop.permute.xlu0 %544
      %546 = vrot.lane.b32.xlu0 %v185, 104
      %v547 = vpop.permute.xlu0 %546
      %548 = vrot.lane.b32.xlu0 %v186, 104
      %v549 = vpop.permute.xlu0 %548
      %550 = vrot.lane.b32.xlu0 %v187, 104
      %v551 = vpop.permute.xlu0 %550
      %552 = vrot.lane.b32.xlu0 %v188, 104
      %v553 = vpop.permute.xlu0 %552
      %554 = vrot.lane.b32.xlu0 %v189, 104
      %v555 = vpop.permute.xlu0 %554
      %556 = vrot.lane.b32.xlu0 %v190, 104
      %v557 = vpop.permute.xlu0 %556
      %558 = vrot.lane.b32.xlu0 %v191, 104
      %v559 = vpop.permute.xlu0 %558
      %560 = vrot.lane.b32.xlu0 %v192, 104
      %v561 = vpop.permute.xlu0 %560
      %562 = vrot.lane.b32.xlu0 %v193, 104
      %v563 = vpop.permute.xlu0 %562
      %564 = vrot.lane.b32.xlu0 %v194, 104
      %v565 = vpop.permute.xlu0 %564
      %566 = vrot.lane.b32.xlu0 %v195, 104
      %v567 = vpop.permute.xlu0 %566
      %v580 = vadd.f32 %v532, %v545
      %v581 = vadd.f32 %v533, %v547
      %v582 = vadd.f32 %v534, %v549
      %v583 = vadd.f32 %v535, %v551
      %v584 = vadd.f32 %v536, %v553
      %v585 = vadd.f32 %v537, %v555
      %v586 = vadd.f32 %v538, %v557
      %v587 = vadd.f32 %v539, %v559
      %v588 = vadd.f32 %v540, %v561
      %v589 = vadd.f32 %v541, %v563
      %v590 = vadd.f32 %v542, %v565
      %v591 = vadd.f32 %v543, %v567
      %592 = vrot.lane.b32.xlu0 %v184, 101
      %v593 = vpop.permute.xlu0 %592
      %594 = vrot.lane.b32.xlu0 %v185, 101
      %v595 = vpop.permute.xlu0 %594
      %596 = vrot.lane.b32.xlu0 %v186, 101
      %v597 = vpop.permute.xlu0 %596
      %598 = vrot.lane.b32.xlu0 %v187, 101
      %v599 = vpop.permute.xlu0 %598
      %600 = vrot.lane.b32.xlu0 %v188, 101
      %v601 = vpop.permute.xlu0 %600
      %602 = vrot.lane.b32.xlu0 %v189, 101
      %v603 = vpop.permute.xlu0 %602
      %604 = vrot.lane.b32.xlu0 %v190, 101
      %v605 = vpop.permute.xlu0 %604
      %606 = vrot.lane.b32.xlu0 %v191, 101
      %v607 = vpop.permute.xlu0 %606
      %608 = vrot.lane.b32.xlu0 %v192, 101
      %v609 = vpop.permute.xlu0 %608
      %610 = vrot.lane.b32.xlu0 %v193, 101
      %v611 = vpop.permute.xlu0 %610
      %612 = vrot.lane.b32.xlu0 %v194, 101
      %v613 = vpop.permute.xlu0 %612
      %614 = vrot.lane.b32.xlu0 %v195, 101
      %v615 = vpop.permute.xlu0 %614
      %v628 = vadd.f32 %v580, %v593
      %v629 = vadd.f32 %v581, %v595
      %v630 = vadd.f32 %v582, %v597
      %v631 = vadd.f32 %v583, %v599
      %v632 = vadd.f32 %v584, %v601
      %v633 = vadd.f32 %v585, %v603
      %v634 = vadd.f32 %v586, %v605
      %v635 = vadd.f32 %v587, %v607
      %v636 = vadd.f32 %v588, %v609
      %v637 = vadd.f32 %v589, %v611
      %v638 = vadd.f32 %v590, %v613
      %v639 = vadd.f32 %v591, %v615
      %640 = vrot.lane.b32.xlu0 %v184, 98
      %v641 = vpop.permute.xlu0 %640
      %642 = vrot.lane.b32.xlu0 %v185, 98
      %v643 = vpop.permute.xlu0 %642
      %644 = vrot.lane.b32.xlu0 %v186, 98
      %v645 = vpop.permute.xlu0 %644
      %646 = vrot.lane.b32.xlu0 %v187, 98
      %v647 = vpop.permute.xlu0 %646
      %648 = vrot.lane.b32.xlu0 %v188, 98
      %v649 = vpop.permute.xlu0 %648
      %650 = vrot.lane.b32.xlu0 %v189, 98
      %v651 = vpop.permute.xlu0 %650
      %652 = vrot.lane.b32.xlu0 %v190, 98
      %v653 = vpop.permute.xlu0 %652
      %654 = vrot.lane.b32.xlu0 %v191, 98
      %v655 = vpop.permute.xlu0 %654
      %656 = vrot.lane.b32.xlu0 %v192, 98
      %v657 = vpop.permute.xlu0 %656
      %658 = vrot.lane.b32.xlu0 %v193, 98
      %v659 = vpop.permute.xlu0 %658
      %660 = vrot.lane.b32.xlu0 %v194, 98
      %v661 = vpop.permute.xlu0 %660
      %662 = vrot.lane.b32.xlu0 %v195, 98
      %v663 = vpop.permute.xlu0 %662
      %v676 = vadd.f32 %v628, %v641
      %v677 = vadd.f32 %v629, %v643
      %v678 = vadd.f32 %v630, %v645
      %v679 = vadd.f32 %v631, %v647
      %v680 = vadd.f32 %v632, %v649
      %v681 = vadd.f32 %v633, %v651
      %v682 = vadd.f32 %v634, %v653
      %v683 = vadd.f32 %v635, %v655
      %v684 = vadd.f32 %v636, %v657
      %v685 = vadd.f32 %v637, %v659
      %v686 = vadd.f32 %v638, %v661
      %v687 = vadd.f32 %v639, %v663
      %688 = vrot.lane.b32.xlu0 %v184, 95
      %v689 = vpop.permute.xlu0 %688
      %690 = vrot.lane.b32.xlu0 %v185, 95
      %v691 = vpop.permute.xlu0 %690
      %692 = vrot.lane.b32.xlu0 %v186, 95
      %v693 = vpop.permute.xlu0 %692
      %694 = vrot.lane.b32.xlu0 %v187, 95
      %v695 = vpop.permute.xlu0 %694
      %696 = vrot.lane.b32.xlu0 %v188, 95
      %v697 = vpop.permute.xlu0 %696
      %698 = vrot.lane.b32.xlu0 %v189, 95
      %v699 = vpop.permute.xlu0 %698
      %700 = vrot.lane.b32.xlu0 %v190, 95
      %v701 = vpop.permute.xlu0 %700
      %702 = vrot.lane.b32.xlu0 %v191, 95
      %v703 = vpop.permute.xlu0 %702
      %704 = vrot.lane.b32.xlu0 %v192, 95
      %v705 = vpop.permute.xlu0 %704
      %706 = vrot.lane.b32.xlu0 %v193, 95
      %v707 = vpop.permute.xlu0 %706
      %708 = vrot.lane.b32.xlu0 %v194, 95
      %v709 = vpop.permute.xlu0 %708
      %710 = vrot.lane.b32.xlu0 %v195, 95
      %v711 = vpop.permute.xlu0 %710
      %v724 = vadd.f32 %v676, %v689
      %v725 = vadd.f32 %v677, %v691
      %v726 = vadd.f32 %v678, %v693
      %v727 = vadd.f32 %v679, %v695
      %v728 = vadd.f32 %v680, %v697
      %v729 = vadd.f32 %v681, %v699
      %v730 = vadd.f32 %v682, %v701
      %v731 = vadd.f32 %v683, %v703
      %v732 = vadd.f32 %v684, %v705
      %v733 = vadd.f32 %v685, %v707
      %v734 = vadd.f32 %v686, %v709
      %v735 = vadd.f32 %v687, %v711
      %736 = vrot.lane.b32.xlu0 %v184, 92
      %v737 = vpop.permute.xlu0 %736
      %738 = vrot.lane.b32.xlu0 %v185, 92
      %v739 = vpop.permute.xlu0 %738
      %740 = vrot.lane.b32.xlu0 %v186, 92
      %v741 = vpop.permute.xlu0 %740
      %742 = vrot.lane.b32.xlu0 %v187, 92
      %v743 = vpop.permute.xlu0 %742
      %744 = vrot.lane.b32.xlu0 %v188, 92
      %v745 = vpop.permute.xlu0 %744
      %746 = vrot.lane.b32.xlu0 %v189, 92
      %v747 = vpop.permute.xlu0 %746
      %748 = vrot.lane.b32.xlu0 %v190, 92
      %v749 = vpop.permute.xlu0 %748
      %750 = vrot.lane.b32.xlu0 %v191, 92
      %v751 = vpop.permute.xlu0 %750
      %752 = vrot.lane.b32.xlu0 %v192, 92
      %v753 = vpop.permute.xlu0 %752
      %754 = vrot.lane.b32.xlu0 %v193, 92
      %v755 = vpop.permute.xlu0 %754
      %756 = vrot.lane.b32.xlu0 %v194, 92
      %v757 = vpop.permute.xlu0 %756
      %758 = vrot.lane.b32.xlu0 %v195, 92
      %v759 = vpop.permute.xlu0 %758
      %v772 = vadd.f32 %v724, %v737
      %v773 = vadd.f32 %v725, %v739
      %v774 = vadd.f32 %v726, %v741
      %v775 = vadd.f32 %v727, %v743
      %v776 = vadd.f32 %v728, %v745
      %v777 = vadd.f32 %v729, %v747
      %v778 = vadd.f32 %v730, %v749
      %v779 = vadd.f32 %v731, %v751
      %v780 = vadd.f32 %v732, %v753
      %v781 = vadd.f32 %v733, %v755
      %v782 = vadd.f32 %v734, %v757
      %v783 = vadd.f32 %v735, %v759
      %784 = vrot.lane.b32.xlu0 %v184, 89
      %v785 = vpop.permute.xlu0 %784
      %786 = vrot.lane.b32.xlu0 %v185, 89
      %v787 = vpop.permute.xlu0 %786
      %788 = vrot.lane.b32.xlu0 %v186, 89
      %v789 = vpop.permute.xlu0 %788
      %790 = vrot.lane.b32.xlu0 %v187, 89
      %v791 = vpop.permute.xlu0 %790
      %792 = vrot.lane.b32.xlu0 %v188, 89
      %v793 = vpop.permute.xlu0 %792
      %794 = vrot.lane.b32.xlu0 %v189, 89
      %v795 = vpop.permute.xlu0 %794
      %796 = vrot.lane.b32.xlu0 %v190, 89
      %v797 = vpop.permute.xlu0 %796
      %798 = vrot.lane.b32.xlu0 %v191, 89
      %v799 = vpop.permute.xlu0 %798
      %800 = vrot.lane.b32.xlu0 %v192, 89
      %v801 = vpop.permute.xlu0 %800
      %802 = vrot.lane.b32.xlu0 %v193, 89
      %v803 = vpop.permute.xlu0 %802
      %804 = vrot.lane.b32.xlu0 %v194, 89
      %v805 = vpop.permute.xlu0 %804
      %806 = vrot.lane.b32.xlu0 %v195, 89
      %v807 = vpop.permute.xlu0 %806
      %v820 = vadd.f32 %v772, %v785
      %v821 = vadd.f32 %v773, %v787
      %v822 = vadd.f32 %v774, %v789
      %v823 = vadd.f32 %v775, %v791
      %v824 = vadd.f32 %v776, %v793
      %v825 = vadd.f32 %v777, %v795
      %v826 = vadd.f32 %v778, %v797
      %v827 = vadd.f32 %v779, %v799
      %v828 = vadd.f32 %v780, %v801
      %v829 = vadd.f32 %v781, %v803
      %v830 = vadd.f32 %v782, %v805
      %v831 = vadd.f32 %v783, %v807
      %832 = vrot.lane.b32.xlu0 %v184, 86
      %v833 = vpop.permute.xlu0 %832
      %834 = vrot.lane.b32.xlu0 %v185, 86
      %v835 = vpop.permute.xlu0 %834
      %836 = vrot.lane.b32.xlu0 %v186, 86
      %v837 = vpop.permute.xlu0 %836
      %838 = vrot.lane.b32.xlu0 %v187, 86
      %v839 = vpop.permute.xlu0 %838
      %840 = vrot.lane.b32.xlu0 %v188, 86
      %v841 = vpop.permute.xlu0 %840
      %842 = vrot.lane.b32.xlu0 %v189, 86
      %v843 = vpop.permute.xlu0 %842
      %844 = vrot.lane.b32.xlu0 %v190, 86
      %v845 = vpop.permute.xlu0 %844
      %846 = vrot.lane.b32.xlu0 %v191, 86
      %v847 = vpop.permute.xlu0 %846
      %848 = vrot.lane.b32.xlu0 %v192, 86
      %v849 = vpop.permute.xlu0 %848
      %850 = vrot.lane.b32.xlu0 %v193, 86
      %v851 = vpop.permute.xlu0 %850
      %852 = vrot.lane.b32.xlu0 %v194, 86
      %v853 = vpop.permute.xlu0 %852
      %854 = vrot.lane.b32.xlu0 %v195, 86
      %v855 = vpop.permute.xlu0 %854
      %v868 = vadd.f32 %v820, %v833
      %v869 = vadd.f32 %v821, %v835
      %v870 = vadd.f32 %v822, %v837
      %v871 = vadd.f32 %v823, %v839
      %v872 = vadd.f32 %v824, %v841
      %v873 = vadd.f32 %v825, %v843
      %v874 = vadd.f32 %v826, %v845
      %v875 = vadd.f32 %v827, %v847
      %v876 = vadd.f32 %v828, %v849
      %v877 = vadd.f32 %v829, %v851
      %v878 = vadd.f32 %v830, %v853
      %v879 = vadd.f32 %v831, %v855
      %880 = vrot.lane.b32.xlu0 %v184, 83
      %v881 = vpop.permute.xlu0 %880
      %882 = vrot.lane.b32.xlu0 %v185, 83
      %v883 = vpop.permute.xlu0 %882
      %884 = vrot.lane.b32.xlu0 %v186, 83
      %v885 = vpop.permute.xlu0 %884
      %886 = vrot.lane.b32.xlu0 %v187, 83
      %v887 = vpop.permute.xlu0 %886
      %888 = vrot.lane.b32.xlu0 %v188, 83
      %v889 = vpop.permute.xlu0 %888
      %890 = vrot.lane.b32.xlu0 %v189, 83
      %v891 = vpop.permute.xlu0 %890
      %892 = vrot.lane.b32.xlu0 %v190, 83
      %v893 = vpop.permute.xlu0 %892
      %894 = vrot.lane.b32.xlu0 %v191, 83
      %v895 = vpop.permute.xlu0 %894
      %896 = vrot.lane.b32.xlu0 %v192, 83
      %v897 = vpop.permute.xlu0 %896
      %898 = vrot.lane.b32.xlu0 %v193, 83
      %v899 = vpop.permute.xlu0 %898
      %900 = vrot.lane.b32.xlu0 %v194, 83
      %v901 = vpop.permute.xlu0 %900
      %902 = vrot.lane.b32.xlu0 %v195, 83
      %v903 = vpop.permute.xlu0 %902
      %v916 = vadd.f32 %v868, %v881
      %v917 = vadd.f32 %v869, %v883
      %v918 = vadd.f32 %v870, %v885
      %v919 = vadd.f32 %v871, %v887
      %v920 = vadd.f32 %v872, %v889
      %v921 = vadd.f32 %v873, %v891
      %v922 = vadd.f32 %v874, %v893
      %v923 = vadd.f32 %v875, %v895
      %v924 = vadd.f32 %v876, %v897
      %v925 = vadd.f32 %v877, %v899
      %v926 = vadd.f32 %v878, %v901
      %v927 = vadd.f32 %v879, %v903
      %v928 = vmul.f32 %v916, 0.0625
      %v929 = vmul.f32 %v917, 0.0625
      %v930 = vmul.f32 %v918, 0.0625
      %v931 = vmul.f32 %v919, 0.0625
      %v932 = vmul.f32 %v920, 0.0625
      %v933 = vmul.f32 %v921, 0.0625
      %v934 = vmul.f32 %v922, 0.0625
      %v935 = vmul.f32 %v923, 0.0625
      %v936 = vmul.f32 %v924, 0.0625
      %v937 = vmul.f32 %v925, 0.0625
      %v938 = vmul.f32 %v926, 0.0625
      %v939 = vmul.f32 %v927, 0.0625
      %v940 = vpack.c.bf16 %v928, %v928
      %v941 = vpack.c.bf16 %v929, %v929
      %v942 = vpack.c.bf16 %v930, %v930
      %v943 = vpack.c.bf16 %v931, %v931
      %v944 = vpack.c.bf16 %v932, %v932
      %v945 = vpack.c.bf16 %v933, %v933
      %v946 = vpack.c.bf16 %v934, %v934
      %v947 = vpack.c.bf16 %v935, %v935
      %v948 = vpack.c.bf16 %v936, %v936
      %v949 = vpack.c.bf16 %v937, %v937
      %v950 = vpack.c.bf16 %v938, %v938
      %v951 = vpack.c.bf16 %v939, %v939
      %v952 = vld [vmem:[%s1] sm:$0x3]
      %vm953 = vsmask.f32 3328
      %vm954 = vsmask.f32 7440
      %vm955 = vmor %vm953, %vm954
      %v957 = vshrl.u32 %v940, 16
      %v959 = vrot.slane %v957, 4
      %v960 = vshll.u32 %v940, 16
      %v962 = vrot.slane %v960, 5
      %v963 = vor.u32 %v959, %v962
      %v964 = vrot.slane %v963, 4
      %v966 = vshll.u32 %v941, 16
      %v968 = vrot.slane %v966, 5
      %v969 = vsel %vm955, %v964, %v968
      %v971 = vshrl.u32 %v942, 16
      %v973 = vrot.slane %v971, 4
      %v974 = vshll.u32 %v942, 16
      %v976 = vrot.slane %v974, 5
      %v977 = vor.u32 %v973, %v976
      %v978 = vrot.slane %v977, 4
      %v980 = vshll.u32 %v943, 16
      %v982 = vrot.slane %v980, 5
      %v983 = vsel %vm955, %v978, %v982
      %v985 = vshrl.u32 %v944, 16
      %v987 = vrot.slane %v985, 4
      %v988 = vshll.u32 %v944, 16
      %v990 = vrot.slane %v988, 5
      %v991 = vor.u32 %v987, %v990
      %v992 = vrot.slane %v991, 4
      %v994 = vshll.u32 %v945, 16
      %v996 = vrot.slane %v994, 5
      %v997 = vsel %vm955, %v992, %v996
      %v999 = vshrl.u32 %v946, 16
      %v1001 = vrot.slane %v999, 4
      %v1002 = vshll.u32 %v946, 16
      %v1004 = vrot.slane %v1002, 5
      %v1005 = vor.u32 %v1001, %v1004
      %v1006 = vrot.slane %v1005, 4
      %v1008 = vshll.u32 %v947, 16
      %v1010 = vrot.slane %v1008, 5
      %v1011 = vsel %vm955, %v1006, %v1010
      %s1012 = scalar_lea.vmem %s1, 2
      %v1013 = vld [vmem:[%s1012] sm:$0x3]
      %v1014 = vunpack.c.l.b16 %v969
      %v1015 = vunpack.c.l.b16 %v983
      %v1016 = vunpack.c.l.b16 %v997
      %v1017 = vunpack.c.l.b16 %v1011
      %v1018 = vpack.c.b16 %v1015, %v1014
      %v1019 = vpack.c.b16 %v1017, %v1016
      %vm1020 = vcmask 23552
      %v1022 = vsel %vm1020, %v1018, 0
      %v1025 = vsel %vm1020, %v1019, 0
      %vm1027 = vcmask 1040384
      %vm1028 = vcmask 1041408
      %v1029 = vsel %vm1027, 4294967295, 65535
      %v1030 = vsel %vm1028, %v1029, 0
      %v1032 = vand.u32 %v1013, %v1030
      %1034 = vmatpush.bf16.msra.mxu0 0
      %1035 = vmatpush.bf16.msra.mxu0 0
      %1036 = vmatpush.bf16.msra.mxu0 0
      %1037 = vmatpush.bf16.msra.mxu0 0
      %1038 = vmatpush.bf16.msra.mxu0 0
      %1039 = vmatpush.bf16.msra.mxu0 0
      %1040 = vmatpush.bf16.msra.mxu0 0
      %1041 = vmatpush.bf16.msra.mxu0 %v1032
      %1042 = vmatmul.bf16.gmra.mxu0 %v1022
      %v1043 = vpop.f32.mrf.mxu0
      %v1044 = vadd.f32 0.0, %v1043
      %v1045 = vpop.f32.mrf.mxu0
      %v1046 = vadd.f32 0.0, %v1045
      %1047 = vmatmul.bf16.gmra.mxu0 %v1025
      %v1048 = vpop.f32.mrf.mxu0
      %v1049 = vadd.f32 0.0, %v1048
      %v1050 = vpop.f32.mrf.mxu0
      %v1051 = vadd.f32 0.0, %v1050
      %1052 = vdwg.mxu0
      %v1057 = vunpack.c.l.b16 %v940
      %v1058 = vunpack.c.l.b16 %v942
      %v1059 = vunpack.c.l.b16 %v944
      %v1060 = vunpack.c.l.b16 %v946
      %v1061 = vpack.c.b16 %v1058, %v1057
      %v1062 = vpack.c.b16 %v1060, %v1059
      %v1064 = vsel %vm1020, %v1061, 0
      %v1067 = vsel %vm1020, %v1062, 0
      %v1070 = vand.u32 %v952, %v1030
      %1072 = vmatpush.bf16.msra.mxu0 0
      %1073 = vmatpush.bf16.msra.mxu0 0
      %1074 = vmatpush.bf16.msra.mxu0 0
      %1075 = vmatpush.bf16.msra.mxu0 0
      %1076 = vmatpush.bf16.msra.mxu0 0
      %1077 = vmatpush.bf16.msra.mxu0 0
      %1078 = vmatpush.bf16.msra.mxu0 0
      %1079 = vmatpush.bf16.msra.mxu0 %v1070
      %1080 = vmatmul.bf16.gmra.mxu0 %v1064
      %v1081 = vpop.f32.mrf.mxu0
      %v1082 = vadd.f32 %v1044, %v1081
      %v1083 = vpop.f32.mrf.mxu0
      %v1084 = vadd.f32 %v1046, %v1083
      %1085 = vmatmul.bf16.gmra.mxu0 %v1067
      %v1086 = vpop.f32.mrf.mxu0
      %v1087 = vadd.f32 %v1049, %v1086
      %v1088 = vpop.f32.mrf.mxu0
      %v1089 = vadd.f32 %v1051, %v1088
      %1090 = vdwg.mxu0
      %vm1095 = vcmask 1042432
      %vm1096 = vcmask 1046532
      %vm1097 = vmor %vm1095, %vm1096
      %v1098 = vrot.slane %v940, 5
      %v1099 = vrot.slane %v1098, 4
      %v1100 = vrot.slane %v941, 5
      %v1101 = vsel %vm1097, %v1099, %v1100
      %v1102 = vrot.slane %v942, 5
      %v1103 = vrot.slane %v1102, 4
      %v1104 = vrot.slane %v943, 5
      %v1105 = vsel %vm1097, %v1103, %v1104
      %v1106 = vrot.slane %v944, 5
      %v1107 = vrot.slane %v1106, 4
      %v1108 = vrot.slane %v945, 5
      %v1109 = vsel %vm1097, %v1107, %v1108
      %v1110 = vrot.slane %v946, 5
      %v1111 = vrot.slane %v1110, 4
      %v1112 = vrot.slane %v947, 5
      %v1113 = vsel %vm1097, %v1111, %v1112
      %s1114 = scalar_lea.vmem %s1, 4
      %v1115 = vld [vmem:[%s1114] sm:$0x3]
      %v1116 = vunpack.c.l.b16 %v1101
      %v1117 = vunpack.c.l.b16 %v1105
      %v1118 = vunpack.c.l.b16 %v1109
      %v1119 = vunpack.c.l.b16 %v1113
      %v1120 = vpack.c.b16 %v1117, %v1116
      %v1121 = vpack.c.b16 %v1119, %v1118
      %v1123 = vsel %vm1020, %v1120, 0
      %v1126 = vsel %vm1020, %v1121, 0
      %v1129 = vand.u32 %v1115, %v1030
      %1131 = vmatpush.bf16.msra.mxu0 0
      %1132 = vmatpush.bf16.msra.mxu0 0
      %1133 = vmatpush.bf16.msra.mxu0 0
      %1134 = vmatpush.bf16.msra.mxu0 0
      %1135 = vmatpush.bf16.msra.mxu0 0
      %1136 = vmatpush.bf16.msra.mxu0 0
      %1137 = vmatpush.bf16.msra.mxu0 0
      %1138 = vmatpush.bf16.msra.mxu0 %v1129
      %1139 = vmatmul.bf16.gmra.mxu0 %v1123
      %v1140 = vpop.f32.mrf.mxu0
      %v1141 = vadd.f32 0.0, %v1140
      %v1142 = vpop.f32.mrf.mxu0
      %v1143 = vadd.f32 0.0, %v1142
      %1144 = vmatmul.bf16.gmra.mxu0 %v1126
      %v1145 = vpop.f32.mrf.mxu0
      %v1146 = vadd.f32 0.0, %v1145
      %v1147 = vpop.f32.mrf.mxu0
      %v1148 = vadd.f32 0.0, %v1147
      %1149 = vdwg.mxu0
      %v1150 = vadd.f32 %v1082, %v1141
      %v1151 = vadd.f32 %v1084, %v1143
      %v1152 = vadd.f32 %v1087, %v1146
      %v1153 = vadd.f32 %v1089, %v1148
      %s1154 = scalar_lea.vmem %s1, 6
      %v1155 = vld [vmem:[%s1154] sm:$0x3]
      %v1157 = vunpack.c.l.b16 %v948
      %v1158 = vpack.c.b16 %v1059, %v1058
      %v1159 = vpack.c.b16 %v1157, %v1060
      %v1161 = vsel %vm1020, %v1158, 0
      %v1164 = vsel %vm1020, %v1159, 0
      %v1167 = vand.u32 %v1155, %v1030
      %1169 = vmatpush.bf16.msra.mxu0 0
      %1170 = vmatpush.bf16.msra.mxu0 0
      %1171 = vmatpush.bf16.msra.mxu0 0
      %1172 = vmatpush.bf16.msra.mxu0 0
      %1173 = vmatpush.bf16.msra.mxu0 0
      %1174 = vmatpush.bf16.msra.mxu0 0
      %1175 = vmatpush.bf16.msra.mxu0 0
      %1176 = vmatpush.bf16.msra.mxu0 %v1167
      %1177 = vmatmul.bf16.gmra.mxu0 %v1161
      %v1178 = vpop.f32.mrf.mxu0
      %v1179 = vadd.f32 0.0, %v1178
      %v1180 = vpop.f32.mrf.mxu0
      %v1181 = vadd.f32 0.0, %v1180
      %1182 = vmatmul.bf16.gmra.mxu0 %v1164
      %v1183 = vpop.f32.mrf.mxu0
      %v1184 = vadd.f32 0.0, %v1183
      %v1185 = vpop.f32.mrf.mxu0
      %v1186 = vadd.f32 0.0, %v1185
      %1187 = vdwg.mxu0
      %v1188 = vadd.f32 %v1150, %v1179
      %v1189 = vadd.f32 %v1151, %v1181
      %v1190 = vadd.f32 %v1152, %v1184
      %v1191 = vadd.f32 %v1153, %v1186
      %v1193 = vshrl.u32 %v948, 16
      %v1195 = vrot.slane %v1193, 4
      %v1196 = vshll.u32 %v948, 16
      %v1198 = vrot.slane %v1196, 5
      %v1199 = vor.u32 %v1195, %v1198
      %v1200 = vrot.slane %v1199, 4
      %v1202 = vshll.u32 %v949, 16
      %v1204 = vrot.slane %v1202, 5
      %v1205 = vsel %vm955, %v1200, %v1204
      %s1206 = scalar_lea.vmem %s1, 8
      %v1207 = vld [vmem:[%s1206] sm:$0x3]
      %v1208 = vunpack.c.l.b16 %v1205
      %v1209 = vpack.c.b16 %v1016, %v1015
      %v1210 = vpack.c.b16 %v1208, %v1017
      %v1212 = vsel %vm1020, %v1209, 0
      %v1215 = vsel %vm1020, %v1210, 0
      %v1218 = vand.u32 %v1207, %v1030
      %1220 = vmatpush.bf16.msra.mxu0 0
      %1221 = vmatpush.bf16.msra.mxu0 0
      %1222 = vmatpush.bf16.msra.mxu0 0
      %1223 = vmatpush.bf16.msra.mxu0 0
      %1224 = vmatpush.bf16.msra.mxu0 0
      %1225 = vmatpush.bf16.msra.mxu0 0
      %1226 = vmatpush.bf16.msra.mxu0 0
      %1227 = vmatpush.bf16.msra.mxu0 %v1218
      %1228 = vmatmul.bf16.gmra.mxu0 %v1212
      %v1229 = vpop.f32.mrf.mxu0
      %v1230 = vadd.f32 0.0, %v1229
      %v1231 = vpop.f32.mrf.mxu0
      %v1232 = vadd.f32 0.0, %v1231
      %1233 = vmatmul.bf16.gmra.mxu0 %v1215
      %v1234 = vpop.f32.mrf.mxu0
      %v1235 = vadd.f32 0.0, %v1234
      %v1236 = vpop.f32.mrf.mxu0
      %v1237 = vadd.f32 0.0, %v1236
      %1238 = vdwg.mxu0
      %v1239 = vadd.f32 %v1188, %v1230
      %v1240 = vadd.f32 %v1189, %v1232
      %v1241 = vadd.f32 %v1190, %v1235
      %v1242 = vadd.f32 %v1191, %v1237
      %v1244 = vrot.slane %v948, 5
      %v1245 = vrot.slane %v1244, 4
      %v1246 = vrot.slane %v949, 5
      %v1247 = vsel %vm1097, %v1245, %v1246
      %s1248 = scalar_lea.vmem %s1, 10
      %v1249 = vld [vmem:[%s1248] sm:$0x3]
      %v1250 = vunpack.c.l.b16 %v1247
      %v1251 = vpack.c.b16 %v1118, %v1117
      %v1252 = vpack.c.b16 %v1250, %v1119
      %v1254 = vsel %vm1020, %v1251, 0
      %v1257 = vsel %vm1020, %v1252, 0
      %v1260 = vand.u32 %v1249, %v1030
      %1262 = vmatpush.bf16.msra.mxu0 0
      %1263 = vmatpush.bf16.msra.mxu0 0
      %1264 = vmatpush.bf16.msra.mxu0 0
      %1265 = vmatpush.bf16.msra.mxu0 0
      %1266 = vmatpush.bf16.msra.mxu0 0
      %1267 = vmatpush.bf16.msra.mxu0 0
      %1268 = vmatpush.bf16.msra.mxu0 0
      %1269 = vmatpush.bf16.msra.mxu0 %v1260
      %1270 = vmatmul.bf16.gmra.mxu0 %v1254
      %v1271 = vpop.f32.mrf.mxu0
      %v1272 = vadd.f32 0.0, %v1271
      %v1273 = vpop.f32.mrf.mxu0
      %v1274 = vadd.f32 0.0, %v1273
      %1275 = vmatmul.bf16.gmra.mxu0 %v1257
      %v1276 = vpop.f32.mrf.mxu0
      %v1277 = vadd.f32 0.0, %v1276
      %v1278 = vpop.f32.mrf.mxu0
      %v1279 = vadd.f32 0.0, %v1278
      %1280 = vdwg.mxu0
      %v1281 = vadd.f32 %v1239, %v1272
      %v1282 = vadd.f32 %v1240, %v1274
      %v1283 = vadd.f32 %v1241, %v1277
      %v1284 = vadd.f32 %v1242, %v1279
      %s1285 = scalar_lea.vmem %s1, 12
      %v1286 = vld [vmem:[%s1285] sm:$0x3]
      %v1288 = vunpack.c.l.b16 %v950
      %v1289 = vpack.c.b16 %v1288, %v1157
      %v1291 = vsel %vm1020, %v1289, 0
      %v1294 = vand.u32 %v1286, %v1030
      %1296 = vmatpush.bf16.msra.mxu0 0
      %1297 = vmatpush.bf16.msra.mxu0 0
      %1298 = vmatpush.bf16.msra.mxu0 0
      %1299 = vmatpush.bf16.msra.mxu0 0
      %1300 = vmatpush.bf16.msra.mxu0 0
      %1301 = vmatpush.bf16.msra.mxu0 0
      %1302 = vmatpush.bf16.msra.mxu0 0
      %1303 = vmatpush.bf16.msra.mxu0 %v1294
      %1304 = vmatmul.bf16.gmra.mxu0 %v1067
      %v1305 = vpop.f32.mrf.mxu0
      %v1306 = vadd.f32 0.0, %v1305
      %v1307 = vpop.f32.mrf.mxu0
      %v1308 = vadd.f32 0.0, %v1307
      %1309 = vmatmul.bf16.gmra.mxu0 %v1291
      %v1310 = vpop.f32.mrf.mxu0
      %v1311 = vadd.f32 0.0, %v1310
      %v1312 = vpop.f32.mrf.mxu0
      %v1313 = vadd.f32 0.0, %v1312
      %1314 = vdwg.mxu0
      %v1315 = vadd.f32 %v1281, %v1306
      %v1316 = vadd.f32 %v1282, %v1308
      %v1317 = vadd.f32 %v1283, %v1311
      %v1318 = vadd.f32 %v1284, %v1313
      %v1320 = vshrl.u32 %v950, 16
      %v1322 = vrot.slane %v1320, 4
      %v1323 = vshll.u32 %v950, 16
      %v1325 = vrot.slane %v1323, 5
      %v1326 = vor.u32 %v1322, %v1325
      %v1327 = vrot.slane %v1326, 4
      %v1329 = vshll.u32 %v951, 16
      %v1331 = vrot.slane %v1329, 5
      %v1332 = vsel %vm955, %v1327, %v1331
      %s1333 = scalar_lea.vmem %s1, 14
      %v1334 = vld [vmem:[%s1333] sm:$0x3]
      %v1335 = vunpack.c.l.b16 %v1332
      %v1336 = vpack.c.b16 %v1335, %v1208
      %v1338 = vsel %vm1020, %v1336, 0
      %v1341 = vand.u32 %v1334, %v1030
      %1343 = vmatpush.bf16.msra.mxu0 0
      %1344 = vmatpush.bf16.msra.mxu0 0
      %1345 = vmatpush.bf16.msra.mxu0 0
      %1346 = vmatpush.bf16.msra.mxu0 0
      %1347 = vmatpush.bf16.msra.mxu0 0
      %1348 = vmatpush.bf16.msra.mxu0 0
      %1349 = vmatpush.bf16.msra.mxu0 0
      %1350 = vmatpush.bf16.msra.mxu0 %v1341
      %1351 = vmatmul.bf16.gmra.mxu0 %v1025
      %v1352 = vpop.f32.mrf.mxu0
      %v1353 = vadd.f32 0.0, %v1352
      %v1354 = vpop.f32.mrf.mxu0
      %v1355 = vadd.f32 0.0, %v1354
      %1356 = vmatmul.bf16.gmra.mxu0 %v1338
      %v1357 = vpop.f32.mrf.mxu0
      %v1358 = vadd.f32 0.0, %v1357
      %v1359 = vpop.f32.mrf.mxu0
      %v1360 = vadd.f32 0.0, %v1359
      %1361 = vdwg.mxu0
      %v1362 = vadd.f32 %v1315, %v1353
      %v1363 = vadd.f32 %v1316, %v1355
      %v1364 = vadd.f32 %v1317, %v1358
      %v1365 = vadd.f32 %v1318, %v1360
      %v1367 = vrot.slane %v950, 5
      %v1368 = vrot.slane %v1367, 4
      %v1369 = vrot.slane %v951, 5
      %v1370 = vsel %vm1097, %v1368, %v1369
      %s1371 = scalar_lea.vmem %s1, 16
      %v1372 = vld [vmem:[%s1371] sm:$0x3]
      %v1373 = vunpack.c.l.b16 %v1370
      %v1374 = vpack.c.b16 %v1373, %v1250
      %v1376 = vsel %vm1020, %v1374, 0
      %v1379 = vand.u32 %v1372, %v1030
      %1381 = vmatpush.bf16.msra.mxu0 0
      %1382 = vmatpush.bf16.msra.mxu0 0
      %1383 = vmatpush.bf16.msra.mxu0 0
      %1384 = vmatpush.bf16.msra.mxu0 0
      %1385 = vmatpush.bf16.msra.mxu0 0
      %1386 = vmatpush.bf16.msra.mxu0 0
      %1387 = vmatpush.bf16.msra.mxu0 0
      %1388 = vmatpush.bf16.msra.mxu0 %v1379
      %1389 = vmatmul.bf16.gmra.mxu0 %v1126
      %v1390 = vpop.f32.mrf.mxu0
      %v1391 = vadd.f32 0.0, %v1390
      %v1392 = vpop.f32.mrf.mxu0
      %v1393 = vadd.f32 0.0, %v1392
      %1394 = vmatmul.bf16.gmra.mxu0 %v1376
      %v1395 = vpop.f32.mrf.mxu0
      %v1396 = vadd.f32 0.0, %v1395
      %v1397 = vpop.f32.mrf.mxu0
      %v1398 = vadd.f32 0.0, %v1397
      %1399 = vdwg.mxu0
      %v1400 = vadd.f32 %v1362, %v1391
      %v1401 = vadd.f32 %v1363, %v1393
      %v1402 = vadd.f32 %v1364, %v1396
      %v1403 = vadd.f32 %v1365, %v1398
      %v1404 = vld [vmem:[%s2] sm:$0x1]
      %v1406 = vperm.slane %v1404, 0
      %v1408 = vadd.f32 %v1400, %v1406
      %v1409 = vadd.f32 %v1401, %v1406
      %v1410 = vadd.f32 %v1402, %v1406
      %v1411 = vadd.f32 %v1403, %v1406
      %vm1412 = vcmp.ge.f32.partialorder %v1408, 0.0
      %vm1413 = vcmp.ge.f32.partialorder %v1409, 0.0
      %vm1414 = vcmp.ge.f32.partialorder %v1410, 0.0
      %vm1415 = vcmp.ge.f32.partialorder %v1411, 0.0
      %v1416 = vmul.f32 %v1408, 0.1
      %v1417 = vmul.f32 %v1409, 0.1
      %v1418 = vmul.f32 %v1410, 0.1
      %v1419 = vmul.f32 %v1411, 0.1
      %v1420 = vsel %vm1412, %v1408, %v1416
      %v1421 = vsel %vm1413, %v1409, %v1417
      %v1422 = vsel %vm1414, %v1410, %v1418
      %v1423 = vsel %vm1415, %v1411, %v1419
      %v1424 = vpack.c.bf16 %v1420, %v1420
      %v1425 = vpack.c.bf16 %v1421, %v1421
      %v1426 = vpack.c.bf16 %v1422, %v1422
      %v1427 = vpack.c.bf16 %v1423, %v1423
      %vm1428 = vcmask 257024
      %1429 = vst.msk [vmem:[%s170] sm:$0xf] %vm1428, %v1424
      %1430 = vst.msk [vmem:[%s170 + $0x4] sm:$0xf] %vm1428, %v1425
      %1431 = vst.msk [vmem:[%s170 + $0x8] sm:$0xf] %vm1428, %v1426
      %1432 = vst.msk [vmem:[%s170 + $0xc] sm:$0xf] %vm1428, %v1427
      %p1433 = scmp.lt.s32.totalorder %s14, 1
      %s1434 = scalar_select %p1433, %s14, 1
      %s1435 = smul.addr %s1434, 4
      %s1436 = smul.addr %s1435, 4
      %s1437 = scalar_lea.vmem %s3, %s1436
      // Predicated region
      $region33: #{_lambda_.10} parent=31 // pred_check
        %p1438 = pneg %p100
      $region34: #{_lambda_.10} parent=31 // pred_check_branch
        %1440 = sbr.rel (%p1438) target = $region36
      $region35: #{_lambda_.10} parent=31 // pred_region
        _
      $region36: #{_lambda_.10} parent=31 // pred_fallthru
        _
    $region32: #{_lambda_.10} parent=5 // pred_fallthru
      _
    %p1441 = scmp.le.s32.totalorder 2, %s9
    // Predicated region
    $region37: #{_lambda_.10} parent=5 // pred_check
      %p1442 = pneg %p1441
    $region38: #{_lambda_.10} parent=5 // pred_check_branch
      %1444 = sbr.rel (%p1442) target = $region40
    $region39: #{_lambda_.10} parent=5 // pred_region
      %s1445 = ssub.s32 %s9, 2
      // Predicated region
      $region41: #{_lambda_.10} parent=39 // pred_check
        %p1446 = pneg %p106
      $region42: #{_lambda_.10} parent=39 // pred_check_branch
        %1448 = sbr.rel (%p1446) target = $region44
      $region43: #{_lambda_.10} parent=39 // pred_region
        %p1449 = scmp.lt.s32.totalorder %s15, 1
        %s1450 = scalar_select %p1449, %s15, 1
        %s1451 = smul.addr %s1450, 4
        %s1452 = smul.addr %s1451, 4
        %s1453 = scalar_lea.vmem %s3, %s1452
      $region44: #{_lambda_.10} parent=39 // pred_fallthru
        _
    $region40: #{_lambda_.10} parent=5 // pred_fallthru
      _
  $region6: #{_lambda_.10} parent=0 // loop_footer
    %s13 = sadd.s32 1, %s9
  $region7: #{_lambda_.10} parent=0 // loop_footer_branch
    %8 = sbr.rel target = $region3
  $region8: #{_lambda_.10} parent=0 // loop_exit
    _

// kernel: _lambda_.11
$region0: #{_lambda_.11}
  #allocation0 [shape = 'u32[]', space=smem, size = 0x4, offset = 0x4, fixed_abs, tag = 'smem constant byte address 0x4 - core index']
  #allocation1 [shape = 'u32[72,128]{1,0:T(1,128)}', space=vmem, size = 0x9000, scoped, tag = 'internal scratch']
  #allocation2 [shape = 'f32[1,1]{1,0:T(1,128)S(1)}', space=vmem, size = 0x200, scoped, tag = 'scoped memory for _lambda_.11']
  %s0 = inlined_call_operand.vmem [shape: bf16[2,4,288], index: 0, kind: input, shape index: {}]
  %s1 = inlined_call_operand.vmem [shape: bf16[288,32], index: 1, kind: input, shape index: {}]
  %s2 = inlined_call_operand.vmem [shape: f32[1,32], index: 2, kind: input, shape index: {}]
  %s3 = inlined_call_operand.vmem [shape: f32[1,32], index: 3, kind: input, shape index: {}]
  %s4 = inlined_call_operand.<no memory space> [shape: f32[1,1], index: 4, kind: input, shape index: {}]
  %s5 = inlined_call_operand.vmem [shape: f32[2,1,128], index: 5, kind: output, shape index: {}]
  %s6 = sld [smem:[#allocation0]]
  $region53: #{_lambda_.11} parent=0
    _
  %s8 = ssub.s32 1, %s6
  %s9 = scalar_select 0, %s8, %s6
  %v10 = vstv %s4
  %11 = vst [vmem:[#allocation2] sm:$0x1] %v10
  loop: start=0, step=1, limit=4
  $region2: #{_lambda_.11} parent=0 // loop_pre_header
    _
  $region3: #{_lambda_.11} parent=0 // loop_header
    %s13 = sphi 0, %s17
    %p14 = scmp.ge.s32.totalorder %s13, 4
    %s23 = sphi 0, %s25
    %s26 = sphi 0, %s23
    %s27 = sphi 0, %s26
    %s43 = sphi 0, %s27
    %s47 = sphi 0, %s47
    %s49 = sphi 0, %s47
    %s50 = sphi 0, %s49
    %s64 = sphi 0, %s50
    %s68 = sphi 0, %s68
    %s70 = sphi 0, %s68
    %s71 = sphi 0, %s70
    %s85 = sphi 0, %s71
    %s89 = sphi 0, %s89
    %s91 = sphi 0, %s89
    %s92 = sphi 0, %s91
    %s106 = sphi 0, %s92
    %s110 = sphi 0, %s110
    %s112 = sphi 0, %s110
    %s113 = sphi 0, %s112
    %s127 = sphi 0, %s113
    %s133 = sphi 0, %s135
    %s136 = sphi 0, %s133
    %s137 = sphi 0, %s136
    %s153 = sphi 0, %s137
  $region4: #{_lambda_.11} parent=0 // loop_header_branch
    %16 = sbr.rel (%p14) target = $region8
  $region5: #{_lambda_.11} parent=0 // loop_body
    %s18 = ssub.s32 %s13, 1
    %s19 = ssub.s32 %s13, 2
    %s20 = sadd.s32 %s13, 1
    %s21 = ssub.s32 %s13, %s20
    %p22 = scmp.eq.s32.totalorder %s21, 0
    %s24 = sadd.s32 %s23, 1
    %s25 = scalar_select %p22, %s23, %s24
    %p28 = pneg %p22
    %p29 = scmp.eq.s32.totalorder %s13, 1
    %p30 = por %p28, %p29
    %p31 = scmp.ne.s32.totalorder %s23, %s26
    %p32 = scmp.eq.s32.totalorder %s13, 0
    %p33 = por %p31, %p32
    %p34 = scmp.ne.s32.totalorder %s23, %s26
    %p35 = scmp.eq.s32.totalorder %s18, 1
    %p36 = por %p34, %p35
    %p37 = scmp.ne.s32.totalorder %s26, %s27
    %p38 = scmp.eq.s32.totalorder %s18, 0
    %p39 = por %p37, %p38
    %p40 = scmp.ne.s32.totalorder %s26, %s27
    %p41 = scmp.eq.s32.totalorder %s19, 1
    %p42 = por %p40, %p41
    %p44 = scmp.ne.s32.totalorder %s27, %s43
    %p45 = scmp.eq.s32.totalorder %s19, 0
    %p46 = por %p44, %p45
    %s48 = sadd.s32 %s47, 1
    %p51 = scmp.eq.s32.totalorder %s13, 1
    %p52 = scmp.ne.s32.totalorder %s47, %s49
    %p53 = scmp.eq.s32.totalorder %s13, 0
    %p54 = por %p52, %p53
    %p55 = scmp.ne.s32.totalorder %s47, %s49
    %p56 = scmp.eq.s32.totalorder %s18, 1
    %p57 = por %p55, %p56
    %p58 = scmp.ne.s32.totalorder %s49, %s50
    %p59 = scmp.eq.s32.totalorder %s18, 0
    %p60 = por %p58, %p59
    %p61 = scmp.ne.s32.totalorder %s49, %s50
    %p62 = scmp.eq.s32.totalorder %s19, 1
    %p63 = por %p61, %p62
    %p65 = scmp.ne.s32.totalorder %s50, %s64
    %p66 = scmp.eq.s32.totalorder %s19, 0
    %p67 = por %p65, %p66
    %s69 = sadd.s32 %s68, 1
    %p72 = scmp.eq.s32.totalorder %s13, 1
    %p73 = scmp.ne.s32.totalorder %s68, %s70
    %p74 = scmp.eq.s32.totalorder %s13, 0
    %p75 = por %p73, %p74
    %p76 = scmp.ne.s32.totalorder %s68, %s70
    %p77 = scmp.eq.s32.totalorder %s18, 1
    %p78 = por %p76, %p77
    %p79 = scmp.ne.s32.totalorder %s70, %s71
    %p80 = scmp.eq.s32.totalorder %s18, 0
    %p81 = por %p79, %p80
    %p82 = scmp.ne.s32.totalorder %s70, %s71
    %p83 = scmp.eq.s32.totalorder %s19, 1
    %p84 = por %p82, %p83
    %p86 = scmp.ne.s32.totalorder %s71, %s85
    %p87 = scmp.eq.s32.totalorder %s19, 0
    %p88 = por %p86, %p87
    %s90 = sadd.s32 %s89, 1
    %p93 = scmp.eq.s32.totalorder %s13, 1
    %p94 = scmp.ne.s32.totalorder %s89, %s91
    %p95 = scmp.eq.s32.totalorder %s13, 0
    %p96 = por %p94, %p95
    %p97 = scmp.ne.s32.totalorder %s89, %s91
    %p98 = scmp.eq.s32.totalorder %s18, 1
    %p99 = por %p97, %p98
    %p100 = scmp.ne.s32.totalorder %s91, %s92
    %p101 = scmp.eq.s32.totalorder %s18, 0
    %p102 = por %p100, %p101
    %p103 = scmp.ne.s32.totalorder %s91, %s92
    %p104 = scmp.eq.s32.totalorder %s19, 1
    %p105 = por %p103, %p104
    %p107 = scmp.ne.s32.totalorder %s92, %s106
    %p108 = scmp.eq.s32.totalorder %s19, 0
    %p109 = por %p107, %p108
    %s111 = sadd.s32 %s110, 1
    %p114 = scmp.eq.s32.totalorder %s13, 1
    %p115 = scmp.ne.s32.totalorder %s110, %s112
    %p116 = scmp.eq.s32.totalorder %s13, 0
    %p117 = por %p115, %p116
    %p118 = scmp.ne.s32.totalorder %s110, %s112
    %p119 = scmp.eq.s32.totalorder %s18, 1
    %p120 = por %p118, %p119
    %p121 = scmp.ne.s32.totalorder %s112, %s113
    %p122 = scmp.eq.s32.totalorder %s18, 0
    %p123 = por %p121, %p122
    %p124 = scmp.ne.s32.totalorder %s112, %s113
    %p125 = scmp.eq.s32.totalorder %s19, 1
    %p126 = por %p124, %p125
    %p128 = scmp.ne.s32.totalorder %s113, %s127
    %p129 = scmp.eq.s32.totalorder %s19, 0
    %p130 = por %p128, %p129
    %s131 = ssub.s32 %s13, %s20
    %p132 = scmp.eq.s32.totalorder %s131, 0
    %s134 = sadd.s32 %s133, 1
    %s135 = scalar_select %p132, %s133, %s134
    %p138 = pneg %p132
    %p139 = scmp.eq.s32.totalorder %s13, 1
    %p140 = por %p138, %p139
    %p141 = scmp.ne.s32.totalorder %s133, %s136
    %p142 = scmp.eq.s32.totalorder %s13, 0
    %p143 = por %p141, %p142
    %p144 = scmp.ne.s32.totalorder %s133, %s136
    %p145 = scmp.eq.s32.totalorder %s18, 1
    %p146 = por %p144, %p145
    %p147 = scmp.ne.s32.totalorder %s136, %s137
    %p148 = scmp.eq.s32.totalorder %s18, 0
    %p149 = por %p147, %p148
    %p150 = scmp.ne.s32.totalorder %s136, %s137
    %p151 = scmp.eq.s32.totalorder %s19, 1
    %p152 = por %p150, %p151
    %p154 = scmp.ne.s32.totalorder %s137, %s153
    %p155 = scmp.eq.s32.totalorder %s19, 0
    %p156 = por %p154, %p155
    %p157 = scmp.le.s32.totalorder 1, %s13
    %p158 = scmp.lt.s32.totalorder %s13, 3
    %p159 = pnand %p157, %p158
    %p160 = pneg %p159
    // Predicated region
    $region9: #{_lambda_.11} parent=5 // pred_check
      _
    $region10: #{_lambda_.11} parent=5 // pred_check_branch
      %162 = sbr.rel (%p159) target = $region12
    $region11: #{_lambda_.11} parent=5 // pred_region
      %s163 = ssub.s32 %s13, 1
      // Predicated region
      $region13: #{_lambda_.11} parent=11 // pred_check
        %p164 = pneg %p60
      $region14: #{_lambda_.11} parent=11 // pred_check_branch
        %166 = sbr.rel (%p164) target = $region16
      $region15: #{_lambda_.11} parent=11 // pred_region
        _
      $region16: #{_lambda_.11} parent=11 // pred_fallthru
        _
      // Predicated region
      $region17: #{_lambda_.11} parent=11 // pred_check
        %p167 = pneg %p81
      $region18: #{_lambda_.11} parent=11 // pred_check_branch
        %169 = sbr.rel (%p167) target = $region20
      $region19: #{_lambda_.11} parent=11 // pred_region
        _
      $region20: #{_lambda_.11} parent=11 // pred_fallthru
        _
      // Predicated region
      $region21: #{_lambda_.11} parent=11 // pred_check
        %p170 = pneg %p102
      $region22: #{_lambda_.11} parent=11 // pred_check_branch
        %172 = sbr.rel (%p170) target = $region24
      $region23: #{_lambda_.11} parent=11 // pred_region
        _
      $region24: #{_lambda_.11} parent=11 // pred_fallthru
        _
      // Predicated region
      $region25: #{_lambda_.11} parent=11 // pred_check
        %p173 = pneg %p123
      $region26: #{_lambda_.11} parent=11 // pred_check_branch
        %175 = sbr.rel (%p173) target = $region28
      $region27: #{_lambda_.11} parent=11 // pred_region
        _
      $region28: #{_lambda_.11} parent=11 // pred_fallthru
        _
    $region12: #{_lambda_.11} parent=5 // pred_fallthru
      _
    %p176 = scmp.lt.s32.totalorder %s13, 2
    // Predicated region
    $region29: #{_lambda_.11} parent=5 // pred_check
      %p177 = pneg %p176
    $region30: #{_lambda_.11} parent=5 // pred_check_branch
      %179 = sbr.rel (%p177) target = $region32
    $region31: #{_lambda_.11} parent=5 // pred_region
      // Predicated region
      $region33: #{_lambda_.11} parent=31 // pred_check
        %p180 = pneg %p33
      $region34: #{_lambda_.11} parent=31 // pred_check_branch
        %182 = sbr.rel (%p180) target = $region36
      $region35: #{_lambda_.11} parent=31 // pred_region
        %p183 = scmp.lt.s32.totalorder %s13, 1
        %s184 = scalar_select %p183, %s13, 1
        %s185 = smul.addr %s184, 3
        %s186 = smul.addr %s185, 2
        %s187 = scalar_lea.vmem %s0, %s186
      $region36: #{_lambda_.11} parent=31 // pred_fallthru
        _
    $region32: #{_lambda_.11} parent=5 // pred_fallthru
      _
    %p188 = scmp.le.s32.totalorder 1, %s13
    %p189 = scmp.lt.s32.totalorder %s13, 3
    %p190 = pnand %p188, %p189
    %p191 = pneg %p190
    // Predicated region
    $region37: #{_lambda_.11} parent=5 // pred_check
      _
    $region38: #{_lambda_.11} parent=5 // pred_check_branch
      %193 = sbr.rel (%p190) target = $region40
    $region39: #{_lambda_.11} parent=5 // pred_region
      %s194 = ssub.s32 %s13, 1
      %p195 = scmp.lt.s32.totalorder %s18, 1
      %s196 = scalar_select %p195, %s18, 1
      %s197 = smul.addr %s196, 3
      %s198 = smul.addr %s197, 2
      %s199 = scalar_lea.vmem %s0, %s198
      %p200 = pneg %p39
      %p201 = pneg %p36
      %p202 = pneg %p60
      %p203 = pneg %p57
      %p204 = pneg %p81
      %p205 = pneg %p78
      %p206 = pneg %p102
      %p207 = pneg %p99
      %p208 = pneg %p123
      %p209 = pneg %p120
      %p210 = pneg %p149
      %p211 = pneg %p146
      %p212 = scmp.lt.s32.totalorder %s18, 1
      %s213 = scalar_select %p212, %s18, 1
      %s214 = scalar_lea.vmem %s5, %s213
      %p215 = scmp.lt.s32.totalorder %s18, 1
      %s216 = scalar_select %p215, %s18, 1
      %s217 = smul.addr %s216, 3
      %s218 = smul.addr %s217, 2
      %s219 = scalar_lea.vmem %s0, %s218
      %p220 = scmp.lt.s32.totalorder %s18, 1
      %s221 = scalar_select %p220, %s18, 1
      %s222 = scalar_lea.vmem %s5, %s221
      %v224 = vld [vmem:[%s219] sm:$0x3f]
      %v225 = vld [vmem:[%s1] sm:$0xf]
      %v226 = vld [vmem:[%s1 + $0x4] sm:$0xf]
      %v227 = vld [vmem:[%s1 + $0x8] sm:$0xf]
      %v228 = vld [vmem:[%s1 + $0xc] sm:$0xf]
      %v229 = vld [vmem:[%s1 + $0x10] sm:$0xf]
      %v230 = vld [vmem:[%s1 + $0x14] sm:$0xf]
      %v231 = vld [vmem:[%s1 + $0x18] sm:$0xf]
      %v232 = vld [vmem:[%s1 + $0x1c] sm:$0xf]
      %v233 = vld [vmem:[%s1 + $0x20] sm:$0xf]
      %v234 = vld [vmem:[%s1 + $0x24] sm:$0xf]
      %v235 = vld [vmem:[%s1 + $0x28] sm:$0xf]
      %v236 = vld [vmem:[%s1 + $0x2c] sm:$0xf]
      %v237 = vld [vmem:[%s1 + $0x30] sm:$0xf]
      %v238 = vld [vmem:[%s1 + $0x34] sm:$0xf]
      %v239 = vld [vmem:[%s1 + $0x38] sm:$0xf]
      %v240 = vld [vmem:[%s1 + $0x3c] sm:$0xf]
      %v241 = vld [vmem:[%s1 + $0x40] sm:$0xf]
      %v242 = vld [vmem:[%s1 + $0x44] sm:$0xf]
      %v243 = vld [vmem:[%s1 + $0x48] sm:$0xf]
      %v244 = vld [vmem:[%s1 + $0x4c] sm:$0xf]
      %v245 = vld [vmem:[%s1 + $0x50] sm:$0xf]
      %v246 = vld [vmem:[%s1 + $0x54] sm:$0xf]
      %v247 = vld [vmem:[%s1 + $0x58] sm:$0xf]
      %v248 = vld [vmem:[%s1 + $0x5c] sm:$0xf]
      %v249 = vld [vmem:[%s1 + $0x60] sm:$0xf]
      %v250 = vld [vmem:[%s1 + $0x64] sm:$0xf]
      %v251 = vld [vmem:[%s1 + $0x68] sm:$0xf]
      %v252 = vld [vmem:[%s1 + $0x6c] sm:$0xf]
      %v253 = vld [vmem:[%s1 + $0x70] sm:$0xf]
      %v254 = vld [vmem:[%s1 + $0x74] sm:$0xf]
      %v255 = vld [vmem:[%s1 + $0x78] sm:$0xf]
      %v256 = vld [vmem:[%s1 + $0x7c] sm:$0xf]
      %v257 = vld [vmem:[%s1 + $0x80] sm:$0xf]
      %v258 = vld [vmem:[%s1 + $0x84] sm:$0xf]
      %v259 = vld [vmem:[%s1 + $0x88] sm:$0xf]
      %v260 = vld [vmem:[%s1 + $0x8c] sm:$0xf]
      %v261 = vld [vmem:[%s2] sm:$0x1]
      %v263 = vperm.slane %v261, 0
      %266 = vst [vmem:[#allocation1] ss:$4 sm:$0xff] %v224
      %v267 = vld.sshfl [vmem:[#allocation1] sm:$0xff pattern:$0x73625140]
      %v268 = vld.sshfl [vmem:[#allocation1 + $0x8] sm:$0xff pattern:$0x73625140]
      %v269 = vld.sshfl [vmem:[#allocation1 + $0x10] sm:$0xff pattern:$0x73625140]
      %v308 = vunpack.c.l.b16 %v225
      %v309 = vunpack.c.l.b16 %v226
      %v310 = vunpack.c.l.b16 %v227
      %v311 = vunpack.c.l.b16 %v228
      %v312 = vunpack.c.l.b16 %v229
      %v313 = vunpack.c.l.b16 %v230
      %v314 = vunpack.c.l.b16 %v231
      %v315 = vunpack.c.l.b16 %v232
      %v316 = vunpack.c.l.b16 %v233
      %v317 = vunpack.c.l.b16 %v234
      %v318 = vunpack.c.l.b16 %v235
      %v319 = vunpack.c.l.b16 %v236
      %v320 = vunpack.c.l.b16 %v237
      %v321 = vunpack.c.l.b16 %v238
      %v322 = vunpack.c.l.b16 %v239
      %v323 = vunpack.c.l.b16 %v240
      %v324 = vunpack.c.l.b16 %v241
      %v325 = vunpack.c.l.b16 %v242
      %v326 = vunpack.c.l.b16 %v243
      %v327 = vunpack.c.l.b16 %v244
      %v328 = vunpack.c.l.b16 %v245
      %v329 = vunpack.c.l.b16 %v246
      %v330 = vunpack.c.l.b16 %v247
      %v331 = vunpack.c.l.b16 %v248
      %v332 = vunpack.c.l.b16 %v249
      %v333 = vunpack.c.l.b16 %v250
      %v334 = vunpack.c.l.b16 %v251
      %v335 = vunpack.c.l.b16 %v252
      %v336 = vunpack.c.l.b16 %v253
      %v337 = vunpack.c.l.b16 %v254
      %v338 = vunpack.c.l.b16 %v255
      %v339 = vunpack.c.l.b16 %v256
      %v340 = vunpack.c.l.b16 %v257
      %v341 = vunpack.c.l.b16 %v258
      %v342 = vunpack.c.l.b16 %v259
      %v343 = vunpack.c.l.b16 %v260
      %v344 = vpack.c.b16 %v309, %v308
      %v345 = vpack.c.b16 %v311, %v310
      %v346 = vpack.c.b16 %v313, %v312
      %v347 = vpack.c.b16 %v315, %v314
      %v348 = vpack.c.b16 %v317, %v316
      %v349 = vpack.c.b16 %v319, %v318
      %v350 = vpack.c.b16 %v321, %v320
      %v351 = vpack.c.b16 %v323, %v322
      %v352 = vpack.c.b16 %v325, %v324
      %v353 = vpack.c.b16 %v327, %v326
      %v354 = vpack.c.b16 %v329, %v328
      %v355 = vpack.c.b16 %v331, %v330
      %v356 = vpack.c.b16 %v333, %v332
      %v357 = vpack.c.b16 %v335, %v334
      %v358 = vpack.c.b16 %v337, %v336
      %v359 = vpack.c.b16 %v339, %v338
      %v360 = vpack.c.b16 %v341, %v340
      %v361 = vpack.c.b16 %v343, %v342
      %vm380 = vcmask 261120
      %v381 = vsel %vm380, %v269, 0
      %383 = vmatpush.bf16.msra.mxu0 %v351
      %384 = vmatpush.bf16.msra.mxu0 %v350
      %385 = vmatpush.bf16.msra.mxu0 %v349
      %386 = vmatpush.bf16.msra.mxu0 %v348
      %387 = vmatpush.bf16.msra.mxu0 %v347
      %388 = vmatpush.bf16.msra.mxu0 %v346
      %389 = vmatpush.bf16.msra.mxu0 %v345
      %390 = vmatpush.bf16.msra.mxu0 %v344
      %391 = vmatmul.bf16.gmra.mxu0 %v267
      %v392 = vpop.f32.mrf.mxu0
      %v393 = vadd.f32 %v263, %v392
      %v394 = vpop.f32.mrf.mxu0
      %395 = vdwg.mxu0
      %396 = vmatpush.bf16.msra.mxu0 %v359
      %397 = vmatpush.bf16.msra.mxu0 %v358
      %398 = vmatpush.bf16.msra.mxu0 %v357
      %399 = vmatpush.bf16.msra.mxu0 %v356
      %400 = vmatpush.bf16.msra.mxu0 %v355
      %401 = vmatpush.bf16.msra.mxu0 %v354
      %402 = vmatpush.bf16.msra.mxu0 %v353
      %403 = vmatpush.bf16.msra.mxu0 %v352
      %404 = vmatmul.bf16.gmra.mxu0 %v268
      %v405 = vpop.f32.mrf.mxu0
      %v406 = vadd.f32 %v393, %v405
      %v407 = vpop.f32.mrf.mxu0
      %408 = vdwg.mxu0
      %409 = vmatpush.bf16.msra.mxu0 0
      %410 = vmatpush.bf16.msra.mxu0 0
      %411 = vmatpush.bf16.msra.mxu0 0
      %412 = vmatpush.bf16.msra.mxu0 0
      %413 = vmatpush.bf16.msra.mxu0 0
      %414 = vmatpush.bf16.msra.mxu0 0
      %415 = vmatpush.bf16.msra.mxu0 %v361
      %416 = vmatpush.bf16.msra.mxu0 %v360
      %417 = vmatmul.bf16.gmra.mxu0 %v381
      %v418 = vpop.f32.mrf.mxu0
      %v419 = vadd.f32 %v406, %v418
      %v420 = vpop.f32.mrf.mxu0
      %421 = vdwg.mxu0
      %vm422 = vcmp.ge.f32.partialorder %v419, 0.0
      %v423 = vmul.f32 %v419, 0.1
      %v424 = vsel %vm422, %v419, %v423
      %vm425 = vcmask 257024
      %v426 = vsel %vm425, %v424, 0.0
      %v427 = vrot.slane %v426, 4
      %v428 = vadd.f32 %v426, %v427
      %v429 = vrot.slane %v428, 2
      %v430 = vadd.f32 %v428, %v429
      %v431 = vrot.slane %v430, 1
      %v432 = vadd.f32 %v430, %v431
      %v433 = vrcp.pop 4.0
      %v434 = vmul.f32 4.0, %v433
      %v435 = vsub.f32 1.0, %v434
      %v436 = vmul.f32 %v433, %v435
      %v437 = vadd.f32 %v433, %v436
      %vm438 = vweird.f32 %v433
      %v439 = vsel %vm438, %v433, %v437
      %v440 = vmul.f32 %v432, %v439
      %v441 = vld [vmem:[%s3] sm:$0x1]
      %v442 = vmul.f32 %v440, %v441
      %vm443 = vcmask 253952
      %v444 = vsel %vm443, %v442, 0.0
      %445 = vadd.xlane.f32.xlu0 %v444
      %v446 = vpop.xlane.xlu0 %445
      %v447 = vld [vmem:[#allocation2] sm:$0x1]
      %v448 = vadd.f32 %v446, %v447
      %450 = vset.pattern.permute.xlu0 0
      %451 = vperm.xlu0 %450, %v448
      %v452 = vpop.permute.xlu0 %451
      %454 = vst [vmem:[%s222] sm:$0x1] %v452
      %p455 = scmp.lt.s32.totalorder %s18, 1
      %s456 = scalar_select %p455, %s18, 1
      %s457 = scalar_lea.vmem %s5, %s456
      // Predicated region
      $region41: #{_lambda_.11} parent=39 // pred_check
        %p458 = pneg %p146
      $region42: #{_lambda_.11} parent=39 // pred_check_branch
        %460 = sbr.rel (%p458) target = $region44
      $region43: #{_lambda_.11} parent=39 // pred_region
        _
      $region44: #{_lambda_.11} parent=39 // pred_fallthru
        _
    $region40: #{_lambda_.11} parent=5 // pred_fallthru
      _
    %p461 = scmp.le.s32.totalorder 2, %s13
    // Predicated region
    $region45: #{_lambda_.11} parent=5 // pred_check
      %p462 = pneg %p461
    $region46: #{_lambda_.11} parent=5 // pred_check_branch
      %464 = sbr.rel (%p462) target = $region48
    $region47: #{_lambda_.11} parent=5 // pred_region
      %s465 = ssub.s32 %s13, 2
      // Predicated region
      $region49: #{_lambda_.11} parent=47 // pred_check
        %p466 = pneg %p152
      $region50: #{_lambda_.11} parent=47 // pred_check_branch
        %468 = sbr.rel (%p466) target = $region52
      $region51: #{_lambda_.11} parent=47 // pred_region
        %p469 = scmp.lt.s32.totalorder %s19, 1
        %s470 = scalar_select %p469, %s19, 1
        %s471 = scalar_lea.vmem %s5, %s470
      $region52: #{_lambda_.11} parent=47 // pred_fallthru
        _
    $region48: #{_lambda_.11} parent=5 // pred_fallthru
      _
  $region6: #{_lambda_.11} parent=0 // loop_footer
    %s17 = sadd.s32 1, %s13
  $region7: #{_lambda_.11} parent=0 // loop_footer_branch
    %12 = sbr.rel target = $region3
  $region8: #{_lambda_.11} parent=0 // loop_exit
    _

// kernel: _lambda_.6
$region0: #{_lambda_.6}
  #allocation0 [shape = 'u32[]', space=smem, size = 0x4, offset = 0x4, fixed_abs, tag = 'smem constant byte address 0x4 - core index']
  #allocation1 [shape = 'u32[72,128]{1,0:T(1,128)}', space=vmem, size = 0x9000, scoped, tag = 'internal scratch']
  %s0 = inlined_call_operand.vmem [shape: bf16[2,18,18,3], index: 0, kind: input, shape index: {}]
  %s1 = inlined_call_operand.vmem [shape: bf16[3,3,3,32], index: 1, kind: input, shape index: {}]
  %s2 = inlined_call_operand.vmem [shape: f32[1,32], index: 2, kind: input, shape index: {}]
  %s3 = inlined_call_operand.vmem [shape: bf16[2,16,16,32], index: 3, kind: output, shape index: {}]
  %s4 = sld [smem:[#allocation0]]
  $region45: #{_lambda_.6} parent=0
    _
  %s6 = ssub.s32 1, %s4
  %s7 = scalar_select 0, %s6, %s4
  loop: start=0, step=1, limit=4
  $region2: #{_lambda_.6} parent=0 // loop_pre_header
    _
  $region3: #{_lambda_.6} parent=0 // loop_header
    %s9 = sphi 0, %s13
    %p10 = scmp.ge.s32.totalorder %s9, 4
    %s19 = sphi 0, %s21
    %s22 = sphi 0, %s19
    %s23 = sphi 0, %s22
    %s39 = sphi 0, %s23
    %s43 = sphi 0, %s43
    %s45 = sphi 0, %s43
    %s46 = sphi 0, %s45
    %s60 = sphi 0, %s46
    %s64 = sphi 0, %s64
    %s66 = sphi 0, %s64
    %s67 = sphi 0, %s66
    %s81 = sphi 0, %s67
    %s87 = sphi 0, %s89
    %s90 = sphi 0, %s87
    %s91 = sphi 0, %s90
    %s107 = sphi 0, %s91
  $region4: #{_lambda_.6} parent=0 // loop_header_branch
    %12 = sbr.rel (%p10) target = $region8
  $region5: #{_lambda_.6} parent=0 // loop_body
    %s14 = ssub.s32 %s9, 1
    %s15 = ssub.s32 %s9, 2
    %s16 = sadd.s32 %s9, 1
    %s17 = ssub.s32 %s9, %s16
    %p18 = scmp.eq.s32.totalorder %s17, 0
    %s20 = sadd.s32 %s19, 1
    %s21 = scalar_select %p18, %s19, %s20
    %p24 = pneg %p18
    %p25 = scmp.eq.s32.totalorder %s9, 1
    %p26 = por %p24, %p25
    %p27 = scmp.ne.s32.totalorder %s19, %s22
    %p28 = scmp.eq.s32.totalorder %s9, 0
    %p29 = por %p27, %p28
    %p30 = scmp.ne.s32.totalorder %s19, %s22
    %p31 = scmp.eq.s32.totalorder %s14, 1
    %p32 = por %p30, %p31
    %p33 = scmp.ne.s32.totalorder %s22, %s23
    %p34 = scmp.eq.s32.totalorder %s14, 0
    %p35 = por %p33, %p34
    %p36 = scmp.ne.s32.totalorder %s22, %s23
    %p37 = scmp.eq.s32.totalorder %s15, 1
    %p38 = por %p36, %p37
    %p40 = scmp.ne.s32.totalorder %s23, %s39
    %p41 = scmp.eq.s32.totalorder %s15, 0
    %p42 = por %p40, %p41
    %s44 = sadd.s32 %s43, 1
    %p47 = scmp.eq.s32.totalorder %s9, 1
    %p48 = scmp.ne.s32.totalorder %s43, %s45
    %p49 = scmp.eq.s32.totalorder %s9, 0
    %p50 = por %p48, %p49
    %p51 = scmp.ne.s32.totalorder %s43, %s45
    %p52 = scmp.eq.s32.totalorder %s14, 1
    %p53 = por %p51, %p52
    %p54 = scmp.ne.s32.totalorder %s45, %s46
    %p55 = scmp.eq.s32.totalorder %s14, 0
    %p56 = por %p54, %p55
    %p57 = scmp.ne.s32.totalorder %s45, %s46
    %p58 = scmp.eq.s32.totalorder %s15, 1
    %p59 = por %p57, %p58
    %p61 = scmp.ne.s32.totalorder %s46, %s60
    %p62 = scmp.eq.s32.totalorder %s15, 0
    %p63 = por %p61, %p62
    %s65 = sadd.s32 %s64, 1
    %p68 = scmp.eq.s32.totalorder %s9, 1
    %p69 = scmp.ne.s32.totalorder %s64, %s66
    %p70 = scmp.eq.s32.totalorder %s9, 0
    %p71 = por %p69, %p70
    %p72 = scmp.ne.s32.totalorder %s64, %s66
    %p73 = scmp.eq.s32.totalorder %s14, 1
    %p74 = por %p72, %p73
    %p75 = scmp.ne.s32.totalorder %s66, %s67
    %p76 = scmp.eq.s32.totalorder %s14, 0
    %p77 = por %p75, %p76
    %p78 = scmp.ne.s32.totalorder %s66, %s67
    %p79 = scmp.eq.s32.totalorder %s15, 1
    %p80 = por %p78, %p79
    %p82 = scmp.ne.s32.totalorder %s67, %s81
    %p83 = scmp.eq.s32.totalorder %s15, 0
    %p84 = por %p82, %p83
    %s85 = ssub.s32 %s9, %s16
    %p86 = scmp.eq.s32.totalorder %s85, 0
    %s88 = sadd.s32 %s87, 1
    %s89 = scalar_select %p86, %s87, %s88
    %p92 = pneg %p86
    %p93 = scmp.eq.s32.totalorder %s9, 1
    %p94 = por %p92, %p93
    %p95 = scmp.ne.s32.totalorder %s87, %s90
    %p96 = scmp.eq.s32.totalorder %s9, 0
    %p97 = por %p95, %p96
    %p98 = scmp.ne.s32.totalorder %s87, %s90
    %p99 = scmp.eq.s32.totalorder %s14, 1
    %p100 = por %p98, %p99
    %p101 = scmp.ne.s32.totalorder %s90, %s91
    %p102 = scmp.eq.s32.totalorder %s14, 0
    %p103 = por %p101, %p102
    %p104 = scmp.ne.s32.totalorder %s90, %s91
    %p105 = scmp.eq.s32.totalorder %s15, 1
    %p106 = por %p104, %p105
    %p108 = scmp.ne.s32.totalorder %s91, %s107
    %p109 = scmp.eq.s32.totalorder %s15, 0
    %p110 = por %p108, %p109
    %p111 = scmp.le.s32.totalorder 1, %s9
    %p112 = scmp.lt.s32.totalorder %s9, 3
    %p113 = pnand %p111, %p112
    %p114 = pneg %p113
    // Predicated region
    $region9: #{_lambda_.6} parent=5 // pred_check
      _
    $region10: #{_lambda_.6} parent=5 // pred_check_branch
      %116 = sbr.rel (%p113) target = $region12
    $region11: #{_lambda_.6} parent=5 // pred_region
      %s117 = ssub.s32 %s9, 1
      // Predicated region
      $region13: #{_lambda_.6} parent=11 // pred_check
        %p118 = pneg %p56
      $region14: #{_lambda_.6} parent=11 // pred_check_branch
        %120 = sbr.rel (%p118) target = $region16
      $region15: #{_lambda_.6} parent=11 // pred_region
        _
      $region16: #{_lambda_.6} parent=11 // pred_fallthru
        _
      // Predicated region
      $region17: #{_lambda_.6} parent=11 // pred_check
        %p121 = pneg %p77
      $region18: #{_lambda_.6} parent=11 // pred_check_branch
        %123 = sbr.rel (%p121) target = $region20
      $region19: #{_lambda_.6} parent=11 // pred_region
        _
      $region20: #{_lambda_.6} parent=11 // pred_fallthru
        _
    $region12: #{_lambda_.6} parent=5 // pred_fallthru
      _
    %p124 = scmp.lt.s32.totalorder %s9, 2
    // Predicated region
    $region21: #{_lambda_.6} parent=5 // pred_check
      %p125 = pneg %p124
    $region22: #{_lambda_.6} parent=5 // pred_check_branch
      %127 = sbr.rel (%p125) target = $region24
    $region23: #{_lambda_.6} parent=5 // pred_region
      // Predicated region
      $region25: #{_lambda_.6} parent=23 // pred_check
        %p128 = pneg %p29
      $region26: #{_lambda_.6} parent=23 // pred_check_branch
        %130 = sbr.rel (%p128) target = $region28
      $region27: #{_lambda_.6} parent=23 // pred_region
        %p131 = scmp.lt.s32.totalorder %s9, 1
        %s132 = scalar_select %p131, %s9, 1
        %s133 = smul.addr %s132, 54
        %s134 = smul.addr %s133, 4
        %s135 = scalar_lea.vmem %s0, %s134
      $region28: #{_lambda_.6} parent=23 // pred_fallthru
        _
    $region24: #{_lambda_.6} parent=5 // pred_fallthru
      _
    %p136 = scmp.le.s32.totalorder 1, %s9
    %p137 = scmp.lt.s32.totalorder %s9, 3
    %p138 = pnand %p136, %p137
    %p139 = pneg %p138
    // Predicated region
    $region29: #{_lambda_.6} parent=5 // pred_check
      _
    $region30: #{_lambda_.6} parent=5 // pred_check_branch
      %141 = sbr.rel (%p138) target = $region32
    $region31: #{_lambda_.6} parent=5 // pred_region
      %s142 = ssub.s32 %s9, 1
      %p143 = scmp.lt.s32.totalorder %s14, 1
      %s144 = scalar_select %p143, %s14, 1
      %s145 = smul.addr %s144, 54
      %s146 = smul.addr %s145, 4
      %s147 = scalar_lea.vmem %s0, %s146
      %p148 = pneg %p35
      %p149 = pneg %p32
      %p150 = pneg %p56
      %p151 = pneg %p53
      %p152 = pneg %p77
      %p153 = pneg %p74
      %p154 = pneg %p103
      %p155 = pneg %p100
      %p156 = scmp.lt.s32.totalorder %s14, 1
      %s157 = scalar_select %p156, %s14, 1
      %s158 = smul.addr %s157, 32
      %s159 = smul.addr %s158, 4
      %s160 = scalar_lea.vmem %s3, %s159
      %p161 = scmp.lt.s32.totalorder %s14, 1
      %s162 = scalar_select %p161, %s14, 1
      %s163 = smul.addr %s162, 54
      %s164 = smul.addr %s163, 4
      %s165 = scalar_lea.vmem %s0, %s164
      %p166 = scmp.lt.s32.totalorder %s14, 1
      %s167 = scalar_select %p166, %s14, 1
      %s168 = smul.addr %s167, 32
      %s169 = smul.addr %s168, 4
      %s170 = scalar_lea.vmem %s3, %s169
      %v172 = vld [vmem:[%s165] sm:$0xf]
      %v173 = vld [vmem:[%s165 + $0x4] sm:$0xf]
      %v174 = vld [vmem:[%s165 + $0x8] sm:$0x1]
      %v175 = vld [vmem:[%s165 + $0xc] sm:$0xf]
      %v176 = vld [vmem:[%s165 + $0x10] sm:$0xf]
      %v177 = vld [vmem:[%s165 + $0x14] sm:$0x1]
      %v178 = vld [vmem:[%s165 + $0x18] sm:$0xf]
      %v179 = vld [vmem:[%s165 + $0x1c] sm:$0xf]
      %v180 = vld [vmem:[%s165 + $0x20] sm:$0x1]
      %v181 = vld [vmem:[%s165 + $0x24] sm:$0xf]
      %v182 = vld [vmem:[%s165 + $0x28] sm:$0xf]
      %v183 = vld [vmem:[%s165 + $0x2c] sm:$0x1]
      %v184 = vld [vmem:[%s165 + $0x30] sm:$0xf]
      %v185 = vld [vmem:[%s165 + $0x34] sm:$0xf]
      %v186 = vld [vmem:[%s165 + $0x38] sm:$0x1]
      %v187 = vld [vmem:[%s165 + $0x3c] sm:$0xf]
      %v188 = vld [vmem:[%s165 + $0x40] sm:$0xf]
      %v189 = vld [vmem:[%s165 + $0x44] sm:$0x1]
      %v190 = vld [vmem:[%s165 + $0x48] sm:$0xf]
      %v191 = vld [vmem:[%s165 + $0x4c] sm:$0xf]
      %v192 = vld [vmem:[%s165 + $0x50] sm:$0x1]
      %v193 = vld [vmem:[%s165 + $0x54] sm:$0xf]
      %v194 = vld [vmem:[%s165 + $0x58] sm:$0xf]
      %v195 = vld [vmem:[%s165 + $0x5c] sm:$0x1]
      %v196 = vld [vmem:[%s165 + $0x60] sm:$0xf]
      %v197 = vld [vmem:[%s165 + $0x64] sm:$0xf]
      %v198 = vld [vmem:[%s165 + $0x68] sm:$0x1]
      %v199 = vld [vmem:[%s165 + $0x6c] sm:$0xf]
      %v200 = vld [vmem:[%s165 + $0x70] sm:$0xf]
      %v201 = vld [vmem:[%s165 + $0x74] sm:$0x1]
      %v202 = vld [vmem:[%s165 + $0x78] sm:$0xf]
      %v203 = vld [vmem:[%s165 + $0x7c] sm:$0xf]
      %v204 = vld [vmem:[%s165 + $0x80] sm:$0x1]
      %v205 = vld [vmem:[%s165 + $0x84] sm:$0xf]
      %v206 = vld [vmem:[%s165 + $0x88] sm:$0xf]
      %v207 = vld [vmem:[%s165 + $0x8c] sm:$0x1]
      %v208 = vld [vmem:[%s165 + $0x90] sm:$0xf]
      %v209 = vld [vmem:[%s165 + $0x94] sm:$0xf]
      %v210 = vld [vmem:[%s165 + $0x98] sm:$0x1]
      %v211 = vld [vmem:[%s165 + $0x9c] sm:$0xf]
      %v212 = vld [vmem:[%s165 + $0xa0] sm:$0xf]
      %v213 = vld [vmem:[%s165 + $0xa4] sm:$0x1]
      %v214 = vld [vmem:[%s165 + $0xa8] sm:$0xf]
      %v215 = vld [vmem:[%s165 + $0xac] sm:$0xf]
      %v216 = vld [vmem:[%s165 + $0xb0] sm:$0x1]
      %v217 = vld [vmem:[%s165 + $0xb4] sm:$0xf]
      %v218 = vld [vmem:[%s165 + $0xb8] sm:$0xf]
      %v219 = vld [vmem:[%s165 + $0xbc] sm:$0x1]
      %v220 = vld [vmem:[%s165 + $0xc0] sm:$0xf]
      %v221 = vld [vmem:[%s165 + $0xc4] sm:$0xf]
      %v222 = vld [vmem:[%s165 + $0xc8] sm:$0x1]
      %v223 = vld [vmem:[%s165 + $0xcc] sm:$0xf]
      %v224 = vld [vmem:[%s165 + $0xd0] sm:$0xf]
      %v225 = vld [vmem:[%s165 + $0xd4] sm:$0x1]
      %v226 = vld [vmem:[%s1] sm:$0x3]
      %vm227 = vsmask.f32 3328
      %vm228 = vsmask.f32 7440
      %vm229 = vmor %vm227, %vm228
      %v231 = vshrl.u32 %v172, 16
      %v233 = vrot.slane %v231, 4
      %v234 = vshll.u32 %v172, 16
      %v236 = vrot.slane %v234, 5
      %v237 = vor.u32 %v233, %v236
      %v238 = vrot.slane %v237, 4
      %v240 = vshll.u32 %v173, 16
      %v242 = vrot.slane %v240, 5
      %v243 = vsel %vm229, %v238, %v242
      %v244 = vshrl.u32 %v173, 16
      %v246 = vrot.slane %v244, 4
      %v247 = vor.u32 %v246, %v242
      %v248 = vrot.slane %v247, 4
      %v250 = vshll.u32 %v174, 16
      %v252 = vrot.slane %v250, 5
      %v253 = vsel %vm229, %v248, %v252
      %v255 = vshrl.u32 %v175, 16
      %v257 = vrot.slane %v255, 4
      %v258 = vshll.u32 %v175, 16
      %v260 = vrot.slane %v258, 5
      %v261 = vor.u32 %v257, %v260
      %v262 = vrot.slane %v261, 4
      %v264 = vshll.u32 %v176, 16
      %v266 = vrot.slane %v264, 5
      %v267 = vsel %vm229, %v262, %v266
      %v268 = vshrl.u32 %v176, 16
      %v270 = vrot.slane %v268, 4
      %v271 = vor.u32 %v270, %v266
      %v272 = vrot.slane %v271, 4
      %v274 = vshll.u32 %v177, 16
      %v276 = vrot.slane %v274, 5
      %v277 = vsel %vm229, %v272, %v276
      %v279 = vshrl.u32 %v178, 16
      %v281 = vrot.slane %v279, 4
      %v282 = vshll.u32 %v178, 16
      %v284 = vrot.slane %v282, 5
      %v285 = vor.u32 %v281, %v284
      %v286 = vrot.slane %v285, 4
      %v288 = vshll.u32 %v179, 16
      %v290 = vrot.slane %v288, 5
      %v291 = vsel %vm229, %v286, %v290
      %v292 = vshrl.u32 %v179, 16
      %v294 = vrot.slane %v292, 4
      %v295 = vor.u32 %v294, %v290
      %v296 = vrot.slane %v295, 4
      %v298 = vshll.u32 %v180, 16
      %v300 = vrot.slane %v298, 5
      %v301 = vsel %vm229, %v296, %v300
      %v303 = vshrl.u32 %v181, 16
      %v305 = vrot.slane %v303, 4
      %v306 = vshll.u32 %v181, 16
      %v308 = vrot.slane %v306, 5
      %v309 = vor.u32 %v305, %v308
      %v310 = vrot.slane %v309, 4
      %v312 = vshll.u32 %v182, 16
      %v314 = vrot.slane %v312, 5
      %v315 = vsel %vm229, %v310, %v314
      %v316 = vshrl.u32 %v182, 16
      %v318 = vrot.slane %v316, 4
      %v319 = vor.u32 %v318, %v314
      %v320 = vrot.slane %v319, 4
      %v322 = vshll.u32 %v183, 16
      %v324 = vrot.slane %v322, 5
      %v325 = vsel %vm229, %v320, %v324
      %v327 = vshrl.u32 %v184, 16
      %v329 = vrot.slane %v327, 4
      %v330 = vshll.u32 %v184, 16
      %v332 = vrot.slane %v330, 5
      %v333 = vor.u32 %v329, %v332
      %v334 = vrot.slane %v333, 4
      %v336 = vshll.u32 %v185, 16
      %v338 = vrot.slane %v336, 5
      %v339 = vsel %vm229, %v334, %v338
      %v340 = vshrl.u32 %v185, 16
      %v342 = vrot.slane %v340, 4
      %v343 = vor.u32 %v342, %v338
      %v344 = vrot.slane %v343, 4
      %v346 = vshll.u32 %v186, 16
      %v348 = vrot.slane %v346, 5
      %v349 = vsel %vm229, %v344, %v348
      %v351 = vshrl.u32 %v187, 16
      %v353 = vrot.slane %v351, 4
      %v354 = vshll.u32 %v187, 16
      %v356 = vrot.slane %v354, 5
      %v357 = vor.u32 %v353, %v356
      %v358 = vrot.slane %v357, 4
      %v360 = vshll.u32 %v188, 16
      %v362 = vrot.slane %v360, 5
      %v363 = vsel %vm229, %v358, %v362
      %v364 = vshrl.u32 %v188, 16
      %v366 = vrot.slane %v364, 4
      %v367 = vor.u32 %v366, %v362
      %v368 = vrot.slane %v367, 4
      %v370 = vshll.u32 %v189, 16
      %v372 = vrot.slane %v370, 5
      %v373 = vsel %vm229, %v368, %v372
      %v375 = vshrl.u32 %v190, 16
      %v377 = vrot.slane %v375, 4
      %v378 = vshll.u32 %v190, 16
      %v380 = vrot.slane %v378, 5
      %v381 = vor.u32 %v377, %v380
      %v382 = vrot.slane %v381, 4
      %v384 = vshll.u32 %v191, 16
      %v386 = vrot.slane %v384, 5
      %v387 = vsel %vm229, %v382, %v386
      %v388 = vshrl.u32 %v191, 16
      %v390 = vrot.slane %v388, 4
      %v391 = vor.u32 %v390, %v386
      %v392 = vrot.slane %v391, 4
      %v394 = vshll.u32 %v192, 16
      %v396 = vrot.slane %v394, 5
      %v397 = vsel %vm229, %v392, %v396
      %v399 = vshrl.u32 %v193, 16
      %v401 = vrot.slane %v399, 4
      %v402 = vshll.u32 %v193, 16
      %v404 = vrot.slane %v402, 5
      %v405 = vor.u32 %v401, %v404
      %v406 = vrot.slane %v405, 4
      %v408 = vshll.u32 %v194, 16
      %v410 = vrot.slane %v408, 5
      %v411 = vsel %vm229, %v406, %v410
      %v412 = vshrl.u32 %v194, 16
      %v414 = vrot.slane %v412, 4
      %v415 = vor.u32 %v414, %v410
      %v416 = vrot.slane %v415, 4
      %v418 = vshll.u32 %v195, 16
      %v420 = vrot.slane %v418, 5
      %v421 = vsel %vm229, %v416, %v420
      %v423 = vshrl.u32 %v196, 16
      %v425 = vrot.slane %v423, 4
      %v426 = vshll.u32 %v196, 16
      %v428 = vrot.slane %v426, 5
      %v429 = vor.u32 %v425, %v428
      %v430 = vrot.slane %v429, 4
      %v432 = vshll.u32 %v197, 16
      %v434 = vrot.slane %v432, 5
      %v435 = vsel %vm229, %v430, %v434
      %v436 = vshrl.u32 %v197, 16
      %v438 = vrot.slane %v436, 4
      %v439 = vor.u32 %v438, %v434
      %v440 = vrot.slane %v439, 4
      %v442 = vshll.u32 %v198, 16
      %v444 = vrot.slane %v442, 5
      %v445 = vsel %vm229, %v440, %v444
      %v447 = vshrl.u32 %v199, 16
      %v449 = vrot.slane %v447, 4
      %v450 = vshll.u32 %v199, 16
      %v452 = vrot.slane %v450, 5
      %v453 = vor.u32 %v449, %v452
      %v454 = vrot.slane %v453, 4
      %v456 = vshll.u32 %v200, 16
      %v458 = vrot.slane %v456, 5
      %v459 = vsel %vm229, %v454, %v458
      %v460 = vshrl.u32 %v200, 16
      %v462 = vrot.slane %v460, 4
      %v463 = vor.u32 %v462, %v458
      %v464 = vrot.slane %v463, 4
      %v466 = vshll.u32 %v201, 16
      %v468 = vrot.slane %v466, 5
      %v469 = vsel %vm229, %v464, %v468
      %v471 = vshrl.u32 %v202, 16
      %v473 = vrot.slane %v471, 4
      %v474 = vshll.u32 %v202, 16
      %v476 = vrot.slane %v474, 5
      %v477 = vor.u32 %v473, %v476
      %v478 = vrot.slane %v477, 4
      %v480 = vshll.u32 %v203, 16
      %v482 = vrot.slane %v480, 5
      %v483 = vsel %vm229, %v478, %v482
      %v484 = vshrl.u32 %v203, 16
      %v486 = vrot.slane %v484, 4
      %v487 = vor.u32 %v486, %v482
      %v488 = vrot.slane %v487, 4
      %v490 = vshll.u32 %v204, 16
      %v492 = vrot.slane %v490, 5
      %v493 = vsel %vm229, %v488, %v492
      %v495 = vshrl.u32 %v205, 16
      %v497 = vrot.slane %v495, 4
      %v498 = vshll.u32 %v205, 16
      %v500 = vrot.slane %v498, 5
      %v501 = vor.u32 %v497, %v500
      %v502 = vrot.slane %v501, 4
      %v504 = vshll.u32 %v206, 16
      %v506 = vrot.slane %v504, 5
      %v507 = vsel %vm229, %v502, %v506
      %v508 = vshrl.u32 %v206, 16
      %v510 = vrot.slane %v508, 4
      %v511 = vor.u32 %v510, %v506
      %v512 = vrot.slane %v511, 4
      %v514 = vshll.u32 %v207, 16
      %v516 = vrot.slane %v514, 5
      %v517 = vsel %vm229, %v512, %v516
      %v519 = vshrl.u32 %v208, 16
      %v521 = vrot.slane %v519, 4
      %v522 = vshll.u32 %v208, 16
      %v524 = vrot.slane %v522, 5
      %v525 = vor.u32 %v521, %v524
      %v526 = vrot.slane %v525, 4
      %v528 = vshll.u32 %v209, 16
      %v530 = vrot.slane %v528, 5
      %v531 = vsel %vm229, %v526, %v530
      %v532 = vshrl.u32 %v209, 16
      %v534 = vrot.slane %v532, 4
      %v535 = vor.u32 %v534, %v530
      %v536 = vrot.slane %v535, 4
      %v538 = vshll.u32 %v210, 16
      %v540 = vrot.slane %v538, 5
      %v541 = vsel %vm229, %v536, %v540
      %v543 = vshrl.u32 %v211, 16
      %v545 = vrot.slane %v543, 4
      %v546 = vshll.u32 %v211, 16
      %v548 = vrot.slane %v546, 5
      %v549 = vor.u32 %v545, %v548
      %v550 = vrot.slane %v549, 4
      %v552 = vshll.u32 %v212, 16
      %v554 = vrot.slane %v552, 5
      %v555 = vsel %vm229, %v550, %v554
      %v556 = vshrl.u32 %v212, 16
      %v558 = vrot.slane %v556, 4
      %v559 = vor.u32 %v558, %v554
      %v560 = vrot.slane %v559, 4
      %v562 = vshll.u32 %v213, 16
      %v564 = vrot.slane %v562, 5
      %v565 = vsel %vm229, %v560, %v564
      %v567 = vshrl.u32 %v214, 16
      %v569 = vrot.slane %v567, 4
      %v570 = vshll.u32 %v214, 16
      %v572 = vrot.slane %v570, 5
      %v573 = vor.u32 %v569, %v572
      %v574 = vrot.slane %v573, 4
      %v576 = vshll.u32 %v215, 16
      %v578 = vrot.slane %v576, 5
      %v579 = vsel %vm229, %v574, %v578
      %v580 = vshrl.u32 %v215, 16
      %v582 = vrot.slane %v580, 4
      %v583 = vor.u32 %v582, %v578
      %v584 = vrot.slane %v583, 4
      %v586 = vshll.u32 %v216, 16
      %v588 = vrot.slane %v586, 5
      %v589 = vsel %vm229, %v584, %v588
      %v591 = vshrl.u32 %v217, 16
      %v593 = vrot.slane %v591, 4
      %v594 = vshll.u32 %v217, 16
      %v596 = vrot.slane %v594, 5
      %v597 = vor.u32 %v593, %v596
      %v598 = vrot.slane %v597, 4
      %v600 = vshll.u32 %v218, 16
      %v602 = vrot.slane %v600, 5
      %v603 = vsel %vm229, %v598, %v602
      %v604 = vshrl.u32 %v218, 16
      %v606 = vrot.slane %v604, 4
      %v607 = vor.u32 %v606, %v602
      %v608 = vrot.slane %v607, 4
      %v610 = vshll.u32 %v219, 16
      %v612 = vrot.slane %v610, 5
      %v613 = vsel %vm229, %v608, %v612
      %s614 = scalar_lea.vmem %s1, 2
      %v615 = vld [vmem:[%s614] sm:$0x3]
      %v616 = vunpack.c.l.b16 %v243
      %v617 = vunpack.c.l.b16 %v253
      %v618 = vunpack.c.l.b16 %v267
      %v619 = vunpack.c.l.b16 %v277
      %v620 = vunpack.c.l.b16 %v291
      %v621 = vunpack.c.l.b16 %v301
      %v622 = vunpack.c.l.b16 %v315
      %v623 = vunpack.c.l.b16 %v325
      %v624 = vunpack.c.l.b16 %v339
      %v625 = vunpack.c.l.b16 %v349
      %v626 = vunpack.c.l.b16 %v363
      %v627 = vunpack.c.l.b16 %v373
      %v628 = vunpack.c.l.b16 %v387
      %v629 = vunpack.c.l.b16 %v397
      %v630 = vunpack.c.l.b16 %v411
      %v631 = vunpack.c.l.b16 %v421
      %v632 = vunpack.c.l.b16 %v435
      %v633 = vunpack.c.l.b16 %v445
      %v634 = vunpack.c.l.b16 %v459
      %v635 = vunpack.c.l.b16 %v469
      %v636 = vunpack.c.l.b16 %v483
      %v637 = vunpack.c.l.b16 %v493
      %v638 = vunpack.c.l.b16 %v507
      %v639 = vunpack.c.l.b16 %v517
      %v640 = vunpack.c.l.b16 %v531
      %v641 = vunpack.c.l.b16 %v541
      %v642 = vunpack.c.l.b16 %v555
      %v643 = vunpack.c.l.b16 %v565
      %v644 = vunpack.c.l.b16 %v579
      %v645 = vunpack.c.l.b16 %v589
      %v646 = vunpack.c.l.b16 %v603
      %v647 = vunpack.c.l.b16 %v613
      %v648 = vpack.c.b16 %v617, %v616
      %v649 = vpack.c.b16 %v619, %v618
      %v650 = vpack.c.b16 %v621, %v620
      %v651 = vpack.c.b16 %v623, %v622
      %v652 = vpack.c.b16 %v625, %v624
      %v653 = vpack.c.b16 %v627, %v626
      %v654 = vpack.c.b16 %v629, %v628
      %v655 = vpack.c.b16 %v631, %v630
      %v656 = vpack.c.b16 %v633, %v632
      %v657 = vpack.c.b16 %v635, %v634
      %v658 = vpack.c.b16 %v637, %v636
      %v659 = vpack.c.b16 %v639, %v638
      %v660 = vpack.c.b16 %v641, %v640
      %v661 = vpack.c.b16 %v643, %v642
      %v662 = vpack.c.b16 %v645, %v644
      %v663 = vpack.c.b16 %v647, %v646
      %vm664 = vcmask 23552
      %v666 = vsel %vm664, %v648, 0
      %v669 = vsel %vm664, %v649, 0
      %v672 = vsel %vm664, %v650, 0
      %v675 = vsel %vm664, %v651, 0
      %v678 = vsel %vm664, %v652, 0
      %v681 = vsel %vm664, %v653, 0
      %v684 = vsel %vm664, %v654, 0
      %v687 = vsel %vm664, %v655, 0
      %v690 = vsel %vm664, %v656, 0
      %v693 = vsel %vm664, %v657, 0
      %v696 = vsel %vm664, %v658, 0
      %v699 = vsel %vm664, %v659, 0
      %v702 = vsel %vm664, %v660, 0
      %v705 = vsel %vm664, %v661, 0
      %v708 = vsel %vm664, %v662, 0
      %v711 = vsel %vm664, %v663, 0
      %vm713 = vcmask 1040384
      %vm714 = vcmask 1041408
      %v715 = vsel %vm713, 4294967295, 65535
      %v716 = vsel %vm714, %v715, 0
      %v718 = vand.u32 %v615, %v716
      %720 = vmatpush.bf16.msra.mxu0 0
      %721 = vmatpush.bf16.msra.mxu0 0
      %722 = vmatpush.bf16.msra.mxu0 0
      %723 = vmatpush.bf16.msra.mxu0 0
      %724 = vmatpush.bf16.msra.mxu0 0
      %725 = vmatpush.bf16.msra.mxu0 0
      %726 = vmatpush.bf16.msra.mxu0 0
      %727 = vmatpush.bf16.msra.mxu0 %v718
      %728 = vmatmul.bf16.gmra.mxu0 %v666
      %v729 = vpop.f32.mrf.mxu0
      %v730 = vadd.f32 0.0, %v729
      %v731 = vpop.f32.mrf.mxu0
      %v732 = vadd.f32 0.0, %v731
      %733 = vmatmul.bf16.gmra.mxu0 %v669
      %v734 = vpop.f32.mrf.mxu0
      %v735 = vadd.f32 0.0, %v734
      %v736 = vpop.f32.mrf.mxu0
      %v737 = vadd.f32 0.0, %v736
      %738 = vmatmul.bf16.gmra.mxu0 %v672
      %v739 = vpop.f32.mrf.mxu0
      %v740 = vadd.f32 0.0, %v739
      %v741 = vpop.f32.mrf.mxu0
      %v742 = vadd.f32 0.0, %v741
      %743 = vmatmul.bf16.gmra.mxu0 %v675
      %v744 = vpop.f32.mrf.mxu0
      %v745 = vadd.f32 0.0, %v744
      %v746 = vpop.f32.mrf.mxu0
      %v747 = vadd.f32 0.0, %v746
      %748 = vmatmul.bf16.gmra.mxu0 %v678
      %v749 = vpop.f32.mrf.mxu0
      %v750 = vadd.f32 0.0, %v749
      %v751 = vpop.f32.mrf.mxu0
      %v752 = vadd.f32 0.0, %v751
      %753 = vmatmul.bf16.gmra.mxu0 %v681
      %v754 = vpop.f32.mrf.mxu0
      %v755 = vadd.f32 0.0, %v754
      %v756 = vpop.f32.mrf.mxu0
      %v757 = vadd.f32 0.0, %v756
      %758 = vmatmul.bf16.gmra.mxu0 %v684
      %v759 = vpop.f32.mrf.mxu0
      %v760 = vadd.f32 0.0, %v759
      %v761 = vpop.f32.mrf.mxu0
      %v762 = vadd.f32 0.0, %v761
      %763 = vmatmul.bf16.gmra.mxu0 %v687
      %v764 = vpop.f32.mrf.mxu0
      %v765 = vadd.f32 0.0, %v764
      %v766 = vpop.f32.mrf.mxu0
      %v767 = vadd.f32 0.0, %v766
      %768 = vmatmul.bf16.gmra.mxu0 %v690
      %v769 = vpop.f32.mrf.mxu0
      %v770 = vadd.f32 0.0, %v769
      %v771 = vpop.f32.mrf.mxu0
      %v772 = vadd.f32 0.0, %v771
      %773 = vmatmul.bf16.gmra.mxu0 %v693
      %v774 = vpop.f32.mrf.mxu0
      %v775 = vadd.f32 0.0, %v774
      %v776 = vpop.f32.mrf.mxu0
      %v777 = vadd.f32 0.0, %v776
      %778 = vmatmul.bf16.gmra.mxu0 %v696
      %v779 = vpop.f32.mrf.mxu0
      %v780 = vadd.f32 0.0, %v779
      %v781 = vpop.f32.mrf.mxu0
      %v782 = vadd.f32 0.0, %v781
      %783 = vmatmul.bf16.gmra.mxu0 %v699
      %v784 = vpop.f32.mrf.mxu0
      %v785 = vadd.f32 0.0, %v784
      %v786 = vpop.f32.mrf.mxu0
      %v787 = vadd.f32 0.0, %v786
      %788 = vmatmul.bf16.gmra.mxu0 %v702
      %v789 = vpop.f32.mrf.mxu0
      %v790 = vadd.f32 0.0, %v789
      %v791 = vpop.f32.mrf.mxu0
      %v792 = vadd.f32 0.0, %v791
      %793 = vmatmul.bf16.gmra.mxu0 %v705
      %v794 = vpop.f32.mrf.mxu0
      %v795 = vadd.f32 0.0, %v794
      %v796 = vpop.f32.mrf.mxu0
      %v797 = vadd.f32 0.0, %v796
      %798 = vmatmul.bf16.gmra.mxu0 %v708
      %v799 = vpop.f32.mrf.mxu0
      %v800 = vadd.f32 0.0, %v799
      %v801 = vpop.f32.mrf.mxu0
      %v802 = vadd.f32 0.0, %v801
      %803 = vmatmul.bf16.gmra.mxu0 %v711
      %v804 = vpop.f32.mrf.mxu0
      %v805 = vadd.f32 0.0, %v804
      %v806 = vpop.f32.mrf.mxu0
      %v807 = vadd.f32 0.0, %v806
      %808 = vdwg.mxu0
      %v841 = vunpack.c.l.b16 %v172
      %v842 = vunpack.c.l.b16 %v173
      %v843 = vunpack.c.l.b16 %v175
      %v844 = vunpack.c.l.b16 %v176
      %v845 = vunpack.c.l.b16 %v178
      %v846 = vunpack.c.l.b16 %v179
      %v847 = vunpack.c.l.b16 %v181
      %v848 = vunpack.c.l.b16 %v182
      %v849 = vunpack.c.l.b16 %v184
      %v850 = vunpack.c.l.b16 %v185
      %v851 = vunpack.c.l.b16 %v187
      %v852 = vunpack.c.l.b16 %v188
      %v853 = vunpack.c.l.b16 %v190
      %v854 = vunpack.c.l.b16 %v191
      %v855 = vunpack.c.l.b16 %v193
      %v856 = vunpack.c.l.b16 %v194
      %v857 = vunpack.c.l.b16 %v196
      %v858 = vunpack.c.l.b16 %v197
      %v859 = vunpack.c.l.b16 %v199
      %v860 = vunpack.c.l.b16 %v200
      %v861 = vunpack.c.l.b16 %v202
      %v862 = vunpack.c.l.b16 %v203
      %v863 = vunpack.c.l.b16 %v205
      %v864 = vunpack.c.l.b16 %v206
      %v865 = vunpack.c.l.b16 %v208
      %v866 = vunpack.c.l.b16 %v209
      %v867 = vunpack.c.l.b16 %v211
      %v868 = vunpack.c.l.b16 %v212
      %v869 = vunpack.c.l.b16 %v214
      %v870 = vunpack.c.l.b16 %v215
      %v871 = vunpack.c.l.b16 %v217
      %v872 = vunpack.c.l.b16 %v218
      %v873 = vpack.c.b16 %v842, %v841
      %v874 = vpack.c.b16 %v844, %v843
      %v875 = vpack.c.b16 %v846, %v845
      %v876 = vpack.c.b16 %v848, %v847
      %v877 = vpack.c.b16 %v850, %v849
      %v878 = vpack.c.b16 %v852, %v851
      %v879 = vpack.c.b16 %v854, %v853
      %v880 = vpack.c.b16 %v856, %v855
      %v881 = vpack.c.b16 %v858, %v857
      %v882 = vpack.c.b16 %v860, %v859
      %v883 = vpack.c.b16 %v862, %v861
      %v884 = vpack.c.b16 %v864, %v863
      %v885 = vpack.c.b16 %v866, %v865
      %v886 = vpack.c.b16 %v868, %v867
      %v887 = vpack.c.b16 %v870, %v869
      %v888 = vpack.c.b16 %v872, %v871
      %v890 = vsel %vm664, %v873, 0
      %v893 = vsel %vm664, %v874, 0
      %v896 = vsel %vm664, %v875, 0
      %v899 = vsel %vm664, %v876, 0
      %v902 = vsel %vm664, %v877, 0
      %v905 = vsel %vm664, %v878, 0
      %v908 = vsel %vm664, %v879, 0
      %v911 = vsel %vm664, %v880, 0
      %v914 = vsel %vm664, %v881, 0
      %v917 = vsel %vm664, %v882, 0
      %v920 = vsel %vm664, %v883, 0
      %v923 = vsel %vm664, %v884, 0
      %v926 = vsel %vm664, %v885, 0
      %v929 = vsel %vm664, %v886, 0
      %v932 = vsel %vm664, %v887, 0
      %v935 = vsel %vm664, %v888, 0
      %v938 = vand.u32 %v226, %v716
      %940 = vmatpush.bf16.msra.mxu0 0
      %941 = vmatpush.bf16.msra.mxu0 0
      %942 = vmatpush.bf16.msra.mxu0 0
      %943 = vmatpush.bf16.msra.mxu0 0
      %944 = vmatpush.bf16.msra.mxu0 0
      %945 = vmatpush.bf16.msra.mxu0 0
      %946 = vmatpush.bf16.msra.mxu0 0
      %947 = vmatpush.bf16.msra.mxu0 %v938
      %948 = vmatmul.bf16.gmra.mxu0 %v890
      %v949 = vpop.f32.mrf.mxu0
      %v950 = vadd.f32 %v730, %v949
      %v951 = vpop.f32.mrf.mxu0
      %v952 = vadd.f32 %v732, %v951
      %953 = vmatmul.bf16.gmra.mxu0 %v893
      %v954 = vpop.f32.mrf.mxu0
      %v955 = vadd.f32 %v735, %v954
      %v956 = vpop.f32.mrf.mxu0
      %v957 = vadd.f32 %v737, %v956
      %958 = vmatmul.bf16.gmra.mxu0 %v896
      %v959 = vpop.f32.mrf.mxu0
      %v960 = vadd.f32 %v740, %v959
      %v961 = vpop.f32.mrf.mxu0
      %v962 = vadd.f32 %v742, %v961
      %963 = vmatmul.bf16.gmra.mxu0 %v899
      %v964 = vpop.f32.mrf.mxu0
      %v965 = vadd.f32 %v745, %v964
      %v966 = vpop.f32.mrf.mxu0
      %v967 = vadd.f32 %v747, %v966
      %968 = vmatmul.bf16.gmra.mxu0 %v902
      %v969 = vpop.f32.mrf.mxu0
      %v970 = vadd.f32 %v750, %v969
      %v971 = vpop.f32.mrf.mxu0
      %v972 = vadd.f32 %v752, %v971
      %973 = vmatmul.bf16.gmra.mxu0 %v905
      %v974 = vpop.f32.mrf.mxu0
      %v975 = vadd.f32 %v755, %v974
      %v976 = vpop.f32.mrf.mxu0
      %v977 = vadd.f32 %v757, %v976
      %978 = vmatmul.bf16.gmra.mxu0 %v908
      %v979 = vpop.f32.mrf.mxu0
      %v980 = vadd.f32 %v760, %v979
      %v981 = vpop.f32.mrf.mxu0
      %v982 = vadd.f32 %v762, %v981
      %983 = vmatmul.bf16.gmra.mxu0 %v911
      %v984 = vpop.f32.mrf.mxu0
      %v985 = vadd.f32 %v765, %v984
      %v986 = vpop.f32.mrf.mxu0
      %v987 = vadd.f32 %v767, %v986
      %988 = vmatmul.bf16.gmra.mxu0 %v914
      %v989 = vpop.f32.mrf.mxu0
      %v990 = vadd.f32 %v770, %v989
      %v991 = vpop.f32.mrf.mxu0
      %v992 = vadd.f32 %v772, %v991
      %993 = vmatmul.bf16.gmra.mxu0 %v917
      %v994 = vpop.f32.mrf.mxu0
      %v995 = vadd.f32 %v775, %v994
      %v996 = vpop.f32.mrf.mxu0
      %v997 = vadd.f32 %v777, %v996
      %998 = vmatmul.bf16.gmra.mxu0 %v920
      %v999 = vpop.f32.mrf.mxu0
      %v1000 = vadd.f32 %v780, %v999
      %v1001 = vpop.f32.mrf.mxu0
      %v1002 = vadd.f32 %v782, %v1001
      %1003 = vmatmul.bf16.gmra.mxu0 %v923
      %v1004 = vpop.f32.mrf.mxu0
      %v1005 = vadd.f32 %v785, %v1004
      %v1006 = vpop.f32.mrf.mxu0
      %v1007 = vadd.f32 %v787, %v1006
      %1008 = vmatmul.bf16.gmra.mxu0 %v926
      %v1009 = vpop.f32.mrf.mxu0
      %v1010 = vadd.f32 %v790, %v1009
      %v1011 = vpop.f32.mrf.mxu0
      %v1012 = vadd.f32 %v792, %v1011
      %1013 = vmatmul.bf16.gmra.mxu0 %v929
      %v1014 = vpop.f32.mrf.mxu0
      %v1015 = vadd.f32 %v795, %v1014
      %v1016 = vpop.f32.mrf.mxu0
      %v1017 = vadd.f32 %v797, %v1016
      %1018 = vmatmul.bf16.gmra.mxu0 %v932
      %v1019 = vpop.f32.mrf.mxu0
      %v1020 = vadd.f32 %v800, %v1019
      %v1021 = vpop.f32.mrf.mxu0
      %v1022 = vadd.f32 %v802, %v1021
      %1023 = vmatmul.bf16.gmra.mxu0 %v935
      %v1024 = vpop.f32.mrf.mxu0
      %v1025 = vadd.f32 %v805, %v1024
      %v1026 = vpop.f32.mrf.mxu0
      %v1027 = vadd.f32 %v807, %v1026
      %1028 = vdwg.mxu0
      %vm1045 = vcmask 1042432
      %vm1046 = vcmask 1046532
      %vm1047 = vmor %vm1045, %vm1046
      %v1048 = vrot.slane %v172, 5
      %v1049 = vrot.slane %v1048, 4
      %v1050 = vrot.slane %v173, 5
      %v1051 = vsel %vm1047, %v1049, %v1050
      %v1052 = vrot.slane %v1050, 4
      %v1053 = vrot.slane %v174, 5
      %v1054 = vsel %vm1047, %v1052, %v1053
      %v1055 = vrot.slane %v175, 5
      %v1056 = vrot.slane %v1055, 4
      %v1057 = vrot.slane %v176, 5
      %v1058 = vsel %vm1047, %v1056, %v1057
      %v1059 = vrot.slane %v1057, 4
      %v1060 = vrot.slane %v177, 5
      %v1061 = vsel %vm1047, %v1059, %v1060
      %v1062 = vrot.slane %v178, 5
      %v1063 = vrot.slane %v1062, 4
      %v1064 = vrot.slane %v179, 5
      %v1065 = vsel %vm1047, %v1063, %v1064
      %v1066 = vrot.slane %v1064, 4
      %v1067 = vrot.slane %v180, 5
      %v1068 = vsel %vm1047, %v1066, %v1067
      %v1069 = vrot.slane %v181, 5
      %v1070 = vrot.slane %v1069, 4
      %v1071 = vrot.slane %v182, 5
      %v1072 = vsel %vm1047, %v1070, %v1071
      %v1073 = vrot.slane %v1071, 4
      %v1074 = vrot.slane %v183, 5
      %v1075 = vsel %vm1047, %v1073, %v1074
      %v1076 = vrot.slane %v184, 5
      %v1077 = vrot.slane %v1076, 4
      %v1078 = vrot.slane %v185, 5
      %v1079 = vsel %vm1047, %v1077, %v1078
      %v1080 = vrot.slane %v1078, 4
      %v1081 = vrot.slane %v186, 5
      %v1082 = vsel %vm1047, %v1080, %v1081
      %v1083 = vrot.slane %v187, 5
      %v1084 = vrot.slane %v1083, 4
      %v1085 = vrot.slane %v188, 5
      %v1086 = vsel %vm1047, %v1084, %v1085
      %v1087 = vrot.slane %v1085, 4
      %v1088 = vrot.slane %v189, 5
      %v1089 = vsel %vm1047, %v1087, %v1088
      %v1090 = vrot.slane %v190, 5
      %v1091 = vrot.slane %v1090, 4
      %v1092 = vrot.slane %v191, 5
      %v1093 = vsel %vm1047, %v1091, %v1092
      %v1094 = vrot.slane %v1092, 4
      %v1095 = vrot.slane %v192, 5
      %v1096 = vsel %vm1047, %v1094, %v1095
      %v1097 = vrot.slane %v193, 5
      %v1098 = vrot.slane %v1097, 4
      %v1099 = vrot.slane %v194, 5
      %v1100 = vsel %vm1047, %v1098, %v1099
      %v1101 = vrot.slane %v1099, 4
      %v1102 = vrot.slane %v195, 5
      %v1103 = vsel %vm1047, %v1101, %v1102
      %v1104 = vrot.slane %v196, 5
      %v1105 = vrot.slane %v1104, 4
      %v1106 = vrot.slane %v197, 5
      %v1107 = vsel %vm1047, %v1105, %v1106
      %v1108 = vrot.slane %v1106, 4
      %v1109 = vrot.slane %v198, 5
      %v1110 = vsel %vm1047, %v1108, %v1109
      %v1111 = vrot.slane %v199, 5
      %v1112 = vrot.slane %v1111, 4
      %v1113 = vrot.slane %v200, 5
      %v1114 = vsel %vm1047, %v1112, %v1113
      %v1115 = vrot.slane %v1113, 4
      %v1116 = vrot.slane %v201, 5
      %v1117 = vsel %vm1047, %v1115, %v1116
      %v1118 = vrot.slane %v202, 5
      %v1119 = vrot.slane %v1118, 4
      %v1120 = vrot.slane %v203, 5
      %v1121 = vsel %vm1047, %v1119, %v1120
      %v1122 = vrot.slane %v1120, 4
      %v1123 = vrot.slane %v204, 5
      %v1124 = vsel %vm1047, %v1122, %v1123
      %v1125 = vrot.slane %v205, 5
      %v1126 = vrot.slane %v1125, 4
      %v1127 = vrot.slane %v206, 5
      %v1128 = vsel %vm1047, %v1126, %v1127
      %v1129 = vrot.slane %v1127, 4
      %v1130 = vrot.slane %v207, 5
      %v1131 = vsel %vm1047, %v1129, %v1130
      %v1132 = vrot.slane %v208, 5
      %v1133 = vrot.slane %v1132, 4
      %v1134 = vrot.slane %v209, 5
      %v1135 = vsel %vm1047, %v1133, %v1134
      %v1136 = vrot.slane %v1134, 4
      %v1137 = vrot.slane %v210, 5
      %v1138 = vsel %vm1047, %v1136, %v1137
      %v1139 = vrot.slane %v211, 5
      %v1140 = vrot.slane %v1139, 4
      %v1141 = vrot.slane %v212, 5
      %v1142 = vsel %vm1047, %v1140, %v1141
      %v1143 = vrot.slane %v1141, 4
      %v1144 = vrot.slane %v213, 5
      %v1145 = vsel %vm1047, %v1143, %v1144
      %v1146 = vrot.slane %v214, 5
      %v1147 = vrot.slane %v1146, 4
      %v1148 = vrot.slane %v215, 5
      %v1149 = vsel %vm1047, %v1147, %v1148
      %v1150 = vrot.slane %v1148, 4
      %v1151 = vrot.slane %v216, 5
      %v1152 = vsel %vm1047, %v1150, %v1151
      %v1153 = vrot.slane %v217, 5
      %v1154 = vrot.slane %v1153, 4
      %v1155 = vrot.slane %v218, 5
      %v1156 = vsel %vm1047, %v1154, %v1155
      %v1157 = vrot.slane %v1155, 4
      %v1158 = vrot.slane %v219, 5
      %v1159 = vsel %vm1047, %v1157, %v1158
      %s1160 = scalar_lea.vmem %s1, 4
      %v1161 = vld [vmem:[%s1160] sm:$0x3]
      %v1162 = vunpack.c.l.b16 %v1051
      %v1163 = vunpack.c.l.b16 %v1054
      %v1164 = vunpack.c.l.b16 %v1058
      %v1165 = vunpack.c.l.b16 %v1061
      %v1166 = vunpack.c.l.b16 %v1065
      %v1167 = vunpack.c.l.b16 %v1068
      %v1168 = vunpack.c.l.b16 %v1072
      %v1169 = vunpack.c.l.b16 %v1075
      %v1170 = vunpack.c.l.b16 %v1079
      %v1171 = vunpack.c.l.b16 %v1082
      %v1172 = vunpack.c.l.b16 %v1086
      %v1173 = vunpack.c.l.b16 %v1089
      %v1174 = vunpack.c.l.b16 %v1093
      %v1175 = vunpack.c.l.b16 %v1096
      %v1176 = vunpack.c.l.b16 %v1100
      %v1177 = vunpack.c.l.b16 %v1103
      %v1178 = vunpack.c.l.b16 %v1107
      %v1179 = vunpack.c.l.b16 %v1110
      %v1180 = vunpack.c.l.b16 %v1114
      %v1181 = vunpack.c.l.b16 %v1117
      %v1182 = vunpack.c.l.b16 %v1121
      %v1183 = vunpack.c.l.b16 %v1124
      %v1184 = vunpack.c.l.b16 %v1128
      %v1185 = vunpack.c.l.b16 %v1131
      %v1186 = vunpack.c.l.b16 %v1135
      %v1187 = vunpack.c.l.b16 %v1138
      %v1188 = vunpack.c.l.b16 %v1142
      %v1189 = vunpack.c.l.b16 %v1145
      %v1190 = vunpack.c.l.b16 %v1149
      %v1191 = vunpack.c.l.b16 %v1152
      %v1192 = vunpack.c.l.b16 %v1156
      %v1193 = vunpack.c.l.b16 %v1159
      %v1194 = vpack.c.b16 %v1163, %v1162
      %v1195 = vpack.c.b16 %v1165, %v1164
      %v1196 = vpack.c.b16 %v1167, %v1166
      %v1197 = vpack.c.b16 %v1169, %v1168
      %v1198 = vpack.c.b16 %v1171, %v1170
      %v1199 = vpack.c.b16 %v1173, %v1172
      %v1200 = vpack.c.b16 %v1175, %v1174
      %v1201 = vpack.c.b16 %v1177, %v1176
      %v1202 = vpack.c.b16 %v1179, %v1178
      %v1203 = vpack.c.b16 %v1181, %v1180
      %v1204 = vpack.c.b16 %v1183, %v1182
      %v1205 = vpack.c.b16 %v1185, %v1184
      %v1206 = vpack.c.b16 %v1187, %v1186
      %v1207 = vpack.c.b16 %v1189, %v1188
      %v1208 = vpack.c.b16 %v1191, %v1190
      %v1209 = vpack.c.b16 %v1193, %v1192
      %v1211 = vsel %vm664, %v1194, 0
      %v1214 = vsel %vm664, %v1195, 0
      %v1217 = vsel %vm664, %v1196, 0
      %v1220 = vsel %vm664, %v1197, 0
      %v1223 = vsel %vm664, %v1198, 0
      %v1226 = vsel %vm664, %v1199, 0
      %v1229 = vsel %vm664, %v1200, 0
      %v1232 = vsel %vm664, %v1201, 0
      %v1235 = vsel %vm664, %v1202, 0
      %v1238 = vsel %vm664, %v1203, 0
      %v1241 = vsel %vm664, %v1204, 0
      %v1244 = vsel %vm664, %v1205, 0
      %v1247 = vsel %vm664, %v1206, 0
      %v1250 = vsel %vm664, %v1207, 0
      %v1253 = vsel %vm664, %v1208, 0
      %v1256 = vsel %vm664, %v1209, 0
      %v1259 = vand.u32 %v1161, %v716
      %1261 = vmatpush.bf16.msra.mxu0 0
      %1262 = vmatpush.bf16.msra.mxu0 0
      %1263 = vmatpush.bf16.msra.mxu0 0
      %1264 = vmatpush.bf16.msra.mxu0 0
      %1265 = vmatpush.bf16.msra.mxu0 0
      %1266 = vmatpush.bf16.msra.mxu0 0
      %1267 = vmatpush.bf16.msra.mxu0 0
      %1268 = vmatpush.bf16.msra.mxu0 %v1259
      %1269 = vmatmul.bf16.gmra.mxu0 %v1211
      %v1270 = vpop.f32.mrf.mxu0
      %v1271 = vadd.f32 0.0, %v1270
      %v1272 = vpop.f32.mrf.mxu0
      %v1273 = vadd.f32 0.0, %v1272
      %1274 = vmatmul.bf16.gmra.mxu0 %v1214
      %v1275 = vpop.f32.mrf.mxu0
      %v1276 = vadd.f32 0.0, %v1275
      %v1277 = vpop.f32.mrf.mxu0
      %v1278 = vadd.f32 0.0, %v1277
      %1279 = vmatmul.bf16.gmra.mxu0 %v1217
      %v1280 = vpop.f32.mrf.mxu0
      %v1281 = vadd.f32 0.0, %v1280
      %v1282 = vpop.f32.mrf.mxu0
      %v1283 = vadd.f32 0.0, %v1282
      %1284 = vmatmul.bf16.gmra.mxu0 %v1220
      %v1285 = vpop.f32.mrf.mxu0
      %v1286 = vadd.f32 0.0, %v1285
      %v1287 = vpop.f32.mrf.mxu0
      %v1288 = vadd.f32 0.0, %v1287
      %1289 = vmatmul.bf16.gmra.mxu0 %v1223
      %v1290 = vpop.f32.mrf.mxu0
      %v1291 = vadd.f32 0.0, %v1290
      %v1292 = vpop.f32.mrf.mxu0
      %v1293 = vadd.f32 0.0, %v1292
      %1294 = vmatmul.bf16.gmra.mxu0 %v1226
      %v1295 = vpop.f32.mrf.mxu0
      %v1296 = vadd.f32 0.0, %v1295
      %v1297 = vpop.f32.mrf.mxu0
      %v1298 = vadd.f32 0.0, %v1297
      %1299 = vmatmul.bf16.gmra.mxu0 %v1229
      %v1300 = vpop.f32.mrf.mxu0
      %v1301 = vadd.f32 0.0, %v1300
      %v1302 = vpop.f32.mrf.mxu0
      %v1303 = vadd.f32 0.0, %v1302
      %1304 = vmatmul.bf16.gmra.mxu0 %v1232
      %v1305 = vpop.f32.mrf.mxu0
      %v1306 = vadd.f32 0.0, %v1305
      %v1307 = vpop.f32.mrf.mxu0
      %v1308 = vadd.f32 0.0, %v1307
      %1309 = vmatmul.bf16.gmra.mxu0 %v1235
      %v1310 = vpop.f32.mrf.mxu0
      %v1311 = vadd.f32 0.0, %v1310
      %v1312 = vpop.f32.mrf.mxu0
      %v1313 = vadd.f32 0.0, %v1312
      %1314 = vmatmul.bf16.gmra.mxu0 %v1238
      %v1315 = vpop.f32.mrf.mxu0
      %v1316 = vadd.f32 0.0, %v1315
      %v1317 = vpop.f32.mrf.mxu0
      %v1318 = vadd.f32 0.0, %v1317
      %1319 = vmatmul.bf16.gmra.mxu0 %v1241
      %v1320 = vpop.f32.mrf.mxu0
      %v1321 = vadd.f32 0.0, %v1320
      %v1322 = vpop.f32.mrf.mxu0
      %v1323 = vadd.f32 0.0, %v1322
      %1324 = vmatmul.bf16.gmra.mxu0 %v1244
      %v1325 = vpop.f32.mrf.mxu0
      %v1326 = vadd.f32 0.0, %v1325
      %v1327 = vpop.f32.mrf.mxu0
      %v1328 = vadd.f32 0.0, %v1327
      %1329 = vmatmul.bf16.gmra.mxu0 %v1247
      %v1330 = vpop.f32.mrf.mxu0
      %v1331 = vadd.f32 0.0, %v1330
      %v1332 = vpop.f32.mrf.mxu0
      %v1333 = vadd.f32 0.0, %v1332
      %1334 = vmatmul.bf16.gmra.mxu0 %v1250
      %v1335 = vpop.f32.mrf.mxu0
      %v1336 = vadd.f32 0.0, %v1335
      %v1337 = vpop.f32.mrf.mxu0
      %v1338 = vadd.f32 0.0, %v1337
      %1339 = vmatmul.bf16.gmra.mxu0 %v1253
      %v1340 = vpop.f32.mrf.mxu0
      %v1341 = vadd.f32 0.0, %v1340
      %v1342 = vpop.f32.mrf.mxu0
      %v1343 = vadd.f32 0.0, %v1342
      %1344 = vmatmul.bf16.gmra.mxu0 %v1256
      %v1345 = vpop.f32.mrf.mxu0
      %v1346 = vadd.f32 0.0, %v1345
      %v1347 = vpop.f32.mrf.mxu0
      %v1348 = vadd.f32 0.0, %v1347
      %1349 = vdwg.mxu0
      %v1350 = vadd.f32 %v950, %v1271
      %v1351 = vadd.f32 %v952, %v1273
      %v1352 = vadd.f32 %v955, %v1276
      %v1353 = vadd.f32 %v957, %v1278
      %v1354 = vadd.f32 %v960, %v1281
      %v1355 = vadd.f32 %v962, %v1283
      %v1356 = vadd.f32 %v965, %v1286
      %v1357 = vadd.f32 %v967, %v1288
      %v1358 = vadd.f32 %v970, %v1291
      %v1359 = vadd.f32 %v972, %v1293
      %v1360 = vadd.f32 %v975, %v1296
      %v1361 = vadd.f32 %v977, %v1298
      %v1362 = vadd.f32 %v980, %v1301
      %v1363 = vadd.f32 %v982, %v1303
      %v1364 = vadd.f32 %v985, %v1306
      %v1365 = vadd.f32 %v987, %v1308
      %v1366 = vadd.f32 %v990, %v1311
      %v1367 = vadd.f32 %v992, %v1313
      %v1368 = vadd.f32 %v995, %v1316
      %v1369 = vadd.f32 %v997, %v1318
      %v1370 = vadd.f32 %v1000, %v1321
      %v1371 = vadd.f32 %v1002, %v1323
      %v1372 = vadd.f32 %v1005, %v1326
      %v1373 = vadd.f32 %v1007, %v1328
      %v1374 = vadd.f32 %v1010, %v1331
      %v1375 = vadd.f32 %v1012, %v1333
      %v1376 = vadd.f32 %v1015, %v1336
      %v1377 = vadd.f32 %v1017, %v1338
      %v1378 = vadd.f32 %v1020, %v1341
      %v1379 = vadd.f32 %v1022, %v1343
      %v1380 = vadd.f32 %v1025, %v1346
      %v1381 = vadd.f32 %v1027, %v1348
      %s1382 = scalar_lea.vmem %s1, 6
      %v1383 = vld [vmem:[%s1382] sm:$0x3]
      %v1386 = vunpack.c.l.b16 %v220
      %v1387 = vunpack.c.l.b16 %v221
      %v1388 = vpack.c.b16 %v1387, %v1386
      %v1390 = vsel %vm664, %v1388, 0
      %v1393 = vand.u32 %v1383, %v716
      %1395 = vmatpush.bf16.msra.mxu0 0
      %1396 = vmatpush.bf16.msra.mxu0 0
      %1397 = vmatpush.bf16.msra.mxu0 0
      %1398 = vmatpush.bf16.msra.mxu0 0
      %1399 = vmatpush.bf16.msra.mxu0 0
      %1400 = vmatpush.bf16.msra.mxu0 0
      %1401 = vmatpush.bf16.msra.mxu0 0
      %1402 = vmatpush.bf16.msra.mxu0 %v1393
      %1403 = vmatmul.bf16.gmra.mxu0 %v893
      %v1404 = vpop.f32.mrf.mxu0
      %v1405 = vadd.f32 0.0, %v1404
      %v1406 = vpop.f32.mrf.mxu0
      %v1407 = vadd.f32 0.0, %v1406
      %1408 = vmatmul.bf16.gmra.mxu0 %v896
      %v1409 = vpop.f32.mrf.mxu0
      %v1410 = vadd.f32 0.0, %v1409
      %v1411 = vpop.f32.mrf.mxu0
      %v1412 = vadd.f32 0.0, %v1411
      %1413 = vmatmul.bf16.gmra.mxu0 %v899
      %v1414 = vpop.f32.mrf.mxu0
      %v1415 = vadd.f32 0.0, %v1414
      %v1416 = vpop.f32.mrf.mxu0
      %v1417 = vadd.f32 0.0, %v1416
      %1418 = vmatmul.bf16.gmra.mxu0 %v902
      %v1419 = vpop.f32.mrf.mxu0
      %v1420 = vadd.f32 0.0, %v1419
      %v1421 = vpop.f32.mrf.mxu0
      %v1422 = vadd.f32 0.0, %v1421
      %1423 = vmatmul.bf16.gmra.mxu0 %v905
      %v1424 = vpop.f32.mrf.mxu0
      %v1425 = vadd.f32 0.0, %v1424
      %v1426 = vpop.f32.mrf.mxu0
      %v1427 = vadd.f32 0.0, %v1426
      %1428 = vmatmul.bf16.gmra.mxu0 %v908
      %v1429 = vpop.f32.mrf.mxu0
      %v1430 = vadd.f32 0.0, %v1429
      %v1431 = vpop.f32.mrf.mxu0
      %v1432 = vadd.f32 0.0, %v1431
      %1433 = vmatmul.bf16.gmra.mxu0 %v911
      %v1434 = vpop.f32.mrf.mxu0
      %v1435 = vadd.f32 0.0, %v1434
      %v1436 = vpop.f32.mrf.mxu0
      %v1437 = vadd.f32 0.0, %v1436
      %1438 = vmatmul.bf16.gmra.mxu0 %v914
      %v1439 = vpop.f32.mrf.mxu0
      %v1440 = vadd.f32 0.0, %v1439
      %v1441 = vpop.f32.mrf.mxu0
      %v1442 = vadd.f32 0.0, %v1441
      %1443 = vmatmul.bf16.gmra.mxu0 %v917
      %v1444 = vpop.f32.mrf.mxu0
      %v1445 = vadd.f32 0.0, %v1444
      %v1446 = vpop.f32.mrf.mxu0
      %v1447 = vadd.f32 0.0, %v1446
      %1448 = vmatmul.bf16.gmra.mxu0 %v920
      %v1449 = vpop.f32.mrf.mxu0
      %v1450 = vadd.f32 0.0, %v1449
      %v1451 = vpop.f32.mrf.mxu0
      %v1452 = vadd.f32 0.0, %v1451
      %1453 = vmatmul.bf16.gmra.mxu0 %v923
      %v1454 = vpop.f32.mrf.mxu0
      %v1455 = vadd.f32 0.0, %v1454
      %v1456 = vpop.f32.mrf.mxu0
      %v1457 = vadd.f32 0.0, %v1456
      %1458 = vmatmul.bf16.gmra.mxu0 %v926
      %v1459 = vpop.f32.mrf.mxu0
      %v1460 = vadd.f32 0.0, %v1459
      %v1461 = vpop.f32.mrf.mxu0
      %v1462 = vadd.f32 0.0, %v1461
      %1463 = vmatmul.bf16.gmra.mxu0 %v929
      %v1464 = vpop.f32.mrf.mxu0
      %v1465 = vadd.f32 0.0, %v1464
      %v1466 = vpop.f32.mrf.mxu0
      %v1467 = vadd.f32 0.0, %v1466
      %1468 = vmatmul.bf16.gmra.mxu0 %v932
      %v1469 = vpop.f32.mrf.mxu0
      %v1470 = vadd.f32 0.0, %v1469
      %v1471 = vpop.f32.mrf.mxu0
      %v1472 = vadd.f32 0.0, %v1471
      %1473 = vmatmul.bf16.gmra.mxu0 %v935
      %v1474 = vpop.f32.mrf.mxu0
      %v1475 = vadd.f32 0.0, %v1474
      %v1476 = vpop.f32.mrf.mxu0
      %v1477 = vadd.f32 0.0, %v1476
      %1478 = vmatmul.bf16.gmra.mxu0 %v1390
      %v1479 = vpop.f32.mrf.mxu0
      %v1480 = vadd.f32 0.0, %v1479
      %v1481 = vpop.f32.mrf.mxu0
      %v1482 = vadd.f32 0.0, %v1481
      %1483 = vdwg.mxu0
      %v1484 = vadd.f32 %v1350, %v1405
      %v1485 = vadd.f32 %v1351, %v1407
      %v1486 = vadd.f32 %v1352, %v1410
      %v1487 = vadd.f32 %v1353, %v1412
      %v1488 = vadd.f32 %v1354, %v1415
      %v1489 = vadd.f32 %v1355, %v1417
      %v1490 = vadd.f32 %v1356, %v1420
      %v1491 = vadd.f32 %v1357, %v1422
      %v1492 = vadd.f32 %v1358, %v1425
      %v1493 = vadd.f32 %v1359, %v1427
      %v1494 = vadd.f32 %v1360, %v1430
      %v1495 = vadd.f32 %v1361, %v1432
      %v1496 = vadd.f32 %v1362, %v1435
      %v1497 = vadd.f32 %v1363, %v1437
      %v1498 = vadd.f32 %v1364, %v1440
      %v1499 = vadd.f32 %v1365, %v1442
      %v1500 = vadd.f32 %v1366, %v1445
      %v1501 = vadd.f32 %v1367, %v1447
      %v1502 = vadd.f32 %v1368, %v1450
      %v1503 = vadd.f32 %v1369, %v1452
      %v1504 = vadd.f32 %v1370, %v1455
      %v1505 = vadd.f32 %v1371, %v1457
      %v1506 = vadd.f32 %v1372, %v1460
      %v1507 = vadd.f32 %v1373, %v1462
      %v1508 = vadd.f32 %v1374, %v1465
      %v1509 = vadd.f32 %v1375, %v1467
      %v1510 = vadd.f32 %v1376, %v1470
      %v1511 = vadd.f32 %v1377, %v1472
      %v1512 = vadd.f32 %v1378, %v1475
      %v1513 = vadd.f32 %v1379, %v1477
      %v1514 = vadd.f32 %v1380, %v1480
      %v1515 = vadd.f32 %v1381, %v1482
      %v1517 = vshrl.u32 %v220, 16
      %v1519 = vrot.slane %v1517, 4
      %v1520 = vshll.u32 %v220, 16
      %v1522 = vrot.slane %v1520, 5
      %v1523 = vor.u32 %v1519, %v1522
      %v1524 = vrot.slane %v1523, 4
      %v1526 = vshll.u32 %v221, 16
      %v1528 = vrot.slane %v1526, 5
      %v1529 = vsel %vm229, %v1524, %v1528
      %v1530 = vshrl.u32 %v221, 16
      %v1532 = vrot.slane %v1530, 4
      %v1533 = vor.u32 %v1532, %v1528
      %v1534 = vrot.slane %v1533, 4
      %v1536 = vshll.u32 %v222, 16
      %v1538 = vrot.slane %v1536, 5
      %v1539 = vsel %vm229, %v1534, %v1538
      %s1540 = scalar_lea.vmem %s1, 8
      %v1541 = vld [vmem:[%s1540] sm:$0x3]
      %v1542 = vunpack.c.l.b16 %v1529
      %v1543 = vunpack.c.l.b16 %v1539
      %v1544 = vpack.c.b16 %v1543, %v1542
      %v1546 = vsel %vm664, %v1544, 0
      %v1549 = vand.u32 %v1541, %v716
      %1551 = vmatpush.bf16.msra.mxu0 0
      %1552 = vmatpush.bf16.msra.mxu0 0
      %1553 = vmatpush.bf16.msra.mxu0 0
      %1554 = vmatpush.bf16.msra.mxu0 0
      %1555 = vmatpush.bf16.msra.mxu0 0
      %1556 = vmatpush.bf16.msra.mxu0 0
      %1557 = vmatpush.bf16.msra.mxu0 0
      %1558 = vmatpush.bf16.msra.mxu0 %v1549
      %1559 = vmatmul.bf16.gmra.mxu0 %v669
      %v1560 = vpop.f32.mrf.mxu0
      %v1561 = vadd.f32 0.0, %v1560
      %v1562 = vpop.f32.mrf.mxu0
      %v1563 = vadd.f32 0.0, %v1562
      %1564 = vmatmul.bf16.gmra.mxu0 %v672
      %v1565 = vpop.f32.mrf.mxu0
      %v1566 = vadd.f32 0.0, %v1565
      %v1567 = vpop.f32.mrf.mxu0
      %v1568 = vadd.f32 0.0, %v1567
      %1569 = vmatmul.bf16.gmra.mxu0 %v675
      %v1570 = vpop.f32.mrf.mxu0
      %v1571 = vadd.f32 0.0, %v1570
      %v1572 = vpop.f32.mrf.mxu0
      %v1573 = vadd.f32 0.0, %v1572
      %1574 = vmatmul.bf16.gmra.mxu0 %v678
      %v1575 = vpop.f32.mrf.mxu0
      %v1576 = vadd.f32 0.0, %v1575
      %v1577 = vpop.f32.mrf.mxu0
      %v1578 = vadd.f32 0.0, %v1577
      %1579 = vmatmul.bf16.gmra.mxu0 %v681
      %v1580 = vpop.f32.mrf.mxu0
      %v1581 = vadd.f32 0.0, %v1580
      %v1582 = vpop.f32.mrf.mxu0
      %v1583 = vadd.f32 0.0, %v1582
      %1584 = vmatmul.bf16.gmra.mxu0 %v684
      %v1585 = vpop.f32.mrf.mxu0
      %v1586 = vadd.f32 0.0, %v1585
      %v1587 = vpop.f32.mrf.mxu0
      %v1588 = vadd.f32 0.0, %v1587
      %1589 = vmatmul.bf16.gmra.mxu0 %v687
      %v1590 = vpop.f32.mrf.mxu0
      %v1591 = vadd.f32 0.0, %v1590
      %v1592 = vpop.f32.mrf.mxu0
      %v1593 = vadd.f32 0.0, %v1592
      %1594 = vmatmul.bf16.gmra.mxu0 %v690
      %v1595 = vpop.f32.mrf.mxu0
      %v1596 = vadd.f32 0.0, %v1595
      %v1597 = vpop.f32.mrf.mxu0
      %v1598 = vadd.f32 0.0, %v1597
      %1599 = vmatmul.bf16.gmra.mxu0 %v693
      %v1600 = vpop.f32.mrf.mxu0
      %v1601 = vadd.f32 0.0, %v1600
      %v1602 = vpop.f32.mrf.mxu0
      %v1603 = vadd.f32 0.0, %v1602
      %1604 = vmatmul.bf16.gmra.mxu0 %v696
      %v1605 = vpop.f32.mrf.mxu0
      %v1606 = vadd.f32 0.0, %v1605
      %v1607 = vpop.f32.mrf.mxu0
      %v1608 = vadd.f32 0.0, %v1607
      %1609 = vmatmul.bf16.gmra.mxu0 %v699
      %v1610 = vpop.f32.mrf.mxu0
      %v1611 = vadd.f32 0.0, %v1610
      %v1612 = vpop.f32.mrf.mxu0
      %v1613 = vadd.f32 0.0, %v1612
      %1614 = vmatmul.bf16.gmra.mxu0 %v702
      %v1615 = vpop.f32.mrf.mxu0
      %v1616 = vadd.f32 0.0, %v1615
      %v1617 = vpop.f32.mrf.mxu0
      %v1618 = vadd.f32 0.0, %v1617
      %1619 = vmatmul.bf16.gmra.mxu0 %v705
      %v1620 = vpop.f32.mrf.mxu0
      %v1621 = vadd.f32 0.0, %v1620
      %v1622 = vpop.f32.mrf.mxu0
      %v1623 = vadd.f32 0.0, %v1622
      %1624 = vmatmul.bf16.gmra.mxu0 %v708
      %v1625 = vpop.f32.mrf.mxu0
      %v1626 = vadd.f32 0.0, %v1625
      %v1627 = vpop.f32.mrf.mxu0
      %v1628 = vadd.f32 0.0, %v1627
      %1629 = vmatmul.bf16.gmra.mxu0 %v711
      %v1630 = vpop.f32.mrf.mxu0
      %v1631 = vadd.f32 0.0, %v1630
      %v1632 = vpop.f32.mrf.mxu0
      %v1633 = vadd.f32 0.0, %v1632
      %1634 = vmatmul.bf16.gmra.mxu0 %v1546
      %v1635 = vpop.f32.mrf.mxu0
      %v1636 = vadd.f32 0.0, %v1635
      %v1637 = vpop.f32.mrf.mxu0
      %v1638 = vadd.f32 0.0, %v1637
      %1639 = vdwg.mxu0
      %v1640 = vadd.f32 %v1484, %v1561
      %v1641 = vadd.f32 %v1485, %v1563
      %v1642 = vadd.f32 %v1486, %v1566
      %v1643 = vadd.f32 %v1487, %v1568
      %v1644 = vadd.f32 %v1488, %v1571
      %v1645 = vadd.f32 %v1489, %v1573
      %v1646 = vadd.f32 %v1490, %v1576
      %v1647 = vadd.f32 %v1491, %v1578
      %v1648 = vadd.f32 %v1492, %v1581
      %v1649 = vadd.f32 %v1493, %v1583
      %v1650 = vadd.f32 %v1494, %v1586
      %v1651 = vadd.f32 %v1495, %v1588
      %v1652 = vadd.f32 %v1496, %v1591
      %v1653 = vadd.f32 %v1497, %v1593
      %v1654 = vadd.f32 %v1498, %v1596
      %v1655 = vadd.f32 %v1499, %v1598
      %v1656 = vadd.f32 %v1500, %v1601
      %v1657 = vadd.f32 %v1501, %v1603
      %v1658 = vadd.f32 %v1502, %v1606
      %v1659 = vadd.f32 %v1503, %v1608
      %v1660 = vadd.f32 %v1504, %v1611
      %v1661 = vadd.f32 %v1505, %v1613
      %v1662 = vadd.f32 %v1506, %v1616
      %v1663 = vadd.f32 %v1507, %v1618
      %v1664 = vadd.f32 %v1508, %v1621
      %v1665 = vadd.f32 %v1509, %v1623
      %v1666 = vadd.f32 %v1510, %v1626
      %v1667 = vadd.f32 %v1511, %v1628
      %v1668 = vadd.f32 %v1512, %v1631
      %v1669 = vadd.f32 %v1513, %v1633
      %v1670 = vadd.f32 %v1514, %v1636
      %v1671 = vadd.f32 %v1515, %v1638
      %v1673 = vrot.slane %v220, 5
      %v1674 = vrot.slane %v1673, 4
      %v1675 = vrot.slane %v221, 5
      %v1676 = vsel %vm1047, %v1674, %v1675
      %v1677 = vrot.slane %v1675, 4
      %v1678 = vrot.slane %v222, 5
      %v1679 = vsel %vm1047, %v1677, %v1678
      %s1680 = scalar_lea.vmem %s1, 10
      %v1681 = vld [vmem:[%s1680] sm:$0x3]
      %v1682 = vunpack.c.l.b16 %v1676
      %v1683 = vunpack.c.l.b16 %v1679
      %v1684 = vpack.c.b16 %v1683, %v1682
      %v1686 = vsel %vm664, %v1684, 0
      %v1689 = vand.u32 %v1681, %v716
      %1691 = vmatpush.bf16.msra.mxu0 0
      %1692 = vmatpush.bf16.msra.mxu0 0
      %1693 = vmatpush.bf16.msra.mxu0 0
      %1694 = vmatpush.bf16.msra.mxu0 0
      %1695 = vmatpush.bf16.msra.mxu0 0
      %1696 = vmatpush.bf16.msra.mxu0 0
      %1697 = vmatpush.bf16.msra.mxu0 0
      %1698 = vmatpush.bf16.msra.mxu0 %v1689
      %1699 = vmatmul.bf16.gmra.mxu0 %v1214
      %v1700 = vpop.f32.mrf.mxu0
      %v1701 = vadd.f32 0.0, %v1700
      %v1702 = vpop.f32.mrf.mxu0
      %v1703 = vadd.f32 0.0, %v1702
      %1704 = vmatmul.bf16.gmra.mxu0 %v1217
      %v1705 = vpop.f32.mrf.mxu0
      %v1706 = vadd.f32 0.0, %v1705
      %v1707 = vpop.f32.mrf.mxu0
      %v1708 = vadd.f32 0.0, %v1707
      %1709 = vmatmul.bf16.gmra.mxu0 %v1220
      %v1710 = vpop.f32.mrf.mxu0
      %v1711 = vadd.f32 0.0, %v1710
      %v1712 = vpop.f32.mrf.mxu0
      %v1713 = vadd.f32 0.0, %v1712
      %1714 = vmatmul.bf16.gmra.mxu0 %v1223
      %v1715 = vpop.f32.mrf.mxu0
      %v1716 = vadd.f32 0.0, %v1715
      %v1717 = vpop.f32.mrf.mxu0
      %v1718 = vadd.f32 0.0, %v1717
      %1719 = vmatmul.bf16.gmra.mxu0 %v1226
      %v1720 = vpop.f32.mrf.mxu0
      %v1721 = vadd.f32 0.0, %v1720
      %v1722 = vpop.f32.mrf.mxu0
      %v1723 = vadd.f32 0.0, %v1722
      %1724 = vmatmul.bf16.gmra.mxu0 %v1229
      %v1725 = vpop.f32.mrf.mxu0
      %v1726 = vadd.f32 0.0, %v1725
      %v1727 = vpop.f32.mrf.mxu0
      %v1728 = vadd.f32 0.0, %v1727
      %1729 = vmatmul.bf16.gmra.mxu0 %v1232
      %v1730 = vpop.f32.mrf.mxu0
      %v1731 = vadd.f32 0.0, %v1730
      %v1732 = vpop.f32.mrf.mxu0
      %v1733 = vadd.f32 0.0, %v1732
      %1734 = vmatmul.bf16.gmra.mxu0 %v1235
      %v1735 = vpop.f32.mrf.mxu0
      %v1736 = vadd.f32 0.0, %v1735
      %v1737 = vpop.f32.mrf.mxu0
      %v1738 = vadd.f32 0.0, %v1737
      %1739 = vmatmul.bf16.gmra.mxu0 %v1238
      %v1740 = vpop.f32.mrf.mxu0
      %v1741 = vadd.f32 0.0, %v1740
      %v1742 = vpop.f32.mrf.mxu0
      %v1743 = vadd.f32 0.0, %v1742
      %1744 = vmatmul.bf16.gmra.mxu0 %v1241
      %v1745 = vpop.f32.mrf.mxu0
      %v1746 = vadd.f32 0.0, %v1745
      %v1747 = vpop.f32.mrf.mxu0
      %v1748 = vadd.f32 0.0, %v1747
      %1749 = vmatmul.bf16.gmra.mxu0 %v1244
      %v1750 = vpop.f32.mrf.mxu0
      %v1751 = vadd.f32 0.0, %v1750
      %v1752 = vpop.f32.mrf.mxu0
      %v1753 = vadd.f32 0.0, %v1752
      %1754 = vmatmul.bf16.gmra.mxu0 %v1247
      %v1755 = vpop.f32.mrf.mxu0
      %v1756 = vadd.f32 0.0, %v1755
      %v1757 = vpop.f32.mrf.mxu0
      %v1758 = vadd.f32 0.0, %v1757
      %1759 = vmatmul.bf16.gmra.mxu0 %v1250
      %v1760 = vpop.f32.mrf.mxu0
      %v1761 = vadd.f32 0.0, %v1760
      %v1762 = vpop.f32.mrf.mxu0
      %v1763 = vadd.f32 0.0, %v1762
      %1764 = vmatmul.bf16.gmra.mxu0 %v1253
      %v1765 = vpop.f32.mrf.mxu0
      %v1766 = vadd.f32 0.0, %v1765
      %v1767 = vpop.f32.mrf.mxu0
      %v1768 = vadd.f32 0.0, %v1767
      %1769 = vmatmul.bf16.gmra.mxu0 %v1256
      %v1770 = vpop.f32.mrf.mxu0
      %v1771 = vadd.f32 0.0, %v1770
      %v1772 = vpop.f32.mrf.mxu0
      %v1773 = vadd.f32 0.0, %v1772
      %1774 = vmatmul.bf16.gmra.mxu0 %v1686
      %v1775 = vpop.f32.mrf.mxu0
      %v1776 = vadd.f32 0.0, %v1775
      %v1777 = vpop.f32.mrf.mxu0
      %v1778 = vadd.f32 0.0, %v1777
      %1779 = vdwg.mxu0
      %v1780 = vadd.f32 %v1640, %v1701
      %v1781 = vadd.f32 %v1641, %v1703
      %v1782 = vadd.f32 %v1642, %v1706
      %v1783 = vadd.f32 %v1643, %v1708
      %v1784 = vadd.f32 %v1644, %v1711
      %v1785 = vadd.f32 %v1645, %v1713
      %v1786 = vadd.f32 %v1646, %v1716
      %v1787 = vadd.f32 %v1647, %v1718
      %v1788 = vadd.f32 %v1648, %v1721
      %v1789 = vadd.f32 %v1649, %v1723
      %v1790 = vadd.f32 %v1650, %v1726
      %v1791 = vadd.f32 %v1651, %v1728
      %v1792 = vadd.f32 %v1652, %v1731
      %v1793 = vadd.f32 %v1653, %v1733
      %v1794 = vadd.f32 %v1654, %v1736
      %v1795 = vadd.f32 %v1655, %v1738
      %v1796 = vadd.f32 %v1656, %v1741
      %v1797 = vadd.f32 %v1657, %v1743
      %v1798 = vadd.f32 %v1658, %v1746
      %v1799 = vadd.f32 %v1659, %v1748
      %v1800 = vadd.f32 %v1660, %v1751
      %v1801 = vadd.f32 %v1661, %v1753
      %v1802 = vadd.f32 %v1662, %v1756
      %v1803 = vadd.f32 %v1663, %v1758
      %v1804 = vadd.f32 %v1664, %v1761
      %v1805 = vadd.f32 %v1665, %v1763
      %v1806 = vadd.f32 %v1666, %v1766
      %v1807 = vadd.f32 %v1667, %v1768
      %v1808 = vadd.f32 %v1668, %v1771
      %v1809 = vadd.f32 %v1669, %v1773
      %v1810 = vadd.f32 %v1670, %v1776
      %v1811 = vadd.f32 %v1671, %v1778
      %s1812 = scalar_lea.vmem %s1, 12
      %v1813 = vld [vmem:[%s1812] sm:$0x3]
      %v1816 = vunpack.c.l.b16 %v223
      %v1817 = vunpack.c.l.b16 %v224
      %v1818 = vpack.c.b16 %v1817, %v1816
      %v1820 = vsel %vm664, %v1818, 0
      %v1823 = vand.u32 %v1813, %v716
      %1825 = vmatpush.bf16.msra.mxu0 0
      %1826 = vmatpush.bf16.msra.mxu0 0
      %1827 = vmatpush.bf16.msra.mxu0 0
      %1828 = vmatpush.bf16.msra.mxu0 0
      %1829 = vmatpush.bf16.msra.mxu0 0
      %1830 = vmatpush.bf16.msra.mxu0 0
      %1831 = vmatpush.bf16.msra.mxu0 0
      %1832 = vmatpush.bf16.msra.mxu0 %v1823
      %1833 = vmatmul.bf16.gmra.mxu0 %v896
      %v1834 = vpop.f32.mrf.mxu0
      %v1835 = vadd.f32 0.0, %v1834
      %v1836 = vpop.f32.mrf.mxu0
      %v1837 = vadd.f32 0.0, %v1836
      %1838 = vmatmul.bf16.gmra.mxu0 %v899
      %v1839 = vpop.f32.mrf.mxu0
      %v1840 = vadd.f32 0.0, %v1839
      %v1841 = vpop.f32.mrf.mxu0
      %v1842 = vadd.f32 0.0, %v1841
      %1843 = vmatmul.bf16.gmra.mxu0 %v902
      %v1844 = vpop.f32.mrf.mxu0
      %v1845 = vadd.f32 0.0, %v1844
      %v1846 = vpop.f32.mrf.mxu0
      %v1847 = vadd.f32 0.0, %v1846
      %1848 = vmatmul.bf16.gmra.mxu0 %v905
      %v1849 = vpop.f32.mrf.mxu0
      %v1850 = vadd.f32 0.0, %v1849
      %v1851 = vpop.f32.mrf.mxu0
      %v1852 = vadd.f32 0.0, %v1851
      %1853 = vmatmul.bf16.gmra.mxu0 %v908
      %v1854 = vpop.f32.mrf.mxu0
      %v1855 = vadd.f32 0.0, %v1854
      %v1856 = vpop.f32.mrf.mxu0
      %v1857 = vadd.f32 0.0, %v1856
      %1858 = vmatmul.bf16.gmra.mxu0 %v911
      %v1859 = vpop.f32.mrf.mxu0
      %v1860 = vadd.f32 0.0, %v1859
      %v1861 = vpop.f32.mrf.mxu0
      %v1862 = vadd.f32 0.0, %v1861
      %1863 = vmatmul.bf16.gmra.mxu0 %v914
      %v1864 = vpop.f32.mrf.mxu0
      %v1865 = vadd.f32 0.0, %v1864
      %v1866 = vpop.f32.mrf.mxu0
      %v1867 = vadd.f32 0.0, %v1866
      %1868 = vmatmul.bf16.gmra.mxu0 %v917
      %v1869 = vpop.f32.mrf.mxu0
      %v1870 = vadd.f32 0.0, %v1869
      %v1871 = vpop.f32.mrf.mxu0
      %v1872 = vadd.f32 0.0, %v1871
      %1873 = vmatmul.bf16.gmra.mxu0 %v920
      %v1874 = vpop.f32.mrf.mxu0
      %v1875 = vadd.f32 0.0, %v1874
      %v1876 = vpop.f32.mrf.mxu0
      %v1877 = vadd.f32 0.0, %v1876
      %1878 = vmatmul.bf16.gmra.mxu0 %v923
      %v1879 = vpop.f32.mrf.mxu0
      %v1880 = vadd.f32 0.0, %v1879
      %v1881 = vpop.f32.mrf.mxu0
      %v1882 = vadd.f32 0.0, %v1881
      %1883 = vmatmul.bf16.gmra.mxu0 %v926
      %v1884 = vpop.f32.mrf.mxu0
      %v1885 = vadd.f32 0.0, %v1884
      %v1886 = vpop.f32.mrf.mxu0
      %v1887 = vadd.f32 0.0, %v1886
      %1888 = vmatmul.bf16.gmra.mxu0 %v929
      %v1889 = vpop.f32.mrf.mxu0
      %v1890 = vadd.f32 0.0, %v1889
      %v1891 = vpop.f32.mrf.mxu0
      %v1892 = vadd.f32 0.0, %v1891
      %1893 = vmatmul.bf16.gmra.mxu0 %v932
      %v1894 = vpop.f32.mrf.mxu0
      %v1895 = vadd.f32 0.0, %v1894
      %v1896 = vpop.f32.mrf.mxu0
      %v1897 = vadd.f32 0.0, %v1896
      %1898 = vmatmul.bf16.gmra.mxu0 %v935
      %v1899 = vpop.f32.mrf.mxu0
      %v1900 = vadd.f32 0.0, %v1899
      %v1901 = vpop.f32.mrf.mxu0
      %v1902 = vadd.f32 0.0, %v1901
      %1903 = vmatmul.bf16.gmra.mxu0 %v1390
      %v1904 = vpop.f32.mrf.mxu0
      %v1905 = vadd.f32 0.0, %v1904
      %v1906 = vpop.f32.mrf.mxu0
      %v1907 = vadd.f32 0.0, %v1906
      %1908 = vmatmul.bf16.gmra.mxu0 %v1820
      %v1909 = vpop.f32.mrf.mxu0
      %v1910 = vadd.f32 0.0, %v1909
      %v1911 = vpop.f32.mrf.mxu0
      %v1912 = vadd.f32 0.0, %v1911
      %1913 = vdwg.mxu0
      %v1914 = vadd.f32 %v1780, %v1835
      %v1915 = vadd.f32 %v1781, %v1837
      %v1916 = vadd.f32 %v1782, %v1840
      %v1917 = vadd.f32 %v1783, %v1842
      %v1918 = vadd.f32 %v1784, %v1845
      %v1919 = vadd.f32 %v1785, %v1847
      %v1920 = vadd.f32 %v1786, %v1850
      %v1921 = vadd.f32 %v1787, %v1852
      %v1922 = vadd.f32 %v1788, %v1855
      %v1923 = vadd.f32 %v1789, %v1857
      %v1924 = vadd.f32 %v1790, %v1860
      %v1925 = vadd.f32 %v1791, %v1862
      %v1926 = vadd.f32 %v1792, %v1865
      %v1927 = vadd.f32 %v1793, %v1867
      %v1928 = vadd.f32 %v1794, %v1870
      %v1929 = vadd.f32 %v1795, %v1872
      %v1930 = vadd.f32 %v1796, %v1875
      %v1931 = vadd.f32 %v1797, %v1877
      %v1932 = vadd.f32 %v1798, %v1880
      %v1933 = vadd.f32 %v1799, %v1882
      %v1934 = vadd.f32 %v1800, %v1885
      %v1935 = vadd.f32 %v1801, %v1887
      %v1936 = vadd.f32 %v1802, %v1890
      %v1937 = vadd.f32 %v1803, %v1892
      %v1938 = vadd.f32 %v1804, %v1895
      %v1939 = vadd.f32 %v1805, %v1897
      %v1940 = vadd.f32 %v1806, %v1900
      %v1941 = vadd.f32 %v1807, %v1902
      %v1942 = vadd.f32 %v1808, %v1905
      %v1943 = vadd.f32 %v1809, %v1907
      %v1944 = vadd.f32 %v1810, %v1910
      %v1945 = vadd.f32 %v1811, %v1912
      %v1947 = vshrl.u32 %v223, 16
      %v1949 = vrot.slane %v1947, 4
      %v1950 = vshll.u32 %v223, 16
      %v1952 = vrot.slane %v1950, 5
      %v1953 = vor.u32 %v1949, %v1952
      %v1954 = vrot.slane %v1953, 4
      %v1956 = vshll.u32 %v224, 16
      %v1958 = vrot.slane %v1956, 5
      %v1959 = vsel %vm229, %v1954, %v1958
      %v1960 = vshrl.u32 %v224, 16
      %v1962 = vrot.slane %v1960, 4
      %v1963 = vor.u32 %v1962, %v1958
      %v1964 = vrot.slane %v1963, 4
      %v1966 = vshll.u32 %v225, 16
      %v1968 = vrot.slane %v1966, 5
      %v1969 = vsel %vm229, %v1964, %v1968
      %s1970 = scalar_lea.vmem %s1, 14
      %v1971 = vld [vmem:[%s1970] sm:$0x3]
      %v1972 = vunpack.c.l.b16 %v1959
      %v1973 = vunpack.c.l.b16 %v1969
      %v1974 = vpack.c.b16 %v1973, %v1972
      %v1976 = vsel %vm664, %v1974, 0
      %v1979 = vand.u32 %v1971, %v716
      %1981 = vmatpush.bf16.msra.mxu0 0
      %1982 = vmatpush.bf16.msra.mxu0 0
      %1983 = vmatpush.bf16.msra.mxu0 0
      %1984 = vmatpush.bf16.msra.mxu0 0
      %1985 = vmatpush.bf16.msra.mxu0 0
      %1986 = vmatpush.bf16.msra.mxu0 0
      %1987 = vmatpush.bf16.msra.mxu0 0
      %1988 = vmatpush.bf16.msra.mxu0 %v1979
      %1989 = vmatmul.bf16.gmra.mxu0 %v672
      %v1990 = vpop.f32.mrf.mxu0
      %v1991 = vadd.f32 0.0, %v1990
      %v1992 = vpop.f32.mrf.mxu0
      %v1993 = vadd.f32 0.0, %v1992
      %1994 = vmatmul.bf16.gmra.mxu0 %v675
      %v1995 = vpop.f32.mrf.mxu0
      %v1996 = vadd.f32 0.0, %v1995
      %v1997 = vpop.f32.mrf.mxu0
      %v1998 = vadd.f32 0.0, %v1997
      %1999 = vmatmul.bf16.gmra.mxu0 %v678
      %v2000 = vpop.f32.mrf.mxu0
      %v2001 = vadd.f32 0.0, %v2000
      %v2002 = vpop.f32.mrf.mxu0
      %v2003 = vadd.f32 0.0, %v2002
      %2004 = vmatmul.bf16.gmra.mxu0 %v681
      %v2005 = vpop.f32.mrf.mxu0
      %v2006 = vadd.f32 0.0, %v2005
      %v2007 = vpop.f32.mrf.mxu0
      %v2008 = vadd.f32 0.0, %v2007
      %2009 = vmatmul.bf16.gmra.mxu0 %v684
      %v2010 = vpop.f32.mrf.mxu0
      %v2011 = vadd.f32 0.0, %v2010
      %v2012 = vpop.f32.mrf.mxu0
      %v2013 = vadd.f32 0.0, %v2012
      %2014 = vmatmul.bf16.gmra.mxu0 %v687
      %v2015 = vpop.f32.mrf.mxu0
      %v2016 = vadd.f32 0.0, %v2015
      %v2017 = vpop.f32.mrf.mxu0
      %v2018 = vadd.f32 0.0, %v2017
      %2019 = vmatmul.bf16.gmra.mxu0 %v690
      %v2020 = vpop.f32.mrf.mxu0
      %v2021 = vadd.f32 0.0, %v2020
      %v2022 = vpop.f32.mrf.mxu0
      %v2023 = vadd.f32 0.0, %v2022
      %2024 = vmatmul.bf16.gmra.mxu0 %v693
      %v2025 = vpop.f32.mrf.mxu0
      %v2026 = vadd.f32 0.0, %v2025
      %v2027 = vpop.f32.mrf.mxu0
      %v2028 = vadd.f32 0.0, %v2027
      %2029 = vmatmul.bf16.gmra.mxu0 %v696
      %v2030 = vpop.f32.mrf.mxu0
      %v2031 = vadd.f32 0.0, %v2030
      %v2032 = vpop.f32.mrf.mxu0
      %v2033 = vadd.f32 0.0, %v2032
      %2034 = vmatmul.bf16.gmra.mxu0 %v699
      %v2035 = vpop.f32.mrf.mxu0
      %v2036 = vadd.f32 0.0, %v2035
      %v2037 = vpop.f32.mrf.mxu0
      %v2038 = vadd.f32 0.0, %v2037
      %2039 = vmatmul.bf16.gmra.mxu0 %v702
      %v2040 = vpop.f32.mrf.mxu0
      %v2041 = vadd.f32 0.0, %v2040
      %v2042 = vpop.f32.mrf.mxu0
      %v2043 = vadd.f32 0.0, %v2042
      %2044 = vmatmul.bf16.gmra.mxu0 %v705
      %v2045 = vpop.f32.mrf.mxu0
      %v2046 = vadd.f32 0.0, %v2045
      %v2047 = vpop.f32.mrf.mxu0
      %v2048 = vadd.f32 0.0, %v2047
      %2049 = vmatmul.bf16.gmra.mxu0 %v708
      %v2050 = vpop.f32.mrf.mxu0
      %v2051 = vadd.f32 0.0, %v2050
      %v2052 = vpop.f32.mrf.mxu0
      %v2053 = vadd.f32 0.0, %v2052
      %2054 = vmatmul.bf16.gmra.mxu0 %v711
      %v2055 = vpop.f32.mrf.mxu0
      %v2056 = vadd.f32 0.0, %v2055
      %v2057 = vpop.f32.mrf.mxu0
      %v2058 = vadd.f32 0.0, %v2057
      %2059 = vmatmul.bf16.gmra.mxu0 %v1546
      %v2060 = vpop.f32.mrf.mxu0
      %v2061 = vadd.f32 0.0, %v2060
      %v2062 = vpop.f32.mrf.mxu0
      %v2063 = vadd.f32 0.0, %v2062
      %2064 = vmatmul.bf16.gmra.mxu0 %v1976
      %v2065 = vpop.f32.mrf.mxu0
      %v2066 = vadd.f32 0.0, %v2065
      %v2067 = vpop.f32.mrf.mxu0
      %v2068 = vadd.f32 0.0, %v2067
      %2069 = vdwg.mxu0
      %v2070 = vadd.f32 %v1914, %v1991
      %v2071 = vadd.f32 %v1915, %v1993
      %v2072 = vadd.f32 %v1916, %v1996
      %v2073 = vadd.f32 %v1917, %v1998
      %v2074 = vadd.f32 %v1918, %v2001
      %v2075 = vadd.f32 %v1919, %v2003
      %v2076 = vadd.f32 %v1920, %v2006
      %v2077 = vadd.f32 %v1921, %v2008
      %v2078 = vadd.f32 %v1922, %v2011
      %v2079 = vadd.f32 %v1923, %v2013
      %v2080 = vadd.f32 %v1924, %v2016
      %v2081 = vadd.f32 %v1925, %v2018
      %v2082 = vadd.f32 %v1926, %v2021
      %v2083 = vadd.f32 %v1927, %v2023
      %v2084 = vadd.f32 %v1928, %v2026
      %v2085 = vadd.f32 %v1929, %v2028
      %v2086 = vadd.f32 %v1930, %v2031
      %v2087 = vadd.f32 %v1931, %v2033
      %v2088 = vadd.f32 %v1932, %v2036
      %v2089 = vadd.f32 %v1933, %v2038
      %v2090 = vadd.f32 %v1934, %v2041
      %v2091 = vadd.f32 %v1935, %v2043
      %v2092 = vadd.f32 %v1936, %v2046
      %v2093 = vadd.f32 %v1937, %v2048
      %v2094 = vadd.f32 %v1938, %v2051
      %v2095 = vadd.f32 %v1939, %v2053
      %v2096 = vadd.f32 %v1940, %v2056
      %v2097 = vadd.f32 %v1941, %v2058
      %v2098 = vadd.f32 %v1942, %v2061
      %v2099 = vadd.f32 %v1943, %v2063
      %v2100 = vadd.f32 %v1944, %v2066
      %v2101 = vadd.f32 %v1945, %v2068
      %v2103 = vrot.slane %v223, 5
      %v2104 = vrot.slane %v2103, 4
      %v2105 = vrot.slane %v224, 5
      %v2106 = vsel %vm1047, %v2104, %v2105
      %v2107 = vrot.slane %v2105, 4
      %v2108 = vrot.slane %v225, 5
      %v2109 = vsel %vm1047, %v2107, %v2108
      %s2110 = scalar_lea.vmem %s1, 16
      %v2111 = vld [vmem:[%s2110] sm:$0x3]
      %v2112 = vunpack.c.l.b16 %v2106
      %v2113 = vunpack.c.l.b16 %v2109
      %v2114 = vpack.c.b16 %v2113, %v2112
      %v2116 = vsel %vm664, %v2114, 0
      %v2119 = vand.u32 %v2111, %v716
      %2121 = vmatpush.bf16.msra.mxu0 0
      %2122 = vmatpush.bf16.msra.mxu0 0
      %2123 = vmatpush.bf16.msra.mxu0 0
      %2124 = vmatpush.bf16.msra.mxu0 0
      %2125 = vmatpush.bf16.msra.mxu0 0
      %2126 = vmatpush.bf16.msra.mxu0 0
      %2127 = vmatpush.bf16.msra.mxu0 0
      %2128 = vmatpush.bf16.msra.mxu0 %v2119
      %2129 = vmatmul.bf16.gmra.mxu0 %v1217
      %v2130 = vpop.f32.mrf.mxu0
      %v2131 = vadd.f32 0.0, %v2130
      %v2132 = vpop.f32.mrf.mxu0
      %v2133 = vadd.f32 0.0, %v2132
      %2134 = vmatmul.bf16.gmra.mxu0 %v1220
      %v2135 = vpop.f32.mrf.mxu0
      %v2136 = vadd.f32 0.0, %v2135
      %v2137 = vpop.f32.mrf.mxu0
      %v2138 = vadd.f32 0.0, %v2137
      %2139 = vmatmul.bf16.gmra.mxu0 %v1223
      %v2140 = vpop.f32.mrf.mxu0
      %v2141 = vadd.f32 0.0, %v2140
      %v2142 = vpop.f32.mrf.mxu0
      %v2143 = vadd.f32 0.0, %v2142
      %2144 = vmatmul.bf16.gmra.mxu0 %v1226
      %v2145 = vpop.f32.mrf.mxu0
      %v2146 = vadd.f32 0.0, %v2145
      %v2147 = vpop.f32.mrf.mxu0
      %v2148 = vadd.f32 0.0, %v2147
      %2149 = vmatmul.bf16.gmra.mxu0 %v1229
      %v2150 = vpop.f32.mrf.mxu0
      %v2151 = vadd.f32 0.0, %v2150
      %v2152 = vpop.f32.mrf.mxu0
      %v2153 = vadd.f32 0.0, %v2152
      %2154 = vmatmul.bf16.gmra.mxu0 %v1232
      %v2155 = vpop.f32.mrf.mxu0
      %v2156 = vadd.f32 0.0, %v2155
      %v2157 = vpop.f32.mrf.mxu0
      %v2158 = vadd.f32 0.0, %v2157
      %2159 = vmatmul.bf16.gmra.mxu0 %v1235
      %v2160 = vpop.f32.mrf.mxu0
      %v2161 = vadd.f32 0.0, %v2160
      %v2162 = vpop.f32.mrf.mxu0
      %v2163 = vadd.f32 0.0, %v2162
      %2164 = vmatmul.bf16.gmra.mxu0 %v1238
      %v2165 = vpop.f32.mrf.mxu0
      %v2166 = vadd.f32 0.0, %v2165
      %v2167 = vpop.f32.mrf.mxu0
      %v2168 = vadd.f32 0.0, %v2167
      %2169 = vmatmul.bf16.gmra.mxu0 %v1241
      %v2170 = vpop.f32.mrf.mxu0
      %v2171 = vadd.f32 0.0, %v2170
      %v2172 = vpop.f32.mrf.mxu0
      %v2173 = vadd.f32 0.0, %v2172
      %2174 = vmatmul.bf16.gmra.mxu0 %v1244
      %v2175 = vpop.f32.mrf.mxu0
      %v2176 = vadd.f32 0.0, %v2175
      %v2177 = vpop.f32.mrf.mxu0
      %v2178 = vadd.f32 0.0, %v2177
      %2179 = vmatmul.bf16.gmra.mxu0 %v1247
      %v2180 = vpop.f32.mrf.mxu0
      %v2181 = vadd.f32 0.0, %v2180
      %v2182 = vpop.f32.mrf.mxu0
      %v2183 = vadd.f32 0.0, %v2182
      %2184 = vmatmul.bf16.gmra.mxu0 %v1250
      %v2185 = vpop.f32.mrf.mxu0
      %v2186 = vadd.f32 0.0, %v2185
      %v2187 = vpop.f32.mrf.mxu0
      %v2188 = vadd.f32 0.0, %v2187
      %2189 = vmatmul.bf16.gmra.mxu0 %v1253
      %v2190 = vpop.f32.mrf.mxu0
      %v2191 = vadd.f32 0.0, %v2190
      %v2192 = vpop.f32.mrf.mxu0
      %v2193 = vadd.f32 0.0, %v2192
      %2194 = vmatmul.bf16.gmra.mxu0 %v1256
      %v2195 = vpop.f32.mrf.mxu0
      %v2196 = vadd.f32 0.0, %v2195
      %v2197 = vpop.f32.mrf.mxu0
      %v2198 = vadd.f32 0.0, %v2197
      %2199 = vmatmul.bf16.gmra.mxu0 %v1686
      %v2200 = vpop.f32.mrf.mxu0
      %v2201 = vadd.f32 0.0, %v2200
      %v2202 = vpop.f32.mrf.mxu0
      %v2203 = vadd.f32 0.0, %v2202
      %2204 = vmatmul.bf16.gmra.mxu0 %v2116
      %v2205 = vpop.f32.mrf.mxu0
      %v2206 = vadd.f32 0.0, %v2205
      %v2207 = vpop.f32.mrf.mxu0
      %v2208 = vadd.f32 0.0, %v2207
      %2209 = vdwg.mxu0
      %v2210 = vadd.f32 %v2070, %v2131
      %v2211 = vadd.f32 %v2071, %v2133
      %v2212 = vadd.f32 %v2072, %v2136
      %v2213 = vadd.f32 %v2073, %v2138
      %v2214 = vadd.f32 %v2074, %v2141
      %v2215 = vadd.f32 %v2075, %v2143
      %v2216 = vadd.f32 %v2076, %v2146
      %v2217 = vadd.f32 %v2077, %v2148
      %v2218 = vadd.f32 %v2078, %v2151
      %v2219 = vadd.f32 %v2079, %v2153
      %v2220 = vadd.f32 %v2080, %v2156
      %v2221 = vadd.f32 %v2081, %v2158
      %v2222 = vadd.f32 %v2082, %v2161
      %v2223 = vadd.f32 %v2083, %v2163
      %v2224 = vadd.f32 %v2084, %v2166
      %v2225 = vadd.f32 %v2085, %v2168
      %v2226 = vadd.f32 %v2086, %v2171
      %v2227 = vadd.f32 %v2087, %v2173
      %v2228 = vadd.f32 %v2088, %v2176
      %v2229 = vadd.f32 %v2089, %v2178
      %v2230 = vadd.f32 %v2090, %v2181
      %v2231 = vadd.f32 %v2091, %v2183
      %v2232 = vadd.f32 %v2092, %v2186
      %v2233 = vadd.f32 %v2093, %v2188
      %v2234 = vadd.f32 %v2094, %v2191
      %v2235 = vadd.f32 %v2095, %v2193
      %v2236 = vadd.f32 %v2096, %v2196
      %v2237 = vadd.f32 %v2097, %v2198
      %v2238 = vadd.f32 %v2098, %v2201
      %v2239 = vadd.f32 %v2099, %v2203
      %v2240 = vadd.f32 %v2100, %v2206
      %v2241 = vadd.f32 %v2101, %v2208
      %v2242 = vld [vmem:[%s2] sm:$0x1]
      %v2244 = vperm.slane %v2242, 0
      %v2246 = vadd.f32 %v2210, %v2244
      %v2247 = vadd.f32 %v2211, %v2244
      %v2248 = vadd.f32 %v2212, %v2244
      %v2249 = vadd.f32 %v2213, %v2244
      %v2250 = vadd.f32 %v2214, %v2244
      %v2251 = vadd.f32 %v2215, %v2244
      %v2252 = vadd.f32 %v2216, %v2244
      %v2253 = vadd.f32 %v2217, %v2244
      %v2254 = vadd.f32 %v2218, %v2244
      %v2255 = vadd.f32 %v2219, %v2244
      %v2256 = vadd.f32 %v2220, %v2244
      %v2257 = vadd.f32 %v2221, %v2244
      %v2258 = vadd.f32 %v2222, %v2244
      %v2259 = vadd.f32 %v2223, %v2244
      %v2260 = vadd.f32 %v2224, %v2244
      %v2261 = vadd.f32 %v2225, %v2244
      %v2262 = vadd.f32 %v2226, %v2244
      %v2263 = vadd.f32 %v2227, %v2244
      %v2264 = vadd.f32 %v2228, %v2244
      %v2265 = vadd.f32 %v2229, %v2244
      %v2266 = vadd.f32 %v2230, %v2244
      %v2267 = vadd.f32 %v2231, %v2244
      %v2268 = vadd.f32 %v2232, %v2244
      %v2269 = vadd.f32 %v2233, %v2244
      %v2270 = vadd.f32 %v2234, %v2244
      %v2271 = vadd.f32 %v2235, %v2244
      %v2272 = vadd.f32 %v2236, %v2244
      %v2273 = vadd.f32 %v2237, %v2244
      %v2274 = vadd.f32 %v2238, %v2244
      %v2275 = vadd.f32 %v2239, %v2244
      %v2276 = vadd.f32 %v2240, %v2244
      %v2277 = vadd.f32 %v2241, %v2244
      %vm2278 = vcmp.ge.f32.partialorder %v2246, 0.0
      %vm2279 = vcmp.ge.f32.partialorder %v2247, 0.0
      %vm2280 = vcmp.ge.f32.partialorder %v2248, 0.0
      %vm2281 = vcmp.ge.f32.partialorder %v2249, 0.0
      %vm2282 = vcmp.ge.f32.partialorder %v2250, 0.0
      %vm2283 = vcmp.ge.f32.partialorder %v2251, 0.0
      %vm2284 = vcmp.ge.f32.partialorder %v2252, 0.0
      %vm2285 = vcmp.ge.f32.partialorder %v2253, 0.0
      %vm2286 = vcmp.ge.f32.partialorder %v2254, 0.0
      %vm2287 = vcmp.ge.f32.partialorder %v2255, 0.0
      %vm2288 = vcmp.ge.f32.partialorder %v2256, 0.0
      %vm2289 = vcmp.ge.f32.partialorder %v2257, 0.0
      %vm2290 = vcmp.ge.f32.partialorder %v2258, 0.0
      %vm2291 = vcmp.ge.f32.partialorder %v2259, 0.0
      %vm2292 = vcmp.ge.f32.partialorder %v2260, 0.0
      %vm2293 = vcmp.ge.f32.partialorder %v2261, 0.0
      %vm2294 = vcmp.ge.f32.partialorder %v2262, 0.0
      %vm2295 = vcmp.ge.f32.partialorder %v2263, 0.0
      %vm2296 = vcmp.ge.f32.partialorder %v2264, 0.0
      %vm2297 = vcmp.ge.f32.partialorder %v2265, 0.0
      %vm2298 = vcmp.ge.f32.partialorder %v2266, 0.0
      %vm2299 = vcmp.ge.f32.partialorder %v2267, 0.0
      %vm2300 = vcmp.ge.f32.partialorder %v2268, 0.0
      %vm2301 = vcmp.ge.f32.partialorder %v2269, 0.0
      %vm2302 = vcmp.ge.f32.partialorder %v2270, 0.0
      %vm2303 = vcmp.ge.f32.partialorder %v2271, 0.0
      %vm2304 = vcmp.ge.f32.partialorder %v2272, 0.0
      %vm2305 = vcmp.ge.f32.partialorder %v2273, 0.0
      %vm2306 = vcmp.ge.f32.partialorder %v2274, 0.0
      %vm2307 = vcmp.ge.f32.partialorder %v2275, 0.0
      %vm2308 = vcmp.ge.f32.partialorder %v2276, 0.0
      %vm2309 = vcmp.ge.f32.partialorder %v2277, 0.0
      %v2310 = vmul.f32 %v2246, 0.1
      %v2311 = vmul.f32 %v2247, 0.1
      %v2312 = vmul.f32 %v2248, 0.1
      %v2313 = vmul.f32 %v2249, 0.1
      %v2314 = vmul.f32 %v2250, 0.1
      %v2315 = vmul.f32 %v2251, 0.1
      %v2316 = vmul.f32 %v2252, 0.1
      %v2317 = vmul.f32 %v2253, 0.1
      %v2318 = vmul.f32 %v2254, 0.1
      %v2319 = vmul.f32 %v2255, 0.1
      %v2320 = vmul.f32 %v2256, 0.1
      %v2321 = vmul.f32 %v2257, 0.1
      %v2322 = vmul.f32 %v2258, 0.1
      %v2323 = vmul.f32 %v2259, 0.1
      %v2324 = vmul.f32 %v2260, 0.1
      %v2325 = vmul.f32 %v2261, 0.1
      %v2326 = vmul.f32 %v2262, 0.1
      %v2327 = vmul.f32 %v2263, 0.1
      %v2328 = vmul.f32 %v2264, 0.1
      %v2329 = vmul.f32 %v2265, 0.1
      %v2330 = vmul.f32 %v2266, 0.1
      %v2331 = vmul.f32 %v2267, 0.1
      %v2332 = vmul.f32 %v2268, 0.1
      %v2333 = vmul.f32 %v2269, 0.1
      %v2334 = vmul.f32 %v2270, 0.1
      %v2335 = vmul.f32 %v2271, 0.1
      %v2336 = vmul.f32 %v2272, 0.1
      %v2337 = vmul.f32 %v2273, 0.1
      %v2338 = vmul.f32 %v2274, 0.1
      %v2339 = vmul.f32 %v2275, 0.1
      %v2340 = vmul.f32 %v2276, 0.1
      %v2341 = vmul.f32 %v2277, 0.1
      %v2342 = vsel %vm2278, %v2246, %v2310
      %v2343 = vsel %vm2279, %v2247, %v2311
      %v2344 = vsel %vm2280, %v2248, %v2312
      %v2345 = vsel %vm2281, %v2249, %v2313
      %v2346 = vsel %vm2282, %v2250, %v2314
      %v2347 = vsel %vm2283, %v2251, %v2315
      %v2348 = vsel %vm2284, %v2252, %v2316
      %v2349 = vsel %vm2285, %v2253, %v2317
      %v2350 = vsel %vm2286, %v2254, %v2318
      %v2351 = vsel %vm2287, %v2255, %v2319
      %v2352 = vsel %vm2288, %v2256, %v2320
      %v2353 = vsel %vm2289, %v2257, %v2321
      %v2354 = vsel %vm2290, %v2258, %v2322
      %v2355 = vsel %vm2291, %v2259, %v2323
      %v2356 = vsel %vm2292, %v2260, %v2324
      %v2357 = vsel %vm2293, %v2261, %v2325
      %v2358 = vsel %vm2294, %v2262, %v2326
      %v2359 = vsel %vm2295, %v2263, %v2327
      %v2360 = vsel %vm2296, %v2264, %v2328
      %v2361 = vsel %vm2297, %v2265, %v2329
      %v2362 = vsel %vm2298, %v2266, %v2330
      %v2363 = vsel %vm2299, %v2267, %v2331
      %v2364 = vsel %vm2300, %v2268, %v2332
      %v2365 = vsel %vm2301, %v2269, %v2333
      %v2366 = vsel %vm2302, %v2270, %v2334
      %v2367 = vsel %vm2303, %v2271, %v2335
      %v2368 = vsel %vm2304, %v2272, %v2336
      %v2369 = vsel %vm2305, %v2273, %v2337
      %v2370 = vsel %vm2306, %v2274, %v2338
      %v2371 = vsel %vm2307, %v2275, %v2339
      %v2372 = vsel %vm2308, %v2276, %v2340
      %v2373 = vsel %vm2309, %v2277, %v2341
      %v2374 = vpack.c.bf16 %v2342, %v2342
      %v2375 = vpack.c.bf16 %v2343, %v2343
      %v2376 = vpack.c.bf16 %v2344, %v2344
      %v2377 = vpack.c.bf16 %v2345, %v2345
      %v2378 = vpack.c.bf16 %v2346, %v2346
      %v2379 = vpack.c.bf16 %v2347, %v2347
      %v2380 = vpack.c.bf16 %v2348, %v2348
      %v2381 = vpack.c.bf16 %v2349, %v2349
      %v2382 = vpack.c.bf16 %v2350, %v2350
      %v2383 = vpack.c.bf16 %v2351, %v2351
      %v2384 = vpack.c.bf16 %v2352, %v2352
      %v2385 = vpack.c.bf16 %v2353, %v2353
      %v2386 = vpack.c.bf16 %v2354, %v2354
      %v2387 = vpack.c.bf16 %v2355, %v2355
      %v2388 = vpack.c.bf16 %v2356, %v2356
      %v2389 = vpack.c.bf16 %v2357, %v2357
      %v2390 = vpack.c.bf16 %v2358, %v2358
      %v2391 = vpack.c.bf16 %v2359, %v2359
      %v2392 = vpack.c.bf16 %v2360, %v2360
      %v2393 = vpack.c.bf16 %v2361, %v2361
      %v2394 = vpack.c.bf16 %v2362, %v2362
      %v2395 = vpack.c.bf16 %v2363, %v2363
      %v2396 = vpack.c.bf16 %v2364, %v2364
      %v2397 = vpack.c.bf16 %v2365, %v2365
      %v2398 = vpack.c.bf16 %v2366, %v2366
      %v2399 = vpack.c.bf16 %v2367, %v2367
      %v2400 = vpack.c.bf16 %v2368, %v2368
      %v2401 = vpack.c.bf16 %v2369, %v2369
      %v2402 = vpack.c.bf16 %v2370, %v2370
      %v2403 = vpack.c.bf16 %v2371, %v2371
      %v2404 = vpack.c.bf16 %v2372, %v2372
      %v2405 = vpack.c.bf16 %v2373, %v2373
      %vm2406 = vcmask 257024
      %2407 = vst.msk [vmem:[%s170] sm:$0xf] %vm2406, %v2374
      %2408 = vst.msk [vmem:[%s170 + $0x4] sm:$0xf] %vm2406, %v2375
      %2409 = vst.msk [vmem:[%s170 + $0x8] sm:$0xf] %vm2406, %v2376
      %2410 = vst.msk [vmem:[%s170 + $0xc] sm:$0xf] %vm2406, %v2377
      %2411 = vst.msk [vmem:[%s170 + $0x10] sm:$0xf] %vm2406, %v2378
      %2412 = vst.msk [vmem:[%s170 + $0x14] sm:$0xf] %vm2406, %v2379
      %2413 = vst.msk [vmem:[%s170 + $0x18] sm:$0xf] %vm2406, %v2380
      %2414 = vst.msk [vmem:[%s170 + $0x1c] sm:$0xf] %vm2406, %v2381
      %2415 = vst.msk [vmem:[%s170 + $0x20] sm:$0xf] %vm2406, %v2382
      %2416 = vst.msk [vmem:[%s170 + $0x24] sm:$0xf] %vm2406, %v2383
      %2417 = vst.msk [vmem:[%s170 + $0x28] sm:$0xf] %vm2406, %v2384
      %2418 = vst.msk [vmem:[%s170 + $0x2c] sm:$0xf] %vm2406, %v2385
      %2419 = vst.msk [vmem:[%s170 + $0x30] sm:$0xf] %vm2406, %v2386
      %2420 = vst.msk [vmem:[%s170 + $0x34] sm:$0xf] %vm2406, %v2387
      %2421 = vst.msk [vmem:[%s170 + $0x38] sm:$0xf] %vm2406, %v2388
      %2422 = vst.msk [vmem:[%s170 + $0x3c] sm:$0xf] %vm2406, %v2389
      %2423 = vst.msk [vmem:[%s170 + $0x40] sm:$0xf] %vm2406, %v2390
      %2424 = vst.msk [vmem:[%s170 + $0x44] sm:$0xf] %vm2406, %v2391
      %2425 = vst.msk [vmem:[%s170 + $0x48] sm:$0xf] %vm2406, %v2392
      %2426 = vst.msk [vmem:[%s170 + $0x4c] sm:$0xf] %vm2406, %v2393
      %2427 = vst.msk [vmem:[%s170 + $0x50] sm:$0xf] %vm2406, %v2394
      %2428 = vst.msk [vmem:[%s170 + $0x54] sm:$0xf] %vm2406, %v2395
      %2429 = vst.msk [vmem:[%s170 + $0x58] sm:$0xf] %vm2406, %v2396
      %2430 = vst.msk [vmem:[%s170 + $0x5c] sm:$0xf] %vm2406, %v2397
      %2431 = vst.msk [vmem:[%s170 + $0x60] sm:$0xf] %vm2406, %v2398
      %2432 = vst.msk [vmem:[%s170 + $0x64] sm:$0xf] %vm2406, %v2399
      %2433 = vst.msk [vmem:[%s170 + $0x68] sm:$0xf] %vm2406, %v2400
      %2434 = vst.msk [vmem:[%s170 + $0x6c] sm:$0xf] %vm2406, %v2401
      %2435 = vst.msk [vmem:[%s170 + $0x70] sm:$0xf] %vm2406, %v2402
      %2436 = vst.msk [vmem:[%s170 + $0x74] sm:$0xf] %vm2406, %v2403
      %2437 = vst.msk [vmem:[%s170 + $0x78] sm:$0xf] %vm2406, %v2404
      %2438 = vst.msk [vmem:[%s170 + $0x7c] sm:$0xf] %vm2406, %v2405
      %p2439 = scmp.lt.s32.totalorder %s14, 1
      %s2440 = scalar_select %p2439, %s14, 1
      %s2441 = smul.addr %s2440, 32
      %s2442 = smul.addr %s2441, 4
      %s2443 = scalar_lea.vmem %s3, %s2442
      // Predicated region
      $region33: #{_lambda_.6} parent=31 // pred_check
        %p2444 = pneg %p100
      $region34: #{_lambda_.6} parent=31 // pred_check_branch
        %2446 = sbr.rel (%p2444) target = $region36
      $region35: #{_lambda_.6} parent=31 // pred_region
        _
      $region36: #{_lambda_.6} parent=31 // pred_fallthru
        _
    $region32: #{_lambda_.6} parent=5 // pred_fallthru
      _
    %p2447 = scmp.le.s32.totalorder 2, %s9
    // Predicated region
    $region37: #{_lambda_.6} parent=5 // pred_check
      %p2448 = pneg %p2447
    $region38: #{_lambda_.6} parent=5 // pred_check_branch
      %2450 = sbr.rel (%p2448) target = $region40
    $region39: #{_lambda_.6} parent=5 // pred_region
      %s2451 = ssub.s32 %s9, 2
      // Predicated region
      $region41: #{_lambda_.6} parent=39 // pred_check
        %p2452 = pneg %p106
      $region42: #{_lambda_.6} parent=39 // pred_check_branch
        %2454 = sbr.rel (%p2452) target = $region44
      $region43: #{_lambda_.6} parent=39 // pred_region
        %p2455 = scmp.lt.s32.totalorder %s15, 1
        %s2456 = scalar_select %p2455, %s15, 1
        %s2457 = smul.addr %s2456, 32
        %s2458 = smul.addr %s2457, 4
        %s2459 = scalar_lea.vmem %s3, %s2458
      $region44: #{_lambda_.6} parent=39 // pred_fallthru
        _
    $region40: #{_lambda_.6} parent=5 // pred_fallthru
      _
  $region6: #{_lambda_.6} parent=0 // loop_footer
    %s13 = sadd.s32 1, %s9
  $region7: #{_lambda_.6} parent=0 // loop_footer_branch
    %8 = sbr.rel target = $region3
  $region8: #{_lambda_.6} parent=0 // loop_exit
    _

// kernel: _lambda_.7
$region0: #{_lambda_.7}
  #allocation0 [shape = 'u32[]', space=smem, size = 0x4, offset = 0x4, fixed_abs, tag = 'smem constant byte address 0x4 - core index']
  #allocation1 [shape = 'u32[72,128]{1,0:T(1,128)}', space=vmem, size = 0x9000, scoped, tag = 'internal scratch']
  #allocation2 [shape = 'f32[1,1]{1,0:T(1,128)S(1)}', space=vmem, size = 0x200, scoped, tag = 'scoped memory for _lambda_.7']
  %s0 = inlined_call_operand.vmem [shape: bf16[2,64,288], index: 0, kind: input, shape index: {}]
  %s1 = inlined_call_operand.vmem [shape: bf16[288,32], index: 1, kind: input, shape index: {}]
  %s2 = inlined_call_operand.vmem [shape: f32[1,32], index: 2, kind: input, shape index: {}]
  %s3 = inlined_call_operand.vmem [shape: f32[1,32], index: 3, kind: input, shape index: {}]
  %s4 = inlined_call_operand.<no memory space> [shape: f32[1,1], index: 4, kind: input, shape index: {}]
  %s5 = inlined_call_operand.vmem [shape: f32[2,1,128], index: 5, kind: output, shape index: {}]
  %s6 = sld [smem:[#allocation0]]
  $region53: #{_lambda_.7} parent=0
    _
  %s8 = ssub.s32 1, %s6
  %s9 = scalar_select 0, %s8, %s6
  %v10 = vstv %s4
  %11 = vst [vmem:[#allocation2] sm:$0x1] %v10
  loop: start=0, step=1, limit=4
  $region2: #{_lambda_.7} parent=0 // loop_pre_header
    _
  $region3: #{_lambda_.7} parent=0 // loop_header
    %s13 = sphi 0, %s17
    %p14 = scmp.ge.s32.totalorder %s13, 4
    %s23 = sphi 0, %s25
    %s26 = sphi 0, %s23
    %s27 = sphi 0, %s26
    %s43 = sphi 0, %s27
    %s47 = sphi 0, %s47
    %s49 = sphi 0, %s47
    %s50 = sphi 0, %s49
    %s64 = sphi 0, %s50
    %s68 = sphi 0, %s68
    %s70 = sphi 0, %s68
    %s71 = sphi 0, %s70
    %s85 = sphi 0, %s71
    %s89 = sphi 0, %s89
    %s91 = sphi 0, %s89
    %s92 = sphi 0, %s91
    %s106 = sphi 0, %s92
    %s110 = sphi 0, %s110
    %s112 = sphi 0, %s110
    %s113 = sphi 0, %s112
    %s127 = sphi 0, %s113
    %s133 = sphi 0, %s135
    %s136 = sphi 0, %s133
    %s137 = sphi 0, %s136
    %s153 = sphi 0, %s137
  $region4: #{_lambda_.7} parent=0 // loop_header_branch
    %16 = sbr.rel (%p14) target = $region8
  $region5: #{_lambda_.7} parent=0 // loop_body
    %s18 = ssub.s32 %s13, 1
    %s19 = ssub.s32 %s13, 2
    %s20 = sadd.s32 %s13, 1
    %s21 = ssub.s32 %s13, %s20
    %p22 = scmp.eq.s32.totalorder %s21, 0
    %s24 = sadd.s32 %s23, 1
    %s25 = scalar_select %p22, %s23, %s24
    %p28 = pneg %p22
    %p29 = scmp.eq.s32.totalorder %s13, 1
    %p30 = por %p28, %p29
    %p31 = scmp.ne.s32.totalorder %s23, %s26
    %p32 = scmp.eq.s32.totalorder %s13, 0
    %p33 = por %p31, %p32
    %p34 = scmp.ne.s32.totalorder %s23, %s26
    %p35 = scmp.eq.s32.totalorder %s18, 1
    %p36 = por %p34, %p35
    %p37 = scmp.ne.s32.totalorder %s26, %s27
    %p38 = scmp.eq.s32.totalorder %s18, 0
    %p39 = por %p37, %p38
    %p40 = scmp.ne.s32.totalorder %s26, %s27
    %p41 = scmp.eq.s32.totalorder %s19, 1
    %p42 = por %p40, %p41
    %p44 = scmp.ne.s32.totalorder %s27, %s43
    %p45 = scmp.eq.s32.totalorder %s19, 0
    %p46 = por %p44, %p45
    %s48 = sadd.s32 %s47, 1
    %p51 = scmp.eq.s32.totalorder %s13, 1
    %p52 = scmp.ne.s32.totalorder %s47, %s49
    %p53 = scmp.eq.s32.totalorder %s13, 0
    %p54 = por %p52, %p53
    %p55 = scmp.ne.s32.totalorder %s47, %s49
    %p56 = scmp.eq.s32.totalorder %s18, 1
    %p57 = por %p55, %p56
    %p58 = scmp.ne.s32.totalorder %s49, %s50
    %p59 = scmp.eq.s32.totalorder %s18, 0
    %p60 = por %p58, %p59
    %p61 = scmp.ne.s32.totalorder %s49, %s50
    %p62 = scmp.eq.s32.totalorder %s19, 1
    %p63 = por %p61, %p62
    %p65 = scmp.ne.s32.totalorder %s50, %s64
    %p66 = scmp.eq.s32.totalorder %s19, 0
    %p67 = por %p65, %p66
    %s69 = sadd.s32 %s68, 1
    %p72 = scmp.eq.s32.totalorder %s13, 1
    %p73 = scmp.ne.s32.totalorder %s68, %s70
    %p74 = scmp.eq.s32.totalorder %s13, 0
    %p75 = por %p73, %p74
    %p76 = scmp.ne.s32.totalorder %s68, %s70
    %p77 = scmp.eq.s32.totalorder %s18, 1
    %p78 = por %p76, %p77
    %p79 = scmp.ne.s32.totalorder %s70, %s71
    %p80 = scmp.eq.s32.totalorder %s18, 0
    %p81 = por %p79, %p80
    %p82 = scmp.ne.s32.totalorder %s70, %s71
    %p83 = scmp.eq.s32.totalorder %s19, 1
    %p84 = por %p82, %p83
    %p86 = scmp.ne.s32.totalorder %s71, %s85
    %p87 = scmp.eq.s32.totalorder %s19, 0
    %p88 = por %p86, %p87
    %s90 = sadd.s32 %s89, 1
    %p93 = scmp.eq.s32.totalorder %s13, 1
    %p94 = scmp.ne.s32.totalorder %s89, %s91
    %p95 = scmp.eq.s32.totalorder %s13, 0
    %p96 = por %p94, %p95
    %p97 = scmp.ne.s32.totalorder %s89, %s91
    %p98 = scmp.eq.s32.totalorder %s18, 1
    %p99 = por %p97, %p98
    %p100 = scmp.ne.s32.totalorder %s91, %s92
    %p101 = scmp.eq.s32.totalorder %s18, 0
    %p102 = por %p100, %p101
    %p103 = scmp.ne.s32.totalorder %s91, %s92
    %p104 = scmp.eq.s32.totalorder %s19, 1
    %p105 = por %p103, %p104
    %p107 = scmp.ne.s32.totalorder %s92, %s106
    %p108 = scmp.eq.s32.totalorder %s19, 0
    %p109 = por %p107, %p108
    %s111 = sadd.s32 %s110, 1
    %p114 = scmp.eq.s32.totalorder %s13, 1
    %p115 = scmp.ne.s32.totalorder %s110, %s112
    %p116 = scmp.eq.s32.totalorder %s13, 0
    %p117 = por %p115, %p116
    %p118 = scmp.ne.s32.totalorder %s110, %s112
    %p119 = scmp.eq.s32.totalorder %s18, 1
    %p120 = por %p118, %p119
    %p121 = scmp.ne.s32.totalorder %s112, %s113
    %p122 = scmp.eq.s32.totalorder %s18, 0
    %p123 = por %p121, %p122
    %p124 = scmp.ne.s32.totalorder %s112, %s113
    %p125 = scmp.eq.s32.totalorder %s19, 1
    %p126 = por %p124, %p125
    %p128 = scmp.ne.s32.totalorder %s113, %s127
    %p129 = scmp.eq.s32.totalorder %s19, 0
    %p130 = por %p128, %p129
    %s131 = ssub.s32 %s13, %s20
    %p132 = scmp.eq.s32.totalorder %s131, 0
    %s134 = sadd.s32 %s133, 1
    %s135 = scalar_select %p132, %s133, %s134
    %p138 = pneg %p132
    %p139 = scmp.eq.s32.totalorder %s13, 1
    %p140 = por %p138, %p139
    %p141 = scmp.ne.s32.totalorder %s133, %s136
    %p142 = scmp.eq.s32.totalorder %s13, 0
    %p143 = por %p141, %p142
    %p144 = scmp.ne.s32.totalorder %s133, %s136
    %p145 = scmp.eq.s32.totalorder %s18, 1
    %p146 = por %p144, %p145
    %p147 = scmp.ne.s32.totalorder %s136, %s137
    %p148 = scmp.eq.s32.totalorder %s18, 0
    %p149 = por %p147, %p148
    %p150 = scmp.ne.s32.totalorder %s136, %s137
    %p151 = scmp.eq.s32.totalorder %s19, 1
    %p152 = por %p150, %p151
    %p154 = scmp.ne.s32.totalorder %s137, %s153
    %p155 = scmp.eq.s32.totalorder %s19, 0
    %p156 = por %p154, %p155
    %p157 = scmp.le.s32.totalorder 1, %s13
    %p158 = scmp.lt.s32.totalorder %s13, 3
    %p159 = pnand %p157, %p158
    %p160 = pneg %p159
    // Predicated region
    $region9: #{_lambda_.7} parent=5 // pred_check
      _
    $region10: #{_lambda_.7} parent=5 // pred_check_branch
      %162 = sbr.rel (%p159) target = $region12
    $region11: #{_lambda_.7} parent=5 // pred_region
      %s163 = ssub.s32 %s13, 1
      // Predicated region
      $region13: #{_lambda_.7} parent=11 // pred_check
        %p164 = pneg %p60
      $region14: #{_lambda_.7} parent=11 // pred_check_branch
        %166 = sbr.rel (%p164) target = $region16
      $region15: #{_lambda_.7} parent=11 // pred_region
        _
      $region16: #{_lambda_.7} parent=11 // pred_fallthru
        _
      // Predicated region
      $region17: #{_lambda_.7} parent=11 // pred_check
        %p167 = pneg %p81
      $region18: #{_lambda_.7} parent=11 // pred_check_branch
        %169 = sbr.rel (%p167) target = $region20
      $region19: #{_lambda_.7} parent=11 // pred_region
        _
      $region20: #{_lambda_.7} parent=11 // pred_fallthru
        _
      // Predicated region
      $region21: #{_lambda_.7} parent=11 // pred_check
        %p170 = pneg %p102
      $region22: #{_lambda_.7} parent=11 // pred_check_branch
        %172 = sbr.rel (%p170) target = $region24
      $region23: #{_lambda_.7} parent=11 // pred_region
        _
      $region24: #{_lambda_.7} parent=11 // pred_fallthru
        _
      // Predicated region
      $region25: #{_lambda_.7} parent=11 // pred_check
        %p173 = pneg %p123
      $region26: #{_lambda_.7} parent=11 // pred_check_branch
        %175 = sbr.rel (%p173) target = $region28
      $region27: #{_lambda_.7} parent=11 // pred_region
        _
      $region28: #{_lambda_.7} parent=11 // pred_fallthru
        _
    $region12: #{_lambda_.7} parent=5 // pred_fallthru
      _
    %p176 = scmp.lt.s32.totalorder %s13, 2
    // Predicated region
    $region29: #{_lambda_.7} parent=5 // pred_check
      %p177 = pneg %p176
    $region30: #{_lambda_.7} parent=5 // pred_check_branch
      %179 = sbr.rel (%p177) target = $region32
    $region31: #{_lambda_.7} parent=5 // pred_region
      // Predicated region
      $region33: #{_lambda_.7} parent=31 // pred_check
        %p180 = pneg %p33
      $region34: #{_lambda_.7} parent=31 // pred_check_branch
        %182 = sbr.rel (%p180) target = $region36
      $region35: #{_lambda_.7} parent=31 // pred_region
        %p183 = scmp.lt.s32.totalorder %s13, 1
        %s184 = scalar_select %p183, %s13, 1
        %s185 = smul.addr %s184, 24
        %s186 = smul.addr %s185, 4
        %s187 = scalar_lea.vmem %s0, %s186
      $region36: #{_lambda_.7} parent=31 // pred_fallthru
        _
    $region32: #{_lambda_.7} parent=5 // pred_fallthru
      _
    %p188 = scmp.le.s32.totalorder 1, %s13
    %p189 = scmp.lt.s32.totalorder %s13, 3
    %p190 = pnand %p188, %p189
    %p191 = pneg %p190
    // Predicated region
    $region37: #{_lambda_.7} parent=5 // pred_check
      _
    $region38: #{_lambda_.7} parent=5 // pred_check_branch
      %193 = sbr.rel (%p190) target = $region40
    $region39: #{_lambda_.7} parent=5 // pred_region
      %s194 = ssub.s32 %s13, 1
      %p195 = scmp.lt.s32.totalorder %s18, 1
      %s196 = scalar_select %p195, %s18, 1
      %s197 = smul.addr %s196, 24
      %s198 = smul.addr %s197, 4
      %s199 = scalar_lea.vmem %s0, %s198
      %p200 = pneg %p39
      %p201 = pneg %p36
      %p202 = pneg %p60
      %p203 = pneg %p57
      %p204 = pneg %p81
      %p205 = pneg %p78
      %p206 = pneg %p102
      %p207 = pneg %p99
      %p208 = pneg %p123
      %p209 = pneg %p120
      %p210 = pneg %p149
      %p211 = pneg %p146
      %p212 = scmp.lt.s32.totalorder %s18, 1
      %s213 = scalar_select %p212, %s18, 1
      %s214 = scalar_lea.vmem %s5, %s213
      %p215 = scmp.lt.s32.totalorder %s18, 1
      %s216 = scalar_select %p215, %s18, 1
      %s217 = smul.addr %s216, 24
      %s218 = smul.addr %s217, 4
      %s219 = scalar_lea.vmem %s0, %s218
      %p220 = scmp.lt.s32.totalorder %s18, 1
      %s221 = scalar_select %p220, %s18, 1
      %s222 = scalar_lea.vmem %s5, %s221
      %v224 = vld [vmem:[%s219] sm:$0xff]
      %v225 = vld [vmem:[%s219 + $0x8] sm:$0xf]
      %v226 = vld [vmem:[%s219 + $0xc] sm:$0xff]
      %v227 = vld [vmem:[%s219 + $0x14] sm:$0xf]
      %v228 = vld [vmem:[%s219 + $0x18] sm:$0xff]
      %v229 = vld [vmem:[%s219 + $0x20] sm:$0xf]
      %v230 = vld [vmem:[%s219 + $0x24] sm:$0xff]
      %v231 = vld [vmem:[%s219 + $0x2c] sm:$0xf]
      %v232 = vld [vmem:[%s219 + $0x30] sm:$0xff]
      %v233 = vld [vmem:[%s219 + $0x38] sm:$0xf]
      %v234 = vld [vmem:[%s219 + $0x3c] sm:$0xff]
      %v235 = vld [vmem:[%s219 + $0x44] sm:$0xf]
      %v236 = vld [vmem:[%s219 + $0x48] sm:$0xff]
      %v237 = vld [vmem:[%s219 + $0x50] sm:$0xf]
      %v238 = vld [vmem:[%s219 + $0x54] sm:$0xff]
      %v239 = vld [vmem:[%s219 + $0x5c] sm:$0xf]
      %v240 = vld [vmem:[%s1] sm:$0xf]
      %v241 = vld [vmem:[%s1 + $0x4] sm:$0xf]
      %v242 = vld [vmem:[%s1 + $0x8] sm:$0xf]
      %v243 = vld [vmem:[%s1 + $0xc] sm:$0xf]
      %v244 = vld [vmem:[%s1 + $0x10] sm:$0xf]
      %v245 = vld [vmem:[%s1 + $0x14] sm:$0xf]
      %v246 = vld [vmem:[%s1 + $0x18] sm:$0xf]
      %v247 = vld [vmem:[%s1 + $0x1c] sm:$0xf]
      %v248 = vld [vmem:[%s1 + $0x20] sm:$0xf]
      %v249 = vld [vmem:[%s1 + $0x24] sm:$0xf]
      %v250 = vld [vmem:[%s1 + $0x28] sm:$0xf]
      %v251 = vld [vmem:[%s1 + $0x2c] sm:$0xf]
      %v252 = vld [vmem:[%s1 + $0x30] sm:$0xf]
      %v253 = vld [vmem:[%s1 + $0x34] sm:$0xf]
      %v254 = vld [vmem:[%s1 + $0x38] sm:$0xf]
      %v255 = vld [vmem:[%s1 + $0x3c] sm:$0xf]
      %v256 = vld [vmem:[%s1 + $0x40] sm:$0xf]
      %v257 = vld [vmem:[%s1 + $0x44] sm:$0xf]
      %v258 = vld [vmem:[%s1 + $0x48] sm:$0xf]
      %v259 = vld [vmem:[%s1 + $0x4c] sm:$0xf]
      %v260 = vld [vmem:[%s1 + $0x50] sm:$0xf]
      %v261 = vld [vmem:[%s1 + $0x54] sm:$0xf]
      %v262 = vld [vmem:[%s1 + $0x58] sm:$0xf]
      %v263 = vld [vmem:[%s1 + $0x5c] sm:$0xf]
      %v264 = vld [vmem:[%s1 + $0x60] sm:$0xf]
      %v265 = vld [vmem:[%s1 + $0x64] sm:$0xf]
      %v266 = vld [vmem:[%s1 + $0x68] sm:$0xf]
      %v267 = vld [vmem:[%s1 + $0x6c] sm:$0xf]
      %v268 = vld [vmem:[%s1 + $0x70] sm:$0xf]
      %v269 = vld [vmem:[%s1 + $0x74] sm:$0xf]
      %v270 = vld [vmem:[%s1 + $0x78] sm:$0xf]
      %v271 = vld [vmem:[%s1 + $0x7c] sm:$0xf]
      %v272 = vld [vmem:[%s1 + $0x80] sm:$0xf]
      %v273 = vld [vmem:[%s1 + $0x84] sm:$0xf]
      %v274 = vld [vmem:[%s1 + $0x88] sm:$0xf]
      %v275 = vld [vmem:[%s1 + $0x8c] sm:$0xf]
      %v276 = vld [vmem:[%s2] sm:$0x1]
      %v278 = vperm.slane %v276, 0
      %v296 = vunpack.c.l.b16 %v224
      %v297 = vunpack.c.h.b16 %v224
      %v298 = vunpack.c.l.b16 %v225
      %v299 = vunpack.c.l.b16 %v226
      %v300 = vunpack.c.h.b16 %v226
      %v301 = vunpack.c.l.b16 %v227
      %v302 = vunpack.c.l.b16 %v228
      %v303 = vunpack.c.h.b16 %v228
      %v304 = vunpack.c.l.b16 %v229
      %v305 = vunpack.c.l.b16 %v230
      %v306 = vunpack.c.h.b16 %v230
      %v307 = vunpack.c.l.b16 %v231
      %v308 = vunpack.c.l.b16 %v232
      %v309 = vunpack.c.h.b16 %v232
      %v310 = vunpack.c.l.b16 %v233
      %v311 = vunpack.c.l.b16 %v234
      %v312 = vunpack.c.h.b16 %v234
      %v313 = vunpack.c.l.b16 %v235
      %v314 = vunpack.c.l.b16 %v236
      %v315 = vunpack.c.h.b16 %v236
      %v316 = vunpack.c.l.b16 %v237
      %v317 = vunpack.c.l.b16 %v238
      %v318 = vunpack.c.h.b16 %v238
      %v319 = vunpack.c.l.b16 %v239
      %v320 = vpack.c.b16 %v299, %v296
      %v321 = vpack.c.b16 %v300, %v297
      %v322 = vpack.c.b16 %v301, %v298
      %v323 = vpack.c.b16 %v305, %v302
      %v324 = vpack.c.b16 %v306, %v303
      %v325 = vpack.c.b16 %v307, %v304
      %v326 = vpack.c.b16 %v311, %v308
      %v327 = vpack.c.b16 %v312, %v309
      %v328 = vpack.c.b16 %v313, %v310
      %v329 = vpack.c.b16 %v317, %v314
      %v330 = vpack.c.b16 %v318, %v315
      %v331 = vpack.c.b16 %v319, %v316
      %v376 = vunpack.c.l.b16 %v240
      %v377 = vunpack.c.l.b16 %v241
      %v378 = vunpack.c.l.b16 %v242
      %v379 = vunpack.c.l.b16 %v243
      %v380 = vunpack.c.l.b16 %v244
      %v381 = vunpack.c.l.b16 %v245
      %v382 = vunpack.c.l.b16 %v246
      %v383 = vunpack.c.l.b16 %v247
      %v384 = vunpack.c.l.b16 %v248
      %v385 = vunpack.c.l.b16 %v249
      %v386 = vunpack.c.l.b16 %v250
      %v387 = vunpack.c.l.b16 %v251
      %v388 = vunpack.c.l.b16 %v252
      %v389 = vunpack.c.l.b16 %v253
      %v390 = vunpack.c.l.b16 %v254
      %v391 = vunpack.c.l.b16 %v255
      %v392 = vunpack.c.l.b16 %v256
      %v393 = vunpack.c.l.b16 %v257
      %v394 = vunpack.c.l.b16 %v258
      %v395 = vunpack.c.l.b16 %v259
      %v396 = vunpack.c.l.b16 %v260
      %v397 = vunpack.c.l.b16 %v261
      %v398 = vunpack.c.l.b16 %v262
      %v399 = vunpack.c.l.b16 %v263
      %v400 = vunpack.c.l.b16 %v264
      %v401 = vunpack.c.l.b16 %v265
      %v402 = vunpack.c.l.b16 %v266
      %v403 = vunpack.c.l.b16 %v267
      %v404 = vunpack.c.l.b16 %v268
      %v405 = vunpack.c.l.b16 %v269
      %v406 = vunpack.c.l.b16 %v270
      %v407 = vunpack.c.l.b16 %v271
      %v408 = vunpack.c.l.b16 %v272
      %v409 = vunpack.c.l.b16 %v273
      %v410 = vunpack.c.l.b16 %v274
      %v411 = vunpack.c.l.b16 %v275
      %v412 = vpack.c.b16 %v377, %v376
      %v413 = vpack.c.b16 %v379, %v378
      %v414 = vpack.c.b16 %v381, %v380
      %v415 = vpack.c.b16 %v383, %v382
      %v416 = vpack.c.b16 %v385, %v384
      %v417 = vpack.c.b16 %v387, %v386
      %v418 = vpack.c.b16 %v389, %v388
      %v419 = vpack.c.b16 %v391, %v390
      %v420 = vpack.c.b16 %v393, %v392
      %v421 = vpack.c.b16 %v395, %v394
      %v422 = vpack.c.b16 %v397, %v396
      %v423 = vpack.c.b16 %v399, %v398
      %v424 = vpack.c.b16 %v401, %v400
      %v425 = vpack.c.b16 %v403, %v402
      %v426 = vpack.c.b16 %v405, %v404
      %v427 = vpack.c.b16 %v407, %v406
      %v428 = vpack.c.b16 %v409, %v408
      %v429 = vpack.c.b16 %v411, %v410
      %vm448 = vcmask 261120
      %v450 = vsel %vm448, %v322, 0
      %v453 = vsel %vm448, %v325, 0
      %v456 = vsel %vm448, %v328, 0
      %v459 = vsel %vm448, %v331, 0
      %461 = vmatpush.bf16.msra.mxu0 %v419
      %462 = vmatpush.bf16.msra.mxu0 %v418
      %463 = vmatpush.bf16.msra.mxu0 %v417
      %464 = vmatpush.bf16.msra.mxu0 %v416
      %465 = vmatpush.bf16.msra.mxu0 %v415
      %466 = vmatpush.bf16.msra.mxu0 %v414
      %467 = vmatpush.bf16.msra.mxu0 %v413
      %468 = vmatpush.bf16.msra.mxu0 %v412
      %469 = vmatmul.bf16.gmra.mxu0 %v320
      %v470 = vpop.f32.mrf.mxu0
      %v471 = vadd.f32 %v278, %v470
      %v472 = vpop.f32.mrf.mxu0
      %v473 = vadd.f32 %v278, %v472
      %474 = vmatmul.bf16.gmra.mxu0 %v323
      %v475 = vpop.f32.mrf.mxu0
      %v476 = vadd.f32 %v278, %v475
      %v477 = vpop.f32.mrf.mxu0
      %v478 = vadd.f32 %v278, %v477
      %479 = vmatmul.bf16.gmra.mxu0 %v326
      %v480 = vpop.f32.mrf.mxu0
      %v481 = vadd.f32 %v278, %v480
      %v482 = vpop.f32.mrf.mxu0
      %v483 = vadd.f32 %v278, %v482
      %484 = vmatmul.bf16.gmra.mxu0 %v329
      %v485 = vpop.f32.mrf.mxu0
      %v486 = vadd.f32 %v278, %v485
      %v487 = vpop.f32.mrf.mxu0
      %v488 = vadd.f32 %v278, %v487
      %489 = vdwg.mxu0
      %490 = vmatpush.bf16.msra.mxu0 %v427
      %491 = vmatpush.bf16.msra.mxu0 %v426
      %492 = vmatpush.bf16.msra.mxu0 %v425
      %493 = vmatpush.bf16.msra.mxu0 %v424
      %494 = vmatpush.bf16.msra.mxu0 %v423
      %495 = vmatpush.bf16.msra.mxu0 %v422
      %496 = vmatpush.bf16.msra.mxu0 %v421
      %497 = vmatpush.bf16.msra.mxu0 %v420
      %498 = vmatmul.bf16.gmra.mxu0 %v321
      %v499 = vpop.f32.mrf.mxu0
      %v500 = vadd.f32 %v471, %v499
      %v501 = vpop.f32.mrf.mxu0
      %v502 = vadd.f32 %v473, %v501
      %503 = vmatmul.bf16.gmra.mxu0 %v324
      %v504 = vpop.f32.mrf.mxu0
      %v505 = vadd.f32 %v476, %v504
      %v506 = vpop.f32.mrf.mxu0
      %v507 = vadd.f32 %v478, %v506
      %508 = vmatmul.bf16.gmra.mxu0 %v327
      %v509 = vpop.f32.mrf.mxu0
      %v510 = vadd.f32 %v481, %v509
      %v511 = vpop.f32.mrf.mxu0
      %v512 = vadd.f32 %v483, %v511
      %513 = vmatmul.bf16.gmra.mxu0 %v330
      %v514 = vpop.f32.mrf.mxu0
      %v515 = vadd.f32 %v486, %v514
      %v516 = vpop.f32.mrf.mxu0
      %v517 = vadd.f32 %v488, %v516
      %518 = vdwg.mxu0
      %519 = vmatpush.bf16.msra.mxu0 0
      %520 = vmatpush.bf16.msra.mxu0 0
      %521 = vmatpush.bf16.msra.mxu0 0
      %522 = vmatpush.bf16.msra.mxu0 0
      %523 = vmatpush.bf16.msra.mxu0 0
      %524 = vmatpush.bf16.msra.mxu0 0
      %525 = vmatpush.bf16.msra.mxu0 %v429
      %526 = vmatpush.bf16.msra.mxu0 %v428
      %527 = vmatmul.bf16.gmra.mxu0 %v450
      %v528 = vpop.f32.mrf.mxu0
      %v529 = vadd.f32 %v500, %v528
      %v530 = vpop.f32.mrf.mxu0
      %v531 = vadd.f32 %v502, %v530
      %532 = vmatmul.bf16.gmra.mxu0 %v453
      %v533 = vpop.f32.mrf.mxu0
      %v534 = vadd.f32 %v505, %v533
      %v535 = vpop.f32.mrf.mxu0
      %v536 = vadd.f32 %v507, %v535
      %537 = vmatmul.bf16.gmra.mxu0 %v456
      %v538 = vpop.f32.mrf.mxu0
      %v539 = vadd.f32 %v510, %v538
      %v540 = vpop.f32.mrf.mxu0
      %v541 = vadd.f32 %v512, %v540
      %542 = vmatmul.bf16.gmra.mxu0 %v459
      %v543 = vpop.f32.mrf.mxu0
      %v544 = vadd.f32 %v515, %v543
      %v545 = vpop.f32.mrf.mxu0
      %v546 = vadd.f32 %v517, %v545
      %547 = vdwg.mxu0
      %vm548 = vcmp.ge.f32.partialorder %v529, 0.0
      %vm549 = vcmp.ge.f32.partialorder %v531, 0.0
      %vm550 = vcmp.ge.f32.partialorder %v534, 0.0
      %vm551 = vcmp.ge.f32.partialorder %v536, 0.0
      %vm552 = vcmp.ge.f32.partialorder %v539, 0.0
      %vm553 = vcmp.ge.f32.partialorder %v541, 0.0
      %vm554 = vcmp.ge.f32.partialorder %v544, 0.0
      %vm555 = vcmp.ge.f32.partialorder %v546, 0.0
      %v556 = vmul.f32 %v529, 0.1
      %v557 = vmul.f32 %v531, 0.1
      %v558 = vmul.f32 %v534, 0.1
      %v559 = vmul.f32 %v536, 0.1
      %v560 = vmul.f32 %v539, 0.1
      %v561 = vmul.f32 %v541, 0.1
      %v562 = vmul.f32 %v544, 0.1
      %v563 = vmul.f32 %v546, 0.1
      %v564 = vsel %vm548, %v529, %v556
      %v565 = vsel %vm549, %v531, %v557
      %v566 = vsel %vm550, %v534, %v558
      %v567 = vsel %vm551, %v536, %v559
      %v568 = vsel %vm552, %v539, %v560
      %v569 = vsel %vm553, %v541, %v561
      %v570 = vsel %vm554, %v544, %v562
      %v571 = vsel %vm555, %v546, %v563
      %v572 = vsel %vm448, %v564, 0.0
      %v573 = vsel %vm448, %v565, 0.0
      %v574 = vadd.f32 %v572, %v573
      %v575 = vsel %vm448, %v566, 0.0
      %v576 = vadd.f32 %v574, %v575
      %v577 = vsel %vm448, %v567, 0.0
      %v578 = vadd.f32 %v576, %v577
      %v579 = vsel %vm448, %v568, 0.0
      %v580 = vadd.f32 %v578, %v579
      %v581 = vsel %vm448, %v569, 0.0
      %v582 = vadd.f32 %v580, %v581
      %v583 = vsel %vm448, %v570, 0.0
      %v584 = vadd.f32 %v582, %v583
      %v585 = vsel %vm448, %v571, 0.0
      %v586 = vadd.f32 %v584, %v585
      %v587 = vrot.slane %v586, 4
      %v588 = vadd.f32 %v586, %v587
      %v589 = vrot.slane %v588, 2
      %v590 = vadd.f32 %v588, %v589
      %v591 = vrot.slane %v590, 1
      %v592 = vadd.f32 %v590, %v591
      %v593 = vrcp.pop 64.0
      %v594 = vmul.f32 64.0, %v593
      %v595 = vsub.f32 1.0, %v594
      %v596 = vmul.f32 %v593, %v595
      %v597 = vadd.f32 %v593, %v596
      %vm598 = vweird.f32 %v593
      %v599 = vsel %vm598, %v593, %v597
      %v600 = vmul.f32 %v592, %v599
      %v601 = vld [vmem:[%s3] sm:$0x1]
      %v602 = vmul.f32 %v600, %v601
      %vm603 = vcmask 253952
      %v604 = vsel %vm603, %v602, 0.0
      %605 = vadd.xlane.f32.xlu0 %v604
      %v606 = vpop.xlane.xlu0 %605
      %v607 = vld [vmem:[#allocation2] sm:$0x1]
      %v608 = vadd.f32 %v606, %v607
      %610 = vset.pattern.permute.xlu0 0
      %611 = vperm.xlu0 %610, %v608
      %v612 = vpop.permute.xlu0 %611
      %614 = vst [vmem:[%s222] sm:$0x1] %v612
      %p615 = scmp.lt.s32.totalorder %s18, 1
      %s616 = scalar_select %p615, %s18, 1
      %s617 = scalar_lea.vmem %s5, %s616
      // Predicated region
      $region41: #{_lambda_.7} parent=39 // pred_check
        %p618 = pneg %p146
      $region42: #{_lambda_.7} parent=39 // pred_check_branch
        %620 = sbr.rel (%p618) target = $region44
      $region43: #{_lambda_.7} parent=39 // pred_region
        _
      $region44: #{_lambda_.7} parent=39 // pred_fallthru
        _
    $region40: #{_lambda_.7} parent=5 // pred_fallthru
      _
    %p621 = scmp.le.s32.totalorder 2, %s13
    // Predicated region
    $region45: #{_lambda_.7} parent=5 // pred_check
      %p622 = pneg %p621
    $region46: #{_lambda_.7} parent=5 // pred_check_branch
      %624 = sbr.rel (%p622) target = $region48
    $region47: #{_lambda_.7} parent=5 // pred_region
      %s625 = ssub.s32 %s13, 2
      // Predicated region
      $region49: #{_lambda_.7} parent=47 // pred_check
        %p626 = pneg %p152
      $region50: #{_lambda_.7} parent=47 // pred_check_branch
        %628 = sbr.rel (%p626) target = $region52
      $region51: #{_lambda_.7} parent=47 // pred_region
        %p629 = scmp.lt.s32.totalorder %s19, 1
        %s630 = scalar_select %p629, %s19, 1
        %s631 = scalar_lea.vmem %s5, %s630
      $region52: #{_lambda_.7} parent=47 // pred_fallthru
        _
    $region48: #{_lambda_.7} parent=5 // pred_fallthru
      _
  $region6: #{_lambda_.7} parent=0 // loop_footer
    %s17 = sadd.s32 1, %s13
  $region7: #{_lambda_.7} parent=0 // loop_footer_branch
    %12 = sbr.rel target = $region3
  $region8: #{_lambda_.7} parent=0 // loop_exit
    _

</llo_original>
